<compile_context>
chip_gen: v7x
topology: tpu7x:2x2x1
jax: 0.10.0
libtpu: 0.0.40
codegen_flags: <defaults>
</compile_context>

<pallas_src>
import jax
import jax.numpy as jnp
from jax import lax
from jax.experimental import pallas as pl
from jax.experimental.pallas import tpu as pltpu


def _make_encoder_kernel(sizes, C):
    """sizes: tuple of 4 static tuples (H_in, W_in, H_out, W_out)."""

    def kernel(x_ref, w_ref, b_ref, o_ref, act1, act2, act3, patch, tmp):
        acts = (x_ref, act1, act2, act3)

        # The padded scratches need a zero 1-pixel border.  They start
        # uninitialised and are per-core under megacore partitioning, so a
        # `program_id == 0` guard is not safe; zeroing them is only ~20 vregs
        # of stores, so just do it every grid step.
        for s in (act1, act2, act3):
            s[...] = jnp.zeros(s.shape, s.dtype)

        for l in range(4):
            h_in, w_in, h_out, w_out = sizes[l]
            m = h_out * w_out
            half = w_out // 2
            src = acts[l]

            # ---- im2col: build the (OH*OW, 9C) patch matrix -------------------
            # Column-paired layout: src[r, j, 0:C] == padded column 2j,
            #                       src[r, j, C:2C] == padded column 2j+1.
            # All tap reads are contiguous (no strided gathers).
            for oh in range(h_out):
                taps = []
                for kh in range(3):
                    r = 2 * oh + kh
                    for kw in range(3):
                        if kw == 0:
                            taps.append(src[r, 0:w_out, 0:C])
                        elif kw == 1:
                            taps.append(src[r, 0:w_out, C:2 * C])
                        else:
                            taps.append(src[r, 1:w_out + 1, 0:C])
                row = jnp.concatenate(taps, axis=-1)          # (w_out, 9C) bf16
                patch[oh * w_out:(oh + 1) * w_out, :] = row.astype(patch.dtype)

            # ---- one MXU matmul for the whole layer + f32 epilogue ------------
            lhs = patch[0:m, :].astype(jnp.bfloat16)
            res = jnp.dot(lhs, w_ref[l], preferred_element_type=jnp.float32)
            res = jnp.maximum(res + b_ref[l], 0.0)            # (m, C) f32

            if l == 3:
                o_ref[...] = res.astype(o_ref.dtype)
            else:
                # Scatter rows into the next layer's padded, column-paired
                # activation.  Output col ow -> padded col ow+1:
                #   ow even -> paired col ow/2,     lane half 1
                #   ow odd  -> paired col (ow+1)/2, lane half 0
                dst = acts[l + 1]
                tmp[0:m, :] = res
                for oh in range(h_out):
                    base = oh * w_out
                    ev = tmp[pl.ds(base, half, stride=2), :].astype(dst.dtype)
                    od = tmp[pl.ds(base + 1, half, stride=2), :].astype(dst.dtype)
                    dst[oh + 1, 0:half, C:2 * C] = ev
                    dst[oh + 1, 1:half + 1, 0:C] = od

    return kernel


@jax.jit
def encoder_forward(x_nchw, w_stack, b_stack):
    """x_nchw: (N, C, H, W) f32; w_stack: (4,3,3,C,C); b_stack: (4,C) -> (N, C, H/16, W/16)."""
    N, C, H, W = x_nchw.shape
    assert H % 16 == 0 and W % 16 == 0, "spatial dims must be multiples of 16"

    # Static per-layer spatial sizes (3x3, stride 2, pad 1 conv; even dims).
    sizes = []
    h, w = H, W
    for _ in range(4):
        ho, wo = h // 2, w // 2
        sizes.append((h, w, ho, wo))
        h, w = ho, wo
    Hf, Wf = sizes[-1][2], sizes[-1][3]

    # NCHW -> padded NHWC -> column-paired bf16: (N, H+2, (W+2)/2, 2C).
    x = jnp.transpose(x_nchw, (0, 2, 3, 1))
    x = jnp.pad(x, ((0, 0), (1, 1), (1, 1), (0, 0)))
    x = x.reshape(N, H + 2, (W + 2) // 2, 2 * C).astype(jnp.bfloat16)

    # (layer, kh, kw, cin, cout) -> (layer, 9*cin, cout); rows ordered (kh, kw, cin)
    # to match the in-kernel tap concatenation order.
    w_mat = w_stack.reshape(4, 9 * C, C).astype(jnp.bfloat16)
    b_mat = b_stack.reshape(4, 1, C).astype(jnp.float32)

    kernel = _make_encoder_kernel(tuple(sizes), C)

    m0 = sizes[0][2] * sizes[0][3]
    scratch_shapes = [
        # padded, column-paired activations for layers 1..3 (bf16)
        pltpu.VMEM((sizes[l][0] + 2, (sizes[l][1] + 2) // 2, 2 * C), jnp.bfloat16)
        for l in range(1, 4)
    ] + [
        pltpu.VMEM((m0, 9 * C), jnp.float32),   # im2col patch matrix (largest layer)
        pltpu.VMEM((m0, C), jnp.float32),       # layer output before the even/odd scatter
    ]

    out = pl.pallas_call(
        kernel,
        out_shape=jax.ShapeDtypeStruct((N, Hf * Wf, C), jnp.float32),
        grid=(N,),
        in_specs=[
            pl.BlockSpec((None, H + 2, (W + 2) // 2, 2 * C), lambda n: (n, 0, 0, 0)),
            pl.BlockSpec((4, 9 * C, C), lambda n: (0, 0, 0)),   # resident weights
            pl.BlockSpec((4, 1, C), lambda n: (0, 0, 0)),       # resident biases
        ],
        out_specs=pl.BlockSpec((None, Hf * Wf, C), lambda n: (n, 0, 0)),
        scratch_shapes=scratch_shapes,
        compiler_params=pltpu.CompilerParams(
            dimension_semantics=("parallel",),
        ),
    )(x, w_mat, b_mat)

    return jnp.transpose(out.reshape(N, Hf, Wf, C), (0, 3, 1, 2))


@jax.jit
def encoder_reference(x_nchw, w_stack, b_stack):
    """Pure-JAX reference (f32) for correctness checking."""
    x = jnp.transpose(x_nchw, (0, 2, 3, 1))
    for l in range(4):
        x = lax.conv_general_dilated(
            x, w_stack[l], window_strides=(2, 2), padding=((1, 1), (1, 1)),
            dimension_numbers=("NHWC", "HWIO", "NHWC"),
            precision=lax.Precision.HIGHEST)
        x = jnp.maximum(x + b_stack[l], 0.0)
    return jnp.transpose(x, (0, 3, 1, 2))


def init_encoder_params(key, out_map=32, n_layers=4):
    ws, bs = [], []
    for i in range(n_layers):
        k_w, k_b = jax.random.split(jax.random.fold_in(key, i))
        fan_in = 9 * out_map
        w = jax.random.normal(k_w, (3, 3, out_map, out_map), jnp.float32)
        w = w * jnp.sqrt(2.0 / fan_in)
        b = jax.random.normal(k_b, (out_map,), jnp.float32) * 0.01
        ws.append(w)
        bs.append(b)
    return jnp.stack(ws), jnp.stack(bs)


if __name__ == "__main__":
    out_map = 32
    N, H, W = 2, 32, 32  # spatial halves 4x: 32 -> 16 -> 8 -> 4 -> 2

    key = jax.random.PRNGKey(0)
    k_x, k_p = jax.random.split(key)
    x = jax.random.normal(k_x, (N, out_map, H, W), jnp.float32)  # NCHW like PyTorch
    w_stack, b_stack = init_encoder_params(k_p, out_map=out_map, n_layers=4)

    y = jax.block_until_ready(encoder_forward(x, w_stack, b_stack))

    assert y.shape == (N, out_map, H // 16, W // 16), y.shape
    assert bool(jnp.all(jnp.isfinite(y)))

    # Numerical check vs the f32 reference (loose tol: kernel matmuls use bf16 inputs).
    y_ref = jax.block_until_ready(encoder_reference(x, w_stack, b_stack))
    max_err = float(jnp.max(jnp.abs(y - y_ref)))
    assert max_err < 1e-1, f"max abs error {max_err}"

    print("KERNEL_OK")
</pallas_src>

<mosaic_0001>
module attributes {stable_mosaic.version = 11 : i64} {
  func.func @kernel(%arg0: i32, %arg1: memref<1x34x17x64xbf16, #tpu.memory_space<vmem>>, %arg2: memref<4x288x32xbf16, #tpu.memory_space<vmem>>, %arg3: memref<4x1x32xf32, #tpu.memory_space<vmem>>, %arg4: memref<1x4x32xf32, #tpu.memory_space<vmem>>, %arg5: memref<18x9x64xbf16, #tpu.memory_space<vmem>>, %arg6: memref<10x5x64xbf16, #tpu.memory_space<vmem>>, %arg7: memref<6x3x64xbf16, #tpu.memory_space<vmem>>, %arg8: memref<256x288xf32, #tpu.memory_space<vmem>>, %arg9: memref<256x32xf32, #tpu.memory_space<vmem>>) attributes {dimension_semantics = [#tpu.dimension_semantics<parallel>], iteration_bounds = array<i64: 2>, scalar_prefetch = 0 : i64, scratch_operands = 5 : i64, tpu.core_type = #tpu.core_type<tc>, window_params = [{transform_indices = @transform_0, window_bounds = array<i64: 1, 34, 17, 64>}, {pipeline_mode = #tpu.pipeline_mode<synchronous>, transform_indices = @transform_1, window_bounds = array<i64: 4, 288, 32>}, {pipeline_mode = #tpu.pipeline_mode<synchronous>, transform_indices = @transform_2, window_bounds = array<i64: 4, 1, 32>}, {transform_indices = @transform_3, window_bounds = array<i64: 1, 4, 32>}]} {
    %cst = arith.constant 0.000000e+00 : bf16
    %0 = vector.broadcast %cst : bf16 to vector<18x9x64xbf16>
    %c0 = arith.constant 0 : index
    %c0_0 = arith.constant 0 : index
    %c0_1 = arith.constant 0 : index
    %1 = vector.load %arg5[%c0, %c0_0, %c0_1] : memref<18x9x64xbf16, #tpu.memory_space<vmem>>, vector<18x9x64xbf16>
    tpu.vector_store %arg5[%c0, %c0_0, %c0_1], %0 {strides = array<i32>} : memref<18x9x64xbf16, #tpu.memory_space<vmem>>, vector<18x9x64xbf16>,
    %cst_2 = arith.constant 0.000000e+00 : bf16
    %2 = vector.broadcast %cst_2 : bf16 to vector<10x5x64xbf16>
    %c0_3 = arith.constant 0 : index
    %c0_4 = arith.constant 0 : index
    %c0_5 = arith.constant 0 : index
    %3 = vector.load %arg6[%c0_3, %c0_4, %c0_5] : memref<10x5x64xbf16, #tpu.memory_space<vmem>>, vector<10x5x64xbf16>
    tpu.vector_store %arg6[%c0_3, %c0_4, %c0_5], %2 {strides = array<i32>} : memref<10x5x64xbf16, #tpu.memory_space<vmem>>, vector<10x5x64xbf16>,
    %cst_6 = arith.constant 0.000000e+00 : bf16
    %4 = vector.broadcast %cst_6 : bf16 to vector<6x3x64xbf16>
    %c0_7 = arith.constant 0 : index
    %c0_8 = arith.constant 0 : index
    %c0_9 = arith.constant 0 : index
    %5 = vector.load %arg7[%c0_7, %c0_8, %c0_9] : memref<6x3x64xbf16, #tpu.memory_space<vmem>>, vector<6x3x64xbf16>
    tpu.vector_store %arg7[%c0_7, %c0_8, %c0_9], %4 {strides = array<i32>} : memref<6x3x64xbf16, #tpu.memory_space<vmem>>, vector<6x3x64xbf16>,
    %c0_10 = arith.constant 0 : index
    %c0_11 = arith.constant 0 : index
    %c0_12 = arith.constant 0 : index
    %c0_13 = arith.constant 0 : index
    %6 = vector.load %arg1[%c0_10, %c0_11, %c0_12, %c0_13] : memref<1x34x17x64xbf16, #tpu.memory_space<vmem>>, vector<1x1x16x32xbf16>
    %7 = vector.shape_cast %6 : vector<1x1x16x32xbf16> to vector<16x32xbf16>
    %c0_14 = arith.constant 0 : index
    %c0_15 = arith.constant 0 : index
    %c0_16 = arith.constant 0 : index
    %c32 = arith.constant 32 : index
    %8 = vector.load %arg1[%c0_14, %c0_15, %c0_16, %c32] : memref<1x34x17x64xbf16, #tpu.memory_space<vmem>>, vector<1x1x16x32xbf16>
    %9 = vector.shape_cast %8 : vector<1x1x16x32xbf16> to vector<16x32xbf16>
    %c0_17 = arith.constant 0 : index
    %c0_18 = arith.constant 0 : index
    %c1 = arith.constant 1 : index
    %c0_19 = arith.constant 0 : index
    %10 = vector.load %arg1[%c0_17, %c0_18, %c1, %c0_19] : memref<1x34x17x64xbf16, #tpu.memory_space<vmem>>, vector<1x1x16x32xbf16>
    %11 = vector.shape_cast %10 : vector<1x1x16x32xbf16> to vector<16x32xbf16>
    %c0_20 = arith.constant 0 : index
    %c1_21 = arith.constant 1 : index
    %c0_22 = arith.constant 0 : index
    %c0_23 = arith.constant 0 : index
    %12 = vector.load %arg1[%c0_20, %c1_21, %c0_22, %c0_23] : memref<1x34x17x64xbf16, #tpu.memory_space<vmem>>, vector<1x1x16x32xbf16>
    %13 = vector.shape_cast %12 : vector<1x1x16x32xbf16> to vector<16x32xbf16>
    %c0_24 = arith.constant 0 : index
    %c1_25 = arith.constant 1 : index
    %c0_26 = arith.constant 0 : index
    %c32_27 = arith.constant 32 : index
    %14 = vector.load %arg1[%c0_24, %c1_25, %c0_26, %c32_27] : memref<1x34x17x64xbf16, #tpu.memory_space<vmem>>, vector<1x1x16x32xbf16>
    %15 = vector.shape_cast %14 : vector<1x1x16x32xbf16> to vector<16x32xbf16>
    %c0_28 = arith.constant 0 : index
    %c1_29 = arith.constant 1 : index
    %c1_30 = arith.constant 1 : index
    %c0_31 = arith.constant 0 : index
    %16 = vector.load %arg1[%c0_28, %c1_29, %c1_30, %c0_31] : memref<1x34x17x64xbf16, #tpu.memory_space<vmem>>, vector<1x1x16x32xbf16>
    %17 = vector.shape_cast %16 : vector<1x1x16x32xbf16> to vector<16x32xbf16>
    %c0_32 = arith.constant 0 : index
    %c2 = arith.constant 2 : index
    %c0_33 = arith.constant 0 : index
    %c0_34 = arith.constant 0 : index
    %18 = vector.load %arg1[%c0_32, %c2, %c0_33, %c0_34] : memref<1x34x17x64xbf16, #tpu.memory_space<vmem>>, vector<1x1x16x32xbf16>
    %19 = vector.shape_cast %18 : vector<1x1x16x32xbf16> to vector<16x32xbf16>
    %c0_35 = arith.constant 0 : index
    %c2_36 = arith.constant 2 : index
    %c0_37 = arith.constant 0 : index
    %c32_38 = arith.constant 32 : index
    %20 = vector.load %arg1[%c0_35, %c2_36, %c0_37, %c32_38] : memref<1x34x17x64xbf16, #tpu.memory_space<vmem>>, vector<1x1x16x32xbf16>
    %21 = vector.shape_cast %20 : vector<1x1x16x32xbf16> to vector<16x32xbf16>
    %c0_39 = arith.constant 0 : index
    %c2_40 = arith.constant 2 : index
    %c1_41 = arith.constant 1 : index
    %c0_42 = arith.constant 0 : index
    %22 = vector.load %arg1[%c0_39, %c2_40, %c1_41, %c0_42] : memref<1x34x17x64xbf16, #tpu.memory_space<vmem>>, vector<1x1x16x32xbf16>
    %23 = vector.shape_cast %22 : vector<1x1x16x32xbf16> to vector<16x32xbf16>
    %24 = tpu.concatenate %7, %9, %11, %13, %15, %17, %19, %21, %23 in 1 : vector<16x32xbf16>, vector<16x32xbf16>, vector<16x32xbf16>, vector<16x32xbf16>, vector<16x32xbf16>, vector<16x32xbf16>, vector<16x32xbf16>, vector<16x32xbf16>, vector<16x32xbf16> -> vector<16x288xbf16>
    %25 = arith.extf %24 : vector<16x288xbf16> to vector<16x288xf32>
    %c0_43 = arith.constant 0 : index
    %c0_44 = arith.constant 0 : index
    %26 = vector.load %arg8[%c0_43, %c0_44] : memref<256x288xf32, #tpu.memory_space<vmem>>, vector<16x288xf32>
    tpu.vector_store %arg8[%c0_43, %c0_44], %25 {strides = array<i32>} : memref<256x288xf32, #tpu.memory_space<vmem>>, vector<16x288xf32>,
    %c0_45 = arith.constant 0 : index
    %c2_46 = arith.constant 2 : index
    %c0_47 = arith.constant 0 : index
    %c0_48 = arith.constant 0 : index
    %27 = vector.load %arg1[%c0_45, %c2_46, %c0_47, %c0_48] : memref<1x34x17x64xbf16, #tpu.memory_space<vmem>>, vector<1x1x16x32xbf16>
    %28 = vector.shape_cast %27 : vector<1x1x16x32xbf16> to vector<16x32xbf16>
    %c0_49 = arith.constant 0 : index
    %c2_50 = arith.constant 2 : index
    %c0_51 = arith.constant 0 : index
    %c32_52 = arith.constant 32 : index
    %29 = vector.load %arg1[%c0_49, %c2_50, %c0_51, %c32_52] : memref<1x34x17x64xbf16, #tpu.memory_space<vmem>>, vector<1x1x16x32xbf16>
    %30 = vector.shape_cast %29 : vector<1x1x16x32xbf16> to vector<16x32xbf16>
    %c0_53 = arith.constant 0 : index
    %c2_54 = arith.constant 2 : index
    %c1_55 = arith.constant 1 : index
    %c0_56 = arith.constant 0 : index
    %31 = vector.load %arg1[%c0_53, %c2_54, %c1_55, %c0_56] : memref<1x34x17x64xbf16, #tpu.memory_space<vmem>>, vector<1x1x16x32xbf16>
    %32 = vector.shape_cast %31 : vector<1x1x16x32xbf16> to vector<16x32xbf16>
    %c0_57 = arith.constant 0 : index
    %c3 = arith.constant 3 : index
    %c0_58 = arith.constant 0 : index
    %c0_59 = arith.constant 0 : index
    %33 = vector.load %arg1[%c0_57, %c3, %c0_58, %c0_59] : memref<1x34x17x64xbf16, #tpu.memory_space<vmem>>, vector<1x1x16x32xbf16>
    %34 = vector.shape_cast %33 : vector<1x1x16x32xbf16> to vector<16x32xbf16>
    %c0_60 = arith.constant 0 : index
    %c3_61 = arith.constant 3 : index
    %c0_62 = arith.constant 0 : index
    %c32_63 = arith.constant 32 : index
    %35 = vector.load %arg1[%c0_60, %c3_61, %c0_62, %c32_63] : memref<1x34x17x64xbf16, #tpu.memory_space<vmem>>, vector<1x1x16x32xbf16>
    %36 = vector.shape_cast %35 : vector<1x1x16x32xbf16> to vector<16x32xbf16>
    %c0_64 = arith.constant 0 : index
    %c3_65 = arith.constant 3 : index
    %c1_66 = arith.constant 1 : index
    %c0_67 = arith.constant 0 : index
    %37 = vector.load %arg1[%c0_64, %c3_65, %c1_66, %c0_67] : memref<1x34x17x64xbf16, #tpu.memory_space<vmem>>, vector<1x1x16x32xbf16>
    %38 = vector.shape_cast %37 : vector<1x1x16x32xbf16> to vector<16x32xbf16>
    %c0_68 = arith.constant 0 : index
    %c4 = arith.constant 4 : index
    %c0_69 = arith.constant 0 : index
    %c0_70 = arith.constant 0 : index
    %39 = vector.load %arg1[%c0_68, %c4, %c0_69, %c0_70] : memref<1x34x17x64xbf16, #tpu.memory_space<vmem>>, vector<1x1x16x32xbf16>
    %40 = vector.shape_cast %39 : vector<1x1x16x32xbf16> to vector<16x32xbf16>
    %c0_71 = arith.constant 0 : index
    %c4_72 = arith.constant 4 : index
    %c0_73 = arith.constant 0 : index
    %c32_74 = arith.constant 32 : index
    %41 = vector.load %arg1[%c0_71, %c4_72, %c0_73, %c32_74] : memref<1x34x17x64xbf16, #tpu.memory_space<vmem>>, vector<1x1x16x32xbf16>
    %42 = vector.shape_cast %41 : vector<1x1x16x32xbf16> to vector<16x32xbf16>
    %c0_75 = arith.constant 0 : index
    %c4_76 = arith.constant 4 : index
    %c1_77 = arith.constant 1 : index
    %c0_78 = arith.constant 0 : index
    %43 = vector.load %arg1[%c0_75, %c4_76, %c1_77, %c0_78] : memref<1x34x17x64xbf16, #tpu.memory_space<vmem>>, vector<1x1x16x32xbf16>
    %44 = vector.shape_cast %43 : vector<1x1x16x32xbf16> to vector<16x32xbf16>
    %45 = tpu.concatenate %28, %30, %32, %34, %36, %38, %40, %42, %44 in 1 : vector<16x32xbf16>, vector<16x32xbf16>, vector<16x32xbf16>, vector<16x32xbf16>, vector<16x32xbf16>, vector<16x32xbf16>, vector<16x32xbf16>, vector<16x32xbf16>, vector<16x32xbf16> -> vector<16x288xbf16>
    %46 = arith.extf %45 : vector<16x288xbf16> to vector<16x288xf32>
    %c16 = arith.constant 16 : index
    %c0_79 = arith.constant 0 : index
    %47 = vector.load %arg8[%c16, %c0_79] : memref<256x288xf32, #tpu.memory_space<vmem>>, vector<16x288xf32>
    tpu.vector_store %arg8[%c16, %c0_79], %46 {strides = array<i32>} : memref<256x288xf32, #tpu.memory_space<vmem>>, vector<16x288xf32>,
    %c0_80 = arith.constant 0 : index
    %c4_81 = arith.constant 4 : index
    %c0_82 = arith.constant 0 : index
    %c0_83 = arith.constant 0 : index
    %48 = vector.load %arg1[%c0_80, %c4_81, %c0_82, %c0_83] : memref<1x34x17x64xbf16, #tpu.memory_space<vmem>>, vector<1x1x16x32xbf16>
    %49 = vector.shape_cast %48 : vector<1x1x16x32xbf16> to vector<16x32xbf16>
    %c0_84 = arith.constant 0 : index
    %c4_85 = arith.constant 4 : index
    %c0_86 = arith.constant 0 : index
    %c32_87 = arith.constant 32 : index
    %50 = vector.load %arg1[%c0_84, %c4_85, %c0_86, %c32_87] : memref<1x34x17x64xbf16, #tpu.memory_space<vmem>>, vector<1x1x16x32xbf16>
    %51 = vector.shape_cast %50 : vector<1x1x16x32xbf16> to vector<16x32xbf16>
    %c0_88 = arith.constant 0 : index
    %c4_89 = arith.constant 4 : index
    %c1_90 = arith.constant 1 : index
    %c0_91 = arith.constant 0 : index
    %52 = vector.load %arg1[%c0_88, %c4_89, %c1_90, %c0_91] : memref<1x34x17x64xbf16, #tpu.memory_space<vmem>>, vector<1x1x16x32xbf16>
    %53 = vector.shape_cast %52 : vector<1x1x16x32xbf16> to vector<16x32xbf16>
    %c0_92 = arith.constant 0 : index
    %c5 = arith.constant 5 : index
    %c0_93 = arith.constant 0 : index
    %c0_94 = arith.constant 0 : index
    %54 = vector.load %arg1[%c0_92, %c5, %c0_93, %c0_94] : memref<1x34x17x64xbf16, #tpu.memory_space<vmem>>, vector<1x1x16x32xbf16>
    %55 = vector.shape_cast %54 : vector<1x1x16x32xbf16> to vector<16x32xbf16>
    %c0_95 = arith.constant 0 : index
    %c5_96 = arith.constant 5 : index
    %c0_97 = arith.constant 0 : index
    %c32_98 = arith.constant 32 : index
    %56 = vector.load %arg1[%c0_95, %c5_96, %c0_97, %c32_98] : memref<1x34x17x64xbf16, #tpu.memory_space<vmem>>, vector<1x1x16x32xbf16>
    %57 = vector.shape_cast %56 : vector<1x1x16x32xbf16> to vector<16x32xbf16>
    %c0_99 = arith.constant 0 : index
    %c5_100 = arith.constant 5 : index
    %c1_101 = arith.constant 1 : index
    %c0_102 = arith.constant 0 : index
    %58 = vector.load %arg1[%c0_99, %c5_100, %c1_101, %c0_102] : memref<1x34x17x64xbf16, #tpu.memory_space<vmem>>, vector<1x1x16x32xbf16>
    %59 = vector.shape_cast %58 : vector<1x1x16x32xbf16> to vector<16x32xbf16>
    %c0_103 = arith.constant 0 : index
    %c6 = arith.constant 6 : index
    %c0_104 = arith.constant 0 : index
    %c0_105 = arith.constant 0 : index
    %60 = vector.load %arg1[%c0_103, %c6, %c0_104, %c0_105] : memref<1x34x17x64xbf16, #tpu.memory_space<vmem>>, vector<1x1x16x32xbf16>
    %61 = vector.shape_cast %60 : vector<1x1x16x32xbf16> to vector<16x32xbf16>
    %c0_106 = arith.constant 0 : index
    %c6_107 = arith.constant 6 : index
    %c0_108 = arith.constant 0 : index
    %c32_109 = arith.constant 32 : index
    %62 = vector.load %arg1[%c0_106, %c6_107, %c0_108, %c32_109] : memref<1x34x17x64xbf16, #tpu.memory_space<vmem>>, vector<1x1x16x32xbf16>
    %63 = vector.shape_cast %62 : vector<1x1x16x32xbf16> to vector<16x32xbf16>
    %c0_110 = arith.constant 0 : index
    %c6_111 = arith.constant 6 : index
    %c1_112 = arith.constant 1 : index
    %c0_113 = arith.constant 0 : index
    %64 = vector.load %arg1[%c0_110, %c6_111, %c1_112, %c0_113] : memref<1x34x17x64xbf16, #tpu.memory_space<vmem>>, vector<1x1x16x32xbf16>
    %65 = vector.shape_cast %64 : vector<1x1x16x32xbf16> to vector<16x32xbf16>
    %66 = tpu.concatenate %49, %51, %53, %55, %57, %59, %61, %63, %65 in 1 : vector<16x32xbf16>, vector<16x32xbf16>, vector<16x32xbf16>, vector<16x32xbf16>, vector<16x32xbf16>, vector<16x32xbf16>, vector<16x32xbf16>, vector<16x32xbf16>, vector<16x32xbf16> -> vector<16x288xbf16>
    %67 = arith.extf %66 : vector<16x288xbf16> to vector<16x288xf32>
    %c32_114 = arith.constant 32 : index
    %c0_115 = arith.constant 0 : index
    %68 = vector.load %arg8[%c32_114, %c0_115] : memref<256x288xf32, #tpu.memory_space<vmem>>, vector<16x288xf32>
    tpu.vector_store %arg8[%c32_114, %c0_115], %67 {strides = array<i32>} : memref<256x288xf32, #tpu.memory_space<vmem>>, vector<16x288xf32>,
    %c0_116 = arith.constant 0 : index
    %c6_117 = arith.constant 6 : index
    %c0_118 = arith.constant 0 : index
    %c0_119 = arith.constant 0 : index
    %69 = vector.load %arg1[%c0_116, %c6_117, %c0_118, %c0_119] : memref<1x34x17x64xbf16, #tpu.memory_space<vmem>>, vector<1x1x16x32xbf16>
    %70 = vector.shape_cast %69 : vector<1x1x16x32xbf16> to vector<16x32xbf16>
    %c0_120 = arith.constant 0 : index
    %c6_121 = arith.constant 6 : index
    %c0_122 = arith.constant 0 : index
    %c32_123 = arith.constant 32 : index
    %71 = vector.load %arg1[%c0_120, %c6_121, %c0_122, %c32_123] : memref<1x34x17x64xbf16, #tpu.memory_space<vmem>>, vector<1x1x16x32xbf16>
    %72 = vector.shape_cast %71 : vector<1x1x16x32xbf16> to vector<16x32xbf16>
    %c0_124 = arith.constant 0 : index
    %c6_125 = arith.constant 6 : index
    %c1_126 = arith.constant 1 : index
    %c0_127 = arith.constant 0 : index
    %73 = vector.load %arg1[%c0_124, %c6_125, %c1_126, %c0_127] : memref<1x34x17x64xbf16, #tpu.memory_space<vmem>>, vector<1x1x16x32xbf16>
    %74 = vector.shape_cast %73 : vector<1x1x16x32xbf16> to vector<16x32xbf16>
    %c0_128 = arith.constant 0 : index
    %c7 = arith.constant 7 : index
    %c0_129 = arith.constant 0 : index
    %c0_130 = arith.constant 0 : index
    %75 = vector.load %arg1[%c0_128, %c7, %c0_129, %c0_130] : memref<1x34x17x64xbf16, #tpu.memory_space<vmem>>, vector<1x1x16x32xbf16>
    %76 = vector.shape_cast %75 : vector<1x1x16x32xbf16> to vector<16x32xbf16>
    %c0_131 = arith.constant 0 : index
    %c7_132 = arith.constant 7 : index
    %c0_133 = arith.constant 0 : index
    %c32_134 = arith.constant 32 : index
    %77 = vector.load %arg1[%c0_131, %c7_132, %c0_133, %c32_134] : memref<1x34x17x64xbf16, #tpu.memory_space<vmem>>, vector<1x1x16x32xbf16>
    %78 = vector.shape_cast %77 : vector<1x1x16x32xbf16> to vector<16x32xbf16>
    %c0_135 = arith.constant 0 : index
    %c7_136 = arith.constant 7 : index
    %c1_137 = arith.constant 1 : index
    %c0_138 = arith.constant 0 : index
    %79 = vector.load %arg1[%c0_135, %c7_136, %c1_137, %c0_138] : memref<1x34x17x64xbf16, #tpu.memory_space<vmem>>, vector<1x1x16x32xbf16>
    %80 = vector.shape_cast %79 : vector<1x1x16x32xbf16> to vector<16x32xbf16>
    %c0_139 = arith.constant 0 : index
    %c8 = arith.constant 8 : index
    %c0_140 = arith.constant 0 : index
    %c0_141 = arith.constant 0 : index
    %81 = vector.load %arg1[%c0_139, %c8, %c0_140, %c0_141] : memref<1x34x17x64xbf16, #tpu.memory_space<vmem>>, vector<1x1x16x32xbf16>
    %82 = vector.shape_cast %81 : vector<1x1x16x32xbf16> to vector<16x32xbf16>
    %c0_142 = arith.constant 0 : index
    %c8_143 = arith.constant 8 : index
    %c0_144 = arith.constant 0 : index
    %c32_145 = arith.constant 32 : index
    %83 = vector.load %arg1[%c0_142, %c8_143, %c0_144, %c32_145] : memref<1x34x17x64xbf16, #tpu.memory_space<vmem>>, vector<1x1x16x32xbf16>
    %84 = vector.shape_cast %83 : vector<1x1x16x32xbf16> to vector<16x32xbf16>
    %c0_146 = arith.constant 0 : index
    %c8_147 = arith.constant 8 : index
    %c1_148 = arith.constant 1 : index
    %c0_149 = arith.constant 0 : index
    %85 = vector.load %arg1[%c0_146, %c8_147, %c1_148, %c0_149] : memref<1x34x17x64xbf16, #tpu.memory_space<vmem>>, vector<1x1x16x32xbf16>
    %86 = vector.shape_cast %85 : vector<1x1x16x32xbf16> to vector<16x32xbf16>
    %87 = tpu.concatenate %70, %72, %74, %76, %78, %80, %82, %84, %86 in 1 : vector<16x32xbf16>, vector<16x32xbf16>, vector<16x32xbf16>, vector<16x32xbf16>, vector<16x32xbf16>, vector<16x32xbf16>, vector<16x32xbf16>, vector<16x32xbf16>, vector<16x32xbf16> -> vector<16x288xbf16>
    %88 = arith.extf %87 : vector<16x288xbf16> to vector<16x288xf32>
    %c48 = arith.constant 48 : index
    %c0_150 = arith.constant 0 : index
    %89 = vector.load %arg8[%c48, %c0_150] : memref<256x288xf32, #tpu.memory_space<vmem>>, vector<16x288xf32>
    tpu.vector_store %arg8[%c48, %c0_150], %88 {strides = array<i32>} : memref<256x288xf32, #tpu.memory_space<vmem>>, vector<16x288xf32>,
    %c0_151 = arith.constant 0 : index
    %c8_152 = arith.constant 8 : index
    %c0_153 = arith.constant 0 : index
    %c0_154 = arith.constant 0 : index
    %90 = vector.load %arg1[%c0_151, %c8_152, %c0_153, %c0_154] : memref<1x34x17x64xbf16, #tpu.memory_space<vmem>>, vector<1x1x16x32xbf16>
    %91 = vector.shape_cast %90 : vector<1x1x16x32xbf16> to vector<16x32xbf16>
    %c0_155 = arith.constant 0 : index
    %c8_156 = arith.constant 8 : index
    %c0_157 = arith.constant 0 : index
    %c32_158 = arith.constant 32 : index
    %92 = vector.load %arg1[%c0_155, %c8_156, %c0_157, %c32_158] : memref<1x34x17x64xbf16, #tpu.memory_space<vmem>>, vector<1x1x16x32xbf16>
    %93 = vector.shape_cast %92 : vector<1x1x16x32xbf16> to vector<16x32xbf16>
    %c0_159 = arith.constant 0 : index
    %c8_160 = arith.constant 8 : index
    %c1_161 = arith.constant 1 : index
    %c0_162 = arith.constant 0 : index
    %94 = vector.load %arg1[%c0_159, %c8_160, %c1_161, %c0_162] : memref<1x34x17x64xbf16, #tpu.memory_space<vmem>>, vector<1x1x16x32xbf16>
    %95 = vector.shape_cast %94 : vector<1x1x16x32xbf16> to vector<16x32xbf16>
    %c0_163 = arith.constant 0 : index
    %c9 = arith.constant 9 : index
    %c0_164 = arith.constant 0 : index
    %c0_165 = arith.constant 0 : index
    %96 = vector.load %arg1[%c0_163, %c9, %c0_164, %c0_165] : memref<1x34x17x64xbf16, #tpu.memory_space<vmem>>, vector<1x1x16x32xbf16>
    %97 = vector.shape_cast %96 : vector<1x1x16x32xbf16> to vector<16x32xbf16>
    %c0_166 = arith.constant 0 : index
    %c9_167 = arith.constant 9 : index
    %c0_168 = arith.constant 0 : index
    %c32_169 = arith.constant 32 : index
    %98 = vector.load %arg1[%c0_166, %c9_167, %c0_168, %c32_169] : memref<1x34x17x64xbf16, #tpu.memory_space<vmem>>, vector<1x1x16x32xbf16>
    %99 = vector.shape_cast %98 : vector<1x1x16x32xbf16> to vector<16x32xbf16>
    %c0_170 = arith.constant 0 : index
    %c9_171 = arith.constant 9 : index
    %c1_172 = arith.constant 1 : index
    %c0_173 = arith.constant 0 : index
    %100 = vector.load %arg1[%c0_170, %c9_171, %c1_172, %c0_173] : memref<1x34x17x64xbf16, #tpu.memory_space<vmem>>, vector<1x1x16x32xbf16>
    %101 = vector.shape_cast %100 : vector<1x1x16x32xbf16> to vector<16x32xbf16>
    %c0_174 = arith.constant 0 : index
    %c10 = arith.constant 10 : index
    %c0_175 = arith.constant 0 : index
    %c0_176 = arith.constant 0 : index
    %102 = vector.load %arg1[%c0_174, %c10, %c0_175, %c0_176] : memref<1x34x17x64xbf16, #tpu.memory_space<vmem>>, vector<1x1x16x32xbf16>
    %103 = vector.shape_cast %102 : vector<1x1x16x32xbf16> to vector<16x32xbf16>
    %c0_177 = arith.constant 0 : index
    %c10_178 = arith.constant 10 : index
    %c0_179 = arith.constant 0 : index
    %c32_180 = arith.constant 32 : index
    %104 = vector.load %arg1[%c0_177, %c10_178, %c0_179, %c32_180] : memref<1x34x17x64xbf16, #tpu.memory_space<vmem>>, vector<1x1x16x32xbf16>
    %105 = vector.shape_cast %104 : vector<1x1x16x32xbf16> to vector<16x32xbf16>
    %c0_181 = arith.constant 0 : index
    %c10_182 = arith.constant 10 : index
    %c1_183 = arith.constant 1 : index
    %c0_184 = arith.constant 0 : index
    %106 = vector.load %arg1[%c0_181, %c10_182, %c1_183, %c0_184] : memref<1x34x17x64xbf16, #tpu.memory_space<vmem>>, vector<1x1x16x32xbf16>
    %107 = vector.shape_cast %106 : vector<1x1x16x32xbf16> to vector<16x32xbf16>
    %108 = tpu.concatenate %91, %93, %95, %97, %99, %101, %103, %105, %107 in 1 : vector<16x32xbf16>, vector<16x32xbf16>, vector<16x32xbf16>, vector<16x32xbf16>, vector<16x32xbf16>, vector<16x32xbf16>, vector<16x32xbf16>, vector<16x32xbf16>, vector<16x32xbf16> -> vector<16x288xbf16>
    %109 = arith.extf %108 : vector<16x288xbf16> to vector<16x288xf32>
    %c64 = arith.constant 64 : index
    %c0_185 = arith.constant 0 : index
    %110 = vector.load %arg8[%c64, %c0_185] : memref<256x288xf32, #tpu.memory_space<vmem>>, vector<16x288xf32>
    tpu.vector_store %arg8[%c64, %c0_185], %109 {strides = array<i32>} : memref<256x288xf32, #tpu.memory_space<vmem>>, vector<16x288xf32>,
    %c0_186 = arith.constant 0 : index
    %c10_187 = arith.constant 10 : index
    %c0_188 = arith.constant 0 : index
    %c0_189 = arith.constant 0 : index
    %111 = vector.load %arg1[%c0_186, %c10_187, %c0_188, %c0_189] : memref<1x34x17x64xbf16, #tpu.memory_space<vmem>>, vector<1x1x16x32xbf16>
    %112 = vector.shape_cast %111 : vector<1x1x16x32xbf16> to vector<16x32xbf16>
    %c0_190 = arith.constant 0 : index
    %c10_191 = arith.constant 10 : index
    %c0_192 = arith.constant 0 : index
    %c32_193 = arith.constant 32 : index
    %113 = vector.load %arg1[%c0_190, %c10_191, %c0_192, %c32_193] : memref<1x34x17x64xbf16, #tpu.memory_space<vmem>>, vector<1x1x16x32xbf16>
    %114 = vector.shape_cast %113 : vector<1x1x16x32xbf16> to vector<16x32xbf16>
    %c0_194 = arith.constant 0 : index
    %c10_195 = arith.constant 10 : index
    %c1_196 = arith.constant 1 : index
    %c0_197 = arith.constant 0 : index
    %115 = vector.load %arg1[%c0_194, %c10_195, %c1_196, %c0_197] : memref<1x34x17x64xbf16, #tpu.memory_space<vmem>>, vector<1x1x16x32xbf16>
    %116 = vector.shape_cast %115 : vector<1x1x16x32xbf16> to vector<16x32xbf16>
    %c0_198 = arith.constant 0 : index
    %c11 = arith.constant 11 : index
    %c0_199 = arith.constant 0 : index
    %c0_200 = arith.constant 0 : index
    %117 = vector.load %arg1[%c0_198, %c11, %c0_199, %c0_200] : memref<1x34x17x64xbf16, #tpu.memory_space<vmem>>, vector<1x1x16x32xbf16>
    %118 = vector.shape_cast %117 : vector<1x1x16x32xbf16> to vector<16x32xbf16>
    %c0_201 = arith.constant 0 : index
    %c11_202 = arith.constant 11 : index
    %c0_203 = arith.constant 0 : index
    %c32_204 = arith.constant 32 : index
    %119 = vector.load %arg1[%c0_201, %c11_202, %c0_203, %c32_204] : memref<1x34x17x64xbf16, #tpu.memory_space<vmem>>, vector<1x1x16x32xbf16>
    %120 = vector.shape_cast %119 : vector<1x1x16x32xbf16> to vector<16x32xbf16>
    %c0_205 = arith.constant 0 : index
    %c11_206 = arith.constant 11 : index
    %c1_207 = arith.constant 1 : index
    %c0_208 = arith.constant 0 : index
    %121 = vector.load %arg1[%c0_205, %c11_206, %c1_207, %c0_208] : memref<1x34x17x64xbf16, #tpu.memory_space<vmem>>, vector<1x1x16x32xbf16>
    %122 = vector.shape_cast %121 : vector<1x1x16x32xbf16> to vector<16x32xbf16>
    %c0_209 = arith.constant 0 : index
    %c12 = arith.constant 12 : index
    %c0_210 = arith.constant 0 : index
    %c0_211 = arith.constant 0 : index
    %123 = vector.load %arg1[%c0_209, %c12, %c0_210, %c0_211] : memref<1x34x17x64xbf16, #tpu.memory_space<vmem>>, vector<1x1x16x32xbf16>
    %124 = vector.shape_cast %123 : vector<1x1x16x32xbf16> to vector<16x32xbf16>
    %c0_212 = arith.constant 0 : index
    %c12_213 = arith.constant 12 : index
    %c0_214 = arith.constant 0 : index
    %c32_215 = arith.constant 32 : index
    %125 = vector.load %arg1[%c0_212, %c12_213, %c0_214, %c32_215] : memref<1x34x17x64xbf16, #tpu.memory_space<vmem>>, vector<1x1x16x32xbf16>
    %126 = vector.shape_cast %125 : vector<1x1x16x32xbf16> to vector<16x32xbf16>
    %c0_216 = arith.constant 0 : index
    %c12_217 = arith.constant 12 : index
    %c1_218 = arith.constant 1 : index
    %c0_219 = arith.constant 0 : index
    %127 = vector.load %arg1[%c0_216, %c12_217, %c1_218, %c0_219] : memref<1x34x17x64xbf16, #tpu.memory_space<vmem>>, vector<1x1x16x32xbf16>
    %128 = vector.shape_cast %127 : vector<1x1x16x32xbf16> to vector<16x32xbf16>
    %129 = tpu.concatenate %112, %114, %116, %118, %120, %122, %124, %126, %128 in 1 : vector<16x32xbf16>, vector<16x32xbf16>, vector<16x32xbf16>, vector<16x32xbf16>, vector<16x32xbf16>, vector<16x32xbf16>, vector<16x32xbf16>, vector<16x32xbf16>, vector<16x32xbf16> -> vector<16x288xbf16>
    %130 = arith.extf %129 : vector<16x288xbf16> to vector<16x288xf32>
    %c80 = arith.constant 80 : index
    %c0_220 = arith.constant 0 : index
    %131 = vector.load %arg8[%c80, %c0_220] : memref<256x288xf32, #tpu.memory_space<vmem>>, vector<16x288xf32>
    tpu.vector_store %arg8[%c80, %c0_220], %130 {strides = array<i32>} : memref<256x288xf32, #tpu.memory_space<vmem>>, vector<16x288xf32>,
    %c0_221 = arith.constant 0 : index
    %c12_222 = arith.constant 12 : index
    %c0_223 = arith.constant 0 : index
    %c0_224 = arith.constant 0 : index
    %132 = vector.load %arg1[%c0_221, %c12_222, %c0_223, %c0_224] : memref<1x34x17x64xbf16, #tpu.memory_space<vmem>>, vector<1x1x16x32xbf16>
    %133 = vector.shape_cast %132 : vector<1x1x16x32xbf16> to vector<16x32xbf16>
    %c0_225 = arith.constant 0 : index
    %c12_226 = arith.constant 12 : index
    %c0_227 = arith.constant 0 : index
    %c32_228 = arith.constant 32 : index
    %134 = vector.load %arg1[%c0_225, %c12_226, %c0_227, %c32_228] : memref<1x34x17x64xbf16, #tpu.memory_space<vmem>>, vector<1x1x16x32xbf16>
    %135 = vector.shape_cast %134 : vector<1x1x16x32xbf16> to vector<16x32xbf16>
    %c0_229 = arith.constant 0 : index
    %c12_230 = arith.constant 12 : index
    %c1_231 = arith.constant 1 : index
    %c0_232 = arith.constant 0 : index
    %136 = vector.load %arg1[%c0_229, %c12_230, %c1_231, %c0_232] : memref<1x34x17x64xbf16, #tpu.memory_space<vmem>>, vector<1x1x16x32xbf16>
    %137 = vector.shape_cast %136 : vector<1x1x16x32xbf16> to vector<16x32xbf16>
    %c0_233 = arith.constant 0 : index
    %c13 = arith.constant 13 : index
    %c0_234 = arith.constant 0 : index
    %c0_235 = arith.constant 0 : index
    %138 = vector.load %arg1[%c0_233, %c13, %c0_234, %c0_235] : memref<1x34x17x64xbf16, #tpu.memory_space<vmem>>, vector<1x1x16x32xbf16>
    %139 = vector.shape_cast %138 : vector<1x1x16x32xbf16> to vector<16x32xbf16>
    %c0_236 = arith.constant 0 : index
    %c13_237 = arith.constant 13 : index
    %c0_238 = arith.constant 0 : index
    %c32_239 = arith.constant 32 : index
    %140 = vector.load %arg1[%c0_236, %c13_237, %c0_238, %c32_239] : memref<1x34x17x64xbf16, #tpu.memory_space<vmem>>, vector<1x1x16x32xbf16>
    %141 = vector.shape_cast %140 : vector<1x1x16x32xbf16> to vector<16x32xbf16>
    %c0_240 = arith.constant 0 : index
    %c13_241 = arith.constant 13 : index
    %c1_242 = arith.constant 1 : index
    %c0_243 = arith.constant 0 : index
    %142 = vector.load %arg1[%c0_240, %c13_241, %c1_242, %c0_243] : memref<1x34x17x64xbf16, #tpu.memory_space<vmem>>, vector<1x1x16x32xbf16>
    %143 = vector.shape_cast %142 : vector<1x1x16x32xbf16> to vector<16x32xbf16>
    %c0_244 = arith.constant 0 : index
    %c14 = arith.constant 14 : index
    %c0_245 = arith.constant 0 : index
    %c0_246 = arith.constant 0 : index
    %144 = vector.load %arg1[%c0_244, %c14, %c0_245, %c0_246] : memref<1x34x17x64xbf16, #tpu.memory_space<vmem>>, vector<1x1x16x32xbf16>
    %145 = vector.shape_cast %144 : vector<1x1x16x32xbf16> to vector<16x32xbf16>
    %c0_247 = arith.constant 0 : index
    %c14_248 = arith.constant 14 : index
    %c0_249 = arith.constant 0 : index
    %c32_250 = arith.constant 32 : index
    %146 = vector.load %arg1[%c0_247, %c14_248, %c0_249, %c32_250] : memref<1x34x17x64xbf16, #tpu.memory_space<vmem>>, vector<1x1x16x32xbf16>
    %147 = vector.shape_cast %146 : vector<1x1x16x32xbf16> to vector<16x32xbf16>
    %c0_251 = arith.constant 0 : index
    %c14_252 = arith.constant 14 : index
    %c1_253 = arith.constant 1 : index
    %c0_254 = arith.constant 0 : index
    %148 = vector.load %arg1[%c0_251, %c14_252, %c1_253, %c0_254] : memref<1x34x17x64xbf16, #tpu.memory_space<vmem>>, vector<1x1x16x32xbf16>
    %149 = vector.shape_cast %148 : vector<1x1x16x32xbf16> to vector<16x32xbf16>
    %150 = tpu.concatenate %133, %135, %137, %139, %141, %143, %145, %147, %149 in 1 : vector<16x32xbf16>, vector<16x32xbf16>, vector<16x32xbf16>, vector<16x32xbf16>, vector<16x32xbf16>, vector<16x32xbf16>, vector<16x32xbf16>, vector<16x32xbf16>, vector<16x32xbf16> -> vector<16x288xbf16>
    %151 = arith.extf %150 : vector<16x288xbf16> to vector<16x288xf32>
    %c96 = arith.constant 96 : index
    %c0_255 = arith.constant 0 : index
    %152 = vector.load %arg8[%c96, %c0_255] : memref<256x288xf32, #tpu.memory_space<vmem>>, vector<16x288xf32>
    tpu.vector_store %arg8[%c96, %c0_255], %151 {strides = array<i32>} : memref<256x288xf32, #tpu.memory_space<vmem>>, vector<16x288xf32>,
    %c0_256 = arith.constant 0 : index
    %c14_257 = arith.constant 14 : index
    %c0_258 = arith.constant 0 : index
    %c0_259 = arith.constant 0 : index
    %153 = vector.load %arg1[%c0_256, %c14_257, %c0_258, %c0_259] : memref<1x34x17x64xbf16, #tpu.memory_space<vmem>>, vector<1x1x16x32xbf16>
    %154 = vector.shape_cast %153 : vector<1x1x16x32xbf16> to vector<16x32xbf16>
    %c0_260 = arith.constant 0 : index
    %c14_261 = arith.constant 14 : index
    %c0_262 = arith.constant 0 : index
    %c32_263 = arith.constant 32 : index
    %155 = vector.load %arg1[%c0_260, %c14_261, %c0_262, %c32_263] : memref<1x34x17x64xbf16, #tpu.memory_space<vmem>>, vector<1x1x16x32xbf16>
    %156 = vector.shape_cast %155 : vector<1x1x16x32xbf16> to vector<16x32xbf16>
    %c0_264 = arith.constant 0 : index
    %c14_265 = arith.constant 14 : index
    %c1_266 = arith.constant 1 : index
    %c0_267 = arith.constant 0 : index
    %157 = vector.load %arg1[%c0_264, %c14_265, %c1_266, %c0_267] : memref<1x34x17x64xbf16, #tpu.memory_space<vmem>>, vector<1x1x16x32xbf16>
    %158 = vector.shape_cast %157 : vector<1x1x16x32xbf16> to vector<16x32xbf16>
    %c0_268 = arith.constant 0 : index
    %c15 = arith.constant 15 : index
    %c0_269 = arith.constant 0 : index
    %c0_270 = arith.constant 0 : index
    %159 = vector.load %arg1[%c0_268, %c15, %c0_269, %c0_270] : memref<1x34x17x64xbf16, #tpu.memory_space<vmem>>, vector<1x1x16x32xbf16>
    %160 = vector.shape_cast %159 : vector<1x1x16x32xbf16> to vector<16x32xbf16>
    %c0_271 = arith.constant 0 : index
    %c15_272 = arith.constant 15 : index
    %c0_273 = arith.constant 0 : index
    %c32_274 = arith.constant 32 : index
    %161 = vector.load %arg1[%c0_271, %c15_272, %c0_273, %c32_274] : memref<1x34x17x64xbf16, #tpu.memory_space<vmem>>, vector<1x1x16x32xbf16>
    %162 = vector.shape_cast %161 : vector<1x1x16x32xbf16> to vector<16x32xbf16>
    %c0_275 = arith.constant 0 : index
    %c15_276 = arith.constant 15 : index
    %c1_277 = arith.constant 1 : index
    %c0_278 = arith.constant 0 : index
    %163 = vector.load %arg1[%c0_275, %c15_276, %c1_277, %c0_278] : memref<1x34x17x64xbf16, #tpu.memory_space<vmem>>, vector<1x1x16x32xbf16>
    %164 = vector.shape_cast %163 : vector<1x1x16x32xbf16> to vector<16x32xbf16>
    %c0_279 = arith.constant 0 : index
    %c16_280 = arith.constant 16 : index
    %c0_281 = arith.constant 0 : index
    %c0_282 = arith.constant 0 : index
    %165 = vector.load %arg1[%c0_279, %c16_280, %c0_281, %c0_282] : memref<1x34x17x64xbf16, #tpu.memory_space<vmem>>, vector<1x1x16x32xbf16>
    %166 = vector.shape_cast %165 : vector<1x1x16x32xbf16> to vector<16x32xbf16>
    %c0_283 = arith.constant 0 : index
    %c16_284 = arith.constant 16 : index
    %c0_285 = arith.constant 0 : index
    %c32_286 = arith.constant 32 : index
    %167 = vector.load %arg1[%c0_283, %c16_284, %c0_285, %c32_286] : memref<1x34x17x64xbf16, #tpu.memory_space<vmem>>, vector<1x1x16x32xbf16>
    %168 = vector.shape_cast %167 : vector<1x1x16x32xbf16> to vector<16x32xbf16>
    %c0_287 = arith.constant 0 : index
    %c16_288 = arith.constant 16 : index
    %c1_289 = arith.constant 1 : index
    %c0_290 = arith.constant 0 : index
    %169 = vector.load %arg1[%c0_287, %c16_288, %c1_289, %c0_290] : memref<1x34x17x64xbf16, #tpu.memory_space<vmem>>, vector<1x1x16x32xbf16>
    %170 = vector.shape_cast %169 : vector<1x1x16x32xbf16> to vector<16x32xbf16>
    %171 = tpu.concatenate %154, %156, %158, %160, %162, %164, %166, %168, %170 in 1 : vector<16x32xbf16>, vector<16x32xbf16>, vector<16x32xbf16>, vector<16x32xbf16>, vector<16x32xbf16>, vector<16x32xbf16>, vector<16x32xbf16>, vector<16x32xbf16>, vector<16x32xbf16> -> vector<16x288xbf16>
    %172 = arith.extf %171 : vector<16x288xbf16> to vector<16x288xf32>
    %c112 = arith.constant 112 : index
    %c0_291 = arith.constant 0 : index
    %173 = vector.load %arg8[%c112, %c0_291] : memref<256x288xf32, #tpu.memory_space<vmem>>, vector<16x288xf32>
    tpu.vector_store %arg8[%c112, %c0_291], %172 {strides = array<i32>} : memref<256x288xf32, #tpu.memory_space<vmem>>, vector<16x288xf32>,
    %c0_292 = arith.constant 0 : index
    %c16_293 = arith.constant 16 : index
    %c0_294 = arith.constant 0 : index
    %c0_295 = arith.constant 0 : index
    %174 = vector.load %arg1[%c0_292, %c16_293, %c0_294, %c0_295] : memref<1x34x17x64xbf16, #tpu.memory_space<vmem>>, vector<1x1x16x32xbf16>
    %175 = vector.shape_cast %174 : vector<1x1x16x32xbf16> to vector<16x32xbf16>
    %c0_296 = arith.constant 0 : index
    %c16_297 = arith.constant 16 : index
    %c0_298 = arith.constant 0 : index
    %c32_299 = arith.constant 32 : index
    %176 = vector.load %arg1[%c0_296, %c16_297, %c0_298, %c32_299] : memref<1x34x17x64xbf16, #tpu.memory_space<vmem>>, vector<1x1x16x32xbf16>
    %177 = vector.shape_cast %176 : vector<1x1x16x32xbf16> to vector<16x32xbf16>
    %c0_300 = arith.constant 0 : index
    %c16_301 = arith.constant 16 : index
    %c1_302 = arith.constant 1 : index
    %c0_303 = arith.constant 0 : index
    %178 = vector.load %arg1[%c0_300, %c16_301, %c1_302, %c0_303] : memref<1x34x17x64xbf16, #tpu.memory_space<vmem>>, vector<1x1x16x32xbf16>
    %179 = vector.shape_cast %178 : vector<1x1x16x32xbf16> to vector<16x32xbf16>
    %c0_304 = arith.constant 0 : index
    %c17 = arith.constant 17 : index
    %c0_305 = arith.constant 0 : index
    %c0_306 = arith.constant 0 : index
    %180 = vector.load %arg1[%c0_304, %c17, %c0_305, %c0_306] : memref<1x34x17x64xbf16, #tpu.memory_space<vmem>>, vector<1x1x16x32xbf16>
    %181 = vector.shape_cast %180 : vector<1x1x16x32xbf16> to vector<16x32xbf16>
    %c0_307 = arith.constant 0 : index
    %c17_308 = arith.constant 17 : index
    %c0_309 = arith.constant 0 : index
    %c32_310 = arith.constant 32 : index
    %182 = vector.load %arg1[%c0_307, %c17_308, %c0_309, %c32_310] : memref<1x34x17x64xbf16, #tpu.memory_space<vmem>>, vector<1x1x16x32xbf16>
    %183 = vector.shape_cast %182 : vector<1x1x16x32xbf16> to vector<16x32xbf16>
    %c0_311 = arith.constant 0 : index
    %c17_312 = arith.constant 17 : index
    %c1_313 = arith.constant 1 : index
    %c0_314 = arith.constant 0 : index
    %184 = vector.load %arg1[%c0_311, %c17_312, %c1_313, %c0_314] : memref<1x34x17x64xbf16, #tpu.memory_space<vmem>>, vector<1x1x16x32xbf16>
    %185 = vector.shape_cast %184 : vector<1x1x16x32xbf16> to vector<16x32xbf16>
    %c0_315 = arith.constant 0 : index
    %c18 = arith.constant 18 : index
    %c0_316 = arith.constant 0 : index
    %c0_317 = arith.constant 0 : index
    %186 = vector.load %arg1[%c0_315, %c18, %c0_316, %c0_317] : memref<1x34x17x64xbf16, #tpu.memory_space<vmem>>, vector<1x1x16x32xbf16>
    %187 = vector.shape_cast %186 : vector<1x1x16x32xbf16> to vector<16x32xbf16>
    %c0_318 = arith.constant 0 : index
    %c18_319 = arith.constant 18 : index
    %c0_320 = arith.constant 0 : index
    %c32_321 = arith.constant 32 : index
    %188 = vector.load %arg1[%c0_318, %c18_319, %c0_320, %c32_321] : memref<1x34x17x64xbf16, #tpu.memory_space<vmem>>, vector<1x1x16x32xbf16>
    %189 = vector.shape_cast %188 : vector<1x1x16x32xbf16> to vector<16x32xbf16>
    %c0_322 = arith.constant 0 : index
    %c18_323 = arith.constant 18 : index
    %c1_324 = arith.constant 1 : index
    %c0_325 = arith.constant 0 : index
    %190 = vector.load %arg1[%c0_322, %c18_323, %c1_324, %c0_325] : memref<1x34x17x64xbf16, #tpu.memory_space<vmem>>, vector<1x1x16x32xbf16>
    %191 = vector.shape_cast %190 : vector<1x1x16x32xbf16> to vector<16x32xbf16>
    %192 = tpu.concatenate %175, %177, %179, %181, %183, %185, %187, %189, %191 in 1 : vector<16x32xbf16>, vector<16x32xbf16>, vector<16x32xbf16>, vector<16x32xbf16>, vector<16x32xbf16>, vector<16x32xbf16>, vector<16x32xbf16>, vector<16x32xbf16>, vector<16x32xbf16> -> vector<16x288xbf16>
    %193 = arith.extf %192 : vector<16x288xbf16> to vector<16x288xf32>
    %c128 = arith.constant 128 : index
    %c0_326 = arith.constant 0 : index
    %194 = vector.load %arg8[%c128, %c0_326] : memref<256x288xf32, #tpu.memory_space<vmem>>, vector<16x288xf32>
    tpu.vector_store %arg8[%c128, %c0_326], %193 {strides = array<i32>} : memref<256x288xf32, #tpu.memory_space<vmem>>, vector<16x288xf32>,
    %c0_327 = arith.constant 0 : index
    %c18_328 = arith.constant 18 : index
    %c0_329 = arith.constant 0 : index
    %c0_330 = arith.constant 0 : index
    %195 = vector.load %arg1[%c0_327, %c18_328, %c0_329, %c0_330] : memref<1x34x17x64xbf16, #tpu.memory_space<vmem>>, vector<1x1x16x32xbf16>
    %196 = vector.shape_cast %195 : vector<1x1x16x32xbf16> to vector<16x32xbf16>
    %c0_331 = arith.constant 0 : index
    %c18_332 = arith.constant 18 : index
    %c0_333 = arith.constant 0 : index
    %c32_334 = arith.constant 32 : index
    %197 = vector.load %arg1[%c0_331, %c18_332, %c0_333, %c32_334] : memref<1x34x17x64xbf16, #tpu.memory_space<vmem>>, vector<1x1x16x32xbf16>
    %198 = vector.shape_cast %197 : vector<1x1x16x32xbf16> to vector<16x32xbf16>
    %c0_335 = arith.constant 0 : index
    %c18_336 = arith.constant 18 : index
    %c1_337 = arith.constant 1 : index
    %c0_338 = arith.constant 0 : index
    %199 = vector.load %arg1[%c0_335, %c18_336, %c1_337, %c0_338] : memref<1x34x17x64xbf16, #tpu.memory_space<vmem>>, vector<1x1x16x32xbf16>
    %200 = vector.shape_cast %199 : vector<1x1x16x32xbf16> to vector<16x32xbf16>
    %c0_339 = arith.constant 0 : index
    %c19 = arith.constant 19 : index
    %c0_340 = arith.constant 0 : index
    %c0_341 = arith.constant 0 : index
    %201 = vector.load %arg1[%c0_339, %c19, %c0_340, %c0_341] : memref<1x34x17x64xbf16, #tpu.memory_space<vmem>>, vector<1x1x16x32xbf16>
    %202 = vector.shape_cast %201 : vector<1x1x16x32xbf16> to vector<16x32xbf16>
    %c0_342 = arith.constant 0 : index
    %c19_343 = arith.constant 19 : index
    %c0_344 = arith.constant 0 : index
    %c32_345 = arith.constant 32 : index
    %203 = vector.load %arg1[%c0_342, %c19_343, %c0_344, %c32_345] : memref<1x34x17x64xbf16, #tpu.memory_space<vmem>>, vector<1x1x16x32xbf16>
    %204 = vector.shape_cast %203 : vector<1x1x16x32xbf16> to vector<16x32xbf16>
    %c0_346 = arith.constant 0 : index
    %c19_347 = arith.constant 19 : index
    %c1_348 = arith.constant 1 : index
    %c0_349 = arith.constant 0 : index
    %205 = vector.load %arg1[%c0_346, %c19_347, %c1_348, %c0_349] : memref<1x34x17x64xbf16, #tpu.memory_space<vmem>>, vector<1x1x16x32xbf16>
    %206 = vector.shape_cast %205 : vector<1x1x16x32xbf16> to vector<16x32xbf16>
    %c0_350 = arith.constant 0 : index
    %c20 = arith.constant 20 : index
    %c0_351 = arith.constant 0 : index
    %c0_352 = arith.constant 0 : index
    %207 = vector.load %arg1[%c0_350, %c20, %c0_351, %c0_352] : memref<1x34x17x64xbf16, #tpu.memory_space<vmem>>, vector<1x1x16x32xbf16>
    %208 = vector.shape_cast %207 : vector<1x1x16x32xbf16> to vector<16x32xbf16>
    %c0_353 = arith.constant 0 : index
    %c20_354 = arith.constant 20 : index
    %c0_355 = arith.constant 0 : index
    %c32_356 = arith.constant 32 : index
    %209 = vector.load %arg1[%c0_353, %c20_354, %c0_355, %c32_356] : memref<1x34x17x64xbf16, #tpu.memory_space<vmem>>, vector<1x1x16x32xbf16>
    %210 = vector.shape_cast %209 : vector<1x1x16x32xbf16> to vector<16x32xbf16>
    %c0_357 = arith.constant 0 : index
    %c20_358 = arith.constant 20 : index
    %c1_359 = arith.constant 1 : index
    %c0_360 = arith.constant 0 : index
    %211 = vector.load %arg1[%c0_357, %c20_358, %c1_359, %c0_360] : memref<1x34x17x64xbf16, #tpu.memory_space<vmem>>, vector<1x1x16x32xbf16>
    %212 = vector.shape_cast %211 : vector<1x1x16x32xbf16> to vector<16x32xbf16>
    %213 = tpu.concatenate %196, %198, %200, %202, %204, %206, %208, %210, %212 in 1 : vector<16x32xbf16>, vector<16x32xbf16>, vector<16x32xbf16>, vector<16x32xbf16>, vector<16x32xbf16>, vector<16x32xbf16>, vector<16x32xbf16>, vector<16x32xbf16>, vector<16x32xbf16> -> vector<16x288xbf16>
    %214 = arith.extf %213 : vector<16x288xbf16> to vector<16x288xf32>
    %c144 = arith.constant 144 : index
    %c0_361 = arith.constant 0 : index
    %215 = vector.load %arg8[%c144, %c0_361] : memref<256x288xf32, #tpu.memory_space<vmem>>, vector<16x288xf32>
    tpu.vector_store %arg8[%c144, %c0_361], %214 {strides = array<i32>} : memref<256x288xf32, #tpu.memory_space<vmem>>, vector<16x288xf32>,
    %c0_362 = arith.constant 0 : index
    %c20_363 = arith.constant 20 : index
    %c0_364 = arith.constant 0 : index
    %c0_365 = arith.constant 0 : index
    %216 = vector.load %arg1[%c0_362, %c20_363, %c0_364, %c0_365] : memref<1x34x17x64xbf16, #tpu.memory_space<vmem>>, vector<1x1x16x32xbf16>
    %217 = vector.shape_cast %216 : vector<1x1x16x32xbf16> to vector<16x32xbf16>
    %c0_366 = arith.constant 0 : index
    %c20_367 = arith.constant 20 : index
    %c0_368 = arith.constant 0 : index
    %c32_369 = arith.constant 32 : index
    %218 = vector.load %arg1[%c0_366, %c20_367, %c0_368, %c32_369] : memref<1x34x17x64xbf16, #tpu.memory_space<vmem>>, vector<1x1x16x32xbf16>
    %219 = vector.shape_cast %218 : vector<1x1x16x32xbf16> to vector<16x32xbf16>
    %c0_370 = arith.constant 0 : index
    %c20_371 = arith.constant 20 : index
    %c1_372 = arith.constant 1 : index
    %c0_373 = arith.constant 0 : index
    %220 = vector.load %arg1[%c0_370, %c20_371, %c1_372, %c0_373] : memref<1x34x17x64xbf16, #tpu.memory_space<vmem>>, vector<1x1x16x32xbf16>
    %221 = vector.shape_cast %220 : vector<1x1x16x32xbf16> to vector<16x32xbf16>
    %c0_374 = arith.constant 0 : index
    %c21 = arith.constant 21 : index
    %c0_375 = arith.constant 0 : index
    %c0_376 = arith.constant 0 : index
    %222 = vector.load %arg1[%c0_374, %c21, %c0_375, %c0_376] : memref<1x34x17x64xbf16, #tpu.memory_space<vmem>>, vector<1x1x16x32xbf16>
    %223 = vector.shape_cast %222 : vector<1x1x16x32xbf16> to vector<16x32xbf16>
    %c0_377 = arith.constant 0 : index
    %c21_378 = arith.constant 21 : index
    %c0_379 = arith.constant 0 : index
    %c32_380 = arith.constant 32 : index
    %224 = vector.load %arg1[%c0_377, %c21_378, %c0_379, %c32_380] : memref<1x34x17x64xbf16, #tpu.memory_space<vmem>>, vector<1x1x16x32xbf16>
    %225 = vector.shape_cast %224 : vector<1x1x16x32xbf16> to vector<16x32xbf16>
    %c0_381 = arith.constant 0 : index
    %c21_382 = arith.constant 21 : index
    %c1_383 = arith.constant 1 : index
    %c0_384 = arith.constant 0 : index
    %226 = vector.load %arg1[%c0_381, %c21_382, %c1_383, %c0_384] : memref<1x34x17x64xbf16, #tpu.memory_space<vmem>>, vector<1x1x16x32xbf16>
    %227 = vector.shape_cast %226 : vector<1x1x16x32xbf16> to vector<16x32xbf16>
    %c0_385 = arith.constant 0 : index
    %c22 = arith.constant 22 : index
    %c0_386 = arith.constant 0 : index
    %c0_387 = arith.constant 0 : index
    %228 = vector.load %arg1[%c0_385, %c22, %c0_386, %c0_387] : memref<1x34x17x64xbf16, #tpu.memory_space<vmem>>, vector<1x1x16x32xbf16>
    %229 = vector.shape_cast %228 : vector<1x1x16x32xbf16> to vector<16x32xbf16>
    %c0_388 = arith.constant 0 : index
    %c22_389 = arith.constant 22 : index
    %c0_390 = arith.constant 0 : index
    %c32_391 = arith.constant 32 : index
    %230 = vector.load %arg1[%c0_388, %c22_389, %c0_390, %c32_391] : memref<1x34x17x64xbf16, #tpu.memory_space<vmem>>, vector<1x1x16x32xbf16>
    %231 = vector.shape_cast %230 : vector<1x1x16x32xbf16> to vector<16x32xbf16>
    %c0_392 = arith.constant 0 : index
    %c22_393 = arith.constant 22 : index
    %c1_394 = arith.constant 1 : index
    %c0_395 = arith.constant 0 : index
    %232 = vector.load %arg1[%c0_392, %c22_393, %c1_394, %c0_395] : memref<1x34x17x64xbf16, #tpu.memory_space<vmem>>, vector<1x1x16x32xbf16>
    %233 = vector.shape_cast %232 : vector<1x1x16x32xbf16> to vector<16x32xbf16>
    %234 = tpu.concatenate %217, %219, %221, %223, %225, %227, %229, %231, %233 in 1 : vector<16x32xbf16>, vector<16x32xbf16>, vector<16x32xbf16>, vector<16x32xbf16>, vector<16x32xbf16>, vector<16x32xbf16>, vector<16x32xbf16>, vector<16x32xbf16>, vector<16x32xbf16> -> vector<16x288xbf16>
    %235 = arith.extf %234 : vector<16x288xbf16> to vector<16x288xf32>
    %c160 = arith.constant 160 : index
    %c0_396 = arith.constant 0 : index
    %236 = vector.load %arg8[%c160, %c0_396] : memref<256x288xf32, #tpu.memory_space<vmem>>, vector<16x288xf32>
    tpu.vector_store %arg8[%c160, %c0_396], %235 {strides = array<i32>} : memref<256x288xf32, #tpu.memory_space<vmem>>, vector<16x288xf32>,
    %c0_397 = arith.constant 0 : index
    %c22_398 = arith.constant 22 : index
    %c0_399 = arith.constant 0 : index
    %c0_400 = arith.constant 0 : index
    %237 = vector.load %arg1[%c0_397, %c22_398, %c0_399, %c0_400] : memref<1x34x17x64xbf16, #tpu.memory_space<vmem>>, vector<1x1x16x32xbf16>
    %238 = vector.shape_cast %237 : vector<1x1x16x32xbf16> to vector<16x32xbf16>
    %c0_401 = arith.constant 0 : index
    %c22_402 = arith.constant 22 : index
    %c0_403 = arith.constant 0 : index
    %c32_404 = arith.constant 32 : index
    %239 = vector.load %arg1[%c0_401, %c22_402, %c0_403, %c32_404] : memref<1x34x17x64xbf16, #tpu.memory_space<vmem>>, vector<1x1x16x32xbf16>
    %240 = vector.shape_cast %239 : vector<1x1x16x32xbf16> to vector<16x32xbf16>
    %c0_405 = arith.constant 0 : index
    %c22_406 = arith.constant 22 : index
    %c1_407 = arith.constant 1 : index
    %c0_408 = arith.constant 0 : index
    %241 = vector.load %arg1[%c0_405, %c22_406, %c1_407, %c0_408] : memref<1x34x17x64xbf16, #tpu.memory_space<vmem>>, vector<1x1x16x32xbf16>
    %242 = vector.shape_cast %241 : vector<1x1x16x32xbf16> to vector<16x32xbf16>
    %c0_409 = arith.constant 0 : index
    %c23 = arith.constant 23 : index
    %c0_410 = arith.constant 0 : index
    %c0_411 = arith.constant 0 : index
    %243 = vector.load %arg1[%c0_409, %c23, %c0_410, %c0_411] : memref<1x34x17x64xbf16, #tpu.memory_space<vmem>>, vector<1x1x16x32xbf16>
    %244 = vector.shape_cast %243 : vector<1x1x16x32xbf16> to vector<16x32xbf16>
    %c0_412 = arith.constant 0 : index
    %c23_413 = arith.constant 23 : index
    %c0_414 = arith.constant 0 : index
    %c32_415 = arith.constant 32 : index
    %245 = vector.load %arg1[%c0_412, %c23_413, %c0_414, %c32_415] : memref<1x34x17x64xbf16, #tpu.memory_space<vmem>>, vector<1x1x16x32xbf16>
    %246 = vector.shape_cast %245 : vector<1x1x16x32xbf16> to vector<16x32xbf16>
    %c0_416 = arith.constant 0 : index
    %c23_417 = arith.constant 23 : index
    %c1_418 = arith.constant 1 : index
    %c0_419 = arith.constant 0 : index
    %247 = vector.load %arg1[%c0_416, %c23_417, %c1_418, %c0_419] : memref<1x34x17x64xbf16, #tpu.memory_space<vmem>>, vector<1x1x16x32xbf16>
    %248 = vector.shape_cast %247 : vector<1x1x16x32xbf16> to vector<16x32xbf16>
    %c0_420 = arith.constant 0 : index
    %c24 = arith.constant 24 : index
    %c0_421 = arith.constant 0 : index
    %c0_422 = arith.constant 0 : index
    %249 = vector.load %arg1[%c0_420, %c24, %c0_421, %c0_422] : memref<1x34x17x64xbf16, #tpu.memory_space<vmem>>, vector<1x1x16x32xbf16>
    %250 = vector.shape_cast %249 : vector<1x1x16x32xbf16> to vector<16x32xbf16>
    %c0_423 = arith.constant 0 : index
    %c24_424 = arith.constant 24 : index
    %c0_425 = arith.constant 0 : index
    %c32_426 = arith.constant 32 : index
    %251 = vector.load %arg1[%c0_423, %c24_424, %c0_425, %c32_426] : memref<1x34x17x64xbf16, #tpu.memory_space<vmem>>, vector<1x1x16x32xbf16>
    %252 = vector.shape_cast %251 : vector<1x1x16x32xbf16> to vector<16x32xbf16>
    %c0_427 = arith.constant 0 : index
    %c24_428 = arith.constant 24 : index
    %c1_429 = arith.constant 1 : index
    %c0_430 = arith.constant 0 : index
    %253 = vector.load %arg1[%c0_427, %c24_428, %c1_429, %c0_430] : memref<1x34x17x64xbf16, #tpu.memory_space<vmem>>, vector<1x1x16x32xbf16>
    %254 = vector.shape_cast %253 : vector<1x1x16x32xbf16> to vector<16x32xbf16>
    %255 = tpu.concatenate %238, %240, %242, %244, %246, %248, %250, %252, %254 in 1 : vector<16x32xbf16>, vector<16x32xbf16>, vector<16x32xbf16>, vector<16x32xbf16>, vector<16x32xbf16>, vector<16x32xbf16>, vector<16x32xbf16>, vector<16x32xbf16>, vector<16x32xbf16> -> vector<16x288xbf16>
    %256 = arith.extf %255 : vector<16x288xbf16> to vector<16x288xf32>
    %c176 = arith.constant 176 : index
    %c0_431 = arith.constant 0 : index
    %257 = vector.load %arg8[%c176, %c0_431] : memref<256x288xf32, #tpu.memory_space<vmem>>, vector<16x288xf32>
    tpu.vector_store %arg8[%c176, %c0_431], %256 {strides = array<i32>} : memref<256x288xf32, #tpu.memory_space<vmem>>, vector<16x288xf32>,
    %c0_432 = arith.constant 0 : index
    %c24_433 = arith.constant 24 : index
    %c0_434 = arith.constant 0 : index
    %c0_435 = arith.constant 0 : index
    %258 = vector.load %arg1[%c0_432, %c24_433, %c0_434, %c0_435] : memref<1x34x17x64xbf16, #tpu.memory_space<vmem>>, vector<1x1x16x32xbf16>
    %259 = vector.shape_cast %258 : vector<1x1x16x32xbf16> to vector<16x32xbf16>
    %c0_436 = arith.constant 0 : index
    %c24_437 = arith.constant 24 : index
    %c0_438 = arith.constant 0 : index
    %c32_439 = arith.constant 32 : index
    %260 = vector.load %arg1[%c0_436, %c24_437, %c0_438, %c32_439] : memref<1x34x17x64xbf16, #tpu.memory_space<vmem>>, vector<1x1x16x32xbf16>
    %261 = vector.shape_cast %260 : vector<1x1x16x32xbf16> to vector<16x32xbf16>
    %c0_440 = arith.constant 0 : index
    %c24_441 = arith.constant 24 : index
    %c1_442 = arith.constant 1 : index
    %c0_443 = arith.constant 0 : index
    %262 = vector.load %arg1[%c0_440, %c24_441, %c1_442, %c0_443] : memref<1x34x17x64xbf16, #tpu.memory_space<vmem>>, vector<1x1x16x32xbf16>
    %263 = vector.shape_cast %262 : vector<1x1x16x32xbf16> to vector<16x32xbf16>
    %c0_444 = arith.constant 0 : index
    %c25 = arith.constant 25 : index
    %c0_445 = arith.constant 0 : index
    %c0_446 = arith.constant 0 : index
    %264 = vector.load %arg1[%c0_444, %c25, %c0_445, %c0_446] : memref<1x34x17x64xbf16, #tpu.memory_space<vmem>>, vector<1x1x16x32xbf16>
    %265 = vector.shape_cast %264 : vector<1x1x16x32xbf16> to vector<16x32xbf16>
    %c0_447 = arith.constant 0 : index
    %c25_448 = arith.constant 25 : index
    %c0_449 = arith.constant 0 : index
    %c32_450 = arith.constant 32 : index
    %266 = vector.load %arg1[%c0_447, %c25_448, %c0_449, %c32_450] : memref<1x34x17x64xbf16, #tpu.memory_space<vmem>>, vector<1x1x16x32xbf16>
    %267 = vector.shape_cast %266 : vector<1x1x16x32xbf16> to vector<16x32xbf16>
    %c0_451 = arith.constant 0 : index
    %c25_452 = arith.constant 25 : index
    %c1_453 = arith.constant 1 : index
    %c0_454 = arith.constant 0 : index
    %268 = vector.load %arg1[%c0_451, %c25_452, %c1_453, %c0_454] : memref<1x34x17x64xbf16, #tpu.memory_space<vmem>>, vector<1x1x16x32xbf16>
    %269 = vector.shape_cast %268 : vector<1x1x16x32xbf16> to vector<16x32xbf16>
    %c0_455 = arith.constant 0 : index
    %c26 = arith.constant 26 : index
    %c0_456 = arith.constant 0 : index
    %c0_457 = arith.constant 0 : index
    %270 = vector.load %arg1[%c0_455, %c26, %c0_456, %c0_457] : memref<1x34x17x64xbf16, #tpu.memory_space<vmem>>, vector<1x1x16x32xbf16>
    %271 = vector.shape_cast %270 : vector<1x1x16x32xbf16> to vector<16x32xbf16>
    %c0_458 = arith.constant 0 : index
    %c26_459 = arith.constant 26 : index
    %c0_460 = arith.constant 0 : index
    %c32_461 = arith.constant 32 : index
    %272 = vector.load %arg1[%c0_458, %c26_459, %c0_460, %c32_461] : memref<1x34x17x64xbf16, #tpu.memory_space<vmem>>, vector<1x1x16x32xbf16>
    %273 = vector.shape_cast %272 : vector<1x1x16x32xbf16> to vector<16x32xbf16>
    %c0_462 = arith.constant 0 : index
    %c26_463 = arith.constant 26 : index
    %c1_464 = arith.constant 1 : index
    %c0_465 = arith.constant 0 : index
    %274 = vector.load %arg1[%c0_462, %c26_463, %c1_464, %c0_465] : memref<1x34x17x64xbf16, #tpu.memory_space<vmem>>, vector<1x1x16x32xbf16>
    %275 = vector.shape_cast %274 : vector<1x1x16x32xbf16> to vector<16x32xbf16>
    %276 = tpu.concatenate %259, %261, %263, %265, %267, %269, %271, %273, %275 in 1 : vector<16x32xbf16>, vector<16x32xbf16>, vector<16x32xbf16>, vector<16x32xbf16>, vector<16x32xbf16>, vector<16x32xbf16>, vector<16x32xbf16>, vector<16x32xbf16>, vector<16x32xbf16> -> vector<16x288xbf16>
    %277 = arith.extf %276 : vector<16x288xbf16> to vector<16x288xf32>
    %c192 = arith.constant 192 : index
    %c0_466 = arith.constant 0 : index
    %278 = vector.load %arg8[%c192, %c0_466] : memref<256x288xf32, #tpu.memory_space<vmem>>, vector<16x288xf32>
    tpu.vector_store %arg8[%c192, %c0_466], %277 {strides = array<i32>} : memref<256x288xf32, #tpu.memory_space<vmem>>, vector<16x288xf32>,
    %c0_467 = arith.constant 0 : index
    %c26_468 = arith.constant 26 : index
    %c0_469 = arith.constant 0 : index
    %c0_470 = arith.constant 0 : index
    %279 = vector.load %arg1[%c0_467, %c26_468, %c0_469, %c0_470] : memref<1x34x17x64xbf16, #tpu.memory_space<vmem>>, vector<1x1x16x32xbf16>
    %280 = vector.shape_cast %279 : vector<1x1x16x32xbf16> to vector<16x32xbf16>
    %c0_471 = arith.constant 0 : index
    %c26_472 = arith.constant 26 : index
    %c0_473 = arith.constant 0 : index
    %c32_474 = arith.constant 32 : index
    %281 = vector.load %arg1[%c0_471, %c26_472, %c0_473, %c32_474] : memref<1x34x17x64xbf16, #tpu.memory_space<vmem>>, vector<1x1x16x32xbf16>
    %282 = vector.shape_cast %281 : vector<1x1x16x32xbf16> to vector<16x32xbf16>
    %c0_475 = arith.constant 0 : index
    %c26_476 = arith.constant 26 : index
    %c1_477 = arith.constant 1 : index
    %c0_478 = arith.constant 0 : index
    %283 = vector.load %arg1[%c0_475, %c26_476, %c1_477, %c0_478] : memref<1x34x17x64xbf16, #tpu.memory_space<vmem>>, vector<1x1x16x32xbf16>
    %284 = vector.shape_cast %283 : vector<1x1x16x32xbf16> to vector<16x32xbf16>
    %c0_479 = arith.constant 0 : index
    %c27 = arith.constant 27 : index
    %c0_480 = arith.constant 0 : index
    %c0_481 = arith.constant 0 : index
    %285 = vector.load %arg1[%c0_479, %c27, %c0_480, %c0_481] : memref<1x34x17x64xbf16, #tpu.memory_space<vmem>>, vector<1x1x16x32xbf16>
    %286 = vector.shape_cast %285 : vector<1x1x16x32xbf16> to vector<16x32xbf16>
    %c0_482 = arith.constant 0 : index
    %c27_483 = arith.constant 27 : index
    %c0_484 = arith.constant 0 : index
    %c32_485 = arith.constant 32 : index
    %287 = vector.load %arg1[%c0_482, %c27_483, %c0_484, %c32_485] : memref<1x34x17x64xbf16, #tpu.memory_space<vmem>>, vector<1x1x16x32xbf16>
    %288 = vector.shape_cast %287 : vector<1x1x16x32xbf16> to vector<16x32xbf16>
    %c0_486 = arith.constant 0 : index
    %c27_487 = arith.constant 27 : index
    %c1_488 = arith.constant 1 : index
    %c0_489 = arith.constant 0 : index
    %289 = vector.load %arg1[%c0_486, %c27_487, %c1_488, %c0_489] : memref<1x34x17x64xbf16, #tpu.memory_space<vmem>>, vector<1x1x16x32xbf16>
    %290 = vector.shape_cast %289 : vector<1x1x16x32xbf16> to vector<16x32xbf16>
    %c0_490 = arith.constant 0 : index
    %c28 = arith.constant 28 : index
    %c0_491 = arith.constant 0 : index
    %c0_492 = arith.constant 0 : index
    %291 = vector.load %arg1[%c0_490, %c28, %c0_491, %c0_492] : memref<1x34x17x64xbf16, #tpu.memory_space<vmem>>, vector<1x1x16x32xbf16>
    %292 = vector.shape_cast %291 : vector<1x1x16x32xbf16> to vector<16x32xbf16>
    %c0_493 = arith.constant 0 : index
    %c28_494 = arith.constant 28 : index
    %c0_495 = arith.constant 0 : index
    %c32_496 = arith.constant 32 : index
    %293 = vector.load %arg1[%c0_493, %c28_494, %c0_495, %c32_496] : memref<1x34x17x64xbf16, #tpu.memory_space<vmem>>, vector<1x1x16x32xbf16>
    %294 = vector.shape_cast %293 : vector<1x1x16x32xbf16> to vector<16x32xbf16>
    %c0_497 = arith.constant 0 : index
    %c28_498 = arith.constant 28 : index
    %c1_499 = arith.constant 1 : index
    %c0_500 = arith.constant 0 : index
    %295 = vector.load %arg1[%c0_497, %c28_498, %c1_499, %c0_500] : memref<1x34x17x64xbf16, #tpu.memory_space<vmem>>, vector<1x1x16x32xbf16>
    %296 = vector.shape_cast %295 : vector<1x1x16x32xbf16> to vector<16x32xbf16>
    %297 = tpu.concatenate %280, %282, %284, %286, %288, %290, %292, %294, %296 in 1 : vector<16x32xbf16>, vector<16x32xbf16>, vector<16x32xbf16>, vector<16x32xbf16>, vector<16x32xbf16>, vector<16x32xbf16>, vector<16x32xbf16>, vector<16x32xbf16>, vector<16x32xbf16> -> vector<16x288xbf16>
    %298 = arith.extf %297 : vector<16x288xbf16> to vector<16x288xf32>
    %c208 = arith.constant 208 : index
    %c0_501 = arith.constant 0 : index
    %299 = vector.load %arg8[%c208, %c0_501] : memref<256x288xf32, #tpu.memory_space<vmem>>, vector<16x288xf32>
    tpu.vector_store %arg8[%c208, %c0_501], %298 {strides = array<i32>} : memref<256x288xf32, #tpu.memory_space<vmem>>, vector<16x288xf32>,
    %c0_502 = arith.constant 0 : index
    %c28_503 = arith.constant 28 : index
    %c0_504 = arith.constant 0 : index
    %c0_505 = arith.constant 0 : index
    %300 = vector.load %arg1[%c0_502, %c28_503, %c0_504, %c0_505] : memref<1x34x17x64xbf16, #tpu.memory_space<vmem>>, vector<1x1x16x32xbf16>
    %301 = vector.shape_cast %300 : vector<1x1x16x32xbf16> to vector<16x32xbf16>
    %c0_506 = arith.constant 0 : index
    %c28_507 = arith.constant 28 : index
    %c0_508 = arith.constant 0 : index
    %c32_509 = arith.constant 32 : index
    %302 = vector.load %arg1[%c0_506, %c28_507, %c0_508, %c32_509] : memref<1x34x17x64xbf16, #tpu.memory_space<vmem>>, vector<1x1x16x32xbf16>
    %303 = vector.shape_cast %302 : vector<1x1x16x32xbf16> to vector<16x32xbf16>
    %c0_510 = arith.constant 0 : index
    %c28_511 = arith.constant 28 : index
    %c1_512 = arith.constant 1 : index
    %c0_513 = arith.constant 0 : index
    %304 = vector.load %arg1[%c0_510, %c28_511, %c1_512, %c0_513] : memref<1x34x17x64xbf16, #tpu.memory_space<vmem>>, vector<1x1x16x32xbf16>
    %305 = vector.shape_cast %304 : vector<1x1x16x32xbf16> to vector<16x32xbf16>
    %c0_514 = arith.constant 0 : index
    %c29 = arith.constant 29 : index
    %c0_515 = arith.constant 0 : index
    %c0_516 = arith.constant 0 : index
    %306 = vector.load %arg1[%c0_514, %c29, %c0_515, %c0_516] : memref<1x34x17x64xbf16, #tpu.memory_space<vmem>>, vector<1x1x16x32xbf16>
    %307 = vector.shape_cast %306 : vector<1x1x16x32xbf16> to vector<16x32xbf16>
    %c0_517 = arith.constant 0 : index
    %c29_518 = arith.constant 29 : index
    %c0_519 = arith.constant 0 : index
    %c32_520 = arith.constant 32 : index
    %308 = vector.load %arg1[%c0_517, %c29_518, %c0_519, %c32_520] : memref<1x34x17x64xbf16, #tpu.memory_space<vmem>>, vector<1x1x16x32xbf16>
    %309 = vector.shape_cast %308 : vector<1x1x16x32xbf16> to vector<16x32xbf16>
    %c0_521 = arith.constant 0 : index
    %c29_522 = arith.constant 29 : index
    %c1_523 = arith.constant 1 : index
    %c0_524 = arith.constant 0 : index
    %310 = vector.load %arg1[%c0_521, %c29_522, %c1_523, %c0_524] : memref<1x34x17x64xbf16, #tpu.memory_space<vmem>>, vector<1x1x16x32xbf16>
    %311 = vector.shape_cast %310 : vector<1x1x16x32xbf16> to vector<16x32xbf16>
    %c0_525 = arith.constant 0 : index
    %c30 = arith.constant 30 : index
    %c0_526 = arith.constant 0 : index
    %c0_527 = arith.constant 0 : index
    %312 = vector.load %arg1[%c0_525, %c30, %c0_526, %c0_527] : memref<1x34x17x64xbf16, #tpu.memory_space<vmem>>, vector<1x1x16x32xbf16>
    %313 = vector.shape_cast %312 : vector<1x1x16x32xbf16> to vector<16x32xbf16>
    %c0_528 = arith.constant 0 : index
    %c30_529 = arith.constant 30 : index
    %c0_530 = arith.constant 0 : index
    %c32_531 = arith.constant 32 : index
    %314 = vector.load %arg1[%c0_528, %c30_529, %c0_530, %c32_531] : memref<1x34x17x64xbf16, #tpu.memory_space<vmem>>, vector<1x1x16x32xbf16>
    %315 = vector.shape_cast %314 : vector<1x1x16x32xbf16> to vector<16x32xbf16>
    %c0_532 = arith.constant 0 : index
    %c30_533 = arith.constant 30 : index
    %c1_534 = arith.constant 1 : index
    %c0_535 = arith.constant 0 : index
    %316 = vector.load %arg1[%c0_532, %c30_533, %c1_534, %c0_535] : memref<1x34x17x64xbf16, #tpu.memory_space<vmem>>, vector<1x1x16x32xbf16>
    %317 = vector.shape_cast %316 : vector<1x1x16x32xbf16> to vector<16x32xbf16>
    %318 = tpu.concatenate %301, %303, %305, %307, %309, %311, %313, %315, %317 in 1 : vector<16x32xbf16>, vector<16x32xbf16>, vector<16x32xbf16>, vector<16x32xbf16>, vector<16x32xbf16>, vector<16x32xbf16>, vector<16x32xbf16>, vector<16x32xbf16>, vector<16x32xbf16> -> vector<16x288xbf16>
    %319 = arith.extf %318 : vector<16x288xbf16> to vector<16x288xf32>
    %c224 = arith.constant 224 : index
    %c0_536 = arith.constant 0 : index
    %320 = vector.load %arg8[%c224, %c0_536] : memref<256x288xf32, #tpu.memory_space<vmem>>, vector<16x288xf32>
    tpu.vector_store %arg8[%c224, %c0_536], %319 {strides = array<i32>} : memref<256x288xf32, #tpu.memory_space<vmem>>, vector<16x288xf32>,
    %c0_537 = arith.constant 0 : index
    %c30_538 = arith.constant 30 : index
    %c0_539 = arith.constant 0 : index
    %c0_540 = arith.constant 0 : index
    %321 = vector.load %arg1[%c0_537, %c30_538, %c0_539, %c0_540] : memref<1x34x17x64xbf16, #tpu.memory_space<vmem>>, vector<1x1x16x32xbf16>
    %322 = vector.shape_cast %321 : vector<1x1x16x32xbf16> to vector<16x32xbf16>
    %c0_541 = arith.constant 0 : index
    %c30_542 = arith.constant 30 : index
    %c0_543 = arith.constant 0 : index
    %c32_544 = arith.constant 32 : index
    %323 = vector.load %arg1[%c0_541, %c30_542, %c0_543, %c32_544] : memref<1x34x17x64xbf16, #tpu.memory_space<vmem>>, vector<1x1x16x32xbf16>
    %324 = vector.shape_cast %323 : vector<1x1x16x32xbf16> to vector<16x32xbf16>
    %c0_545 = arith.constant 0 : index
    %c30_546 = arith.constant 30 : index
    %c1_547 = arith.constant 1 : index
    %c0_548 = arith.constant 0 : index
    %325 = vector.load %arg1[%c0_545, %c30_546, %c1_547, %c0_548] : memref<1x34x17x64xbf16, #tpu.memory_space<vmem>>, vector<1x1x16x32xbf16>
    %326 = vector.shape_cast %325 : vector<1x1x16x32xbf16> to vector<16x32xbf16>
    %c0_549 = arith.constant 0 : index
    %c31 = arith.constant 31 : index
    %c0_550 = arith.constant 0 : index
    %c0_551 = arith.constant 0 : index
    %327 = vector.load %arg1[%c0_549, %c31, %c0_550, %c0_551] : memref<1x34x17x64xbf16, #tpu.memory_space<vmem>>, vector<1x1x16x32xbf16>
    %328 = vector.shape_cast %327 : vector<1x1x16x32xbf16> to vector<16x32xbf16>
    %c0_552 = arith.constant 0 : index
    %c31_553 = arith.constant 31 : index
    %c0_554 = arith.constant 0 : index
    %c32_555 = arith.constant 32 : index
    %329 = vector.load %arg1[%c0_552, %c31_553, %c0_554, %c32_555] : memref<1x34x17x64xbf16, #tpu.memory_space<vmem>>, vector<1x1x16x32xbf16>
    %330 = vector.shape_cast %329 : vector<1x1x16x32xbf16> to vector<16x32xbf16>
    %c0_556 = arith.constant 0 : index
    %c31_557 = arith.constant 31 : index
    %c1_558 = arith.constant 1 : index
    %c0_559 = arith.constant 0 : index
    %331 = vector.load %arg1[%c0_556, %c31_557, %c1_558, %c0_559] : memref<1x34x17x64xbf16, #tpu.memory_space<vmem>>, vector<1x1x16x32xbf16>
    %332 = vector.shape_cast %331 : vector<1x1x16x32xbf16> to vector<16x32xbf16>
    %c0_560 = arith.constant 0 : index
    %c32_561 = arith.constant 32 : index
    %c0_562 = arith.constant 0 : index
    %c0_563 = arith.constant 0 : index
    %333 = vector.load %arg1[%c0_560, %c32_561, %c0_562, %c0_563] : memref<1x34x17x64xbf16, #tpu.memory_space<vmem>>, vector<1x1x16x32xbf16>
    %334 = vector.shape_cast %333 : vector<1x1x16x32xbf16> to vector<16x32xbf16>
    %c0_564 = arith.constant 0 : index
    %c32_565 = arith.constant 32 : index
    %c0_566 = arith.constant 0 : index
    %c32_567 = arith.constant 32 : index
    %335 = vector.load %arg1[%c0_564, %c32_565, %c0_566, %c32_567] : memref<1x34x17x64xbf16, #tpu.memory_space<vmem>>, vector<1x1x16x32xbf16>
    %336 = vector.shape_cast %335 : vector<1x1x16x32xbf16> to vector<16x32xbf16>
    %c0_568 = arith.constant 0 : index
    %c32_569 = arith.constant 32 : index
    %c1_570 = arith.constant 1 : index
    %c0_571 = arith.constant 0 : index
    %337 = vector.load %arg1[%c0_568, %c32_569, %c1_570, %c0_571] : memref<1x34x17x64xbf16, #tpu.memory_space<vmem>>, vector<1x1x16x32xbf16>
    %338 = vector.shape_cast %337 : vector<1x1x16x32xbf16> to vector<16x32xbf16>
    %339 = tpu.concatenate %322, %324, %326, %328, %330, %332, %334, %336, %338 in 1 : vector<16x32xbf16>, vector<16x32xbf16>, vector<16x32xbf16>, vector<16x32xbf16>, vector<16x32xbf16>, vector<16x32xbf16>, vector<16x32xbf16>, vector<16x32xbf16>, vector<16x32xbf16> -> vector<16x288xbf16>
    %340 = arith.extf %339 : vector<16x288xbf16> to vector<16x288xf32>
    %c240 = arith.constant 240 : index
    %c0_572 = arith.constant 0 : index
    %341 = vector.load %arg8[%c240, %c0_572] : memref<256x288xf32, #tpu.memory_space<vmem>>, vector<16x288xf32>
    tpu.vector_store %arg8[%c240, %c0_572], %340 {strides = array<i32>} : memref<256x288xf32, #tpu.memory_space<vmem>>, vector<16x288xf32>,
    %c0_573 = arith.constant 0 : index
    %c0_574 = arith.constant 0 : index
    %342 = vector.load %arg8[%c0_573, %c0_574] : memref<256x288xf32, #tpu.memory_space<vmem>>, vector<256x288xf32>
    %343 = arith.truncf %342 : vector<256x288xf32> to vector<256x288xbf16>
    %c0_575 = arith.constant 0 : index
    %c0_576 = arith.constant 0 : index
    %c0_577 = arith.constant 0 : index
    %344 = vector.load %arg2[%c0_575, %c0_576, %c0_577] : memref<4x288x32xbf16, #tpu.memory_space<vmem>>, vector<1x288x32xbf16>
    %345 = vector.shape_cast %344 : vector<1x288x32xbf16> to vector<288x32xbf16>
    %cst_578 = arith.constant dense<0.000000e+00> : vector<256x32xf32>
    %346 = tpu.matmul %343, %345, %cst_578 {dimension_numbers = #tpu.dot_dimension_numbers<[1], [0], [0], [1], [0, 0, 1, 1], [], []>} : vector<256x288xbf16>, vector<288x32xbf16>, vector<256x32xf32> -> vector<256x32xf32>
    %c0_579 = arith.constant 0 : index
    %c0_580 = arith.constant 0 : index
    %c0_581 = arith.constant 0 : index
    %347 = vector.load %arg3[%c0_579, %c0_580, %c0_581] : memref<4x1x32xf32, #tpu.memory_space<vmem>>, vector<1x1x32xf32>
    %348 = vector.shape_cast %347 : vector<1x1x32xf32> to vector<1x32xf32>
    %349 = vector.broadcast %348 : vector<1x32xf32> to vector<256x32xf32>
    %350 = arith.addf %346, %349 : vector<256x32xf32>
    %cst_582 = arith.constant 0.000000e+00 : f32
    %351 = vector.broadcast %cst_582 : f32 to vector<256x32xf32>
    %352 = arith.maximumf %350, %351 : vector<256x32xf32>
    %c0_583 = arith.constant 0 : index
    %c0_584 = arith.constant 0 : index
    %353 = vector.load %arg9[%c0_583, %c0_584] : memref<256x32xf32, #tpu.memory_space<vmem>>, vector<256x32xf32>
    tpu.vector_store %arg9[%c0_583, %c0_584], %352 {strides = array<i32>} : memref<256x32xf32, #tpu.memory_space<vmem>>, vector<256x32xf32>,
    %c0_585 = arith.constant 0 : index
    %c0_586 = arith.constant 0 : index
    %354 = tpu.strided_load %arg9[%c0_585, %c0_586] {strides = array<i32: 2, 1>} : memref<256x32xf32, #tpu.memory_space<vmem>>, vector<8x32xf32>
    %355 = arith.truncf %354 : vector<8x32xf32> to vector<8x32xbf16>
    %c1_587 = arith.constant 1 : index
    %c0_588 = arith.constant 0 : index
    %356 = tpu.strided_load %arg9[%c1_587, %c0_588] {strides = array<i32: 2, 1>} : memref<256x32xf32, #tpu.memory_space<vmem>>, vector<8x32xf32>
    %357 = arith.truncf %356 : vector<8x32xf32> to vector<8x32xbf16>
    %c1_589 = arith.constant 1 : index
    %c0_590 = arith.constant 0 : index
    %c32_591 = arith.constant 32 : index
    %358 = vector.load %arg5[%c1_589, %c0_590, %c32_591] : memref<18x9x64xbf16, #tpu.memory_space<vmem>>, vector<1x8x32xbf16>
    %359 = vector.shape_cast %358 : vector<1x8x32xbf16> to vector<8x32xbf16>
    %360 = vector.shape_cast %355 : vector<8x32xbf16> to vector<1x8x32xbf16>
    tpu.vector_store %arg5[%c1_589, %c0_590, %c32_591], %360 {strides = array<i32>} : memref<18x9x64xbf16, #tpu.memory_space<vmem>>, vector<1x8x32xbf16>,
    %c1_592 = arith.constant 1 : index
    %c1_593 = arith.constant 1 : index
    %c0_594 = arith.constant 0 : index
    %361 = vector.load %arg5[%c1_592, %c1_593, %c0_594] : memref<18x9x64xbf16, #tpu.memory_space<vmem>>, vector<1x8x32xbf16>
    %362 = vector.shape_cast %361 : vector<1x8x32xbf16> to vector<8x32xbf16>
    %363 = vector.shape_cast %357 : vector<8x32xbf16> to vector<1x8x32xbf16>
    tpu.vector_store %arg5[%c1_592, %c1_593, %c0_594], %363 {strides = array<i32>} : memref<18x9x64xbf16, #tpu.memory_space<vmem>>, vector<1x8x32xbf16>,
    %c16_595 = arith.constant 16 : index
    %c0_596 = arith.constant 0 : index
    %364 = tpu.strided_load %arg9[%c16_595, %c0_596] {strides = array<i32: 2, 1>} : memref<256x32xf32, #tpu.memory_space<vmem>>, vector<8x32xf32>
    %365 = arith.truncf %364 : vector<8x32xf32> to vector<8x32xbf16>
    %c17_597 = arith.constant 17 : index
    %c0_598 = arith.constant 0 : index
    %366 = tpu.strided_load %arg9[%c17_597, %c0_598] {strides = array<i32: 2, 1>} : memref<256x32xf32, #tpu.memory_space<vmem>>, vector<8x32xf32>
    %367 = arith.truncf %366 : vector<8x32xf32> to vector<8x32xbf16>
    %c2_599 = arith.constant 2 : index
    %c0_600 = arith.constant 0 : index
    %c32_601 = arith.constant 32 : index
    %368 = vector.load %arg5[%c2_599, %c0_600, %c32_601] : memref<18x9x64xbf16, #tpu.memory_space<vmem>>, vector<1x8x32xbf16>
    %369 = vector.shape_cast %368 : vector<1x8x32xbf16> to vector<8x32xbf16>
    %370 = vector.shape_cast %365 : vector<8x32xbf16> to vector<1x8x32xbf16>
    tpu.vector_store %arg5[%c2_599, %c0_600, %c32_601], %370 {strides = array<i32>} : memref<18x9x64xbf16, #tpu.memory_space<vmem>>, vector<1x8x32xbf16>,
    %c2_602 = arith.constant 2 : index
    %c1_603 = arith.constant 1 : index
    %c0_604 = arith.constant 0 : index
    %371 = vector.load %arg5[%c2_602, %c1_603, %c0_604] : memref<18x9x64xbf16, #tpu.memory_space<vmem>>, vector<1x8x32xbf16>
    %372 = vector.shape_cast %371 : vector<1x8x32xbf16> to vector<8x32xbf16>
    %373 = vector.shape_cast %367 : vector<8x32xbf16> to vector<1x8x32xbf16>
    tpu.vector_store %arg5[%c2_602, %c1_603, %c0_604], %373 {strides = array<i32>} : memref<18x9x64xbf16, #tpu.memory_space<vmem>>, vector<1x8x32xbf16>,
    %c32_605 = arith.constant 32 : index
    %c0_606 = arith.constant 0 : index
    %374 = tpu.strided_load %arg9[%c32_605, %c0_606] {strides = array<i32: 2, 1>} : memref<256x32xf32, #tpu.memory_space<vmem>>, vector<8x32xf32>
    %375 = arith.truncf %374 : vector<8x32xf32> to vector<8x32xbf16>
    %c33 = arith.constant 33 : index
    %c0_607 = arith.constant 0 : index
    %376 = tpu.strided_load %arg9[%c33, %c0_607] {strides = array<i32: 2, 1>} : memref<256x32xf32, #tpu.memory_space<vmem>>, vector<8x32xf32>
    %377 = arith.truncf %376 : vector<8x32xf32> to vector<8x32xbf16>
    %c3_608 = arith.constant 3 : index
    %c0_609 = arith.constant 0 : index
    %c32_610 = arith.constant 32 : index
    %378 = vector.load %arg5[%c3_608, %c0_609, %c32_610] : memref<18x9x64xbf16, #tpu.memory_space<vmem>>, vector<1x8x32xbf16>
    %379 = vector.shape_cast %378 : vector<1x8x32xbf16> to vector<8x32xbf16>
    %380 = vector.shape_cast %375 : vector<8x32xbf16> to vector<1x8x32xbf16>
    tpu.vector_store %arg5[%c3_608, %c0_609, %c32_610], %380 {strides = array<i32>} : memref<18x9x64xbf16, #tpu.memory_space<vmem>>, vector<1x8x32xbf16>,
    %c3_611 = arith.constant 3 : index
    %c1_612 = arith.constant 1 : index
    %c0_613 = arith.constant 0 : index
    %381 = vector.load %arg5[%c3_611, %c1_612, %c0_613] : memref<18x9x64xbf16, #tpu.memory_space<vmem>>, vector<1x8x32xbf16>
    %382 = vector.shape_cast %381 : vector<1x8x32xbf16> to vector<8x32xbf16>
    %383 = vector.shape_cast %377 : vector<8x32xbf16> to vector<1x8x32xbf16>
    tpu.vector_store %arg5[%c3_611, %c1_612, %c0_613], %383 {strides = array<i32>} : memref<18x9x64xbf16, #tpu.memory_space<vmem>>, vector<1x8x32xbf16>,
    %c48_614 = arith.constant 48 : index
    %c0_615 = arith.constant 0 : index
    %384 = tpu.strided_load %arg9[%c48_614, %c0_615] {strides = array<i32: 2, 1>} : memref<256x32xf32, #tpu.memory_space<vmem>>, vector<8x32xf32>
    %385 = arith.truncf %384 : vector<8x32xf32> to vector<8x32xbf16>
    %c49 = arith.constant 49 : index
    %c0_616 = arith.constant 0 : index
    %386 = tpu.strided_load %arg9[%c49, %c0_616] {strides = array<i32: 2, 1>} : memref<256x32xf32, #tpu.memory_space<vmem>>, vector<8x32xf32>
    %387 = arith.truncf %386 : vector<8x32xf32> to vector<8x32xbf16>
    %c4_617 = arith.constant 4 : index
    %c0_618 = arith.constant 0 : index
    %c32_619 = arith.constant 32 : index
    %388 = vector.load %arg5[%c4_617, %c0_618, %c32_619] : memref<18x9x64xbf16, #tpu.memory_space<vmem>>, vector<1x8x32xbf16>
    %389 = vector.shape_cast %388 : vector<1x8x32xbf16> to vector<8x32xbf16>
    %390 = vector.shape_cast %385 : vector<8x32xbf16> to vector<1x8x32xbf16>
    tpu.vector_store %arg5[%c4_617, %c0_618, %c32_619], %390 {strides = array<i32>} : memref<18x9x64xbf16, #tpu.memory_space<vmem>>, vector<1x8x32xbf16>,
    %c4_620 = arith.constant 4 : index
    %c1_621 = arith.constant 1 : index
    %c0_622 = arith.constant 0 : index
    %391 = vector.load %arg5[%c4_620, %c1_621, %c0_622] : memref<18x9x64xbf16, #tpu.memory_space<vmem>>, vector<1x8x32xbf16>
    %392 = vector.shape_cast %391 : vector<1x8x32xbf16> to vector<8x32xbf16>
    %393 = vector.shape_cast %387 : vector<8x32xbf16> to vector<1x8x32xbf16>
    tpu.vector_store %arg5[%c4_620, %c1_621, %c0_622], %393 {strides = array<i32>} : memref<18x9x64xbf16, #tpu.memory_space<vmem>>, vector<1x8x32xbf16>,
    %c64_623 = arith.constant 64 : index
    %c0_624 = arith.constant 0 : index
    %394 = tpu.strided_load %arg9[%c64_623, %c0_624] {strides = array<i32: 2, 1>} : memref<256x32xf32, #tpu.memory_space<vmem>>, vector<8x32xf32>
    %395 = arith.truncf %394 : vector<8x32xf32> to vector<8x32xbf16>
    %c65 = arith.constant 65 : index
    %c0_625 = arith.constant 0 : index
    %396 = tpu.strided_load %arg9[%c65, %c0_625] {strides = array<i32: 2, 1>} : memref<256x32xf32, #tpu.memory_space<vmem>>, vector<8x32xf32>
    %397 = arith.truncf %396 : vector<8x32xf32> to vector<8x32xbf16>
    %c5_626 = arith.constant 5 : index
    %c0_627 = arith.constant 0 : index
    %c32_628 = arith.constant 32 : index
    %398 = vector.load %arg5[%c5_626, %c0_627, %c32_628] : memref<18x9x64xbf16, #tpu.memory_space<vmem>>, vector<1x8x32xbf16>
    %399 = vector.shape_cast %398 : vector<1x8x32xbf16> to vector<8x32xbf16>
    %400 = vector.shape_cast %395 : vector<8x32xbf16> to vector<1x8x32xbf16>
    tpu.vector_store %arg5[%c5_626, %c0_627, %c32_628], %400 {strides = array<i32>} : memref<18x9x64xbf16, #tpu.memory_space<vmem>>, vector<1x8x32xbf16>,
    %c5_629 = arith.constant 5 : index
    %c1_630 = arith.constant 1 : index
    %c0_631 = arith.constant 0 : index
    %401 = vector.load %arg5[%c5_629, %c1_630, %c0_631] : memref<18x9x64xbf16, #tpu.memory_space<vmem>>, vector<1x8x32xbf16>
    %402 = vector.shape_cast %401 : vector<1x8x32xbf16> to vector<8x32xbf16>
    %403 = vector.shape_cast %397 : vector<8x32xbf16> to vector<1x8x32xbf16>
    tpu.vector_store %arg5[%c5_629, %c1_630, %c0_631], %403 {strides = array<i32>} : memref<18x9x64xbf16, #tpu.memory_space<vmem>>, vector<1x8x32xbf16>,
    %c80_632 = arith.constant 80 : index
    %c0_633 = arith.constant 0 : index
    %404 = tpu.strided_load %arg9[%c80_632, %c0_633] {strides = array<i32: 2, 1>} : memref<256x32xf32, #tpu.memory_space<vmem>>, vector<8x32xf32>
    %405 = arith.truncf %404 : vector<8x32xf32> to vector<8x32xbf16>
    %c81 = arith.constant 81 : index
    %c0_634 = arith.constant 0 : index
    %406 = tpu.strided_load %arg9[%c81, %c0_634] {strides = array<i32: 2, 1>} : memref<256x32xf32, #tpu.memory_space<vmem>>, vector<8x32xf32>
    %407 = arith.truncf %406 : vector<8x32xf32> to vector<8x32xbf16>
    %c6_635 = arith.constant 6 : index
    %c0_636 = arith.constant 0 : index
    %c32_637 = arith.constant 32 : index
    %408 = vector.load %arg5[%c6_635, %c0_636, %c32_637] : memref<18x9x64xbf16, #tpu.memory_space<vmem>>, vector<1x8x32xbf16>
    %409 = vector.shape_cast %408 : vector<1x8x32xbf16> to vector<8x32xbf16>
    %410 = vector.shape_cast %405 : vector<8x32xbf16> to vector<1x8x32xbf16>
    tpu.vector_store %arg5[%c6_635, %c0_636, %c32_637], %410 {strides = array<i32>} : memref<18x9x64xbf16, #tpu.memory_space<vmem>>, vector<1x8x32xbf16>,
    %c6_638 = arith.constant 6 : index
    %c1_639 = arith.constant 1 : index
    %c0_640 = arith.constant 0 : index
    %411 = vector.load %arg5[%c6_638, %c1_639, %c0_640] : memref<18x9x64xbf16, #tpu.memory_space<vmem>>, vector<1x8x32xbf16>
    %412 = vector.shape_cast %411 : vector<1x8x32xbf16> to vector<8x32xbf16>
    %413 = vector.shape_cast %407 : vector<8x32xbf16> to vector<1x8x32xbf16>
    tpu.vector_store %arg5[%c6_638, %c1_639, %c0_640], %413 {strides = array<i32>} : memref<18x9x64xbf16, #tpu.memory_space<vmem>>, vector<1x8x32xbf16>,
    %c96_641 = arith.constant 96 : index
    %c0_642 = arith.constant 0 : index
    %414 = tpu.strided_load %arg9[%c96_641, %c0_642] {strides = array<i32: 2, 1>} : memref<256x32xf32, #tpu.memory_space<vmem>>, vector<8x32xf32>
    %415 = arith.truncf %414 : vector<8x32xf32> to vector<8x32xbf16>
    %c97 = arith.constant 97 : index
    %c0_643 = arith.constant 0 : index
    %416 = tpu.strided_load %arg9[%c97, %c0_643] {strides = array<i32: 2, 1>} : memref<256x32xf32, #tpu.memory_space<vmem>>, vector<8x32xf32>
    %417 = arith.truncf %416 : vector<8x32xf32> to vector<8x32xbf16>
    %c7_644 = arith.constant 7 : index
    %c0_645 = arith.constant 0 : index
    %c32_646 = arith.constant 32 : index
    %418 = vector.load %arg5[%c7_644, %c0_645, %c32_646] : memref<18x9x64xbf16, #tpu.memory_space<vmem>>, vector<1x8x32xbf16>
    %419 = vector.shape_cast %418 : vector<1x8x32xbf16> to vector<8x32xbf16>
    %420 = vector.shape_cast %415 : vector<8x32xbf16> to vector<1x8x32xbf16>
    tpu.vector_store %arg5[%c7_644, %c0_645, %c32_646], %420 {strides = array<i32>} : memref<18x9x64xbf16, #tpu.memory_space<vmem>>, vector<1x8x32xbf16>,
    %c7_647 = arith.constant 7 : index
    %c1_648 = arith.constant 1 : index
    %c0_649 = arith.constant 0 : index
    %421 = vector.load %arg5[%c7_647, %c1_648, %c0_649] : memref<18x9x64xbf16, #tpu.memory_space<vmem>>, vector<1x8x32xbf16>
    %422 = vector.shape_cast %421 : vector<1x8x32xbf16> to vector<8x32xbf16>
    %423 = vector.shape_cast %417 : vector<8x32xbf16> to vector<1x8x32xbf16>
    tpu.vector_store %arg5[%c7_647, %c1_648, %c0_649], %423 {strides = array<i32>} : memref<18x9x64xbf16, #tpu.memory_space<vmem>>, vector<1x8x32xbf16>,
    %c112_650 = arith.constant 112 : index
    %c0_651 = arith.constant 0 : index
    %424 = tpu.strided_load %arg9[%c112_650, %c0_651] {strides = array<i32: 2, 1>} : memref<256x32xf32, #tpu.memory_space<vmem>>, vector<8x32xf32>
    %425 = arith.truncf %424 : vector<8x32xf32> to vector<8x32xbf16>
    %c113 = arith.constant 113 : index
    %c0_652 = arith.constant 0 : index
    %426 = tpu.strided_load %arg9[%c113, %c0_652] {strides = array<i32: 2, 1>} : memref<256x32xf32, #tpu.memory_space<vmem>>, vector<8x32xf32>
    %427 = arith.truncf %426 : vector<8x32xf32> to vector<8x32xbf16>
    %c8_653 = arith.constant 8 : index
    %c0_654 = arith.constant 0 : index
    %c32_655 = arith.constant 32 : index
    %428 = vector.load %arg5[%c8_653, %c0_654, %c32_655] : memref<18x9x64xbf16, #tpu.memory_space<vmem>>, vector<1x8x32xbf16>
    %429 = vector.shape_cast %428 : vector<1x8x32xbf16> to vector<8x32xbf16>
    %430 = vector.shape_cast %425 : vector<8x32xbf16> to vector<1x8x32xbf16>
    tpu.vector_store %arg5[%c8_653, %c0_654, %c32_655], %430 {strides = array<i32>} : memref<18x9x64xbf16, #tpu.memory_space<vmem>>, vector<1x8x32xbf16>,
    %c8_656 = arith.constant 8 : index
    %c1_657 = arith.constant 1 : index
    %c0_658 = arith.constant 0 : index
    %431 = vector.load %arg5[%c8_656, %c1_657, %c0_658] : memref<18x9x64xbf16, #tpu.memory_space<vmem>>, vector<1x8x32xbf16>
    %432 = vector.shape_cast %431 : vector<1x8x32xbf16> to vector<8x32xbf16>
    %433 = vector.shape_cast %427 : vector<8x32xbf16> to vector<1x8x32xbf16>
    tpu.vector_store %arg5[%c8_656, %c1_657, %c0_658], %433 {strides = array<i32>} : memref<18x9x64xbf16, #tpu.memory_space<vmem>>, vector<1x8x32xbf16>,
    %c128_659 = arith.constant 128 : index
    %c0_660 = arith.constant 0 : index
    %434 = tpu.strided_load %arg9[%c128_659, %c0_660] {strides = array<i32: 2, 1>} : memref<256x32xf32, #tpu.memory_space<vmem>>, vector<8x32xf32>
    %435 = arith.truncf %434 : vector<8x32xf32> to vector<8x32xbf16>
    %c129 = arith.constant 129 : index
    %c0_661 = arith.constant 0 : index
    %436 = tpu.strided_load %arg9[%c129, %c0_661] {strides = array<i32: 2, 1>} : memref<256x32xf32, #tpu.memory_space<vmem>>, vector<8x32xf32>
    %437 = arith.truncf %436 : vector<8x32xf32> to vector<8x32xbf16>
    %c9_662 = arith.constant 9 : index
    %c0_663 = arith.constant 0 : index
    %c32_664 = arith.constant 32 : index
    %438 = vector.load %arg5[%c9_662, %c0_663, %c32_664] : memref<18x9x64xbf16, #tpu.memory_space<vmem>>, vector<1x8x32xbf16>
    %439 = vector.shape_cast %438 : vector<1x8x32xbf16> to vector<8x32xbf16>
    %440 = vector.shape_cast %435 : vector<8x32xbf16> to vector<1x8x32xbf16>
    tpu.vector_store %arg5[%c9_662, %c0_663, %c32_664], %440 {strides = array<i32>} : memref<18x9x64xbf16, #tpu.memory_space<vmem>>, vector<1x8x32xbf16>,
    %c9_665 = arith.constant 9 : index
    %c1_666 = arith.constant 1 : index
    %c0_667 = arith.constant 0 : index
    %441 = vector.load %arg5[%c9_665, %c1_666, %c0_667] : memref<18x9x64xbf16, #tpu.memory_space<vmem>>, vector<1x8x32xbf16>
    %442 = vector.shape_cast %441 : vector<1x8x32xbf16> to vector<8x32xbf16>
    %443 = vector.shape_cast %437 : vector<8x32xbf16> to vector<1x8x32xbf16>
    tpu.vector_store %arg5[%c9_665, %c1_666, %c0_667], %443 {strides = array<i32>} : memref<18x9x64xbf16, #tpu.memory_space<vmem>>, vector<1x8x32xbf16>,
    %c144_668 = arith.constant 144 : index
    %c0_669 = arith.constant 0 : index
    %444 = tpu.strided_load %arg9[%c144_668, %c0_669] {strides = array<i32: 2, 1>} : memref<256x32xf32, #tpu.memory_space<vmem>>, vector<8x32xf32>
    %445 = arith.truncf %444 : vector<8x32xf32> to vector<8x32xbf16>
    %c145 = arith.constant 145 : index
    %c0_670 = arith.constant 0 : index
    %446 = tpu.strided_load %arg9[%c145, %c0_670] {strides = array<i32: 2, 1>} : memref<256x32xf32, #tpu.memory_space<vmem>>, vector<8x32xf32>
    %447 = arith.truncf %446 : vector<8x32xf32> to vector<8x32xbf16>
    %c10_671 = arith.constant 10 : index
    %c0_672 = arith.constant 0 : index
    %c32_673 = arith.constant 32 : index
    %448 = vector.load %arg5[%c10_671, %c0_672, %c32_673] : memref<18x9x64xbf16, #tpu.memory_space<vmem>>, vector<1x8x32xbf16>
    %449 = vector.shape_cast %448 : vector<1x8x32xbf16> to vector<8x32xbf16>
    %450 = vector.shape_cast %445 : vector<8x32xbf16> to vector<1x8x32xbf16>
    tpu.vector_store %arg5[%c10_671, %c0_672, %c32_673], %450 {strides = array<i32>} : memref<18x9x64xbf16, #tpu.memory_space<vmem>>, vector<1x8x32xbf16>,
    %c10_674 = arith.constant 10 : index
    %c1_675 = arith.constant 1 : index
    %c0_676 = arith.constant 0 : index
    %451 = vector.load %arg5[%c10_674, %c1_675, %c0_676] : memref<18x9x64xbf16, #tpu.memory_space<vmem>>, vector<1x8x32xbf16>
    %452 = vector.shape_cast %451 : vector<1x8x32xbf16> to vector<8x32xbf16>
    %453 = vector.shape_cast %447 : vector<8x32xbf16> to vector<1x8x32xbf16>
    tpu.vector_store %arg5[%c10_674, %c1_675, %c0_676], %453 {strides = array<i32>} : memref<18x9x64xbf16, #tpu.memory_space<vmem>>, vector<1x8x32xbf16>,
    %c160_677 = arith.constant 160 : index
    %c0_678 = arith.constant 0 : index
    %454 = tpu.strided_load %arg9[%c160_677, %c0_678] {strides = array<i32: 2, 1>} : memref<256x32xf32, #tpu.memory_space<vmem>>, vector<8x32xf32>
    %455 = arith.truncf %454 : vector<8x32xf32> to vector<8x32xbf16>
    %c161 = arith.constant 161 : index
    %c0_679 = arith.constant 0 : index
    %456 = tpu.strided_load %arg9[%c161, %c0_679] {strides = array<i32: 2, 1>} : memref<256x32xf32, #tpu.memory_space<vmem>>, vector<8x32xf32>
    %457 = arith.truncf %456 : vector<8x32xf32> to vector<8x32xbf16>
    %c11_680 = arith.constant 11 : index
    %c0_681 = arith.constant 0 : index
    %c32_682 = arith.constant 32 : index
    %458 = vector.load %arg5[%c11_680, %c0_681, %c32_682] : memref<18x9x64xbf16, #tpu.memory_space<vmem>>, vector<1x8x32xbf16>
    %459 = vector.shape_cast %458 : vector<1x8x32xbf16> to vector<8x32xbf16>
    %460 = vector.shape_cast %455 : vector<8x32xbf16> to vector<1x8x32xbf16>
    tpu.vector_store %arg5[%c11_680, %c0_681, %c32_682], %460 {strides = array<i32>} : memref<18x9x64xbf16, #tpu.memory_space<vmem>>, vector<1x8x32xbf16>,
    %c11_683 = arith.constant 11 : index
    %c1_684 = arith.constant 1 : index
    %c0_685 = arith.constant 0 : index
    %461 = vector.load %arg5[%c11_683, %c1_684, %c0_685] : memref<18x9x64xbf16, #tpu.memory_space<vmem>>, vector<1x8x32xbf16>
    %462 = vector.shape_cast %461 : vector<1x8x32xbf16> to vector<8x32xbf16>
    %463 = vector.shape_cast %457 : vector<8x32xbf16> to vector<1x8x32xbf16>
    tpu.vector_store %arg5[%c11_683, %c1_684, %c0_685], %463 {strides = array<i32>} : memref<18x9x64xbf16, #tpu.memory_space<vmem>>, vector<1x8x32xbf16>,
    %c176_686 = arith.constant 176 : index
    %c0_687 = arith.constant 0 : index
    %464 = tpu.strided_load %arg9[%c176_686, %c0_687] {strides = array<i32: 2, 1>} : memref<256x32xf32, #tpu.memory_space<vmem>>, vector<8x32xf32>
    %465 = arith.truncf %464 : vector<8x32xf32> to vector<8x32xbf16>
    %c177 = arith.constant 177 : index
    %c0_688 = arith.constant 0 : index
    %466 = tpu.strided_load %arg9[%c177, %c0_688] {strides = array<i32: 2, 1>} : memref<256x32xf32, #tpu.memory_space<vmem>>, vector<8x32xf32>
    %467 = arith.truncf %466 : vector<8x32xf32> to vector<8x32xbf16>
    %c12_689 = arith.constant 12 : index
    %c0_690 = arith.constant 0 : index
    %c32_691 = arith.constant 32 : index
    %468 = vector.load %arg5[%c12_689, %c0_690, %c32_691] : memref<18x9x64xbf16, #tpu.memory_space<vmem>>, vector<1x8x32xbf16>
    %469 = vector.shape_cast %468 : vector<1x8x32xbf16> to vector<8x32xbf16>
    %470 = vector.shape_cast %465 : vector<8x32xbf16> to vector<1x8x32xbf16>
    tpu.vector_store %arg5[%c12_689, %c0_690, %c32_691], %470 {strides = array<i32>} : memref<18x9x64xbf16, #tpu.memory_space<vmem>>, vector<1x8x32xbf16>,
    %c12_692 = arith.constant 12 : index
    %c1_693 = arith.constant 1 : index
    %c0_694 = arith.constant 0 : index
    %471 = vector.load %arg5[%c12_692, %c1_693, %c0_694] : memref<18x9x64xbf16, #tpu.memory_space<vmem>>, vector<1x8x32xbf16>
    %472 = vector.shape_cast %471 : vector<1x8x32xbf16> to vector<8x32xbf16>
    %473 = vector.shape_cast %467 : vector<8x32xbf16> to vector<1x8x32xbf16>
    tpu.vector_store %arg5[%c12_692, %c1_693, %c0_694], %473 {strides = array<i32>} : memref<18x9x64xbf16, #tpu.memory_space<vmem>>, vector<1x8x32xbf16>,
    %c192_695 = arith.constant 192 : index
    %c0_696 = arith.constant 0 : index
    %474 = tpu.strided_load %arg9[%c192_695, %c0_696] {strides = array<i32: 2, 1>} : memref<256x32xf32, #tpu.memory_space<vmem>>, vector<8x32xf32>
    %475 = arith.truncf %474 : vector<8x32xf32> to vector<8x32xbf16>
    %c193 = arith.constant 193 : index
    %c0_697 = arith.constant 0 : index
    %476 = tpu.strided_load %arg9[%c193, %c0_697] {strides = array<i32: 2, 1>} : memref<256x32xf32, #tpu.memory_space<vmem>>, vector<8x32xf32>
    %477 = arith.truncf %476 : vector<8x32xf32> to vector<8x32xbf16>
    %c13_698 = arith.constant 13 : index
    %c0_699 = arith.constant 0 : index
    %c32_700 = arith.constant 32 : index
    %478 = vector.load %arg5[%c13_698, %c0_699, %c32_700] : memref<18x9x64xbf16, #tpu.memory_space<vmem>>, vector<1x8x32xbf16>
    %479 = vector.shape_cast %478 : vector<1x8x32xbf16> to vector<8x32xbf16>
    %480 = vector.shape_cast %475 : vector<8x32xbf16> to vector<1x8x32xbf16>
    tpu.vector_store %arg5[%c13_698, %c0_699, %c32_700], %480 {strides = array<i32>} : memref<18x9x64xbf16, #tpu.memory_space<vmem>>, vector<1x8x32xbf16>,
    %c13_701 = arith.constant 13 : index
    %c1_702 = arith.constant 1 : index
    %c0_703 = arith.constant 0 : index
    %481 = vector.load %arg5[%c13_701, %c1_702, %c0_703] : memref<18x9x64xbf16, #tpu.memory_space<vmem>>, vector<1x8x32xbf16>
    %482 = vector.shape_cast %481 : vector<1x8x32xbf16> to vector<8x32xbf16>
    %483 = vector.shape_cast %477 : vector<8x32xbf16> to vector<1x8x32xbf16>
    tpu.vector_store %arg5[%c13_701, %c1_702, %c0_703], %483 {strides = array<i32>} : memref<18x9x64xbf16, #tpu.memory_space<vmem>>, vector<1x8x32xbf16>,
    %c208_704 = arith.constant 208 : index
    %c0_705 = arith.constant 0 : index
    %484 = tpu.strided_load %arg9[%c208_704, %c0_705] {strides = array<i32: 2, 1>} : memref<256x32xf32, #tpu.memory_space<vmem>>, vector<8x32xf32>
    %485 = arith.truncf %484 : vector<8x32xf32> to vector<8x32xbf16>
    %c209 = arith.constant 209 : index
    %c0_706 = arith.constant 0 : index
    %486 = tpu.strided_load %arg9[%c209, %c0_706] {strides = array<i32: 2, 1>} : memref<256x32xf32, #tpu.memory_space<vmem>>, vector<8x32xf32>
    %487 = arith.truncf %486 : vector<8x32xf32> to vector<8x32xbf16>
    %c14_707 = arith.constant 14 : index
    %c0_708 = arith.constant 0 : index
    %c32_709 = arith.constant 32 : index
    %488 = vector.load %arg5[%c14_707, %c0_708, %c32_709] : memref<18x9x64xbf16, #tpu.memory_space<vmem>>, vector<1x8x32xbf16>
    %489 = vector.shape_cast %488 : vector<1x8x32xbf16> to vector<8x32xbf16>
    %490 = vector.shape_cast %485 : vector<8x32xbf16> to vector<1x8x32xbf16>
    tpu.vector_store %arg5[%c14_707, %c0_708, %c32_709], %490 {strides = array<i32>} : memref<18x9x64xbf16, #tpu.memory_space<vmem>>, vector<1x8x32xbf16>,
    %c14_710 = arith.constant 14 : index
    %c1_711 = arith.constant 1 : index
    %c0_712 = arith.constant 0 : index
    %491 = vector.load %arg5[%c14_710, %c1_711, %c0_712] : memref<18x9x64xbf16, #tpu.memory_space<vmem>>, vector<1x8x32xbf16>
    %492 = vector.shape_cast %491 : vector<1x8x32xbf16> to vector<8x32xbf16>
    %493 = vector.shape_cast %487 : vector<8x32xbf16> to vector<1x8x32xbf16>
    tpu.vector_store %arg5[%c14_710, %c1_711, %c0_712], %493 {strides = array<i32>} : memref<18x9x64xbf16, #tpu.memory_space<vmem>>, vector<1x8x32xbf16>,
    %c224_713 = arith.constant 224 : index
    %c0_714 = arith.constant 0 : index
    %494 = tpu.strided_load %arg9[%c224_713, %c0_714] {strides = array<i32: 2, 1>} : memref<256x32xf32, #tpu.memory_space<vmem>>, vector<8x32xf32>
    %495 = arith.truncf %494 : vector<8x32xf32> to vector<8x32xbf16>
    %c225 = arith.constant 225 : index
    %c0_715 = arith.constant 0 : index
    %496 = tpu.strided_load %arg9[%c225, %c0_715] {strides = array<i32: 2, 1>} : memref<256x32xf32, #tpu.memory_space<vmem>>, vector<8x32xf32>
    %497 = arith.truncf %496 : vector<8x32xf32> to vector<8x32xbf16>
    %c15_716 = arith.constant 15 : index
    %c0_717 = arith.constant 0 : index
    %c32_718 = arith.constant 32 : index
    %498 = vector.load %arg5[%c15_716, %c0_717, %c32_718] : memref<18x9x64xbf16, #tpu.memory_space<vmem>>, vector<1x8x32xbf16>
    %499 = vector.shape_cast %498 : vector<1x8x32xbf16> to vector<8x32xbf16>
    %500 = vector.shape_cast %495 : vector<8x32xbf16> to vector<1x8x32xbf16>
    tpu.vector_store %arg5[%c15_716, %c0_717, %c32_718], %500 {strides = array<i32>} : memref<18x9x64xbf16, #tpu.memory_space<vmem>>, vector<1x8x32xbf16>,
    %c15_719 = arith.constant 15 : index
    %c1_720 = arith.constant 1 : index
    %c0_721 = arith.constant 0 : index
    %501 = vector.load %arg5[%c15_719, %c1_720, %c0_721] : memref<18x9x64xbf16, #tpu.memory_space<vmem>>, vector<1x8x32xbf16>
    %502 = vector.shape_cast %501 : vector<1x8x32xbf16> to vector<8x32xbf16>
    %503 = vector.shape_cast %497 : vector<8x32xbf16> to vector<1x8x32xbf16>
    tpu.vector_store %arg5[%c15_719, %c1_720, %c0_721], %503 {strides = array<i32>} : memref<18x9x64xbf16, #tpu.memory_space<vmem>>, vector<1x8x32xbf16>,
    %c240_722 = arith.constant 240 : index
    %c0_723 = arith.constant 0 : index
    %504 = tpu.strided_load %arg9[%c240_722, %c0_723] {strides = array<i32: 2, 1>} : memref<256x32xf32, #tpu.memory_space<vmem>>, vector<8x32xf32>
    %505 = arith.truncf %504 : vector<8x32xf32> to vector<8x32xbf16>
    %c241 = arith.constant 241 : index
    %c0_724 = arith.constant 0 : index
    %506 = tpu.strided_load %arg9[%c241, %c0_724] {strides = array<i32: 2, 1>} : memref<256x32xf32, #tpu.memory_space<vmem>>, vector<8x32xf32>
    %507 = arith.truncf %506 : vector<8x32xf32> to vector<8x32xbf16>
    %c16_725 = arith.constant 16 : index
    %c0_726 = arith.constant 0 : index
    %c32_727 = arith.constant 32 : index
    %508 = vector.load %arg5[%c16_725, %c0_726, %c32_727] : memref<18x9x64xbf16, #tpu.memory_space<vmem>>, vector<1x8x32xbf16>
    %509 = vector.shape_cast %508 : vector<1x8x32xbf16> to vector<8x32xbf16>
    %510 = vector.shape_cast %505 : vector<8x32xbf16> to vector<1x8x32xbf16>
    tpu.vector_store %arg5[%c16_725, %c0_726, %c32_727], %510 {strides = array<i32>} : memref<18x9x64xbf16, #tpu.memory_space<vmem>>, vector<1x8x32xbf16>,
    %c16_728 = arith.constant 16 : index
    %c1_729 = arith.constant 1 : index
    %c0_730 = arith.constant 0 : index
    %511 = vector.load %arg5[%c16_728, %c1_729, %c0_730] : memref<18x9x64xbf16, #tpu.memory_space<vmem>>, vector<1x8x32xbf16>
    %512 = vector.shape_cast %511 : vector<1x8x32xbf16> to vector<8x32xbf16>
    %513 = vector.shape_cast %507 : vector<8x32xbf16> to vector<1x8x32xbf16>
    tpu.vector_store %arg5[%c16_728, %c1_729, %c0_730], %513 {strides = array<i32>} : memref<18x9x64xbf16, #tpu.memory_space<vmem>>, vector<1x8x32xbf16>,
    %c0_731 = arith.constant 0 : index
    %c0_732 = arith.constant 0 : index
    %c0_733 = arith.constant 0 : index
    %514 = vector.load %arg5[%c0_731, %c0_732, %c0_733] : memref<18x9x64xbf16, #tpu.memory_space<vmem>>, vector<1x8x32xbf16>
    %515 = vector.shape_cast %514 : vector<1x8x32xbf16> to vector<8x32xbf16>
    %c0_734 = arith.constant 0 : index
    %c0_735 = arith.constant 0 : index
    %c32_736 = arith.constant 32 : index
    %516 = vector.load %arg5[%c0_734, %c0_735, %c32_736] : memref<18x9x64xbf16, #tpu.memory_space<vmem>>, vector<1x8x32xbf16>
    %517 = vector.shape_cast %516 : vector<1x8x32xbf16> to vector<8x32xbf16>
    %c0_737 = arith.constant 0 : index
    %c1_738 = arith.constant 1 : index
    %c0_739 = arith.constant 0 : index
    %518 = vector.load %arg5[%c0_737, %c1_738, %c0_739] : memref<18x9x64xbf16, #tpu.memory_space<vmem>>, vector<1x8x32xbf16>
    %519 = vector.shape_cast %518 : vector<1x8x32xbf16> to vector<8x32xbf16>
    %c1_740 = arith.constant 1 : index
    %c0_741 = arith.constant 0 : index
    %c0_742 = arith.constant 0 : index
    %520 = vector.load %arg5[%c1_740, %c0_741, %c0_742] : memref<18x9x64xbf16, #tpu.memory_space<vmem>>, vector<1x8x32xbf16>
    %521 = vector.shape_cast %520 : vector<1x8x32xbf16> to vector<8x32xbf16>
    %c1_743 = arith.constant 1 : index
    %c0_744 = arith.constant 0 : index
    %c32_745 = arith.constant 32 : index
    %522 = vector.load %arg5[%c1_743, %c0_744, %c32_745] : memref<18x9x64xbf16, #tpu.memory_space<vmem>>, vector<1x8x32xbf16>
    %523 = vector.shape_cast %522 : vector<1x8x32xbf16> to vector<8x32xbf16>
    %c1_746 = arith.constant 1 : index
    %c1_747 = arith.constant 1 : index
    %c0_748 = arith.constant 0 : index
    %524 = vector.load %arg5[%c1_746, %c1_747, %c0_748] : memref<18x9x64xbf16, #tpu.memory_space<vmem>>, vector<1x8x32xbf16>
    %525 = vector.shape_cast %524 : vector<1x8x32xbf16> to vector<8x32xbf16>
    %c2_749 = arith.constant 2 : index
    %c0_750 = arith.constant 0 : index
    %c0_751 = arith.constant 0 : index
    %526 = vector.load %arg5[%c2_749, %c0_750, %c0_751] : memref<18x9x64xbf16, #tpu.memory_space<vmem>>, vector<1x8x32xbf16>
    %527 = vector.shape_cast %526 : vector<1x8x32xbf16> to vector<8x32xbf16>
    %c2_752 = arith.constant 2 : index
    %c0_753 = arith.constant 0 : index
    %c32_754 = arith.constant 32 : index
    %528 = vector.load %arg5[%c2_752, %c0_753, %c32_754] : memref<18x9x64xbf16, #tpu.memory_space<vmem>>, vector<1x8x32xbf16>
    %529 = vector.shape_cast %528 : vector<1x8x32xbf16> to vector<8x32xbf16>
    %c2_755 = arith.constant 2 : index
    %c1_756 = arith.constant 1 : index
    %c0_757 = arith.constant 0 : index
    %530 = vector.load %arg5[%c2_755, %c1_756, %c0_757] : memref<18x9x64xbf16, #tpu.memory_space<vmem>>, vector<1x8x32xbf16>
    %531 = vector.shape_cast %530 : vector<1x8x32xbf16> to vector<8x32xbf16>
    %532 = tpu.concatenate %515, %517, %519, %521, %523, %525, %527, %529, %531 in 1 : vector<8x32xbf16>, vector<8x32xbf16>, vector<8x32xbf16>, vector<8x32xbf16>, vector<8x32xbf16>, vector<8x32xbf16>, vector<8x32xbf16>, vector<8x32xbf16>, vector<8x32xbf16> -> vector<8x288xbf16>
    %533 = arith.extf %532 : vector<8x288xbf16> to vector<8x288xf32>
    %c0_758 = arith.constant 0 : index
    %c0_759 = arith.constant 0 : index
    %534 = vector.load %arg8[%c0_758, %c0_759] : memref<256x288xf32, #tpu.memory_space<vmem>>, vector<8x288xf32>
    tpu.vector_store %arg8[%c0_758, %c0_759], %533 {strides = array<i32>} : memref<256x288xf32, #tpu.memory_space<vmem>>, vector<8x288xf32>,
    %c2_760 = arith.constant 2 : index
    %c0_761 = arith.constant 0 : index
    %c0_762 = arith.constant 0 : index
    %535 = vector.load %arg5[%c2_760, %c0_761, %c0_762] : memref<18x9x64xbf16, #tpu.memory_space<vmem>>, vector<1x8x32xbf16>
    %536 = vector.shape_cast %535 : vector<1x8x32xbf16> to vector<8x32xbf16>
    %c2_763 = arith.constant 2 : index
    %c0_764 = arith.constant 0 : index
    %c32_765 = arith.constant 32 : index
    %537 = vector.load %arg5[%c2_763, %c0_764, %c32_765] : memref<18x9x64xbf16, #tpu.memory_space<vmem>>, vector<1x8x32xbf16>
    %538 = vector.shape_cast %537 : vector<1x8x32xbf16> to vector<8x32xbf16>
    %c2_766 = arith.constant 2 : index
    %c1_767 = arith.constant 1 : index
    %c0_768 = arith.constant 0 : index
    %539 = vector.load %arg5[%c2_766, %c1_767, %c0_768] : memref<18x9x64xbf16, #tpu.memory_space<vmem>>, vector<1x8x32xbf16>
    %540 = vector.shape_cast %539 : vector<1x8x32xbf16> to vector<8x32xbf16>
    %c3_769 = arith.constant 3 : index
    %c0_770 = arith.constant 0 : index
    %c0_771 = arith.constant 0 : index
    %541 = vector.load %arg5[%c3_769, %c0_770, %c0_771] : memref<18x9x64xbf16, #tpu.memory_space<vmem>>, vector<1x8x32xbf16>
    %542 = vector.shape_cast %541 : vector<1x8x32xbf16> to vector<8x32xbf16>
    %c3_772 = arith.constant 3 : index
    %c0_773 = arith.constant 0 : index
    %c32_774 = arith.constant 32 : index
    %543 = vector.load %arg5[%c3_772, %c0_773, %c32_774] : memref<18x9x64xbf16, #tpu.memory_space<vmem>>, vector<1x8x32xbf16>
    %544 = vector.shape_cast %543 : vector<1x8x32xbf16> to vector<8x32xbf16>
    %c3_775 = arith.constant 3 : index
    %c1_776 = arith.constant 1 : index
    %c0_777 = arith.constant 0 : index
    %545 = vector.load %arg5[%c3_775, %c1_776, %c0_777] : memref<18x9x64xbf16, #tpu.memory_space<vmem>>, vector<1x8x32xbf16>
    %546 = vector.shape_cast %545 : vector<1x8x32xbf16> to vector<8x32xbf16>
    %c4_778 = arith.constant 4 : index
    %c0_779 = arith.constant 0 : index
    %c0_780 = arith.constant 0 : index
    %547 = vector.load %arg5[%c4_778, %c0_779, %c0_780] : memref<18x9x64xbf16, #tpu.memory_space<vmem>>, vector<1x8x32xbf16>
    %548 = vector.shape_cast %547 : vector<1x8x32xbf16> to vector<8x32xbf16>
    %c4_781 = arith.constant 4 : index
    %c0_782 = arith.constant 0 : index
    %c32_783 = arith.constant 32 : index
    %549 = vector.load %arg5[%c4_781, %c0_782, %c32_783] : memref<18x9x64xbf16, #tpu.memory_space<vmem>>, vector<1x8x32xbf16>
    %550 = vector.shape_cast %549 : vector<1x8x32xbf16> to vector<8x32xbf16>
    %c4_784 = arith.constant 4 : index
    %c1_785 = arith.constant 1 : index
    %c0_786 = arith.constant 0 : index
    %551 = vector.load %arg5[%c4_784, %c1_785, %c0_786] : memref<18x9x64xbf16, #tpu.memory_space<vmem>>, vector<1x8x32xbf16>
    %552 = vector.shape_cast %551 : vector<1x8x32xbf16> to vector<8x32xbf16>
    %553 = tpu.concatenate %536, %538, %540, %542, %544, %546, %548, %550, %552 in 1 : vector<8x32xbf16>, vector<8x32xbf16>, vector<8x32xbf16>, vector<8x32xbf16>, vector<8x32xbf16>, vector<8x32xbf16>, vector<8x32xbf16>, vector<8x32xbf16>, vector<8x32xbf16> -> vector<8x288xbf16>
    %554 = arith.extf %553 : vector<8x288xbf16> to vector<8x288xf32>
    %c8_787 = arith.constant 8 : index
    %c0_788 = arith.constant 0 : index
    %555 = vector.load %arg8[%c8_787, %c0_788] : memref<256x288xf32, #tpu.memory_space<vmem>>, vector<8x288xf32>
    tpu.vector_store %arg8[%c8_787, %c0_788], %554 {strides = array<i32>} : memref<256x288xf32, #tpu.memory_space<vmem>>, vector<8x288xf32>,
    %c4_789 = arith.constant 4 : index
    %c0_790 = arith.constant 0 : index
    %c0_791 = arith.constant 0 : index
    %556 = vector.load %arg5[%c4_789, %c0_790, %c0_791] : memref<18x9x64xbf16, #tpu.memory_space<vmem>>, vector<1x8x32xbf16>
    %557 = vector.shape_cast %556 : vector<1x8x32xbf16> to vector<8x32xbf16>
    %c4_792 = arith.constant 4 : index
    %c0_793 = arith.constant 0 : index
    %c32_794 = arith.constant 32 : index
    %558 = vector.load %arg5[%c4_792, %c0_793, %c32_794] : memref<18x9x64xbf16, #tpu.memory_space<vmem>>, vector<1x8x32xbf16>
    %559 = vector.shape_cast %558 : vector<1x8x32xbf16> to vector<8x32xbf16>
    %c4_795 = arith.constant 4 : index
    %c1_796 = arith.constant 1 : index
    %c0_797 = arith.constant 0 : index
    %560 = vector.load %arg5[%c4_795, %c1_796, %c0_797] : memref<18x9x64xbf16, #tpu.memory_space<vmem>>, vector<1x8x32xbf16>
    %561 = vector.shape_cast %560 : vector<1x8x32xbf16> to vector<8x32xbf16>
    %c5_798 = arith.constant 5 : index
    %c0_799 = arith.constant 0 : index
    %c0_800 = arith.constant 0 : index
    %562 = vector.load %arg5[%c5_798, %c0_799, %c0_800] : memref<18x9x64xbf16, #tpu.memory_space<vmem>>, vector<1x8x32xbf16>
    %563 = vector.shape_cast %562 : vector<1x8x32xbf16> to vector<8x32xbf16>
    %c5_801 = arith.constant 5 : index
    %c0_802 = arith.constant 0 : index
    %c32_803 = arith.constant 32 : index
    %564 = vector.load %arg5[%c5_801, %c0_802, %c32_803] : memref<18x9x64xbf16, #tpu.memory_space<vmem>>, vector<1x8x32xbf16>
    %565 = vector.shape_cast %564 : vector<1x8x32xbf16> to vector<8x32xbf16>
    %c5_804 = arith.constant 5 : index
    %c1_805 = arith.constant 1 : index
    %c0_806 = arith.constant 0 : index
    %566 = vector.load %arg5[%c5_804, %c1_805, %c0_806] : memref<18x9x64xbf16, #tpu.memory_space<vmem>>, vector<1x8x32xbf16>
    %567 = vector.shape_cast %566 : vector<1x8x32xbf16> to vector<8x32xbf16>
    %c6_807 = arith.constant 6 : index
    %c0_808 = arith.constant 0 : index
    %c0_809 = arith.constant 0 : index
    %568 = vector.load %arg5[%c6_807, %c0_808, %c0_809] : memref<18x9x64xbf16, #tpu.memory_space<vmem>>, vector<1x8x32xbf16>
    %569 = vector.shape_cast %568 : vector<1x8x32xbf16> to vector<8x32xbf16>
    %c6_810 = arith.constant 6 : index
    %c0_811 = arith.constant 0 : index
    %c32_812 = arith.constant 32 : index
    %570 = vector.load %arg5[%c6_810, %c0_811, %c32_812] : memref<18x9x64xbf16, #tpu.memory_space<vmem>>, vector<1x8x32xbf16>
    %571 = vector.shape_cast %570 : vector<1x8x32xbf16> to vector<8x32xbf16>
    %c6_813 = arith.constant 6 : index
    %c1_814 = arith.constant 1 : index
    %c0_815 = arith.constant 0 : index
    %572 = vector.load %arg5[%c6_813, %c1_814, %c0_815] : memref<18x9x64xbf16, #tpu.memory_space<vmem>>, vector<1x8x32xbf16>
    %573 = vector.shape_cast %572 : vector<1x8x32xbf16> to vector<8x32xbf16>
    %574 = tpu.concatenate %557, %559, %561, %563, %565, %567, %569, %571, %573 in 1 : vector<8x32xbf16>, vector<8x32xbf16>, vector<8x32xbf16>, vector<8x32xbf16>, vector<8x32xbf16>, vector<8x32xbf16>, vector<8x32xbf16>, vector<8x32xbf16>, vector<8x32xbf16> -> vector<8x288xbf16>
    %575 = arith.extf %574 : vector<8x288xbf16> to vector<8x288xf32>
    %c16_816 = arith.constant 16 : index
    %c0_817 = arith.constant 0 : index
    %576 = vector.load %arg8[%c16_816, %c0_817] : memref<256x288xf32, #tpu.memory_space<vmem>>, vector<8x288xf32>
    tpu.vector_store %arg8[%c16_816, %c0_817], %575 {strides = array<i32>} : memref<256x288xf32, #tpu.memory_space<vmem>>, vector<8x288xf32>,
    %c6_818 = arith.constant 6 : index
    %c0_819 = arith.constant 0 : index
    %c0_820 = arith.constant 0 : index
    %577 = vector.load %arg5[%c6_818, %c0_819, %c0_820] : memref<18x9x64xbf16, #tpu.memory_space<vmem>>, vector<1x8x32xbf16>
    %578 = vector.shape_cast %577 : vector<1x8x32xbf16> to vector<8x32xbf16>
    %c6_821 = arith.constant 6 : index
    %c0_822 = arith.constant 0 : index
    %c32_823 = arith.constant 32 : index
    %579 = vector.load %arg5[%c6_821, %c0_822, %c32_823] : memref<18x9x64xbf16, #tpu.memory_space<vmem>>, vector<1x8x32xbf16>
    %580 = vector.shape_cast %579 : vector<1x8x32xbf16> to vector<8x32xbf16>
    %c6_824 = arith.constant 6 : index
    %c1_825 = arith.constant 1 : index
    %c0_826 = arith.constant 0 : index
    %581 = vector.load %arg5[%c6_824, %c1_825, %c0_826] : memref<18x9x64xbf16, #tpu.memory_space<vmem>>, vector<1x8x32xbf16>
    %582 = vector.shape_cast %581 : vector<1x8x32xbf16> to vector<8x32xbf16>
    %c7_827 = arith.constant 7 : index
    %c0_828 = arith.constant 0 : index
    %c0_829 = arith.constant 0 : index
    %583 = vector.load %arg5[%c7_827, %c0_828, %c0_829] : memref<18x9x64xbf16, #tpu.memory_space<vmem>>, vector<1x8x32xbf16>
    %584 = vector.shape_cast %583 : vector<1x8x32xbf16> to vector<8x32xbf16>
    %c7_830 = arith.constant 7 : index
    %c0_831 = arith.constant 0 : index
    %c32_832 = arith.constant 32 : index
    %585 = vector.load %arg5[%c7_830, %c0_831, %c32_832] : memref<18x9x64xbf16, #tpu.memory_space<vmem>>, vector<1x8x32xbf16>
    %586 = vector.shape_cast %585 : vector<1x8x32xbf16> to vector<8x32xbf16>
    %c7_833 = arith.constant 7 : index
    %c1_834 = arith.constant 1 : index
    %c0_835 = arith.constant 0 : index
    %587 = vector.load %arg5[%c7_833, %c1_834, %c0_835] : memref<18x9x64xbf16, #tpu.memory_space<vmem>>, vector<1x8x32xbf16>
    %588 = vector.shape_cast %587 : vector<1x8x32xbf16> to vector<8x32xbf16>
    %c8_836 = arith.constant 8 : index
    %c0_837 = arith.constant 0 : index
    %c0_838 = arith.constant 0 : index
    %589 = vector.load %arg5[%c8_836, %c0_837, %c0_838] : memref<18x9x64xbf16, #tpu.memory_space<vmem>>, vector<1x8x32xbf16>
    %590 = vector.shape_cast %589 : vector<1x8x32xbf16> to vector<8x32xbf16>
    %c8_839 = arith.constant 8 : index
    %c0_840 = arith.constant 0 : index
    %c32_841 = arith.constant 32 : index
    %591 = vector.load %arg5[%c8_839, %c0_840, %c32_841] : memref<18x9x64xbf16, #tpu.memory_space<vmem>>, vector<1x8x32xbf16>
    %592 = vector.shape_cast %591 : vector<1x8x32xbf16> to vector<8x32xbf16>
    %c8_842 = arith.constant 8 : index
    %c1_843 = arith.constant 1 : index
    %c0_844 = arith.constant 0 : index
    %593 = vector.load %arg5[%c8_842, %c1_843, %c0_844] : memref<18x9x64xbf16, #tpu.memory_space<vmem>>, vector<1x8x32xbf16>
    %594 = vector.shape_cast %593 : vector<1x8x32xbf16> to vector<8x32xbf16>
    %595 = tpu.concatenate %578, %580, %582, %584, %586, %588, %590, %592, %594 in 1 : vector<8x32xbf16>, vector<8x32xbf16>, vector<8x32xbf16>, vector<8x32xbf16>, vector<8x32xbf16>, vector<8x32xbf16>, vector<8x32xbf16>, vector<8x32xbf16>, vector<8x32xbf16> -> vector<8x288xbf16>
    %596 = arith.extf %595 : vector<8x288xbf16> to vector<8x288xf32>
    %c24_845 = arith.constant 24 : index
    %c0_846 = arith.constant 0 : index
    %597 = vector.load %arg8[%c24_845, %c0_846] : memref<256x288xf32, #tpu.memory_space<vmem>>, vector<8x288xf32>
    tpu.vector_store %arg8[%c24_845, %c0_846], %596 {strides = array<i32>} : memref<256x288xf32, #tpu.memory_space<vmem>>, vector<8x288xf32>,
    %c8_847 = arith.constant 8 : index
    %c0_848 = arith.constant 0 : index
    %c0_849 = arith.constant 0 : index
    %598 = vector.load %arg5[%c8_847, %c0_848, %c0_849] : memref<18x9x64xbf16, #tpu.memory_space<vmem>>, vector<1x8x32xbf16>
    %599 = vector.shape_cast %598 : vector<1x8x32xbf16> to vector<8x32xbf16>
    %c8_850 = arith.constant 8 : index
    %c0_851 = arith.constant 0 : index
    %c32_852 = arith.constant 32 : index
    %600 = vector.load %arg5[%c8_850, %c0_851, %c32_852] : memref<18x9x64xbf16, #tpu.memory_space<vmem>>, vector<1x8x32xbf16>
    %601 = vector.shape_cast %600 : vector<1x8x32xbf16> to vector<8x32xbf16>
    %c8_853 = arith.constant 8 : index
    %c1_854 = arith.constant 1 : index
    %c0_855 = arith.constant 0 : index
    %602 = vector.load %arg5[%c8_853, %c1_854, %c0_855] : memref<18x9x64xbf16, #tpu.memory_space<vmem>>, vector<1x8x32xbf16>
    %603 = vector.shape_cast %602 : vector<1x8x32xbf16> to vector<8x32xbf16>
    %c9_856 = arith.constant 9 : index
    %c0_857 = arith.constant 0 : index
    %c0_858 = arith.constant 0 : index
    %604 = vector.load %arg5[%c9_856, %c0_857, %c0_858] : memref<18x9x64xbf16, #tpu.memory_space<vmem>>, vector<1x8x32xbf16>
    %605 = vector.shape_cast %604 : vector<1x8x32xbf16> to vector<8x32xbf16>
    %c9_859 = arith.constant 9 : index
    %c0_860 = arith.constant 0 : index
    %c32_861 = arith.constant 32 : index
    %606 = vector.load %arg5[%c9_859, %c0_860, %c32_861] : memref<18x9x64xbf16, #tpu.memory_space<vmem>>, vector<1x8x32xbf16>
    %607 = vector.shape_cast %606 : vector<1x8x32xbf16> to vector<8x32xbf16>
    %c9_862 = arith.constant 9 : index
    %c1_863 = arith.constant 1 : index
    %c0_864 = arith.constant 0 : index
    %608 = vector.load %arg5[%c9_862, %c1_863, %c0_864] : memref<18x9x64xbf16, #tpu.memory_space<vmem>>, vector<1x8x32xbf16>
    %609 = vector.shape_cast %608 : vector<1x8x32xbf16> to vector<8x32xbf16>
    %c10_865 = arith.constant 10 : index
    %c0_866 = arith.constant 0 : index
    %c0_867 = arith.constant 0 : index
    %610 = vector.load %arg5[%c10_865, %c0_866, %c0_867] : memref<18x9x64xbf16, #tpu.memory_space<vmem>>, vector<1x8x32xbf16>
    %611 = vector.shape_cast %610 : vector<1x8x32xbf16> to vector<8x32xbf16>
    %c10_868 = arith.constant 10 : index
    %c0_869 = arith.constant 0 : index
    %c32_870 = arith.constant 32 : index
    %612 = vector.load %arg5[%c10_868, %c0_869, %c32_870] : memref<18x9x64xbf16, #tpu.memory_space<vmem>>, vector<1x8x32xbf16>
    %613 = vector.shape_cast %612 : vector<1x8x32xbf16> to vector<8x32xbf16>
    %c10_871 = arith.constant 10 : index
    %c1_872 = arith.constant 1 : index
    %c0_873 = arith.constant 0 : index
    %614 = vector.load %arg5[%c10_871, %c1_872, %c0_873] : memref<18x9x64xbf16, #tpu.memory_space<vmem>>, vector<1x8x32xbf16>
    %615 = vector.shape_cast %614 : vector<1x8x32xbf16> to vector<8x32xbf16>
    %616 = tpu.concatenate %599, %601, %603, %605, %607, %609, %611, %613, %615 in 1 : vector<8x32xbf16>, vector<8x32xbf16>, vector<8x32xbf16>, vector<8x32xbf16>, vector<8x32xbf16>, vector<8x32xbf16>, vector<8x32xbf16>, vector<8x32xbf16>, vector<8x32xbf16> -> vector<8x288xbf16>
    %617 = arith.extf %616 : vector<8x288xbf16> to vector<8x288xf32>
    %c32_874 = arith.constant 32 : index
    %c0_875 = arith.constant 0 : index
    %618 = vector.load %arg8[%c32_874, %c0_875] : memref<256x288xf32, #tpu.memory_space<vmem>>, vector<8x288xf32>
    tpu.vector_store %arg8[%c32_874, %c0_875], %617 {strides = array<i32>} : memref<256x288xf32, #tpu.memory_space<vmem>>, vector<8x288xf32>,
    %c10_876 = arith.constant 10 : index
    %c0_877 = arith.constant 0 : index
    %c0_878 = arith.constant 0 : index
    %619 = vector.load %arg5[%c10_876, %c0_877, %c0_878] : memref<18x9x64xbf16, #tpu.memory_space<vmem>>, vector<1x8x32xbf16>
    %620 = vector.shape_cast %619 : vector<1x8x32xbf16> to vector<8x32xbf16>
    %c10_879 = arith.constant 10 : index
    %c0_880 = arith.constant 0 : index
    %c32_881 = arith.constant 32 : index
    %621 = vector.load %arg5[%c10_879, %c0_880, %c32_881] : memref<18x9x64xbf16, #tpu.memory_space<vmem>>, vector<1x8x32xbf16>
    %622 = vector.shape_cast %621 : vector<1x8x32xbf16> to vector<8x32xbf16>
    %c10_882 = arith.constant 10 : index
    %c1_883 = arith.constant 1 : index
    %c0_884 = arith.constant 0 : index
    %623 = vector.load %arg5[%c10_882, %c1_883, %c0_884] : memref<18x9x64xbf16, #tpu.memory_space<vmem>>, vector<1x8x32xbf16>
    %624 = vector.shape_cast %623 : vector<1x8x32xbf16> to vector<8x32xbf16>
    %c11_885 = arith.constant 11 : index
    %c0_886 = arith.constant 0 : index
    %c0_887 = arith.constant 0 : index
    %625 = vector.load %arg5[%c11_885, %c0_886, %c0_887] : memref<18x9x64xbf16, #tpu.memory_space<vmem>>, vector<1x8x32xbf16>
    %626 = vector.shape_cast %625 : vector<1x8x32xbf16> to vector<8x32xbf16>
    %c11_888 = arith.constant 11 : index
    %c0_889 = arith.constant 0 : index
    %c32_890 = arith.constant 32 : index
    %627 = vector.load %arg5[%c11_888, %c0_889, %c32_890] : memref<18x9x64xbf16, #tpu.memory_space<vmem>>, vector<1x8x32xbf16>
    %628 = vector.shape_cast %627 : vector<1x8x32xbf16> to vector<8x32xbf16>
    %c11_891 = arith.constant 11 : index
    %c1_892 = arith.constant 1 : index
    %c0_893 = arith.constant 0 : index
    %629 = vector.load %arg5[%c11_891, %c1_892, %c0_893] : memref<18x9x64xbf16, #tpu.memory_space<vmem>>, vector<1x8x32xbf16>
    %630 = vector.shape_cast %629 : vector<1x8x32xbf16> to vector<8x32xbf16>
    %c12_894 = arith.constant 12 : index
    %c0_895 = arith.constant 0 : index
    %c0_896 = arith.constant 0 : index
    %631 = vector.load %arg5[%c12_894, %c0_895, %c0_896] : memref<18x9x64xbf16, #tpu.memory_space<vmem>>, vector<1x8x32xbf16>
    %632 = vector.shape_cast %631 : vector<1x8x32xbf16> to vector<8x32xbf16>
    %c12_897 = arith.constant 12 : index
    %c0_898 = arith.constant 0 : index
    %c32_899 = arith.constant 32 : index
    %633 = vector.load %arg5[%c12_897, %c0_898, %c32_899] : memref<18x9x64xbf16, #tpu.memory_space<vmem>>, vector<1x8x32xbf16>
    %634 = vector.shape_cast %633 : vector<1x8x32xbf16> to vector<8x32xbf16>
    %c12_900 = arith.constant 12 : index
    %c1_901 = arith.constant 1 : index
    %c0_902 = arith.constant 0 : index
    %635 = vector.load %arg5[%c12_900, %c1_901, %c0_902] : memref<18x9x64xbf16, #tpu.memory_space<vmem>>, vector<1x8x32xbf16>
    %636 = vector.shape_cast %635 : vector<1x8x32xbf16> to vector<8x32xbf16>
    %637 = tpu.concatenate %620, %622, %624, %626, %628, %630, %632, %634, %636 in 1 : vector<8x32xbf16>, vector<8x32xbf16>, vector<8x32xbf16>, vector<8x32xbf16>, vector<8x32xbf16>, vector<8x32xbf16>, vector<8x32xbf16>, vector<8x32xbf16>, vector<8x32xbf16> -> vector<8x288xbf16>
    %638 = arith.extf %637 : vector<8x288xbf16> to vector<8x288xf32>
    %c40 = arith.constant 40 : index
    %c0_903 = arith.constant 0 : index
    %639 = vector.load %arg8[%c40, %c0_903] : memref<256x288xf32, #tpu.memory_space<vmem>>, vector<8x288xf32>
    tpu.vector_store %arg8[%c40, %c0_903], %638 {strides = array<i32>} : memref<256x288xf32, #tpu.memory_space<vmem>>, vector<8x288xf32>,
    %c12_904 = arith.constant 12 : index
    %c0_905 = arith.constant 0 : index
    %c0_906 = arith.constant 0 : index
    %640 = vector.load %arg5[%c12_904, %c0_905, %c0_906] : memref<18x9x64xbf16, #tpu.memory_space<vmem>>, vector<1x8x32xbf16>
    %641 = vector.shape_cast %640 : vector<1x8x32xbf16> to vector<8x32xbf16>
    %c12_907 = arith.constant 12 : index
    %c0_908 = arith.constant 0 : index
    %c32_909 = arith.constant 32 : index
    %642 = vector.load %arg5[%c12_907, %c0_908, %c32_909] : memref<18x9x64xbf16, #tpu.memory_space<vmem>>, vector<1x8x32xbf16>
    %643 = vector.shape_cast %642 : vector<1x8x32xbf16> to vector<8x32xbf16>
    %c12_910 = arith.constant 12 : index
    %c1_911 = arith.constant 1 : index
    %c0_912 = arith.constant 0 : index
    %644 = vector.load %arg5[%c12_910, %c1_911, %c0_912] : memref<18x9x64xbf16, #tpu.memory_space<vmem>>, vector<1x8x32xbf16>
    %645 = vector.shape_cast %644 : vector<1x8x32xbf16> to vector<8x32xbf16>
    %c13_913 = arith.constant 13 : index
    %c0_914 = arith.constant 0 : index
    %c0_915 = arith.constant 0 : index
    %646 = vector.load %arg5[%c13_913, %c0_914, %c0_915] : memref<18x9x64xbf16, #tpu.memory_space<vmem>>, vector<1x8x32xbf16>
    %647 = vector.shape_cast %646 : vector<1x8x32xbf16> to vector<8x32xbf16>
    %c13_916 = arith.constant 13 : index
    %c0_917 = arith.constant 0 : index
    %c32_918 = arith.constant 32 : index
    %648 = vector.load %arg5[%c13_916, %c0_917, %c32_918] : memref<18x9x64xbf16, #tpu.memory_space<vmem>>, vector<1x8x32xbf16>
    %649 = vector.shape_cast %648 : vector<1x8x32xbf16> to vector<8x32xbf16>
    %c13_919 = arith.constant 13 : index
    %c1_920 = arith.constant 1 : index
    %c0_921 = arith.constant 0 : index
    %650 = vector.load %arg5[%c13_919, %c1_920, %c0_921] : memref<18x9x64xbf16, #tpu.memory_space<vmem>>, vector<1x8x32xbf16>
    %651 = vector.shape_cast %650 : vector<1x8x32xbf16> to vector<8x32xbf16>
    %c14_922 = arith.constant 14 : index
    %c0_923 = arith.constant 0 : index
    %c0_924 = arith.constant 0 : index
    %652 = vector.load %arg5[%c14_922, %c0_923, %c0_924] : memref<18x9x64xbf16, #tpu.memory_space<vmem>>, vector<1x8x32xbf16>
    %653 = vector.shape_cast %652 : vector<1x8x32xbf16> to vector<8x32xbf16>
    %c14_925 = arith.constant 14 : index
    %c0_926 = arith.constant 0 : index
    %c32_927 = arith.constant 32 : index
    %654 = vector.load %arg5[%c14_925, %c0_926, %c32_927] : memref<18x9x64xbf16, #tpu.memory_space<vmem>>, vector<1x8x32xbf16>
    %655 = vector.shape_cast %654 : vector<1x8x32xbf16> to vector<8x32xbf16>
    %c14_928 = arith.constant 14 : index
    %c1_929 = arith.constant 1 : index
    %c0_930 = arith.constant 0 : index
    %656 = vector.load %arg5[%c14_928, %c1_929, %c0_930] : memref<18x9x64xbf16, #tpu.memory_space<vmem>>, vector<1x8x32xbf16>
    %657 = vector.shape_cast %656 : vector<1x8x32xbf16> to vector<8x32xbf16>
    %658 = tpu.concatenate %641, %643, %645, %647, %649, %651, %653, %655, %657 in 1 : vector<8x32xbf16>, vector<8x32xbf16>, vector<8x32xbf16>, vector<8x32xbf16>, vector<8x32xbf16>, vector<8x32xbf16>, vector<8x32xbf16>, vector<8x32xbf16>, vector<8x32xbf16> -> vector<8x288xbf16>
    %659 = arith.extf %658 : vector<8x288xbf16> to vector<8x288xf32>
    %c48_931 = arith.constant 48 : index
    %c0_932 = arith.constant 0 : index
    %660 = vector.load %arg8[%c48_931, %c0_932] : memref<256x288xf32, #tpu.memory_space<vmem>>, vector<8x288xf32>
    tpu.vector_store %arg8[%c48_931, %c0_932], %659 {strides = array<i32>} : memref<256x288xf32, #tpu.memory_space<vmem>>, vector<8x288xf32>,
    %c14_933 = arith.constant 14 : index
    %c0_934 = arith.constant 0 : index
    %c0_935 = arith.constant 0 : index
    %661 = vector.load %arg5[%c14_933, %c0_934, %c0_935] : memref<18x9x64xbf16, #tpu.memory_space<vmem>>, vector<1x8x32xbf16>
    %662 = vector.shape_cast %661 : vector<1x8x32xbf16> to vector<8x32xbf16>
    %c14_936 = arith.constant 14 : index
    %c0_937 = arith.constant 0 : index
    %c32_938 = arith.constant 32 : index
    %663 = vector.load %arg5[%c14_936, %c0_937, %c32_938] : memref<18x9x64xbf16, #tpu.memory_space<vmem>>, vector<1x8x32xbf16>
    %664 = vector.shape_cast %663 : vector<1x8x32xbf16> to vector<8x32xbf16>
    %c14_939 = arith.constant 14 : index
    %c1_940 = arith.constant 1 : index
    %c0_941 = arith.constant 0 : index
    %665 = vector.load %arg5[%c14_939, %c1_940, %c0_941] : memref<18x9x64xbf16, #tpu.memory_space<vmem>>, vector<1x8x32xbf16>
    %666 = vector.shape_cast %665 : vector<1x8x32xbf16> to vector<8x32xbf16>
    %c15_942 = arith.constant 15 : index
    %c0_943 = arith.constant 0 : index
    %c0_944 = arith.constant 0 : index
    %667 = vector.load %arg5[%c15_942, %c0_943, %c0_944] : memref<18x9x64xbf16, #tpu.memory_space<vmem>>, vector<1x8x32xbf16>
    %668 = vector.shape_cast %667 : vector<1x8x32xbf16> to vector<8x32xbf16>
    %c15_945 = arith.constant 15 : index
    %c0_946 = arith.constant 0 : index
    %c32_947 = arith.constant 32 : index
    %669 = vector.load %arg5[%c15_945, %c0_946, %c32_947] : memref<18x9x64xbf16, #tpu.memory_space<vmem>>, vector<1x8x32xbf16>
    %670 = vector.shape_cast %669 : vector<1x8x32xbf16> to vector<8x32xbf16>
    %c15_948 = arith.constant 15 : index
    %c1_949 = arith.constant 1 : index
    %c0_950 = arith.constant 0 : index
    %671 = vector.load %arg5[%c15_948, %c1_949, %c0_950] : memref<18x9x64xbf16, #tpu.memory_space<vmem>>, vector<1x8x32xbf16>
    %672 = vector.shape_cast %671 : vector<1x8x32xbf16> to vector<8x32xbf16>
    %c16_951 = arith.constant 16 : index
    %c0_952 = arith.constant 0 : index
    %c0_953 = arith.constant 0 : index
    %673 = vector.load %arg5[%c16_951, %c0_952, %c0_953] : memref<18x9x64xbf16, #tpu.memory_space<vmem>>, vector<1x8x32xbf16>
    %674 = vector.shape_cast %673 : vector<1x8x32xbf16> to vector<8x32xbf16>
    %c16_954 = arith.constant 16 : index
    %c0_955 = arith.constant 0 : index
    %c32_956 = arith.constant 32 : index
    %675 = vector.load %arg5[%c16_954, %c0_955, %c32_956] : memref<18x9x64xbf16, #tpu.memory_space<vmem>>, vector<1x8x32xbf16>
    %676 = vector.shape_cast %675 : vector<1x8x32xbf16> to vector<8x32xbf16>
    %c16_957 = arith.constant 16 : index
    %c1_958 = arith.constant 1 : index
    %c0_959 = arith.constant 0 : index
    %677 = vector.load %arg5[%c16_957, %c1_958, %c0_959] : memref<18x9x64xbf16, #tpu.memory_space<vmem>>, vector<1x8x32xbf16>
    %678 = vector.shape_cast %677 : vector<1x8x32xbf16> to vector<8x32xbf16>
    %679 = tpu.concatenate %662, %664, %666, %668, %670, %672, %674, %676, %678 in 1 : vector<8x32xbf16>, vector<8x32xbf16>, vector<8x32xbf16>, vector<8x32xbf16>, vector<8x32xbf16>, vector<8x32xbf16>, vector<8x32xbf16>, vector<8x32xbf16>, vector<8x32xbf16> -> vector<8x288xbf16>
    %680 = arith.extf %679 : vector<8x288xbf16> to vector<8x288xf32>
    %c56 = arith.constant 56 : index
    %c0_960 = arith.constant 0 : index
    %681 = vector.load %arg8[%c56, %c0_960] : memref<256x288xf32, #tpu.memory_space<vmem>>, vector<8x288xf32>
    tpu.vector_store %arg8[%c56, %c0_960], %680 {strides = array<i32>} : memref<256x288xf32, #tpu.memory_space<vmem>>, vector<8x288xf32>,
    %c0_961 = arith.constant 0 : index
    %c0_962 = arith.constant 0 : index
    %682 = vector.load %arg8[%c0_961, %c0_962] : memref<256x288xf32, #tpu.memory_space<vmem>>, vector<64x288xf32>
    %683 = arith.truncf %682 : vector<64x288xf32> to vector<64x288xbf16>
    %c1_963 = arith.constant 1 : index
    %c0_964 = arith.constant 0 : index
    %c0_965 = arith.constant 0 : index
    %684 = vector.load %arg2[%c1_963, %c0_964, %c0_965] : memref<4x288x32xbf16, #tpu.memory_space<vmem>>, vector<1x288x32xbf16>
    %685 = vector.shape_cast %684 : vector<1x288x32xbf16> to vector<288x32xbf16>
    %cst_966 = arith.constant dense<0.000000e+00> : vector<64x32xf32>
    %686 = tpu.matmul %683, %685, %cst_966 {dimension_numbers = #tpu.dot_dimension_numbers<[1], [0], [0], [1], [0, 0, 1, 1], [], []>} : vector<64x288xbf16>, vector<288x32xbf16>, vector<64x32xf32> -> vector<64x32xf32>
    %c1_967 = arith.constant 1 : index
    %c0_968 = arith.constant 0 : index
    %c0_969 = arith.constant 0 : index
    %687 = vector.load %arg3[%c1_967, %c0_968, %c0_969] : memref<4x1x32xf32, #tpu.memory_space<vmem>>, vector<1x1x32xf32>
    %688 = vector.shape_cast %687 : vector<1x1x32xf32> to vector<1x32xf32>
    %689 = vector.broadcast %688 : vector<1x32xf32> to vector<64x32xf32>
    %690 = arith.addf %686, %689 : vector<64x32xf32>
    %cst_970 = arith.constant 0.000000e+00 : f32
    %691 = vector.broadcast %cst_970 : f32 to vector<64x32xf32>
    %692 = arith.maximumf %690, %691 : vector<64x32xf32>
    %c0_971 = arith.constant 0 : index
    %c0_972 = arith.constant 0 : index
    %693 = vector.load %arg9[%c0_971, %c0_972] : memref<256x32xf32, #tpu.memory_space<vmem>>, vector<64x32xf32>
    tpu.vector_store %arg9[%c0_971, %c0_972], %692 {strides = array<i32>} : memref<256x32xf32, #tpu.memory_space<vmem>>, vector<64x32xf32>,
    %c0_973 = arith.constant 0 : index
    %c0_974 = arith.constant 0 : index
    %694 = tpu.strided_load %arg9[%c0_973, %c0_974] {strides = array<i32: 2, 1>} : memref<256x32xf32, #tpu.memory_space<vmem>>, vector<4x32xf32>
    %695 = arith.truncf %694 : vector<4x32xf32> to vector<4x32xbf16>
    %c1_975 = arith.constant 1 : index
    %c0_976 = arith.constant 0 : index
    %696 = tpu.strided_load %arg9[%c1_975, %c0_976] {strides = array<i32: 2, 1>} : memref<256x32xf32, #tpu.memory_space<vmem>>, vector<4x32xf32>
    %697 = arith.truncf %696 : vector<4x32xf32> to vector<4x32xbf16>
    %c1_977 = arith.constant 1 : index
    %c0_978 = arith.constant 0 : index
    %c32_979 = arith.constant 32 : index
    %698 = vector.load %arg6[%c1_977, %c0_978, %c32_979] : memref<10x5x64xbf16, #tpu.memory_space<vmem>>, vector<1x4x32xbf16>
    %699 = vector.shape_cast %698 : vector<1x4x32xbf16> to vector<4x32xbf16>
    %700 = vector.shape_cast %695 : vector<4x32xbf16> to vector<1x4x32xbf16>
    tpu.vector_store %arg6[%c1_977, %c0_978, %c32_979], %700 {strides = array<i32>} : memref<10x5x64xbf16, #tpu.memory_space<vmem>>, vector<1x4x32xbf16>,
    %c1_980 = arith.constant 1 : index
    %c1_981 = arith.constant 1 : index
    %c0_982 = arith.constant 0 : index
    %701 = vector.load %arg6[%c1_980, %c1_981, %c0_982] : memref<10x5x64xbf16, #tpu.memory_space<vmem>>, vector<1x4x32xbf16>
    %702 = vector.shape_cast %701 : vector<1x4x32xbf16> to vector<4x32xbf16>
    %703 = vector.shape_cast %697 : vector<4x32xbf16> to vector<1x4x32xbf16>
    tpu.vector_store %arg6[%c1_980, %c1_981, %c0_982], %703 {strides = array<i32>} : memref<10x5x64xbf16, #tpu.memory_space<vmem>>, vector<1x4x32xbf16>,
    %c8_983 = arith.constant 8 : index
    %c0_984 = arith.constant 0 : index
    %704 = tpu.strided_load %arg9[%c8_983, %c0_984] {strides = array<i32: 2, 1>} : memref<256x32xf32, #tpu.memory_space<vmem>>, vector<4x32xf32>
    %705 = arith.truncf %704 : vector<4x32xf32> to vector<4x32xbf16>
    %c9_985 = arith.constant 9 : index
    %c0_986 = arith.constant 0 : index
    %706 = tpu.strided_load %arg9[%c9_985, %c0_986] {strides = array<i32: 2, 1>} : memref<256x32xf32, #tpu.memory_space<vmem>>, vector<4x32xf32>
    %707 = arith.truncf %706 : vector<4x32xf32> to vector<4x32xbf16>
    %c2_987 = arith.constant 2 : index
    %c0_988 = arith.constant 0 : index
    %c32_989 = arith.constant 32 : index
    %708 = vector.load %arg6[%c2_987, %c0_988, %c32_989] : memref<10x5x64xbf16, #tpu.memory_space<vmem>>, vector<1x4x32xbf16>
    %709 = vector.shape_cast %708 : vector<1x4x32xbf16> to vector<4x32xbf16>
    %710 = vector.shape_cast %705 : vector<4x32xbf16> to vector<1x4x32xbf16>
    tpu.vector_store %arg6[%c2_987, %c0_988, %c32_989], %710 {strides = array<i32>} : memref<10x5x64xbf16, #tpu.memory_space<vmem>>, vector<1x4x32xbf16>,
    %c2_990 = arith.constant 2 : index
    %c1_991 = arith.constant 1 : index
    %c0_992 = arith.constant 0 : index
    %711 = vector.load %arg6[%c2_990, %c1_991, %c0_992] : memref<10x5x64xbf16, #tpu.memory_space<vmem>>, vector<1x4x32xbf16>
    %712 = vector.shape_cast %711 : vector<1x4x32xbf16> to vector<4x32xbf16>
    %713 = vector.shape_cast %707 : vector<4x32xbf16> to vector<1x4x32xbf16>
    tpu.vector_store %arg6[%c2_990, %c1_991, %c0_992], %713 {strides = array<i32>} : memref<10x5x64xbf16, #tpu.memory_space<vmem>>, vector<1x4x32xbf16>,
    %c16_993 = arith.constant 16 : index
    %c0_994 = arith.constant 0 : index
    %714 = tpu.strided_load %arg9[%c16_993, %c0_994] {strides = array<i32: 2, 1>} : memref<256x32xf32, #tpu.memory_space<vmem>>, vector<4x32xf32>
    %715 = arith.truncf %714 : vector<4x32xf32> to vector<4x32xbf16>
    %c17_995 = arith.constant 17 : index
    %c0_996 = arith.constant 0 : index
    %716 = tpu.strided_load %arg9[%c17_995, %c0_996] {strides = array<i32: 2, 1>} : memref<256x32xf32, #tpu.memory_space<vmem>>, vector<4x32xf32>
    %717 = arith.truncf %716 : vector<4x32xf32> to vector<4x32xbf16>
    %c3_997 = arith.constant 3 : index
    %c0_998 = arith.constant 0 : index
    %c32_999 = arith.constant 32 : index
    %718 = vector.load %arg6[%c3_997, %c0_998, %c32_999] : memref<10x5x64xbf16, #tpu.memory_space<vmem>>, vector<1x4x32xbf16>
    %719 = vector.shape_cast %718 : vector<1x4x32xbf16> to vector<4x32xbf16>
    %720 = vector.shape_cast %715 : vector<4x32xbf16> to vector<1x4x32xbf16>
    tpu.vector_store %arg6[%c3_997, %c0_998, %c32_999], %720 {strides = array<i32>} : memref<10x5x64xbf16, #tpu.memory_space<vmem>>, vector<1x4x32xbf16>,
    %c3_1000 = arith.constant 3 : index
    %c1_1001 = arith.constant 1 : index
    %c0_1002 = arith.constant 0 : index
    %721 = vector.load %arg6[%c3_1000, %c1_1001, %c0_1002] : memref<10x5x64xbf16, #tpu.memory_space<vmem>>, vector<1x4x32xbf16>
    %722 = vector.shape_cast %721 : vector<1x4x32xbf16> to vector<4x32xbf16>
    %723 = vector.shape_cast %717 : vector<4x32xbf16> to vector<1x4x32xbf16>
    tpu.vector_store %arg6[%c3_1000, %c1_1001, %c0_1002], %723 {strides = array<i32>} : memref<10x5x64xbf16, #tpu.memory_space<vmem>>, vector<1x4x32xbf16>,
    %c24_1003 = arith.constant 24 : index
    %c0_1004 = arith.constant 0 : index
    %724 = tpu.strided_load %arg9[%c24_1003, %c0_1004] {strides = array<i32: 2, 1>} : memref<256x32xf32, #tpu.memory_space<vmem>>, vector<4x32xf32>
    %725 = arith.truncf %724 : vector<4x32xf32> to vector<4x32xbf16>
    %c25_1005 = arith.constant 25 : index
    %c0_1006 = arith.constant 0 : index
    %726 = tpu.strided_load %arg9[%c25_1005, %c0_1006] {strides = array<i32: 2, 1>} : memref<256x32xf32, #tpu.memory_space<vmem>>, vector<4x32xf32>
    %727 = arith.truncf %726 : vector<4x32xf32> to vector<4x32xbf16>
    %c4_1007 = arith.constant 4 : index
    %c0_1008 = arith.constant 0 : index
    %c32_1009 = arith.constant 32 : index
    %728 = vector.load %arg6[%c4_1007, %c0_1008, %c32_1009] : memref<10x5x64xbf16, #tpu.memory_space<vmem>>, vector<1x4x32xbf16>
    %729 = vector.shape_cast %728 : vector<1x4x32xbf16> to vector<4x32xbf16>
    %730 = vector.shape_cast %725 : vector<4x32xbf16> to vector<1x4x32xbf16>
    tpu.vector_store %arg6[%c4_1007, %c0_1008, %c32_1009], %730 {strides = array<i32>} : memref<10x5x64xbf16, #tpu.memory_space<vmem>>, vector<1x4x32xbf16>,
    %c4_1010 = arith.constant 4 : index
    %c1_1011 = arith.constant 1 : index
    %c0_1012 = arith.constant 0 : index
    %731 = vector.load %arg6[%c4_1010, %c1_1011, %c0_1012] : memref<10x5x64xbf16, #tpu.memory_space<vmem>>, vector<1x4x32xbf16>
    %732 = vector.shape_cast %731 : vector<1x4x32xbf16> to vector<4x32xbf16>
    %733 = vector.shape_cast %727 : vector<4x32xbf16> to vector<1x4x32xbf16>
    tpu.vector_store %arg6[%c4_1010, %c1_1011, %c0_1012], %733 {strides = array<i32>} : memref<10x5x64xbf16, #tpu.memory_space<vmem>>, vector<1x4x32xbf16>,
    %c32_1013 = arith.constant 32 : index
    %c0_1014 = arith.constant 0 : index
    %734 = tpu.strided_load %arg9[%c32_1013, %c0_1014] {strides = array<i32: 2, 1>} : memref<256x32xf32, #tpu.memory_space<vmem>>, vector<4x32xf32>
    %735 = arith.truncf %734 : vector<4x32xf32> to vector<4x32xbf16>
    %c33_1015 = arith.constant 33 : index
    %c0_1016 = arith.constant 0 : index
    %736 = tpu.strided_load %arg9[%c33_1015, %c0_1016] {strides = array<i32: 2, 1>} : memref<256x32xf32, #tpu.memory_space<vmem>>, vector<4x32xf32>
    %737 = arith.truncf %736 : vector<4x32xf32> to vector<4x32xbf16>
    %c5_1017 = arith.constant 5 : index
    %c0_1018 = arith.constant 0 : index
    %c32_1019 = arith.constant 32 : index
    %738 = vector.load %arg6[%c5_1017, %c0_1018, %c32_1019] : memref<10x5x64xbf16, #tpu.memory_space<vmem>>, vector<1x4x32xbf16>
    %739 = vector.shape_cast %738 : vector<1x4x32xbf16> to vector<4x32xbf16>
    %740 = vector.shape_cast %735 : vector<4x32xbf16> to vector<1x4x32xbf16>
    tpu.vector_store %arg6[%c5_1017, %c0_1018, %c32_1019], %740 {strides = array<i32>} : memref<10x5x64xbf16, #tpu.memory_space<vmem>>, vector<1x4x32xbf16>,
    %c5_1020 = arith.constant 5 : index
    %c1_1021 = arith.constant 1 : index
    %c0_1022 = arith.constant 0 : index
    %741 = vector.load %arg6[%c5_1020, %c1_1021, %c0_1022] : memref<10x5x64xbf16, #tpu.memory_space<vmem>>, vector<1x4x32xbf16>
    %742 = vector.shape_cast %741 : vector<1x4x32xbf16> to vector<4x32xbf16>
    %743 = vector.shape_cast %737 : vector<4x32xbf16> to vector<1x4x32xbf16>
    tpu.vector_store %arg6[%c5_1020, %c1_1021, %c0_1022], %743 {strides = array<i32>} : memref<10x5x64xbf16, #tpu.memory_space<vmem>>, vector<1x4x32xbf16>,
    %c40_1023 = arith.constant 40 : index
    %c0_1024 = arith.constant 0 : index
    %744 = tpu.strided_load %arg9[%c40_1023, %c0_1024] {strides = array<i32: 2, 1>} : memref<256x32xf32, #tpu.memory_space<vmem>>, vector<4x32xf32>
    %745 = arith.truncf %744 : vector<4x32xf32> to vector<4x32xbf16>
    %c41 = arith.constant 41 : index
    %c0_1025 = arith.constant 0 : index
    %746 = tpu.strided_load %arg9[%c41, %c0_1025] {strides = array<i32: 2, 1>} : memref<256x32xf32, #tpu.memory_space<vmem>>, vector<4x32xf32>
    %747 = arith.truncf %746 : vector<4x32xf32> to vector<4x32xbf16>
    %c6_1026 = arith.constant 6 : index
    %c0_1027 = arith.constant 0 : index
    %c32_1028 = arith.constant 32 : index
    %748 = vector.load %arg6[%c6_1026, %c0_1027, %c32_1028] : memref<10x5x64xbf16, #tpu.memory_space<vmem>>, vector<1x4x32xbf16>
    %749 = vector.shape_cast %748 : vector<1x4x32xbf16> to vector<4x32xbf16>
    %750 = vector.shape_cast %745 : vector<4x32xbf16> to vector<1x4x32xbf16>
    tpu.vector_store %arg6[%c6_1026, %c0_1027, %c32_1028], %750 {strides = array<i32>} : memref<10x5x64xbf16, #tpu.memory_space<vmem>>, vector<1x4x32xbf16>,
    %c6_1029 = arith.constant 6 : index
    %c1_1030 = arith.constant 1 : index
    %c0_1031 = arith.constant 0 : index
    %751 = vector.load %arg6[%c6_1029, %c1_1030, %c0_1031] : memref<10x5x64xbf16, #tpu.memory_space<vmem>>, vector<1x4x32xbf16>
    %752 = vector.shape_cast %751 : vector<1x4x32xbf16> to vector<4x32xbf16>
    %753 = vector.shape_cast %747 : vector<4x32xbf16> to vector<1x4x32xbf16>
    tpu.vector_store %arg6[%c6_1029, %c1_1030, %c0_1031], %753 {strides = array<i32>} : memref<10x5x64xbf16, #tpu.memory_space<vmem>>, vector<1x4x32xbf16>,
    %c48_1032 = arith.constant 48 : index
    %c0_1033 = arith.constant 0 : index
    %754 = tpu.strided_load %arg9[%c48_1032, %c0_1033] {strides = array<i32: 2, 1>} : memref<256x32xf32, #tpu.memory_space<vmem>>, vector<4x32xf32>
    %755 = arith.truncf %754 : vector<4x32xf32> to vector<4x32xbf16>
    %c49_1034 = arith.constant 49 : index
    %c0_1035 = arith.constant 0 : index
    %756 = tpu.strided_load %arg9[%c49_1034, %c0_1035] {strides = array<i32: 2, 1>} : memref<256x32xf32, #tpu.memory_space<vmem>>, vector<4x32xf32>
    %757 = arith.truncf %756 : vector<4x32xf32> to vector<4x32xbf16>
    %c7_1036 = arith.constant 7 : index
    %c0_1037 = arith.constant 0 : index
    %c32_1038 = arith.constant 32 : index
    %758 = vector.load %arg6[%c7_1036, %c0_1037, %c32_1038] : memref<10x5x64xbf16, #tpu.memory_space<vmem>>, vector<1x4x32xbf16>
    %759 = vector.shape_cast %758 : vector<1x4x32xbf16> to vector<4x32xbf16>
    %760 = vector.shape_cast %755 : vector<4x32xbf16> to vector<1x4x32xbf16>
    tpu.vector_store %arg6[%c7_1036, %c0_1037, %c32_1038], %760 {strides = array<i32>} : memref<10x5x64xbf16, #tpu.memory_space<vmem>>, vector<1x4x32xbf16>,
    %c7_1039 = arith.constant 7 : index
    %c1_1040 = arith.constant 1 : index
    %c0_1041 = arith.constant 0 : index
    %761 = vector.load %arg6[%c7_1039, %c1_1040, %c0_1041] : memref<10x5x64xbf16, #tpu.memory_space<vmem>>, vector<1x4x32xbf16>
    %762 = vector.shape_cast %761 : vector<1x4x32xbf16> to vector<4x32xbf16>
    %763 = vector.shape_cast %757 : vector<4x32xbf16> to vector<1x4x32xbf16>
    tpu.vector_store %arg6[%c7_1039, %c1_1040, %c0_1041], %763 {strides = array<i32>} : memref<10x5x64xbf16, #tpu.memory_space<vmem>>, vector<1x4x32xbf16>,
    %c56_1042 = arith.constant 56 : index
    %c0_1043 = arith.constant 0 : index
    %764 = tpu.strided_load %arg9[%c56_1042, %c0_1043] {strides = array<i32: 2, 1>} : memref<256x32xf32, #tpu.memory_space<vmem>>, vector<4x32xf32>
    %765 = arith.truncf %764 : vector<4x32xf32> to vector<4x32xbf16>
    %c57 = arith.constant 57 : index
    %c0_1044 = arith.constant 0 : index
    %766 = tpu.strided_load %arg9[%c57, %c0_1044] {strides = array<i32: 2, 1>} : memref<256x32xf32, #tpu.memory_space<vmem>>, vector<4x32xf32>
    %767 = arith.truncf %766 : vector<4x32xf32> to vector<4x32xbf16>
    %c8_1045 = arith.constant 8 : index
    %c0_1046 = arith.constant 0 : index
    %c32_1047 = arith.constant 32 : index
    %768 = vector.load %arg6[%c8_1045, %c0_1046, %c32_1047] : memref<10x5x64xbf16, #tpu.memory_space<vmem>>, vector<1x4x32xbf16>
    %769 = vector.shape_cast %768 : vector<1x4x32xbf16> to vector<4x32xbf16>
    %770 = vector.shape_cast %765 : vector<4x32xbf16> to vector<1x4x32xbf16>
    tpu.vector_store %arg6[%c8_1045, %c0_1046, %c32_1047], %770 {strides = array<i32>} : memref<10x5x64xbf16, #tpu.memory_space<vmem>>, vector<1x4x32xbf16>,
    %c8_1048 = arith.constant 8 : index
    %c1_1049 = arith.constant 1 : index
    %c0_1050 = arith.constant 0 : index
    %771 = vector.load %arg6[%c8_1048, %c1_1049, %c0_1050] : memref<10x5x64xbf16, #tpu.memory_space<vmem>>, vector<1x4x32xbf16>
    %772 = vector.shape_cast %771 : vector<1x4x32xbf16> to vector<4x32xbf16>
    %773 = vector.shape_cast %767 : vector<4x32xbf16> to vector<1x4x32xbf16>
    tpu.vector_store %arg6[%c8_1048, %c1_1049, %c0_1050], %773 {strides = array<i32>} : memref<10x5x64xbf16, #tpu.memory_space<vmem>>, vector<1x4x32xbf16>,
    %c0_1051 = arith.constant 0 : index
    %c0_1052 = arith.constant 0 : index
    %c0_1053 = arith.constant 0 : index
    %774 = vector.load %arg6[%c0_1051, %c0_1052, %c0_1053] : memref<10x5x64xbf16, #tpu.memory_space<vmem>>, vector<1x4x32xbf16>
    %775 = vector.shape_cast %774 : vector<1x4x32xbf16> to vector<4x32xbf16>
    %c0_1054 = arith.constant 0 : index
    %c0_1055 = arith.constant 0 : index
    %c32_1056 = arith.constant 32 : index
    %776 = vector.load %arg6[%c0_1054, %c0_1055, %c32_1056] : memref<10x5x64xbf16, #tpu.memory_space<vmem>>, vector<1x4x32xbf16>
    %777 = vector.shape_cast %776 : vector<1x4x32xbf16> to vector<4x32xbf16>
    %c0_1057 = arith.constant 0 : index
    %c1_1058 = arith.constant 1 : index
    %c0_1059 = arith.constant 0 : index
    %778 = vector.load %arg6[%c0_1057, %c1_1058, %c0_1059] : memref<10x5x64xbf16, #tpu.memory_space<vmem>>, vector<1x4x32xbf16>
    %779 = vector.shape_cast %778 : vector<1x4x32xbf16> to vector<4x32xbf16>
    %c1_1060 = arith.constant 1 : index
    %c0_1061 = arith.constant 0 : index
    %c0_1062 = arith.constant 0 : index
    %780 = vector.load %arg6[%c1_1060, %c0_1061, %c0_1062] : memref<10x5x64xbf16, #tpu.memory_space<vmem>>, vector<1x4x32xbf16>
    %781 = vector.shape_cast %780 : vector<1x4x32xbf16> to vector<4x32xbf16>
    %c1_1063 = arith.constant 1 : index
    %c0_1064 = arith.constant 0 : index
    %c32_1065 = arith.constant 32 : index
    %782 = vector.load %arg6[%c1_1063, %c0_1064, %c32_1065] : memref<10x5x64xbf16, #tpu.memory_space<vmem>>, vector<1x4x32xbf16>
    %783 = vector.shape_cast %782 : vector<1x4x32xbf16> to vector<4x32xbf16>
    %c1_1066 = arith.constant 1 : index
    %c1_1067 = arith.constant 1 : index
    %c0_1068 = arith.constant 0 : index
    %784 = vector.load %arg6[%c1_1066, %c1_1067, %c0_1068] : memref<10x5x64xbf16, #tpu.memory_space<vmem>>, vector<1x4x32xbf16>
    %785 = vector.shape_cast %784 : vector<1x4x32xbf16> to vector<4x32xbf16>
    %c2_1069 = arith.constant 2 : index
    %c0_1070 = arith.constant 0 : index
    %c0_1071 = arith.constant 0 : index
    %786 = vector.load %arg6[%c2_1069, %c0_1070, %c0_1071] : memref<10x5x64xbf16, #tpu.memory_space<vmem>>, vector<1x4x32xbf16>
    %787 = vector.shape_cast %786 : vector<1x4x32xbf16> to vector<4x32xbf16>
    %c2_1072 = arith.constant 2 : index
    %c0_1073 = arith.constant 0 : index
    %c32_1074 = arith.constant 32 : index
    %788 = vector.load %arg6[%c2_1072, %c0_1073, %c32_1074] : memref<10x5x64xbf16, #tpu.memory_space<vmem>>, vector<1x4x32xbf16>
    %789 = vector.shape_cast %788 : vector<1x4x32xbf16> to vector<4x32xbf16>
    %c2_1075 = arith.constant 2 : index
    %c1_1076 = arith.constant 1 : index
    %c0_1077 = arith.constant 0 : index
    %790 = vector.load %arg6[%c2_1075, %c1_1076, %c0_1077] : memref<10x5x64xbf16, #tpu.memory_space<vmem>>, vector<1x4x32xbf16>
    %791 = vector.shape_cast %790 : vector<1x4x32xbf16> to vector<4x32xbf16>
    %792 = tpu.concatenate %775, %777, %779, %781, %783, %785, %787, %789, %791 in 1 : vector<4x32xbf16>, vector<4x32xbf16>, vector<4x32xbf16>, vector<4x32xbf16>, vector<4x32xbf16>, vector<4x32xbf16>, vector<4x32xbf16>, vector<4x32xbf16>, vector<4x32xbf16> -> vector<4x288xbf16>
    %793 = arith.extf %792 : vector<4x288xbf16> to vector<4x288xf32>
    %c0_1078 = arith.constant 0 : index
    %c0_1079 = arith.constant 0 : index
    %794 = vector.load %arg8[%c0_1078, %c0_1079] : memref<256x288xf32, #tpu.memory_space<vmem>>, vector<4x288xf32>
    tpu.vector_store %arg8[%c0_1078, %c0_1079], %793 {strides = array<i32>} : memref<256x288xf32, #tpu.memory_space<vmem>>, vector<4x288xf32>,
    %c2_1080 = arith.constant 2 : index
    %c0_1081 = arith.constant 0 : index
    %c0_1082 = arith.constant 0 : index
    %795 = vector.load %arg6[%c2_1080, %c0_1081, %c0_1082] : memref<10x5x64xbf16, #tpu.memory_space<vmem>>, vector<1x4x32xbf16>
    %796 = vector.shape_cast %795 : vector<1x4x32xbf16> to vector<4x32xbf16>
    %c2_1083 = arith.constant 2 : index
    %c0_1084 = arith.constant 0 : index
    %c32_1085 = arith.constant 32 : index
    %797 = vector.load %arg6[%c2_1083, %c0_1084, %c32_1085] : memref<10x5x64xbf16, #tpu.memory_space<vmem>>, vector<1x4x32xbf16>
    %798 = vector.shape_cast %797 : vector<1x4x32xbf16> to vector<4x32xbf16>
    %c2_1086 = arith.constant 2 : index
    %c1_1087 = arith.constant 1 : index
    %c0_1088 = arith.constant 0 : index
    %799 = vector.load %arg6[%c2_1086, %c1_1087, %c0_1088] : memref<10x5x64xbf16, #tpu.memory_space<vmem>>, vector<1x4x32xbf16>
    %800 = vector.shape_cast %799 : vector<1x4x32xbf16> to vector<4x32xbf16>
    %c3_1089 = arith.constant 3 : index
    %c0_1090 = arith.constant 0 : index
    %c0_1091 = arith.constant 0 : index
    %801 = vector.load %arg6[%c3_1089, %c0_1090, %c0_1091] : memref<10x5x64xbf16, #tpu.memory_space<vmem>>, vector<1x4x32xbf16>
    %802 = vector.shape_cast %801 : vector<1x4x32xbf16> to vector<4x32xbf16>
    %c3_1092 = arith.constant 3 : index
    %c0_1093 = arith.constant 0 : index
    %c32_1094 = arith.constant 32 : index
    %803 = vector.load %arg6[%c3_1092, %c0_1093, %c32_1094] : memref<10x5x64xbf16, #tpu.memory_space<vmem>>, vector<1x4x32xbf16>
    %804 = vector.shape_cast %803 : vector<1x4x32xbf16> to vector<4x32xbf16>
    %c3_1095 = arith.constant 3 : index
    %c1_1096 = arith.constant 1 : index
    %c0_1097 = arith.constant 0 : index
    %805 = vector.load %arg6[%c3_1095, %c1_1096, %c0_1097] : memref<10x5x64xbf16, #tpu.memory_space<vmem>>, vector<1x4x32xbf16>
    %806 = vector.shape_cast %805 : vector<1x4x32xbf16> to vector<4x32xbf16>
    %c4_1098 = arith.constant 4 : index
    %c0_1099 = arith.constant 0 : index
    %c0_1100 = arith.constant 0 : index
    %807 = vector.load %arg6[%c4_1098, %c0_1099, %c0_1100] : memref<10x5x64xbf16, #tpu.memory_space<vmem>>, vector<1x4x32xbf16>
    %808 = vector.shape_cast %807 : vector<1x4x32xbf16> to vector<4x32xbf16>
    %c4_1101 = arith.constant 4 : index
    %c0_1102 = arith.constant 0 : index
    %c32_1103 = arith.constant 32 : index
    %809 = vector.load %arg6[%c4_1101, %c0_1102, %c32_1103] : memref<10x5x64xbf16, #tpu.memory_space<vmem>>, vector<1x4x32xbf16>
    %810 = vector.shape_cast %809 : vector<1x4x32xbf16> to vector<4x32xbf16>
    %c4_1104 = arith.constant 4 : index
    %c1_1105 = arith.constant 1 : index
    %c0_1106 = arith.constant 0 : index
    %811 = vector.load %arg6[%c4_1104, %c1_1105, %c0_1106] : memref<10x5x64xbf16, #tpu.memory_space<vmem>>, vector<1x4x32xbf16>
    %812 = vector.shape_cast %811 : vector<1x4x32xbf16> to vector<4x32xbf16>
    %813 = tpu.concatenate %796, %798, %800, %802, %804, %806, %808, %810, %812 in 1 : vector<4x32xbf16>, vector<4x32xbf16>, vector<4x32xbf16>, vector<4x32xbf16>, vector<4x32xbf16>, vector<4x32xbf16>, vector<4x32xbf16>, vector<4x32xbf16>, vector<4x32xbf16> -> vector<4x288xbf16>
    %814 = arith.extf %813 : vector<4x288xbf16> to vector<4x288xf32>
    %c4_1107 = arith.constant 4 : index
    %c0_1108 = arith.constant 0 : index
    %815 = vector.load %arg8[%c4_1107, %c0_1108] : memref<256x288xf32, #tpu.memory_space<vmem>>, vector<4x288xf32>
    tpu.vector_store %arg8[%c4_1107, %c0_1108], %814 {strides = array<i32>} : memref<256x288xf32, #tpu.memory_space<vmem>>, vector<4x288xf32>,
    %c4_1109 = arith.constant 4 : index
    %c0_1110 = arith.constant 0 : index
    %c0_1111 = arith.constant 0 : index
    %816 = vector.load %arg6[%c4_1109, %c0_1110, %c0_1111] : memref<10x5x64xbf16, #tpu.memory_space<vmem>>, vector<1x4x32xbf16>
    %817 = vector.shape_cast %816 : vector<1x4x32xbf16> to vector<4x32xbf16>
    %c4_1112 = arith.constant 4 : index
    %c0_1113 = arith.constant 0 : index
    %c32_1114 = arith.constant 32 : index
    %818 = vector.load %arg6[%c4_1112, %c0_1113, %c32_1114] : memref<10x5x64xbf16, #tpu.memory_space<vmem>>, vector<1x4x32xbf16>
    %819 = vector.shape_cast %818 : vector<1x4x32xbf16> to vector<4x32xbf16>
    %c4_1115 = arith.constant 4 : index
    %c1_1116 = arith.constant 1 : index
    %c0_1117 = arith.constant 0 : index
    %820 = vector.load %arg6[%c4_1115, %c1_1116, %c0_1117] : memref<10x5x64xbf16, #tpu.memory_space<vmem>>, vector<1x4x32xbf16>
    %821 = vector.shape_cast %820 : vector<1x4x32xbf16> to vector<4x32xbf16>
    %c5_1118 = arith.constant 5 : index
    %c0_1119 = arith.constant 0 : index
    %c0_1120 = arith.constant 0 : index
    %822 = vector.load %arg6[%c5_1118, %c0_1119, %c0_1120] : memref<10x5x64xbf16, #tpu.memory_space<vmem>>, vector<1x4x32xbf16>
    %823 = vector.shape_cast %822 : vector<1x4x32xbf16> to vector<4x32xbf16>
    %c5_1121 = arith.constant 5 : index
    %c0_1122 = arith.constant 0 : index
    %c32_1123 = arith.constant 32 : index
    %824 = vector.load %arg6[%c5_1121, %c0_1122, %c32_1123] : memref<10x5x64xbf16, #tpu.memory_space<vmem>>, vector<1x4x32xbf16>
    %825 = vector.shape_cast %824 : vector<1x4x32xbf16> to vector<4x32xbf16>
    %c5_1124 = arith.constant 5 : index
    %c1_1125 = arith.constant 1 : index
    %c0_1126 = arith.constant 0 : index
    %826 = vector.load %arg6[%c5_1124, %c1_1125, %c0_1126] : memref<10x5x64xbf16, #tpu.memory_space<vmem>>, vector<1x4x32xbf16>
    %827 = vector.shape_cast %826 : vector<1x4x32xbf16> to vector<4x32xbf16>
    %c6_1127 = arith.constant 6 : index
    %c0_1128 = arith.constant 0 : index
    %c0_1129 = arith.constant 0 : index
    %828 = vector.load %arg6[%c6_1127, %c0_1128, %c0_1129] : memref<10x5x64xbf16, #tpu.memory_space<vmem>>, vector<1x4x32xbf16>
    %829 = vector.shape_cast %828 : vector<1x4x32xbf16> to vector<4x32xbf16>
    %c6_1130 = arith.constant 6 : index
    %c0_1131 = arith.constant 0 : index
    %c32_1132 = arith.constant 32 : index
    %830 = vector.load %arg6[%c6_1130, %c0_1131, %c32_1132] : memref<10x5x64xbf16, #tpu.memory_space<vmem>>, vector<1x4x32xbf16>
    %831 = vector.shape_cast %830 : vector<1x4x32xbf16> to vector<4x32xbf16>
    %c6_1133 = arith.constant 6 : index
    %c1_1134 = arith.constant 1 : index
    %c0_1135 = arith.constant 0 : index
    %832 = vector.load %arg6[%c6_1133, %c1_1134, %c0_1135] : memref<10x5x64xbf16, #tpu.memory_space<vmem>>, vector<1x4x32xbf16>
    %833 = vector.shape_cast %832 : vector<1x4x32xbf16> to vector<4x32xbf16>
    %834 = tpu.concatenate %817, %819, %821, %823, %825, %827, %829, %831, %833 in 1 : vector<4x32xbf16>, vector<4x32xbf16>, vector<4x32xbf16>, vector<4x32xbf16>, vector<4x32xbf16>, vector<4x32xbf16>, vector<4x32xbf16>, vector<4x32xbf16>, vector<4x32xbf16> -> vector<4x288xbf16>
    %835 = arith.extf %834 : vector<4x288xbf16> to vector<4x288xf32>
    %c8_1136 = arith.constant 8 : index
    %c0_1137 = arith.constant 0 : index
    %836 = vector.load %arg8[%c8_1136, %c0_1137] : memref<256x288xf32, #tpu.memory_space<vmem>>, vector<4x288xf32>
    tpu.vector_store %arg8[%c8_1136, %c0_1137], %835 {strides = array<i32>} : memref<256x288xf32, #tpu.memory_space<vmem>>, vector<4x288xf32>,
    %c6_1138 = arith.constant 6 : index
    %c0_1139 = arith.constant 0 : index
    %c0_1140 = arith.constant 0 : index
    %837 = vector.load %arg6[%c6_1138, %c0_1139, %c0_1140] : memref<10x5x64xbf16, #tpu.memory_space<vmem>>, vector<1x4x32xbf16>
    %838 = vector.shape_cast %837 : vector<1x4x32xbf16> to vector<4x32xbf16>
    %c6_1141 = arith.constant 6 : index
    %c0_1142 = arith.constant 0 : index
    %c32_1143 = arith.constant 32 : index
    %839 = vector.load %arg6[%c6_1141, %c0_1142, %c32_1143] : memref<10x5x64xbf16, #tpu.memory_space<vmem>>, vector<1x4x32xbf16>
    %840 = vector.shape_cast %839 : vector<1x4x32xbf16> to vector<4x32xbf16>
    %c6_1144 = arith.constant 6 : index
    %c1_1145 = arith.constant 1 : index
    %c0_1146 = arith.constant 0 : index
    %841 = vector.load %arg6[%c6_1144, %c1_1145, %c0_1146] : memref<10x5x64xbf16, #tpu.memory_space<vmem>>, vector<1x4x32xbf16>
    %842 = vector.shape_cast %841 : vector<1x4x32xbf16> to vector<4x32xbf16>
    %c7_1147 = arith.constant 7 : index
    %c0_1148 = arith.constant 0 : index
    %c0_1149 = arith.constant 0 : index
    %843 = vector.load %arg6[%c7_1147, %c0_1148, %c0_1149] : memref<10x5x64xbf16, #tpu.memory_space<vmem>>, vector<1x4x32xbf16>
    %844 = vector.shape_cast %843 : vector<1x4x32xbf16> to vector<4x32xbf16>
    %c7_1150 = arith.constant 7 : index
    %c0_1151 = arith.constant 0 : index
    %c32_1152 = arith.constant 32 : index
    %845 = vector.load %arg6[%c7_1150, %c0_1151, %c32_1152] : memref<10x5x64xbf16, #tpu.memory_space<vmem>>, vector<1x4x32xbf16>
    %846 = vector.shape_cast %845 : vector<1x4x32xbf16> to vector<4x32xbf16>
    %c7_1153 = arith.constant 7 : index
    %c1_1154 = arith.constant 1 : index
    %c0_1155 = arith.constant 0 : index
    %847 = vector.load %arg6[%c7_1153, %c1_1154, %c0_1155] : memref<10x5x64xbf16, #tpu.memory_space<vmem>>, vector<1x4x32xbf16>
    %848 = vector.shape_cast %847 : vector<1x4x32xbf16> to vector<4x32xbf16>
    %c8_1156 = arith.constant 8 : index
    %c0_1157 = arith.constant 0 : index
    %c0_1158 = arith.constant 0 : index
    %849 = vector.load %arg6[%c8_1156, %c0_1157, %c0_1158] : memref<10x5x64xbf16, #tpu.memory_space<vmem>>, vector<1x4x32xbf16>
    %850 = vector.shape_cast %849 : vector<1x4x32xbf16> to vector<4x32xbf16>
    %c8_1159 = arith.constant 8 : index
    %c0_1160 = arith.constant 0 : index
    %c32_1161 = arith.constant 32 : index
    %851 = vector.load %arg6[%c8_1159, %c0_1160, %c32_1161] : memref<10x5x64xbf16, #tpu.memory_space<vmem>>, vector<1x4x32xbf16>
    %852 = vector.shape_cast %851 : vector<1x4x32xbf16> to vector<4x32xbf16>
    %c8_1162 = arith.constant 8 : index
    %c1_1163 = arith.constant 1 : index
    %c0_1164 = arith.constant 0 : index
    %853 = vector.load %arg6[%c8_1162, %c1_1163, %c0_1164] : memref<10x5x64xbf16, #tpu.memory_space<vmem>>, vector<1x4x32xbf16>
    %854 = vector.shape_cast %853 : vector<1x4x32xbf16> to vector<4x32xbf16>
    %855 = tpu.concatenate %838, %840, %842, %844, %846, %848, %850, %852, %854 in 1 : vector<4x32xbf16>, vector<4x32xbf16>, vector<4x32xbf16>, vector<4x32xbf16>, vector<4x32xbf16>, vector<4x32xbf16>, vector<4x32xbf16>, vector<4x32xbf16>, vector<4x32xbf16> -> vector<4x288xbf16>
    %856 = arith.extf %855 : vector<4x288xbf16> to vector<4x288xf32>
    %c12_1165 = arith.constant 12 : index
    %c0_1166 = arith.constant 0 : index
    %857 = vector.load %arg8[%c12_1165, %c0_1166] : memref<256x288xf32, #tpu.memory_space<vmem>>, vector<4x288xf32>
    tpu.vector_store %arg8[%c12_1165, %c0_1166], %856 {strides = array<i32>} : memref<256x288xf32, #tpu.memory_space<vmem>>, vector<4x288xf32>,
    %c0_1167 = arith.constant 0 : index
    %c0_1168 = arith.constant 0 : index
    %858 = vector.load %arg8[%c0_1167, %c0_1168] : memref<256x288xf32, #tpu.memory_space<vmem>>, vector<16x288xf32>
    %859 = arith.truncf %858 : vector<16x288xf32> to vector<16x288xbf16>
    %c2_1169 = arith.constant 2 : index
    %c0_1170 = arith.constant 0 : index
    %c0_1171 = arith.constant 0 : index
    %860 = vector.load %arg2[%c2_1169, %c0_1170, %c0_1171] : memref<4x288x32xbf16, #tpu.memory_space<vmem>>, vector<1x288x32xbf16>
    %861 = vector.shape_cast %860 : vector<1x288x32xbf16> to vector<288x32xbf16>
    %cst_1172 = arith.constant dense<0.000000e+00> : vector<16x32xf32>
    %862 = tpu.matmul %859, %861, %cst_1172 {dimension_numbers = #tpu.dot_dimension_numbers<[1], [0], [0], [1], [0, 0, 1, 1], [], []>} : vector<16x288xbf16>, vector<288x32xbf16>, vector<16x32xf32> -> vector<16x32xf32>
    %c2_1173 = arith.constant 2 : index
    %c0_1174 = arith.constant 0 : index
    %c0_1175 = arith.constant 0 : index
    %863 = vector.load %arg3[%c2_1173, %c0_1174, %c0_1175] : memref<4x1x32xf32, #tpu.memory_space<vmem>>, vector<1x1x32xf32>
    %864 = vector.shape_cast %863 : vector<1x1x32xf32> to vector<1x32xf32>
    %865 = vector.broadcast %864 : vector<1x32xf32> to vector<16x32xf32>
    %866 = arith.addf %862, %865 : vector<16x32xf32>
    %cst_1176 = arith.constant 0.000000e+00 : f32
    %867 = vector.broadcast %cst_1176 : f32 to vector<16x32xf32>
    %868 = arith.maximumf %866, %867 : vector<16x32xf32>
    %c0_1177 = arith.constant 0 : index
    %c0_1178 = arith.constant 0 : index
    %869 = vector.load %arg9[%c0_1177, %c0_1178] : memref<256x32xf32, #tpu.memory_space<vmem>>, vector<16x32xf32>
    tpu.vector_store %arg9[%c0_1177, %c0_1178], %868 {strides = array<i32>} : memref<256x32xf32, #tpu.memory_space<vmem>>, vector<16x32xf32>,
    %c0_1179 = arith.constant 0 : index
    %c0_1180 = arith.constant 0 : index
    %870 = tpu.strided_load %arg9[%c0_1179, %c0_1180] {strides = array<i32: 2, 1>} : memref<256x32xf32, #tpu.memory_space<vmem>>, vector<2x32xf32>
    %871 = arith.truncf %870 : vector<2x32xf32> to vector<2x32xbf16>
    %c1_1181 = arith.constant 1 : index
    %c0_1182 = arith.constant 0 : index
    %872 = tpu.strided_load %arg9[%c1_1181, %c0_1182] {strides = array<i32: 2, 1>} : memref<256x32xf32, #tpu.memory_space<vmem>>, vector<2x32xf32>
    %873 = arith.truncf %872 : vector<2x32xf32> to vector<2x32xbf16>
    %c1_1183 = arith.constant 1 : index
    %c0_1184 = arith.constant 0 : index
    %c32_1185 = arith.constant 32 : index
    %874 = vector.load %arg7[%c1_1183, %c0_1184, %c32_1185] : memref<6x3x64xbf16, #tpu.memory_space<vmem>>, vector<1x2x32xbf16>
    %875 = vector.shape_cast %874 : vector<1x2x32xbf16> to vector<2x32xbf16>
    %876 = vector.shape_cast %871 : vector<2x32xbf16> to vector<1x2x32xbf16>
    tpu.vector_store %arg7[%c1_1183, %c0_1184, %c32_1185], %876 {strides = array<i32>} : memref<6x3x64xbf16, #tpu.memory_space<vmem>>, vector<1x2x32xbf16>,
    %c1_1186 = arith.constant 1 : index
    %c1_1187 = arith.constant 1 : index
    %c0_1188 = arith.constant 0 : index
    %877 = vector.load %arg7[%c1_1186, %c1_1187, %c0_1188] : memref<6x3x64xbf16, #tpu.memory_space<vmem>>, vector<1x2x32xbf16>
    %878 = vector.shape_cast %877 : vector<1x2x32xbf16> to vector<2x32xbf16>
    %879 = vector.shape_cast %873 : vector<2x32xbf16> to vector<1x2x32xbf16>
    tpu.vector_store %arg7[%c1_1186, %c1_1187, %c0_1188], %879 {strides = array<i32>} : memref<6x3x64xbf16, #tpu.memory_space<vmem>>, vector<1x2x32xbf16>,
    %c4_1189 = arith.constant 4 : index
    %c0_1190 = arith.constant 0 : index
    %880 = tpu.strided_load %arg9[%c4_1189, %c0_1190] {strides = array<i32: 2, 1>} : memref<256x32xf32, #tpu.memory_space<vmem>>, vector<2x32xf32>
    %881 = arith.truncf %880 : vector<2x32xf32> to vector<2x32xbf16>
    %c5_1191 = arith.constant 5 : index
    %c0_1192 = arith.constant 0 : index
    %882 = tpu.strided_load %arg9[%c5_1191, %c0_1192] {strides = array<i32: 2, 1>} : memref<256x32xf32, #tpu.memory_space<vmem>>, vector<2x32xf32>
    %883 = arith.truncf %882 : vector<2x32xf32> to vector<2x32xbf16>
    %c2_1193 = arith.constant 2 : index
    %c0_1194 = arith.constant 0 : index
    %c32_1195 = arith.constant 32 : index
    %884 = vector.load %arg7[%c2_1193, %c0_1194, %c32_1195] : memref<6x3x64xbf16, #tpu.memory_space<vmem>>, vector<1x2x32xbf16>
    %885 = vector.shape_cast %884 : vector<1x2x32xbf16> to vector<2x32xbf16>
    %886 = vector.shape_cast %881 : vector<2x32xbf16> to vector<1x2x32xbf16>
    tpu.vector_store %arg7[%c2_1193, %c0_1194, %c32_1195], %886 {strides = array<i32>} : memref<6x3x64xbf16, #tpu.memory_space<vmem>>, vector<1x2x32xbf16>,
    %c2_1196 = arith.constant 2 : index
    %c1_1197 = arith.constant 1 : index
    %c0_1198 = arith.constant 0 : index
    %887 = vector.load %arg7[%c2_1196, %c1_1197, %c0_1198] : memref<6x3x64xbf16, #tpu.memory_space<vmem>>, vector<1x2x32xbf16>
    %888 = vector.shape_cast %887 : vector<1x2x32xbf16> to vector<2x32xbf16>
    %889 = vector.shape_cast %883 : vector<2x32xbf16> to vector<1x2x32xbf16>
    tpu.vector_store %arg7[%c2_1196, %c1_1197, %c0_1198], %889 {strides = array<i32>} : memref<6x3x64xbf16, #tpu.memory_space<vmem>>, vector<1x2x32xbf16>,
    %c8_1199 = arith.constant 8 : index
    %c0_1200 = arith.constant 0 : index
    %890 = tpu.strided_load %arg9[%c8_1199, %c0_1200] {strides = array<i32: 2, 1>} : memref<256x32xf32, #tpu.memory_space<vmem>>, vector<2x32xf32>
    %891 = arith.truncf %890 : vector<2x32xf32> to vector<2x32xbf16>
    %c9_1201 = arith.constant 9 : index
    %c0_1202 = arith.constant 0 : index
    %892 = tpu.strided_load %arg9[%c9_1201, %c0_1202] {strides = array<i32: 2, 1>} : memref<256x32xf32, #tpu.memory_space<vmem>>, vector<2x32xf32>
    %893 = arith.truncf %892 : vector<2x32xf32> to vector<2x32xbf16>
    %c3_1203 = arith.constant 3 : index
    %c0_1204 = arith.constant 0 : index
    %c32_1205 = arith.constant 32 : index
    %894 = vector.load %arg7[%c3_1203, %c0_1204, %c32_1205] : memref<6x3x64xbf16, #tpu.memory_space<vmem>>, vector<1x2x32xbf16>
    %895 = vector.shape_cast %894 : vector<1x2x32xbf16> to vector<2x32xbf16>
    %896 = vector.shape_cast %891 : vector<2x32xbf16> to vector<1x2x32xbf16>
    tpu.vector_store %arg7[%c3_1203, %c0_1204, %c32_1205], %896 {strides = array<i32>} : memref<6x3x64xbf16, #tpu.memory_space<vmem>>, vector<1x2x32xbf16>,
    %c3_1206 = arith.constant 3 : index
    %c1_1207 = arith.constant 1 : index
    %c0_1208 = arith.constant 0 : index
    %897 = vector.load %arg7[%c3_1206, %c1_1207, %c0_1208] : memref<6x3x64xbf16, #tpu.memory_space<vmem>>, vector<1x2x32xbf16>
    %898 = vector.shape_cast %897 : vector<1x2x32xbf16> to vector<2x32xbf16>
    %899 = vector.shape_cast %893 : vector<2x32xbf16> to vector<1x2x32xbf16>
    tpu.vector_store %arg7[%c3_1206, %c1_1207, %c0_1208], %899 {strides = array<i32>} : memref<6x3x64xbf16, #tpu.memory_space<vmem>>, vector<1x2x32xbf16>,
    %c12_1209 = arith.constant 12 : index
    %c0_1210 = arith.constant 0 : index
    %900 = tpu.strided_load %arg9[%c12_1209, %c0_1210] {strides = array<i32: 2, 1>} : memref<256x32xf32, #tpu.memory_space<vmem>>, vector<2x32xf32>
    %901 = arith.truncf %900 : vector<2x32xf32> to vector<2x32xbf16>
    %c13_1211 = arith.constant 13 : index
    %c0_1212 = arith.constant 0 : index
    %902 = tpu.strided_load %arg9[%c13_1211, %c0_1212] {strides = array<i32: 2, 1>} : memref<256x32xf32, #tpu.memory_space<vmem>>, vector<2x32xf32>
    %903 = arith.truncf %902 : vector<2x32xf32> to vector<2x32xbf16>
    %c4_1213 = arith.constant 4 : index
    %c0_1214 = arith.constant 0 : index
    %c32_1215 = arith.constant 32 : index
    %904 = vector.load %arg7[%c4_1213, %c0_1214, %c32_1215] : memref<6x3x64xbf16, #tpu.memory_space<vmem>>, vector<1x2x32xbf16>
    %905 = vector.shape_cast %904 : vector<1x2x32xbf16> to vector<2x32xbf16>
    %906 = vector.shape_cast %901 : vector<2x32xbf16> to vector<1x2x32xbf16>
    tpu.vector_store %arg7[%c4_1213, %c0_1214, %c32_1215], %906 {strides = array<i32>} : memref<6x3x64xbf16, #tpu.memory_space<vmem>>, vector<1x2x32xbf16>,
    %c4_1216 = arith.constant 4 : index
    %c1_1217 = arith.constant 1 : index
    %c0_1218 = arith.constant 0 : index
    %907 = vector.load %arg7[%c4_1216, %c1_1217, %c0_1218] : memref<6x3x64xbf16, #tpu.memory_space<vmem>>, vector<1x2x32xbf16>
    %908 = vector.shape_cast %907 : vector<1x2x32xbf16> to vector<2x32xbf16>
    %909 = vector.shape_cast %903 : vector<2x32xbf16> to vector<1x2x32xbf16>
    tpu.vector_store %arg7[%c4_1216, %c1_1217, %c0_1218], %909 {strides = array<i32>} : memref<6x3x64xbf16, #tpu.memory_space<vmem>>, vector<1x2x32xbf16>,
    %c0_1219 = arith.constant 0 : index
    %c0_1220 = arith.constant 0 : index
    %c0_1221 = arith.constant 0 : index
    %910 = vector.load %arg7[%c0_1219, %c0_1220, %c0_1221] : memref<6x3x64xbf16, #tpu.memory_space<vmem>>, vector<1x2x32xbf16>
    %911 = vector.shape_cast %910 : vector<1x2x32xbf16> to vector<2x32xbf16>
    %c0_1222 = arith.constant 0 : index
    %c0_1223 = arith.constant 0 : index
    %c32_1224 = arith.constant 32 : index
    %912 = vector.load %arg7[%c0_1222, %c0_1223, %c32_1224] : memref<6x3x64xbf16, #tpu.memory_space<vmem>>, vector<1x2x32xbf16>
    %913 = vector.shape_cast %912 : vector<1x2x32xbf16> to vector<2x32xbf16>
    %c0_1225 = arith.constant 0 : index
    %c1_1226 = arith.constant 1 : index
    %c0_1227 = arith.constant 0 : index
    %914 = vector.load %arg7[%c0_1225, %c1_1226, %c0_1227] : memref<6x3x64xbf16, #tpu.memory_space<vmem>>, vector<1x2x32xbf16>
    %915 = vector.shape_cast %914 : vector<1x2x32xbf16> to vector<2x32xbf16>
    %c1_1228 = arith.constant 1 : index
    %c0_1229 = arith.constant 0 : index
    %c0_1230 = arith.constant 0 : index
    %916 = vector.load %arg7[%c1_1228, %c0_1229, %c0_1230] : memref<6x3x64xbf16, #tpu.memory_space<vmem>>, vector<1x2x32xbf16>
    %917 = vector.shape_cast %916 : vector<1x2x32xbf16> to vector<2x32xbf16>
    %c1_1231 = arith.constant 1 : index
    %c0_1232 = arith.constant 0 : index
    %c32_1233 = arith.constant 32 : index
    %918 = vector.load %arg7[%c1_1231, %c0_1232, %c32_1233] : memref<6x3x64xbf16, #tpu.memory_space<vmem>>, vector<1x2x32xbf16>
    %919 = vector.shape_cast %918 : vector<1x2x32xbf16> to vector<2x32xbf16>
    %c1_1234 = arith.constant 1 : index
    %c1_1235 = arith.constant 1 : index
    %c0_1236 = arith.constant 0 : index
    %920 = vector.load %arg7[%c1_1234, %c1_1235, %c0_1236] : memref<6x3x64xbf16, #tpu.memory_space<vmem>>, vector<1x2x32xbf16>
    %921 = vector.shape_cast %920 : vector<1x2x32xbf16> to vector<2x32xbf16>
    %c2_1237 = arith.constant 2 : index
    %c0_1238 = arith.constant 0 : index
    %c0_1239 = arith.constant 0 : index
    %922 = vector.load %arg7[%c2_1237, %c0_1238, %c0_1239] : memref<6x3x64xbf16, #tpu.memory_space<vmem>>, vector<1x2x32xbf16>
    %923 = vector.shape_cast %922 : vector<1x2x32xbf16> to vector<2x32xbf16>
    %c2_1240 = arith.constant 2 : index
    %c0_1241 = arith.constant 0 : index
    %c32_1242 = arith.constant 32 : index
    %924 = vector.load %arg7[%c2_1240, %c0_1241, %c32_1242] : memref<6x3x64xbf16, #tpu.memory_space<vmem>>, vector<1x2x32xbf16>
    %925 = vector.shape_cast %924 : vector<1x2x32xbf16> to vector<2x32xbf16>
    %c2_1243 = arith.constant 2 : index
    %c1_1244 = arith.constant 1 : index
    %c0_1245 = arith.constant 0 : index
    %926 = vector.load %arg7[%c2_1243, %c1_1244, %c0_1245] : memref<6x3x64xbf16, #tpu.memory_space<vmem>>, vector<1x2x32xbf16>
    %927 = vector.shape_cast %926 : vector<1x2x32xbf16> to vector<2x32xbf16>
    %928 = tpu.concatenate %911, %913, %915, %917, %919, %921, %923, %925, %927 in 1 : vector<2x32xbf16>, vector<2x32xbf16>, vector<2x32xbf16>, vector<2x32xbf16>, vector<2x32xbf16>, vector<2x32xbf16>, vector<2x32xbf16>, vector<2x32xbf16>, vector<2x32xbf16> -> vector<2x288xbf16>
    %929 = arith.extf %928 : vector<2x288xbf16> to vector<2x288xf32>
    %c0_1246 = arith.constant 0 : index
    %c0_1247 = arith.constant 0 : index
    %930 = vector.load %arg8[%c0_1246, %c0_1247] : memref<256x288xf32, #tpu.memory_space<vmem>>, vector<2x288xf32>
    tpu.vector_store %arg8[%c0_1246, %c0_1247], %929 {strides = array<i32>} : memref<256x288xf32, #tpu.memory_space<vmem>>, vector<2x288xf32>,
    %c2_1248 = arith.constant 2 : index
    %c0_1249 = arith.constant 0 : index
    %c0_1250 = arith.constant 0 : index
    %931 = vector.load %arg7[%c2_1248, %c0_1249, %c0_1250] : memref<6x3x64xbf16, #tpu.memory_space<vmem>>, vector<1x2x32xbf16>
    %932 = vector.shape_cast %931 : vector<1x2x32xbf16> to vector<2x32xbf16>
    %c2_1251 = arith.constant 2 : index
    %c0_1252 = arith.constant 0 : index
    %c32_1253 = arith.constant 32 : index
    %933 = vector.load %arg7[%c2_1251, %c0_1252, %c32_1253] : memref<6x3x64xbf16, #tpu.memory_space<vmem>>, vector<1x2x32xbf16>
    %934 = vector.shape_cast %933 : vector<1x2x32xbf16> to vector<2x32xbf16>
    %c2_1254 = arith.constant 2 : index
    %c1_1255 = arith.constant 1 : index
    %c0_1256 = arith.constant 0 : index
    %935 = vector.load %arg7[%c2_1254, %c1_1255, %c0_1256] : memref<6x3x64xbf16, #tpu.memory_space<vmem>>, vector<1x2x32xbf16>
    %936 = vector.shape_cast %935 : vector<1x2x32xbf16> to vector<2x32xbf16>
    %c3_1257 = arith.constant 3 : index
    %c0_1258 = arith.constant 0 : index
    %c0_1259 = arith.constant 0 : index
    %937 = vector.load %arg7[%c3_1257, %c0_1258, %c0_1259] : memref<6x3x64xbf16, #tpu.memory_space<vmem>>, vector<1x2x32xbf16>
    %938 = vector.shape_cast %937 : vector<1x2x32xbf16> to vector<2x32xbf16>
    %c3_1260 = arith.constant 3 : index
    %c0_1261 = arith.constant 0 : index
    %c32_1262 = arith.constant 32 : index
    %939 = vector.load %arg7[%c3_1260, %c0_1261, %c32_1262] : memref<6x3x64xbf16, #tpu.memory_space<vmem>>, vector<1x2x32xbf16>
    %940 = vector.shape_cast %939 : vector<1x2x32xbf16> to vector<2x32xbf16>
    %c3_1263 = arith.constant 3 : index
    %c1_1264 = arith.constant 1 : index
    %c0_1265 = arith.constant 0 : index
    %941 = vector.load %arg7[%c3_1263, %c1_1264, %c0_1265] : memref<6x3x64xbf16, #tpu.memory_space<vmem>>, vector<1x2x32xbf16>
    %942 = vector.shape_cast %941 : vector<1x2x32xbf16> to vector<2x32xbf16>
    %c4_1266 = arith.constant 4 : index
    %c0_1267 = arith.constant 0 : index
    %c0_1268 = arith.constant 0 : index
    %943 = vector.load %arg7[%c4_1266, %c0_1267, %c0_1268] : memref<6x3x64xbf16, #tpu.memory_space<vmem>>, vector<1x2x32xbf16>
    %944 = vector.shape_cast %943 : vector<1x2x32xbf16> to vector<2x32xbf16>
    %c4_1269 = arith.constant 4 : index
    %c0_1270 = arith.constant 0 : index
    %c32_1271 = arith.constant 32 : index
    %945 = vector.load %arg7[%c4_1269, %c0_1270, %c32_1271] : memref<6x3x64xbf16, #tpu.memory_space<vmem>>, vector<1x2x32xbf16>
    %946 = vector.shape_cast %945 : vector<1x2x32xbf16> to vector<2x32xbf16>
    %c4_1272 = arith.constant 4 : index
    %c1_1273 = arith.constant 1 : index
    %c0_1274 = arith.constant 0 : index
    %947 = vector.load %arg7[%c4_1272, %c1_1273, %c0_1274] : memref<6x3x64xbf16, #tpu.memory_space<vmem>>, vector<1x2x32xbf16>
    %948 = vector.shape_cast %947 : vector<1x2x32xbf16> to vector<2x32xbf16>
    %949 = tpu.concatenate %932, %934, %936, %938, %940, %942, %944, %946, %948 in 1 : vector<2x32xbf16>, vector<2x32xbf16>, vector<2x32xbf16>, vector<2x32xbf16>, vector<2x32xbf16>, vector<2x32xbf16>, vector<2x32xbf16>, vector<2x32xbf16>, vector<2x32xbf16> -> vector<2x288xbf16>
    %950 = arith.extf %949 : vector<2x288xbf16> to vector<2x288xf32>
    %c2_1275 = arith.constant 2 : index
    %c0_1276 = arith.constant 0 : index
    %951 = vector.load %arg8[%c2_1275, %c0_1276] : memref<256x288xf32, #tpu.memory_space<vmem>>, vector<2x288xf32>
    tpu.vector_store %arg8[%c2_1275, %c0_1276], %950 {strides = array<i32>} : memref<256x288xf32, #tpu.memory_space<vmem>>, vector<2x288xf32>,
    %c0_1277 = arith.constant 0 : index
    %c0_1278 = arith.constant 0 : index
    %952 = vector.load %arg8[%c0_1277, %c0_1278] : memref<256x288xf32, #tpu.memory_space<vmem>>, vector<4x288xf32>
    %953 = arith.truncf %952 : vector<4x288xf32> to vector<4x288xbf16>
    %c3_1279 = arith.constant 3 : index
    %c0_1280 = arith.constant 0 : index
    %c0_1281 = arith.constant 0 : index
    %954 = vector.load %arg2[%c3_1279, %c0_1280, %c0_1281] : memref<4x288x32xbf16, #tpu.memory_space<vmem>>, vector<1x288x32xbf16>
    %955 = vector.shape_cast %954 : vector<1x288x32xbf16> to vector<288x32xbf16>
    %cst_1282 = arith.constant dense<0.000000e+00> : vector<4x32xf32>
    %956 = tpu.matmul %953, %955, %cst_1282 {dimension_numbers = #tpu.dot_dimension_numbers<[1], [0], [0], [1], [0, 0, 1, 1], [], []>} : vector<4x288xbf16>, vector<288x32xbf16>, vector<4x32xf32> -> vector<4x32xf32>
    %c3_1283 = arith.constant 3 : index
    %c0_1284 = arith.constant 0 : index
    %c0_1285 = arith.constant 0 : index
    %957 = vector.load %arg3[%c3_1283, %c0_1284, %c0_1285] : memref<4x1x32xf32, #tpu.memory_space<vmem>>, vector<1x1x32xf32>
    %958 = vector.shape_cast %957 : vector<1x1x32xf32> to vector<1x32xf32>
    %959 = vector.broadcast %958 : vector<1x32xf32> to vector<4x32xf32>
    %960 = arith.addf %956, %959 : vector<4x32xf32>
    %cst_1286 = arith.constant 0.000000e+00 : f32
    %961 = vector.broadcast %cst_1286 : f32 to vector<4x32xf32>
    %962 = arith.maximumf %960, %961 : vector<4x32xf32>
    %c0_1287 = arith.constant 0 : index
    %c0_1288 = arith.constant 0 : index
    %c0_1289 = arith.constant 0 : index
    %963 = vector.load %arg4[%c0_1287, %c0_1288, %c0_1289] : memref<1x4x32xf32, #tpu.memory_space<vmem>>, vector<1x4x32xf32>
    %964 = vector.shape_cast %963 : vector<1x4x32xf32> to vector<4x32xf32>
    %965 = vector.shape_cast %962 : vector<4x32xf32> to vector<1x4x32xf32>
    tpu.vector_store %arg4[%c0_1287, %c0_1288, %c0_1289], %965 {strides = array<i32>} : memref<1x4x32xf32, #tpu.memory_space<vmem>>, vector<1x4x32xf32>,
    return
  }
  func.func @transform_0(%arg0: i32) -> (i32, i32, i32, i32) {
    %c0_i32 = arith.constant 0 : i32
    %c0_i32_0 = arith.constant 0 : i32
    %c0_i32_1 = arith.constant 0 : i32
    %c0_i32_2 = arith.constant 0 : i32
    return %arg0, %c0_i32, %c0_i32_0, %c0_i32_1 : i32, i32, i32, i32
  }
  func.func @transform_1(%arg0: i32) -> (i32, i32, i32) {
    %c0_i32 = arith.constant 0 : i32
    %c0_i32_0 = arith.constant 0 : i32
    %c0_i32_1 = arith.constant 0 : i32
    %c0_i32_2 = arith.constant 0 : i32
    return %c0_i32, %c0_i32_0, %c0_i32_1 : i32, i32, i32
  }
  func.func @transform_2(%arg0: i32) -> (i32, i32, i32) {
    %c0_i32 = arith.constant 0 : i32
    %c0_i32_0 = arith.constant 0 : i32
    %c0_i32_1 = arith.constant 0 : i32
    %c0_i32_2 = arith.constant 0 : i32
    return %c0_i32, %c0_i32_0, %c0_i32_1 : i32, i32, i32
  }
  func.func @transform_3(%arg0: i32) -> (i32, i32, i32) {
    %c0_i32 = arith.constant 0 : i32
    %c0_i32_0 = arith.constant 0 : i32
    %c0_i32_1 = arith.constant 0 : i32
    return %arg0, %c0_i32, %c0_i32_0 : i32, i32, i32
  }
}

</mosaic_0001>

<llo_original>
// kernel: encoder_forward.1
$region0: #{encoder_forward.1}
  #allocation0 [shape = 'u32[]', space=smem, size = 0x4, offset = 0x4, fixed_abs, tag = 'smem constant byte address 0x4 - core index']
  #allocation1 [shape = 'u32[144,128]{1,0:T(1,128)}', space=vmem, size = 0x12000, scoped, tag = 'internal scratch']
  #allocation2 [shape = 'bf16[18,9,64]{2,1,0:T(8,128)(2,1)}', space=vmem, size = 0x12000, scoped, tag = 'scratch operand']
  #allocation3 [shape = 'bf16[10,5,64]{2,1,0:T(8,128)(2,1)}', space=vmem, size = 0x5000, scoped, tag = 'scratch operand']
  #allocation4 [shape = 'bf16[6,3,64]{2,1,0:T(4,128)(2,1)}', space=vmem, size = 0x1800, scoped, tag = 'scratch operand']
  #allocation5 [shape = 'f32[256,288]{1,0:T(8,128)}', space=vmem, size = 0x60000, scoped, tag = 'scratch operand']
  #allocation6 [shape = 'f32[256,32]{1,0:T(8,128)}', space=vmem, size = 0x20000, scoped, tag = 'scratch operand']
  %s0 = inlined_call_operand.vmem [shape: bf16[2,34,17,64], index: 0, kind: input, shape index: {}]
  %s1 = inlined_call_operand.vmem [shape: bf16[4,288,32], index: 1, kind: input, shape index: {}]
  %s2 = inlined_call_operand.vmem [shape: f32[4,1,32], index: 2, kind: input, shape index: {}]
  %s3 = inlined_call_operand.hbm [shape: f32[2,4,32], index: 3, kind: output, shape index: {}]
  %s4 = sld [smem:[#allocation0]]
  $region45: #{encoder_forward.1} parent=0
    _
  %s6 = ssub.s32 1, %s4
  %s7 = scalar_select 0, %s6, %s4
  $region1: #{encoder_forward.1} parent=0
    #allocation7 [shape = 'u8[4096]{0}', space=vmem, size = 0x1000, scoped, tag = 'output window, operand 0']
    #allocation8 [shape = 's32[2]{0}', space=sflag, size = 0x8, scoped, tag = 'scoped memory for encoder_forward.1']
    %8 = vsyncpa [#allocation8], 0
    %s9 = scalar_lea.sflag [#allocation8], 1
    %10 = vsyncpa %s9, 0
    loop: start=0, step=1, limit=4
    $region2: #{encoder_forward.1} parent=1 // loop_pre_header
      _
    $region3: #{encoder_forward.1} parent=1 // loop_header
      %s12 = sphi 0, %s16
      %p13 = scmp.ge.s32.totalorder %s12, 4
      %s22 = sphi 0, %s24
      %s25 = sphi 0, %s22
      %s26 = sphi 0, %s25
      %s42 = sphi 0, %s26
      %s46 = sphi 0, %s46
      %s48 = sphi 0, %s46
      %s49 = sphi 0, %s48
      %s63 = sphi 0, %s49
      %s67 = sphi 0, %s67
      %s69 = sphi 0, %s67
      %s70 = sphi 0, %s69
      %s84 = sphi 0, %s70
      %s90 = sphi 0, %s92
      %s93 = sphi 0, %s90
      %s94 = sphi 0, %s93
      %s110 = sphi 0, %s94
    $region4: #{encoder_forward.1} parent=1 // loop_header_branch
      %15 = sbr.rel (%p13) target = $region8
    $region5: #{encoder_forward.1} parent=1 // loop_body
      %s17 = ssub.s32 %s12, 1
      %s18 = ssub.s32 %s12, 2
      %s19 = sadd.s32 %s12, 1
      %s20 = ssub.s32 %s12, %s19
      %p21 = scmp.eq.s32.totalorder %s20, 0
      %s23 = sadd.s32 %s22, 1
      %s24 = scalar_select %p21, %s22, %s23
      %p27 = pneg %p21
      %p28 = scmp.eq.s32.totalorder %s12, 1
      %p29 = por %p27, %p28
      %p30 = scmp.ne.s32.totalorder %s22, %s25
      %p31 = scmp.eq.s32.totalorder %s12, 0
      %p32 = por %p30, %p31
      %p33 = scmp.ne.s32.totalorder %s22, %s25
      %p34 = scmp.eq.s32.totalorder %s17, 1
      %p35 = por %p33, %p34
      %p36 = scmp.ne.s32.totalorder %s25, %s26
      %p37 = scmp.eq.s32.totalorder %s17, 0
      %p38 = por %p36, %p37
      %p39 = scmp.ne.s32.totalorder %s25, %s26
      %p40 = scmp.eq.s32.totalorder %s18, 1
      %p41 = por %p39, %p40
      %p43 = scmp.ne.s32.totalorder %s26, %s42
      %p44 = scmp.eq.s32.totalorder %s18, 0
      %p45 = por %p43, %p44
      %s47 = sadd.s32 %s46, 1
      %p50 = scmp.eq.s32.totalorder %s12, 1
      %p51 = scmp.ne.s32.totalorder %s46, %s48
      %p52 = scmp.eq.s32.totalorder %s12, 0
      %p53 = por %p51, %p52
      %p54 = scmp.ne.s32.totalorder %s46, %s48
      %p55 = scmp.eq.s32.totalorder %s17, 1
      %p56 = por %p54, %p55
      %p57 = scmp.ne.s32.totalorder %s48, %s49
      %p58 = scmp.eq.s32.totalorder %s17, 0
      %p59 = por %p57, %p58
      %p60 = scmp.ne.s32.totalorder %s48, %s49
      %p61 = scmp.eq.s32.totalorder %s18, 1
      %p62 = por %p60, %p61
      %p64 = scmp.ne.s32.totalorder %s49, %s63
      %p65 = scmp.eq.s32.totalorder %s18, 0
      %p66 = por %p64, %p65
      %s68 = sadd.s32 %s67, 1
      %p71 = scmp.eq.s32.totalorder %s12, 1
      %p72 = scmp.ne.s32.totalorder %s67, %s69
      %p73 = scmp.eq.s32.totalorder %s12, 0
      %p74 = por %p72, %p73
      %p75 = scmp.ne.s32.totalorder %s67, %s69
      %p76 = scmp.eq.s32.totalorder %s17, 1
      %p77 = por %p75, %p76
      %p78 = scmp.ne.s32.totalorder %s69, %s70
      %p79 = scmp.eq.s32.totalorder %s17, 0
      %p80 = por %p78, %p79
      %p81 = scmp.ne.s32.totalorder %s69, %s70
      %p82 = scmp.eq.s32.totalorder %s18, 1
      %p83 = por %p81, %p82
      %p85 = scmp.ne.s32.totalorder %s70, %s84
      %p86 = scmp.eq.s32.totalorder %s18, 0
      %p87 = por %p85, %p86
      %s88 = ssub.s32 %s12, %s19
      %p89 = scmp.eq.s32.totalorder %s88, 0
      %s91 = sadd.s32 %s90, 1
      %s92 = scalar_select %p89, %s90, %s91
      %p95 = pneg %p89
      %p96 = scmp.eq.s32.totalorder %s12, 1
      %p97 = por %p95, %p96
      %p98 = scmp.ne.s32.totalorder %s90, %s93
      %p99 = scmp.eq.s32.totalorder %s12, 0
      %p100 = por %p98, %p99
      %p101 = scmp.ne.s32.totalorder %s90, %s93
      %p102 = scmp.eq.s32.totalorder %s17, 1
      %p103 = por %p101, %p102
      %p104 = scmp.ne.s32.totalorder %s93, %s94
      %p105 = scmp.eq.s32.totalorder %s17, 0
      %p106 = por %p104, %p105
      %p107 = scmp.ne.s32.totalorder %s93, %s94
      %p108 = scmp.eq.s32.totalorder %s18, 1
      %p109 = por %p107, %p108
      %p111 = scmp.ne.s32.totalorder %s94, %s110
      %p112 = scmp.eq.s32.totalorder %s18, 0
      %p113 = por %p111, %p112
      %p114 = scmp.le.s32.totalorder 1, %s12
      %p115 = scmp.lt.s32.totalorder %s12, 3
      %p116 = pnand %p114, %p115
      %p117 = pneg %p116
      // Predicated region
      $region9: #{encoder_forward.1} parent=5 // pred_check
        _
      $region10: #{encoder_forward.1} parent=5 // pred_check_branch
        %119 = sbr.rel (%p116) target = $region12
      $region11: #{encoder_forward.1} parent=5 // pred_region
        %s120 = ssub.s32 %s12, 1
        // Predicated region
        $region13: #{encoder_forward.1} parent=11 // pred_check
          %p121 = pneg %p59
        $region14: #{encoder_forward.1} parent=11 // pred_check_branch
          %123 = sbr.rel (%p121) target = $region16
        $region15: #{encoder_forward.1} parent=11 // pred_region
          _
        $region16: #{encoder_forward.1} parent=11 // pred_fallthru
          _
        // Predicated region
        $region17: #{encoder_forward.1} parent=11 // pred_check
          %p124 = pneg %p80
        $region18: #{encoder_forward.1} parent=11 // pred_check_branch
          %126 = sbr.rel (%p124) target = $region20
        $region19: #{encoder_forward.1} parent=11 // pred_region
          _
        $region20: #{encoder_forward.1} parent=11 // pred_fallthru
          _
      $region12: #{encoder_forward.1} parent=5 // pred_fallthru
        _
      %p127 = scmp.lt.s32.totalorder %s12, 2
      // Predicated region
      $region21: #{encoder_forward.1} parent=5 // pred_check
        %p128 = pneg %p127
      $region22: #{encoder_forward.1} parent=5 // pred_check_branch
        %130 = sbr.rel (%p128) target = $region24
      $region23: #{encoder_forward.1} parent=5 // pred_region
        // Predicated region
        $region25: #{encoder_forward.1} parent=23 // pred_check
          %p131 = pneg %p32
        $region26: #{encoder_forward.1} parent=23 // pred_check_branch
          %133 = sbr.rel (%p131) target = $region28
        $region27: #{encoder_forward.1} parent=23 // pred_region
          %p134 = scmp.lt.s32.totalorder %s12, 1
          %s135 = scalar_select %p134, %s12, 1
          %s136 = smul.addr %s135, 102
          %s137 = smul.addr %s136, 4
          %s138 = scalar_lea.vmem %s0, %s137
        $region28: #{encoder_forward.1} parent=23 // pred_fallthru
          _
      $region24: #{encoder_forward.1} parent=5 // pred_fallthru
        _
      %p139 = scmp.le.s32.totalorder 1, %s12
      %p140 = scmp.lt.s32.totalorder %s12, 3
      %p141 = pnand %p139, %p140
      %p142 = pneg %p141
      // Predicated region
      $region29: #{encoder_forward.1} parent=5 // pred_check
        _
      $region30: #{encoder_forward.1} parent=5 // pred_check_branch
        %144 = sbr.rel (%p141) target = $region32
      $region31: #{encoder_forward.1} parent=5 // pred_region
        %s145 = ssub.s32 %s12, 1
        %p146 = scmp.lt.s32.totalorder %s17, 1
        %s147 = scalar_select %p146, %s17, 1
        %s148 = smul.addr %s147, 102
        %s149 = smul.addr %s148, 4
        %s150 = scalar_lea.vmem %s0, %s149
        %p151 = pneg %p38
        %p152 = pneg %p35
        %p153 = pneg %p59
        %p154 = pneg %p56
        %p155 = pneg %p80
        %p156 = pneg %p77
        %p157 = pneg %p106
        %p158 = pneg %p103
        %s159 = sand.u32 %s93, 1
        %s160 = scalar_lea.sflag [#allocation8], %s159
        %s161 = sand.u32 %s93, 1
        %s162 = smul.addr %s161, 4
        %s163 = scalar_lea.vmem [#allocation7], %s162
        %p164 = scmp.lt.s32.totalorder %s17, 1
        %s165 = scalar_select %p164, %s17, 1
        %s166 = smul.addr %s165, 102
        %s167 = smul.addr %s166, 4
        %s168 = scalar_lea.vmem %s0, %s167
        %vm170 = vcmask 519168
        %171 = vst.msk [vmem:[#allocation2] sm:$0xf] %vm170, 0
        %vm172 = vcmask 516096
        %vm173 = vsmask.f32 256
        %vm174 = vmand %vm172, %vm173
        %v175 = vld [vmem:[#allocation2 + $0x4] sm:$0x1]
        %v176 = vsel %vm174, 0, %v175
        %177 = vst [vmem:[#allocation2 + $0x4] sm:$0x1] %v176
        %178 = vst.msk [vmem:[#allocation2 + $0x8] sm:$0xf] %vm170, 0
        %v179 = vld [vmem:[#allocation2 + $0xc] sm:$0x1]
        %v180 = vsel %vm174, 0, %v179
        %181 = vst [vmem:[#allocation2 + $0xc] sm:$0x1] %v180
        %182 = vst.msk [vmem:[#allocation2 + $0x10] sm:$0xf] %vm170, 0
        %v183 = vld [vmem:[#allocation2 + $0x14] sm:$0x1]
        %v184 = vsel %vm174, 0, %v183
        %185 = vst [vmem:[#allocation2 + $0x14] sm:$0x1] %v184
        %186 = vst.msk [vmem:[#allocation2 + $0x18] sm:$0xf] %vm170, 0
        %v187 = vld [vmem:[#allocation2 + $0x1c] sm:$0x1]
        %v188 = vsel %vm174, 0, %v187
        %189 = vst [vmem:[#allocation2 + $0x1c] sm:$0x1] %v188
        %190 = vst.msk [vmem:[#allocation2 + $0x20] sm:$0xf] %vm170, 0
        %v191 = vld [vmem:[#allocation2 + $0x24] sm:$0x1]
        %v192 = vsel %vm174, 0, %v191
        %193 = vst [vmem:[#allocation2 + $0x24] sm:$0x1] %v192
        %194 = vst.msk [vmem:[#allocation2 + $0x28] sm:$0xf] %vm170, 0
        %v195 = vld [vmem:[#allocation2 + $0x2c] sm:$0x1]
        %v196 = vsel %vm174, 0, %v195
        %197 = vst [vmem:[#allocation2 + $0x2c] sm:$0x1] %v196
        %198 = vst.msk [vmem:[#allocation2 + $0x30] sm:$0xf] %vm170, 0
        %v199 = vld [vmem:[#allocation2 + $0x34] sm:$0x1]
        %v200 = vsel %vm174, 0, %v199
        %201 = vst [vmem:[#allocation2 + $0x34] sm:$0x1] %v200
        %202 = vst.msk [vmem:[#allocation2 + $0x38] sm:$0xf] %vm170, 0
        %v203 = vld [vmem:[#allocation2 + $0x3c] sm:$0x1]
        %v204 = vsel %vm174, 0, %v203
        %205 = vst [vmem:[#allocation2 + $0x3c] sm:$0x1] %v204
        %206 = vst.msk [vmem:[#allocation2 + $0x40] sm:$0xf] %vm170, 0
        %v207 = vld [vmem:[#allocation2 + $0x44] sm:$0x1]
        %v208 = vsel %vm174, 0, %v207
        %209 = vst [vmem:[#allocation2 + $0x44] sm:$0x1] %v208
        %210 = vst.msk [vmem:[#allocation2 + $0x48] sm:$0xf] %vm170, 0
        %v211 = vld [vmem:[#allocation2 + $0x4c] sm:$0x1]
        %v212 = vsel %vm174, 0, %v211
        %213 = vst [vmem:[#allocation2 + $0x4c] sm:$0x1] %v212
        %214 = vst.msk [vmem:[#allocation2 + $0x50] sm:$0xf] %vm170, 0
        %v215 = vld [vmem:[#allocation2 + $0x54] sm:$0x1]
        %v216 = vsel %vm174, 0, %v215
        %217 = vst [vmem:[#allocation2 + $0x54] sm:$0x1] %v216
        %218 = vst.msk [vmem:[#allocation2 + $0x58] sm:$0xf] %vm170, 0
        %v219 = vld [vmem:[#allocation2 + $0x5c] sm:$0x1]
        %v220 = vsel %vm174, 0, %v219
        %221 = vst [vmem:[#allocation2 + $0x5c] sm:$0x1] %v220
        %222 = vst.msk [vmem:[#allocation2 + $0x60] sm:$0xf] %vm170, 0
        %v223 = vld [vmem:[#allocation2 + $0x64] sm:$0x1]
        %v224 = vsel %vm174, 0, %v223
        %225 = vst [vmem:[#allocation2 + $0x64] sm:$0x1] %v224
        %226 = vst.msk [vmem:[#allocation2 + $0x68] sm:$0xf] %vm170, 0
        %v227 = vld [vmem:[#allocation2 + $0x6c] sm:$0x1]
        %v228 = vsel %vm174, 0, %v227
        %229 = vst [vmem:[#allocation2 + $0x6c] sm:$0x1] %v228
        %230 = vst.msk [vmem:[#allocation2 + $0x70] sm:$0xf] %vm170, 0
        %v231 = vld [vmem:[#allocation2 + $0x74] sm:$0x1]
        %v232 = vsel %vm174, 0, %v231
        %233 = vst [vmem:[#allocation2 + $0x74] sm:$0x1] %v232
        %234 = vst.msk [vmem:[#allocation2 + $0x78] sm:$0xf] %vm170, 0
        %v235 = vld [vmem:[#allocation2 + $0x7c] sm:$0x1]
        %v236 = vsel %vm174, 0, %v235
        %237 = vst [vmem:[#allocation2 + $0x7c] sm:$0x1] %v236
        %238 = vst.msk [vmem:[#allocation2 + $0x80] sm:$0xf] %vm170, 0
        %v239 = vld [vmem:[#allocation2 + $0x84] sm:$0x1]
        %v240 = vsel %vm174, 0, %v239
        %241 = vst [vmem:[#allocation2 + $0x84] sm:$0x1] %v240
        %242 = vst.msk [vmem:[#allocation2 + $0x88] sm:$0xf] %vm170, 0
        %v243 = vld [vmem:[#allocation2 + $0x8c] sm:$0x1]
        %v244 = vsel %vm174, 0, %v243
        %245 = vst [vmem:[#allocation2 + $0x8c] sm:$0x1] %v244
        %vm246 = vcmask 518144
        %vm247 = vsmask.f32 2304
        %vm248 = vmand %vm246, %vm247
        %v249 = vld [vmem:[#allocation3] sm:$0x7]
        %v250 = vsel %vm248, 0, %v249
        %251 = vst [vmem:[#allocation3] sm:$0x7] %v250
        %v252 = vld [vmem:[#allocation3 + $0x4] sm:$0x7]
        %v253 = vsel %vm248, 0, %v252
        %254 = vst [vmem:[#allocation3 + $0x4] sm:$0x7] %v253
        %v255 = vld [vmem:[#allocation3 + $0x8] sm:$0x7]
        %v256 = vsel %vm248, 0, %v255
        %257 = vst [vmem:[#allocation3 + $0x8] sm:$0x7] %v256
        %v258 = vld [vmem:[#allocation3 + $0xc] sm:$0x7]
        %v259 = vsel %vm248, 0, %v258
        %260 = vst [vmem:[#allocation3 + $0xc] sm:$0x7] %v259
        %v261 = vld [vmem:[#allocation3 + $0x10] sm:$0x7]
        %v262 = vsel %vm248, 0, %v261
        %263 = vst [vmem:[#allocation3 + $0x10] sm:$0x7] %v262
        %v264 = vld [vmem:[#allocation3 + $0x14] sm:$0x7]
        %v265 = vsel %vm248, 0, %v264
        %266 = vst [vmem:[#allocation3 + $0x14] sm:$0x7] %v265
        %v267 = vld [vmem:[#allocation3 + $0x18] sm:$0x7]
        %v268 = vsel %vm248, 0, %v267
        %269 = vst [vmem:[#allocation3 + $0x18] sm:$0x7] %v268
        %v270 = vld [vmem:[#allocation3 + $0x1c] sm:$0x7]
        %v271 = vsel %vm248, 0, %v270
        %272 = vst [vmem:[#allocation3 + $0x1c] sm:$0x7] %v271
        %v273 = vld [vmem:[#allocation3 + $0x20] sm:$0x7]
        %v274 = vsel %vm248, 0, %v273
        %275 = vst [vmem:[#allocation3 + $0x20] sm:$0x7] %v274
        %v276 = vld [vmem:[#allocation3 + $0x24] sm:$0x7]
        %v277 = vsel %vm248, 0, %v276
        %278 = vst [vmem:[#allocation3 + $0x24] sm:$0x7] %v277
        %vm279 = vcmask 517120
        %vm280 = vsmask.f32 1280
        %vm281 = vmand %vm279, %vm280
        %v282 = vld [vmem:[#allocation4] sm:$0x3]
        %v283 = vsel %vm281, 0, %v282
        %284 = vst [vmem:[#allocation4] sm:$0x3] %v283
        %v285 = vld [vmem:[#allocation4 + $0x2] sm:$0x3]
        %v286 = vsel %vm281, 0, %v285
        %287 = vst [vmem:[#allocation4 + $0x2] sm:$0x3] %v286
        %v288 = vld [vmem:[#allocation4 + $0x4] sm:$0x3]
        %v289 = vsel %vm281, 0, %v288
        %290 = vst [vmem:[#allocation4 + $0x4] sm:$0x3] %v289
        %v291 = vld [vmem:[#allocation4 + $0x6] sm:$0x3]
        %v292 = vsel %vm281, 0, %v291
        %293 = vst [vmem:[#allocation4 + $0x6] sm:$0x3] %v292
        %v294 = vld [vmem:[#allocation4 + $0x8] sm:$0x3]
        %v295 = vsel %vm281, 0, %v294
        %296 = vst [vmem:[#allocation4 + $0x8] sm:$0x3] %v295
        %v297 = vld [vmem:[#allocation4 + $0xa] sm:$0x3]
        %v298 = vsel %vm281, 0, %v297
        %299 = vst [vmem:[#allocation4 + $0xa] sm:$0x3] %v298
        %v300 = vld [vmem:[%s168] sm:$0xf]
        %v301 = vld [vmem:[%s168 + $0x4] sm:$0xf]
        %v302 = vld [vmem:[%s168 + $0x8] sm:$0x1]
        %s303 = scalar_lea.vmem %s168, 12
        %v304 = vld [vmem:[%s303] sm:$0xf]
        %v305 = vld [vmem:[%s303 + $0x4] sm:$0xf]
        %v306 = vld [vmem:[%s303 + $0x8] sm:$0x1]
        %s307 = scalar_lea.vmem %s168, 24
        %v308 = vld [vmem:[%s307] sm:$0xf]
        %v309 = vld [vmem:[%s307 + $0x4] sm:$0xf]
        %v310 = vld [vmem:[%s307 + $0x8] sm:$0x1]
        %v313 = vunpack.c.l.b16 %v300
        %v314 = vunpack.c.l.b16 %v301
        %v315 = vpack.c.b16 %v314, %v313
        %v317 = vunpack.c.l.b16 %v302
        %v318 = vpack.c.b16 %v317, %v317
        %vm319 = vsmask.f32 7424
        %v321 = vshrl.u32 %v315, 16
        %v323 = vshll.u32 %v315, 16
        %v325 = vrot.slane %v323, 1
        %v326 = vor.u32 %v321, %v325
        %v328 = vshll.u32 %v318, 16
        %v330 = vrot.slane %v328, 1
        %v331 = vsel %vm319, %v326, %v330
        %332 = vrot.lane.b32.xlu0 %v331, 64
        %v333 = vpop.permute.xlu0 %332
        %v336 = vunpack.c.l.b16 %v304
        %v337 = vunpack.c.l.b16 %v305
        %v338 = vpack.c.b16 %v337, %v336
        %339 = vrot.lane.b32.xlu0 %v338, 96
        %v340 = vpop.permute.xlu0 %339
        %v342 = vunpack.c.l.b16 %v306
        %v343 = vpack.c.b16 %v342, %v342
        %v345 = vshrl.u32 %v338, 16
        %v347 = vshll.u32 %v338, 16
        %v349 = vrot.slane %v347, 1
        %v350 = vor.u32 %v345, %v349
        %v352 = vshll.u32 %v343, 16
        %v354 = vrot.slane %v352, 1
        %v355 = vsel %vm319, %v350, %v354
        %356 = vrot.lane.b32.xlu0 %v355, 32
        %v357 = vpop.permute.xlu0 %356
        %v360 = vunpack.c.l.b16 %v308
        %v361 = vunpack.c.l.b16 %v309
        %v362 = vpack.c.b16 %v361, %v360
        %363 = vrot.lane.b32.xlu0 %v362, 64
        %v364 = vpop.permute.xlu0 %363
        %v366 = vunpack.c.l.b16 %v310
        %v367 = vpack.c.b16 %v366, %v366
        %v369 = vshrl.u32 %v362, 16
        %v371 = vshll.u32 %v362, 16
        %v373 = vrot.slane %v371, 1
        %v374 = vor.u32 %v369, %v373
        %v376 = vshll.u32 %v367, 16
        %v378 = vrot.slane %v376, 1
        %v379 = vsel %vm319, %v374, %v378
        %vm381 = vcmask 261120
        %vm382 = vcmask 523264
        %v384 = vsel %vm382, %v315, %v333
        %vm385 = vcmask 785408
        %v387 = vsel %vm385, %v384, %v340
        %v390 = vsel %vm381, %v340, %v357
        %v392 = vsel %vm382, %v390, %v364
        %v393 = vsel %vm385, %v392, %v364
        %v395 = vunpack.c.l.bf16 %v387
        %v396 = vunpack.c.l.bf16 %v393
        %v397 = vunpack.c.l.bf16 %v379
        %v398 = vunpack.c.h.bf16 %v387
        %v399 = vunpack.c.h.bf16 %v393
        %v400 = vunpack.c.h.bf16 %v379
        %401 = vst [vmem:[#allocation5] sm:$0xff] %v395
        %402 = vst [vmem:[#allocation5 + $0x8] sm:$0xff] %v396
        %403 = vst.msk [vmem:[#allocation5 + $0x10] sm:$0xff] %vm381, %v397
        %404 = vst [vmem:[#allocation5 + $0x18] sm:$0xff] %v398
        %405 = vst [vmem:[#allocation5 + $0x20] sm:$0xff] %v399
        %406 = vst.msk [vmem:[#allocation5 + $0x28] sm:$0xff] %vm381, %v400
        %v407 = vld [vmem:[%s307] sm:$0xf]
        %v408 = vld [vmem:[%s307 + $0x4] sm:$0xf]
        %v409 = vld [vmem:[%s307 + $0x8] sm:$0x1]
        %s410 = scalar_lea.vmem %s168, 36
        %v411 = vld [vmem:[%s410] sm:$0xf]
        %v412 = vld [vmem:[%s410 + $0x4] sm:$0xf]
        %v413 = vld [vmem:[%s410 + $0x8] sm:$0x1]
        %s414 = scalar_lea.vmem %s168, 48
        %v415 = vld [vmem:[%s414] sm:$0xf]
        %v416 = vld [vmem:[%s414 + $0x4] sm:$0xf]
        %v417 = vld [vmem:[%s414 + $0x8] sm:$0x1]
        %v420 = vunpack.c.l.b16 %v407
        %v421 = vunpack.c.l.b16 %v408
        %v422 = vpack.c.b16 %v421, %v420
        %v424 = vunpack.c.l.b16 %v409
        %v425 = vpack.c.b16 %v424, %v424
        %v427 = vshrl.u32 %v422, 16
        %v429 = vshll.u32 %v422, 16
        %v431 = vrot.slane %v429, 1
        %v432 = vor.u32 %v427, %v431
        %v434 = vshll.u32 %v425, 16
        %v436 = vrot.slane %v434, 1
        %v437 = vsel %vm319, %v432, %v436
        %438 = vrot.lane.b32.xlu0 %v437, 64
        %v439 = vpop.permute.xlu0 %438
        %v442 = vunpack.c.l.b16 %v411
        %v443 = vunpack.c.l.b16 %v412
        %v444 = vpack.c.b16 %v443, %v442
        %445 = vrot.lane.b32.xlu0 %v444, 96
        %v446 = vpop.permute.xlu0 %445
        %v448 = vunpack.c.l.b16 %v413
        %v449 = vpack.c.b16 %v448, %v448
        %v451 = vshrl.u32 %v444, 16
        %v453 = vshll.u32 %v444, 16
        %v455 = vrot.slane %v453, 1
        %v456 = vor.u32 %v451, %v455
        %v458 = vshll.u32 %v449, 16
        %v460 = vrot.slane %v458, 1
        %v461 = vsel %vm319, %v456, %v460
        %462 = vrot.lane.b32.xlu0 %v461, 32
        %v463 = vpop.permute.xlu0 %462
        %v466 = vunpack.c.l.b16 %v415
        %v467 = vunpack.c.l.b16 %v416
        %v468 = vpack.c.b16 %v467, %v466
        %469 = vrot.lane.b32.xlu0 %v468, 64
        %v470 = vpop.permute.xlu0 %469
        %v472 = vunpack.c.l.b16 %v417
        %v473 = vpack.c.b16 %v472, %v472
        %v475 = vshrl.u32 %v468, 16
        %v477 = vshll.u32 %v468, 16
        %v479 = vrot.slane %v477, 1
        %v480 = vor.u32 %v475, %v479
        %v482 = vshll.u32 %v473, 16
        %v484 = vrot.slane %v482, 1
        %v485 = vsel %vm319, %v480, %v484
        %v488 = vsel %vm382, %v422, %v439
        %v490 = vsel %vm385, %v488, %v446
        %v493 = vsel %vm381, %v446, %v463
        %v495 = vsel %vm382, %v493, %v470
        %v496 = vsel %vm385, %v495, %v470
        %v498 = vunpack.c.l.bf16 %v490
        %v499 = vunpack.c.l.bf16 %v496
        %v500 = vunpack.c.l.bf16 %v485
        %v501 = vunpack.c.h.bf16 %v490
        %v502 = vunpack.c.h.bf16 %v496
        %v503 = vunpack.c.h.bf16 %v485
        %504 = vst [vmem:[#allocation5 + $0x30] sm:$0xff] %v498
        %505 = vst [vmem:[#allocation5 + $0x38] sm:$0xff] %v499
        %506 = vst.msk [vmem:[#allocation5 + $0x40] sm:$0xff] %vm381, %v500
        %507 = vst [vmem:[#allocation5 + $0x48] sm:$0xff] %v501
        %508 = vst [vmem:[#allocation5 + $0x50] sm:$0xff] %v502
        %509 = vst.msk [vmem:[#allocation5 + $0x58] sm:$0xff] %vm381, %v503
        %v510 = vld [vmem:[%s414] sm:$0xf]
        %v511 = vld [vmem:[%s414 + $0x4] sm:$0xf]
        %v512 = vld [vmem:[%s414 + $0x8] sm:$0x1]
        %s513 = scalar_lea.vmem %s168, 60
        %v514 = vld [vmem:[%s513] sm:$0xf]
        %v515 = vld [vmem:[%s513 + $0x4] sm:$0xf]
        %v516 = vld [vmem:[%s513 + $0x8] sm:$0x1]
        %s517 = scalar_lea.vmem %s168, 72
        %v518 = vld [vmem:[%s517] sm:$0xf]
        %v519 = vld [vmem:[%s517 + $0x4] sm:$0xf]
        %v520 = vld [vmem:[%s517 + $0x8] sm:$0x1]
        %v523 = vunpack.c.l.b16 %v510
        %v524 = vunpack.c.l.b16 %v511
        %v525 = vpack.c.b16 %v524, %v523
        %v527 = vunpack.c.l.b16 %v512
        %v528 = vpack.c.b16 %v527, %v527
        %v530 = vshrl.u32 %v525, 16
        %v532 = vshll.u32 %v525, 16
        %v534 = vrot.slane %v532, 1
        %v535 = vor.u32 %v530, %v534
        %v537 = vshll.u32 %v528, 16
        %v539 = vrot.slane %v537, 1
        %v540 = vsel %vm319, %v535, %v539
        %541 = vrot.lane.b32.xlu0 %v540, 64
        %v542 = vpop.permute.xlu0 %541
        %v545 = vunpack.c.l.b16 %v514
        %v546 = vunpack.c.l.b16 %v515
        %v547 = vpack.c.b16 %v546, %v545
        %548 = vrot.lane.b32.xlu0 %v547, 96
        %v549 = vpop.permute.xlu0 %548
        %v551 = vunpack.c.l.b16 %v516
        %v552 = vpack.c.b16 %v551, %v551
        %v554 = vshrl.u32 %v547, 16
        %v556 = vshll.u32 %v547, 16
        %v558 = vrot.slane %v556, 1
        %v559 = vor.u32 %v554, %v558
        %v561 = vshll.u32 %v552, 16
        %v563 = vrot.slane %v561, 1
        %v564 = vsel %vm319, %v559, %v563
        %565 = vrot.lane.b32.xlu0 %v564, 32
        %v566 = vpop.permute.xlu0 %565
        %v569 = vunpack.c.l.b16 %v518
        %v570 = vunpack.c.l.b16 %v519
        %v571 = vpack.c.b16 %v570, %v569
        %572 = vrot.lane.b32.xlu0 %v571, 64
        %v573 = vpop.permute.xlu0 %572
        %v575 = vunpack.c.l.b16 %v520
        %v576 = vpack.c.b16 %v575, %v575
        %v578 = vshrl.u32 %v571, 16
        %v580 = vshll.u32 %v571, 16
        %v582 = vrot.slane %v580, 1
        %v583 = vor.u32 %v578, %v582
        %v585 = vshll.u32 %v576, 16
        %v587 = vrot.slane %v585, 1
        %v588 = vsel %vm319, %v583, %v587
        %v591 = vsel %vm382, %v525, %v542
        %v593 = vsel %vm385, %v591, %v549
        %v596 = vsel %vm381, %v549, %v566
        %v598 = vsel %vm382, %v596, %v573
        %v599 = vsel %vm385, %v598, %v573
        %v601 = vunpack.c.l.bf16 %v593
        %v602 = vunpack.c.l.bf16 %v599
        %v603 = vunpack.c.l.bf16 %v588
        %v604 = vunpack.c.h.bf16 %v593
        %v605 = vunpack.c.h.bf16 %v599
        %v606 = vunpack.c.h.bf16 %v588
        %607 = vst [vmem:[#allocation5 + $0x60] sm:$0xff] %v601
        %608 = vst [vmem:[#allocation5 + $0x68] sm:$0xff] %v602
        %609 = vst.msk [vmem:[#allocation5 + $0x70] sm:$0xff] %vm381, %v603
        %610 = vst [vmem:[#allocation5 + $0x78] sm:$0xff] %v604
        %611 = vst [vmem:[#allocation5 + $0x80] sm:$0xff] %v605
        %612 = vst.msk [vmem:[#allocation5 + $0x88] sm:$0xff] %vm381, %v606
        %v613 = vld [vmem:[%s517] sm:$0xf]
        %v614 = vld [vmem:[%s517 + $0x4] sm:$0xf]
        %v615 = vld [vmem:[%s517 + $0x8] sm:$0x1]
        %s616 = scalar_lea.vmem %s168, 84
        %v617 = vld [vmem:[%s616] sm:$0xf]
        %v618 = vld [vmem:[%s616 + $0x4] sm:$0xf]
        %v619 = vld [vmem:[%s616 + $0x8] sm:$0x1]
        %s620 = scalar_lea.vmem %s168, 96
        %v621 = vld [vmem:[%s620] sm:$0xf]
        %v622 = vld [vmem:[%s620 + $0x4] sm:$0xf]
        %v623 = vld [vmem:[%s620 + $0x8] sm:$0x1]
        %v626 = vunpack.c.l.b16 %v613
        %v627 = vunpack.c.l.b16 %v614
        %v628 = vpack.c.b16 %v627, %v626
        %v630 = vunpack.c.l.b16 %v615
        %v631 = vpack.c.b16 %v630, %v630
        %v633 = vshrl.u32 %v628, 16
        %v635 = vshll.u32 %v628, 16
        %v637 = vrot.slane %v635, 1
        %v638 = vor.u32 %v633, %v637
        %v640 = vshll.u32 %v631, 16
        %v642 = vrot.slane %v640, 1
        %v643 = vsel %vm319, %v638, %v642
        %644 = vrot.lane.b32.xlu0 %v643, 64
        %v645 = vpop.permute.xlu0 %644
        %v648 = vunpack.c.l.b16 %v617
        %v649 = vunpack.c.l.b16 %v618
        %v650 = vpack.c.b16 %v649, %v648
        %651 = vrot.lane.b32.xlu0 %v650, 96
        %v652 = vpop.permute.xlu0 %651
        %v654 = vunpack.c.l.b16 %v619
        %v655 = vpack.c.b16 %v654, %v654
        %v657 = vshrl.u32 %v650, 16
        %v659 = vshll.u32 %v650, 16
        %v661 = vrot.slane %v659, 1
        %v662 = vor.u32 %v657, %v661
        %v664 = vshll.u32 %v655, 16
        %v666 = vrot.slane %v664, 1
        %v667 = vsel %vm319, %v662, %v666
        %668 = vrot.lane.b32.xlu0 %v667, 32
        %v669 = vpop.permute.xlu0 %668
        %v672 = vunpack.c.l.b16 %v621
        %v673 = vunpack.c.l.b16 %v622
        %v674 = vpack.c.b16 %v673, %v672
        %675 = vrot.lane.b32.xlu0 %v674, 64
        %v676 = vpop.permute.xlu0 %675
        %v678 = vunpack.c.l.b16 %v623
        %v679 = vpack.c.b16 %v678, %v678
        %v681 = vshrl.u32 %v674, 16
        %v683 = vshll.u32 %v674, 16
        %v685 = vrot.slane %v683, 1
        %v686 = vor.u32 %v681, %v685
        %v688 = vshll.u32 %v679, 16
        %v690 = vrot.slane %v688, 1
        %v691 = vsel %vm319, %v686, %v690
        %v694 = vsel %vm382, %v628, %v645
        %v696 = vsel %vm385, %v694, %v652
        %v699 = vsel %vm381, %v652, %v669
        %v701 = vsel %vm382, %v699, %v676
        %v702 = vsel %vm385, %v701, %v676
        %v704 = vunpack.c.l.bf16 %v696
        %v705 = vunpack.c.l.bf16 %v702
        %v706 = vunpack.c.l.bf16 %v691
        %v707 = vunpack.c.h.bf16 %v696
        %v708 = vunpack.c.h.bf16 %v702
        %v709 = vunpack.c.h.bf16 %v691
        %710 = vst [vmem:[#allocation5 + $0x90] sm:$0xff] %v704
        %711 = vst [vmem:[#allocation5 + $0x98] sm:$0xff] %v705
        %712 = vst.msk [vmem:[#allocation5 + $0xa0] sm:$0xff] %vm381, %v706
        %713 = vst [vmem:[#allocation5 + $0xa8] sm:$0xff] %v707
        %714 = vst [vmem:[#allocation5 + $0xb0] sm:$0xff] %v708
        %715 = vst.msk [vmem:[#allocation5 + $0xb8] sm:$0xff] %vm381, %v709
        %v716 = vld [vmem:[%s620] sm:$0xf]
        %v717 = vld [vmem:[%s620 + $0x4] sm:$0xf]
        %v718 = vld [vmem:[%s620 + $0x8] sm:$0x1]
        %s719 = scalar_lea.vmem %s168, 108
        %v720 = vld [vmem:[%s719] sm:$0xf]
        %v721 = vld [vmem:[%s719 + $0x4] sm:$0xf]
        %v722 = vld [vmem:[%s719 + $0x8] sm:$0x1]
        %s723 = scalar_lea.vmem %s168, 120
        %v724 = vld [vmem:[%s723] sm:$0xf]
        %v725 = vld [vmem:[%s723 + $0x4] sm:$0xf]
        %v726 = vld [vmem:[%s723 + $0x8] sm:$0x1]
        %v729 = vunpack.c.l.b16 %v716
        %v730 = vunpack.c.l.b16 %v717
        %v731 = vpack.c.b16 %v730, %v729
        %v733 = vunpack.c.l.b16 %v718
        %v734 = vpack.c.b16 %v733, %v733
        %v736 = vshrl.u32 %v731, 16
        %v738 = vshll.u32 %v731, 16
        %v740 = vrot.slane %v738, 1
        %v741 = vor.u32 %v736, %v740
        %v743 = vshll.u32 %v734, 16
        %v745 = vrot.slane %v743, 1
        %v746 = vsel %vm319, %v741, %v745
        %747 = vrot.lane.b32.xlu0 %v746, 64
        %v748 = vpop.permute.xlu0 %747
        %v751 = vunpack.c.l.b16 %v720
        %v752 = vunpack.c.l.b16 %v721
        %v753 = vpack.c.b16 %v752, %v751
        %754 = vrot.lane.b32.xlu0 %v753, 96
        %v755 = vpop.permute.xlu0 %754
        %v757 = vunpack.c.l.b16 %v722
        %v758 = vpack.c.b16 %v757, %v757
        %v760 = vshrl.u32 %v753, 16
        %v762 = vshll.u32 %v753, 16
        %v764 = vrot.slane %v762, 1
        %v765 = vor.u32 %v760, %v764
        %v767 = vshll.u32 %v758, 16
        %v769 = vrot.slane %v767, 1
        %v770 = vsel %vm319, %v765, %v769
        %771 = vrot.lane.b32.xlu0 %v770, 32
        %v772 = vpop.permute.xlu0 %771
        %v775 = vunpack.c.l.b16 %v724
        %v776 = vunpack.c.l.b16 %v725
        %v777 = vpack.c.b16 %v776, %v775
        %778 = vrot.lane.b32.xlu0 %v777, 64
        %v779 = vpop.permute.xlu0 %778
        %v781 = vunpack.c.l.b16 %v726
        %v782 = vpack.c.b16 %v781, %v781
        %v784 = vshrl.u32 %v777, 16
        %v786 = vshll.u32 %v777, 16
        %v788 = vrot.slane %v786, 1
        %v789 = vor.u32 %v784, %v788
        %v791 = vshll.u32 %v782, 16
        %v793 = vrot.slane %v791, 1
        %v794 = vsel %vm319, %v789, %v793
        %v797 = vsel %vm382, %v731, %v748
        %v799 = vsel %vm385, %v797, %v755
        %v802 = vsel %vm381, %v755, %v772
        %v804 = vsel %vm382, %v802, %v779
        %v805 = vsel %vm385, %v804, %v779
        %v807 = vunpack.c.l.bf16 %v799
        %v808 = vunpack.c.l.bf16 %v805
        %v809 = vunpack.c.l.bf16 %v794
        %v810 = vunpack.c.h.bf16 %v799
        %v811 = vunpack.c.h.bf16 %v805
        %v812 = vunpack.c.h.bf16 %v794
        %813 = vst [vmem:[#allocation5 + $0xc0] sm:$0xff] %v807
        %814 = vst [vmem:[#allocation5 + $0xc8] sm:$0xff] %v808
        %815 = vst.msk [vmem:[#allocation5 + $0xd0] sm:$0xff] %vm381, %v809
        %816 = vst [vmem:[#allocation5 + $0xd8] sm:$0xff] %v810
        %817 = vst [vmem:[#allocation5 + $0xe0] sm:$0xff] %v811
        %818 = vst.msk [vmem:[#allocation5 + $0xe8] sm:$0xff] %vm381, %v812
        %v819 = vld [vmem:[%s723] sm:$0xf]
        %v820 = vld [vmem:[%s723 + $0x4] sm:$0xf]
        %v821 = vld [vmem:[%s723 + $0x8] sm:$0x1]
        %s822 = scalar_lea.vmem %s168, 132
        %v823 = vld [vmem:[%s822] sm:$0xf]
        %v824 = vld [vmem:[%s822 + $0x4] sm:$0xf]
        %v825 = vld [vmem:[%s822 + $0x8] sm:$0x1]
        %s826 = scalar_lea.vmem %s168, 144
        %v827 = vld [vmem:[%s826] sm:$0xf]
        %v828 = vld [vmem:[%s826 + $0x4] sm:$0xf]
        %v829 = vld [vmem:[%s826 + $0x8] sm:$0x1]
        %v832 = vunpack.c.l.b16 %v819
        %v833 = vunpack.c.l.b16 %v820
        %v834 = vpack.c.b16 %v833, %v832
        %v836 = vunpack.c.l.b16 %v821
        %v837 = vpack.c.b16 %v836, %v836
        %v839 = vshrl.u32 %v834, 16
        %v841 = vshll.u32 %v834, 16
        %v843 = vrot.slane %v841, 1
        %v844 = vor.u32 %v839, %v843
        %v846 = vshll.u32 %v837, 16
        %v848 = vrot.slane %v846, 1
        %v849 = vsel %vm319, %v844, %v848
        %850 = vrot.lane.b32.xlu0 %v849, 64
        %v851 = vpop.permute.xlu0 %850
        %v854 = vunpack.c.l.b16 %v823
        %v855 = vunpack.c.l.b16 %v824
        %v856 = vpack.c.b16 %v855, %v854
        %857 = vrot.lane.b32.xlu0 %v856, 96
        %v858 = vpop.permute.xlu0 %857
        %v860 = vunpack.c.l.b16 %v825
        %v861 = vpack.c.b16 %v860, %v860
        %v863 = vshrl.u32 %v856, 16
        %v865 = vshll.u32 %v856, 16
        %v867 = vrot.slane %v865, 1
        %v868 = vor.u32 %v863, %v867
        %v870 = vshll.u32 %v861, 16
        %v872 = vrot.slane %v870, 1
        %v873 = vsel %vm319, %v868, %v872
        %874 = vrot.lane.b32.xlu0 %v873, 32
        %v875 = vpop.permute.xlu0 %874
        %v878 = vunpack.c.l.b16 %v827
        %v879 = vunpack.c.l.b16 %v828
        %v880 = vpack.c.b16 %v879, %v878
        %881 = vrot.lane.b32.xlu0 %v880, 64
        %v882 = vpop.permute.xlu0 %881
        %v884 = vunpack.c.l.b16 %v829
        %v885 = vpack.c.b16 %v884, %v884
        %v887 = vshrl.u32 %v880, 16
        %v889 = vshll.u32 %v880, 16
        %v891 = vrot.slane %v889, 1
        %v892 = vor.u32 %v887, %v891
        %v894 = vshll.u32 %v885, 16
        %v896 = vrot.slane %v894, 1
        %v897 = vsel %vm319, %v892, %v896
        %v900 = vsel %vm382, %v834, %v851
        %v902 = vsel %vm385, %v900, %v858
        %v905 = vsel %vm381, %v858, %v875
        %v907 = vsel %vm382, %v905, %v882
        %v908 = vsel %vm385, %v907, %v882
        %v910 = vunpack.c.l.bf16 %v902
        %v911 = vunpack.c.l.bf16 %v908
        %v912 = vunpack.c.l.bf16 %v897
        %v913 = vunpack.c.h.bf16 %v902
        %v914 = vunpack.c.h.bf16 %v908
        %v915 = vunpack.c.h.bf16 %v897
        %916 = vst [vmem:[#allocation5 + $0xf0] sm:$0xff] %v910
        %917 = vst [vmem:[#allocation5 + $0xf8] sm:$0xff] %v911
        %918 = vst.msk [vmem:[#allocation5 + $0x100] sm:$0xff] %vm381, %v912
        %919 = vst [vmem:[#allocation5 + $0x108] sm:$0xff] %v913
        %920 = vst [vmem:[#allocation5 + $0x110] sm:$0xff] %v914
        %921 = vst.msk [vmem:[#allocation5 + $0x118] sm:$0xff] %vm381, %v915
        %v922 = vld [vmem:[%s826] sm:$0xf]
        %v923 = vld [vmem:[%s826 + $0x4] sm:$0xf]
        %v924 = vld [vmem:[%s826 + $0x8] sm:$0x1]
        %s925 = scalar_lea.vmem %s168, 156
        %v926 = vld [vmem:[%s925] sm:$0xf]
        %v927 = vld [vmem:[%s925 + $0x4] sm:$0xf]
        %v928 = vld [vmem:[%s925 + $0x8] sm:$0x1]
        %s929 = scalar_lea.vmem %s168, 168
        %v930 = vld [vmem:[%s929] sm:$0xf]
        %v931 = vld [vmem:[%s929 + $0x4] sm:$0xf]
        %v932 = vld [vmem:[%s929 + $0x8] sm:$0x1]
        %v935 = vunpack.c.l.b16 %v922
        %v936 = vunpack.c.l.b16 %v923
        %v937 = vpack.c.b16 %v936, %v935
        %v939 = vunpack.c.l.b16 %v924
        %v940 = vpack.c.b16 %v939, %v939
        %v942 = vshrl.u32 %v937, 16
        %v944 = vshll.u32 %v937, 16
        %v946 = vrot.slane %v944, 1
        %v947 = vor.u32 %v942, %v946
        %v949 = vshll.u32 %v940, 16
        %v951 = vrot.slane %v949, 1
        %v952 = vsel %vm319, %v947, %v951
        %953 = vrot.lane.b32.xlu0 %v952, 64
        %v954 = vpop.permute.xlu0 %953
        %v957 = vunpack.c.l.b16 %v926
        %v958 = vunpack.c.l.b16 %v927
        %v959 = vpack.c.b16 %v958, %v957
        %960 = vrot.lane.b32.xlu0 %v959, 96
        %v961 = vpop.permute.xlu0 %960
        %v963 = vunpack.c.l.b16 %v928
        %v964 = vpack.c.b16 %v963, %v963
        %v966 = vshrl.u32 %v959, 16
        %v968 = vshll.u32 %v959, 16
        %v970 = vrot.slane %v968, 1
        %v971 = vor.u32 %v966, %v970
        %v973 = vshll.u32 %v964, 16
        %v975 = vrot.slane %v973, 1
        %v976 = vsel %vm319, %v971, %v975
        %977 = vrot.lane.b32.xlu0 %v976, 32
        %v978 = vpop.permute.xlu0 %977
        %v981 = vunpack.c.l.b16 %v930
        %v982 = vunpack.c.l.b16 %v931
        %v983 = vpack.c.b16 %v982, %v981
        %984 = vrot.lane.b32.xlu0 %v983, 64
        %v985 = vpop.permute.xlu0 %984
        %v987 = vunpack.c.l.b16 %v932
        %v988 = vpack.c.b16 %v987, %v987
        %v990 = vshrl.u32 %v983, 16
        %v992 = vshll.u32 %v983, 16
        %v994 = vrot.slane %v992, 1
        %v995 = vor.u32 %v990, %v994
        %v997 = vshll.u32 %v988, 16
        %v999 = vrot.slane %v997, 1
        %v1000 = vsel %vm319, %v995, %v999
        %v1003 = vsel %vm382, %v937, %v954
        %v1005 = vsel %vm385, %v1003, %v961
        %v1008 = vsel %vm381, %v961, %v978
        %v1010 = vsel %vm382, %v1008, %v985
        %v1011 = vsel %vm385, %v1010, %v985
        %v1013 = vunpack.c.l.bf16 %v1005
        %v1014 = vunpack.c.l.bf16 %v1011
        %v1015 = vunpack.c.l.bf16 %v1000
        %v1016 = vunpack.c.h.bf16 %v1005
        %v1017 = vunpack.c.h.bf16 %v1011
        %v1018 = vunpack.c.h.bf16 %v1000
        %1019 = vst [vmem:[#allocation5 + $0x120] sm:$0xff] %v1013
        %1020 = vst [vmem:[#allocation5 + $0x128] sm:$0xff] %v1014
        %1021 = vst.msk [vmem:[#allocation5 + $0x130] sm:$0xff] %vm381, %v1015
        %1022 = vst [vmem:[#allocation5 + $0x138] sm:$0xff] %v1016
        %1023 = vst [vmem:[#allocation5 + $0x140] sm:$0xff] %v1017
        %1024 = vst.msk [vmem:[#allocation5 + $0x148] sm:$0xff] %vm381, %v1018
        %v1025 = vld [vmem:[%s929] sm:$0xf]
        %v1026 = vld [vmem:[%s929 + $0x4] sm:$0xf]
        %v1027 = vld [vmem:[%s929 + $0x8] sm:$0x1]
        %s1028 = scalar_lea.vmem %s168, 180
        %v1029 = vld [vmem:[%s1028] sm:$0xf]
        %v1030 = vld [vmem:[%s1028 + $0x4] sm:$0xf]
        %v1031 = vld [vmem:[%s1028 + $0x8] sm:$0x1]
        %s1032 = scalar_lea.vmem %s168, 192
        %v1033 = vld [vmem:[%s1032] sm:$0xf]
        %v1034 = vld [vmem:[%s1032 + $0x4] sm:$0xf]
        %v1035 = vld [vmem:[%s1032 + $0x8] sm:$0x1]
        %v1038 = vunpack.c.l.b16 %v1025
        %v1039 = vunpack.c.l.b16 %v1026
        %v1040 = vpack.c.b16 %v1039, %v1038
        %v1042 = vunpack.c.l.b16 %v1027
        %v1043 = vpack.c.b16 %v1042, %v1042
        %v1045 = vshrl.u32 %v1040, 16
        %v1047 = vshll.u32 %v1040, 16
        %v1049 = vrot.slane %v1047, 1
        %v1050 = vor.u32 %v1045, %v1049
        %v1052 = vshll.u32 %v1043, 16
        %v1054 = vrot.slane %v1052, 1
        %v1055 = vsel %vm319, %v1050, %v1054
        %1056 = vrot.lane.b32.xlu0 %v1055, 64
        %v1057 = vpop.permute.xlu0 %1056
        %v1060 = vunpack.c.l.b16 %v1029
        %v1061 = vunpack.c.l.b16 %v1030
        %v1062 = vpack.c.b16 %v1061, %v1060
        %1063 = vrot.lane.b32.xlu0 %v1062, 96
        %v1064 = vpop.permute.xlu0 %1063
        %v1066 = vunpack.c.l.b16 %v1031
        %v1067 = vpack.c.b16 %v1066, %v1066
        %v1069 = vshrl.u32 %v1062, 16
        %v1071 = vshll.u32 %v1062, 16
        %v1073 = vrot.slane %v1071, 1
        %v1074 = vor.u32 %v1069, %v1073
        %v1076 = vshll.u32 %v1067, 16
        %v1078 = vrot.slane %v1076, 1
        %v1079 = vsel %vm319, %v1074, %v1078
        %1080 = vrot.lane.b32.xlu0 %v1079, 32
        %v1081 = vpop.permute.xlu0 %1080
        %v1084 = vunpack.c.l.b16 %v1033
        %v1085 = vunpack.c.l.b16 %v1034
        %v1086 = vpack.c.b16 %v1085, %v1084
        %1087 = vrot.lane.b32.xlu0 %v1086, 64
        %v1088 = vpop.permute.xlu0 %1087
        %v1090 = vunpack.c.l.b16 %v1035
        %v1091 = vpack.c.b16 %v1090, %v1090
        %v1093 = vshrl.u32 %v1086, 16
        %v1095 = vshll.u32 %v1086, 16
        %v1097 = vrot.slane %v1095, 1
        %v1098 = vor.u32 %v1093, %v1097
        %v1100 = vshll.u32 %v1091, 16
        %v1102 = vrot.slane %v1100, 1
        %v1103 = vsel %vm319, %v1098, %v1102
        %v1106 = vsel %vm382, %v1040, %v1057
        %v1108 = vsel %vm385, %v1106, %v1064
        %v1111 = vsel %vm381, %v1064, %v1081
        %v1113 = vsel %vm382, %v1111, %v1088
        %v1114 = vsel %vm385, %v1113, %v1088
        %v1116 = vunpack.c.l.bf16 %v1108
        %v1117 = vunpack.c.l.bf16 %v1114
        %v1118 = vunpack.c.l.bf16 %v1103
        %v1119 = vunpack.c.h.bf16 %v1108
        %v1120 = vunpack.c.h.bf16 %v1114
        %v1121 = vunpack.c.h.bf16 %v1103
        %1122 = vst [vmem:[#allocation5 + $0x150] sm:$0xff] %v1116
        %1123 = vst [vmem:[#allocation5 + $0x158] sm:$0xff] %v1117
        %1124 = vst.msk [vmem:[#allocation5 + $0x160] sm:$0xff] %vm381, %v1118
        %1125 = vst [vmem:[#allocation5 + $0x168] sm:$0xff] %v1119
        %1126 = vst [vmem:[#allocation5 + $0x170] sm:$0xff] %v1120
        %1127 = vst.msk [vmem:[#allocation5 + $0x178] sm:$0xff] %vm381, %v1121
        %v1128 = vld [vmem:[%s1032] sm:$0xf]
        %v1129 = vld [vmem:[%s1032 + $0x4] sm:$0xf]
        %v1130 = vld [vmem:[%s1032 + $0x8] sm:$0x1]
        %s1131 = scalar_lea.vmem %s168, 204
        %v1132 = vld [vmem:[%s1131] sm:$0xf]
        %v1133 = vld [vmem:[%s1131 + $0x4] sm:$0xf]
        %v1134 = vld [vmem:[%s1131 + $0x8] sm:$0x1]
        %s1135 = scalar_lea.vmem %s168, 216
        %v1136 = vld [vmem:[%s1135] sm:$0xf]
        %v1137 = vld [vmem:[%s1135 + $0x4] sm:$0xf]
        %v1138 = vld [vmem:[%s1135 + $0x8] sm:$0x1]
        %v1141 = vunpack.c.l.b16 %v1128
        %v1142 = vunpack.c.l.b16 %v1129
        %v1143 = vpack.c.b16 %v1142, %v1141
        %v1145 = vunpack.c.l.b16 %v1130
        %v1146 = vpack.c.b16 %v1145, %v1145
        %v1148 = vshrl.u32 %v1143, 16
        %v1150 = vshll.u32 %v1143, 16
        %v1152 = vrot.slane %v1150, 1
        %v1153 = vor.u32 %v1148, %v1152
        %v1155 = vshll.u32 %v1146, 16
        %v1157 = vrot.slane %v1155, 1
        %v1158 = vsel %vm319, %v1153, %v1157
        %1159 = vrot.lane.b32.xlu0 %v1158, 64
        %v1160 = vpop.permute.xlu0 %1159
        %v1163 = vunpack.c.l.b16 %v1132
        %v1164 = vunpack.c.l.b16 %v1133
        %v1165 = vpack.c.b16 %v1164, %v1163
        %1166 = vrot.lane.b32.xlu0 %v1165, 96
        %v1167 = vpop.permute.xlu0 %1166
        %v1169 = vunpack.c.l.b16 %v1134
        %v1170 = vpack.c.b16 %v1169, %v1169
        %v1172 = vshrl.u32 %v1165, 16
        %v1174 = vshll.u32 %v1165, 16
        %v1176 = vrot.slane %v1174, 1
        %v1177 = vor.u32 %v1172, %v1176
        %v1179 = vshll.u32 %v1170, 16
        %v1181 = vrot.slane %v1179, 1
        %v1182 = vsel %vm319, %v1177, %v1181
        %1183 = vrot.lane.b32.xlu0 %v1182, 32
        %v1184 = vpop.permute.xlu0 %1183
        %v1187 = vunpack.c.l.b16 %v1136
        %v1188 = vunpack.c.l.b16 %v1137
        %v1189 = vpack.c.b16 %v1188, %v1187
        %1190 = vrot.lane.b32.xlu0 %v1189, 64
        %v1191 = vpop.permute.xlu0 %1190
        %v1193 = vunpack.c.l.b16 %v1138
        %v1194 = vpack.c.b16 %v1193, %v1193
        %v1196 = vshrl.u32 %v1189, 16
        %v1198 = vshll.u32 %v1189, 16
        %v1200 = vrot.slane %v1198, 1
        %v1201 = vor.u32 %v1196, %v1200
        %v1203 = vshll.u32 %v1194, 16
        %v1205 = vrot.slane %v1203, 1
        %v1206 = vsel %vm319, %v1201, %v1205
        %v1209 = vsel %vm382, %v1143, %v1160
        %v1211 = vsel %vm385, %v1209, %v1167
        %v1214 = vsel %vm381, %v1167, %v1184
        %v1216 = vsel %vm382, %v1214, %v1191
        %v1217 = vsel %vm385, %v1216, %v1191
        %v1219 = vunpack.c.l.bf16 %v1211
        %v1220 = vunpack.c.l.bf16 %v1217
        %v1221 = vunpack.c.l.bf16 %v1206
        %v1222 = vunpack.c.h.bf16 %v1211
        %v1223 = vunpack.c.h.bf16 %v1217
        %v1224 = vunpack.c.h.bf16 %v1206
        %1225 = vst [vmem:[#allocation5 + $0x180] sm:$0xff] %v1219
        %1226 = vst [vmem:[#allocation5 + $0x188] sm:$0xff] %v1220
        %1227 = vst.msk [vmem:[#allocation5 + $0x190] sm:$0xff] %vm381, %v1221
        %1228 = vst [vmem:[#allocation5 + $0x198] sm:$0xff] %v1222
        %1229 = vst [vmem:[#allocation5 + $0x1a0] sm:$0xff] %v1223
        %1230 = vst.msk [vmem:[#allocation5 + $0x1a8] sm:$0xff] %vm381, %v1224
        %v1231 = vld [vmem:[%s1135] sm:$0xf]
        %v1232 = vld [vmem:[%s1135 + $0x4] sm:$0xf]
        %v1233 = vld [vmem:[%s1135 + $0x8] sm:$0x1]
        %s1234 = scalar_lea.vmem %s168, 228
        %v1235 = vld [vmem:[%s1234] sm:$0xf]
        %v1236 = vld [vmem:[%s1234 + $0x4] sm:$0xf]
        %v1237 = vld [vmem:[%s1234 + $0x8] sm:$0x1]
        %s1238 = scalar_lea.vmem %s168, 240
        %v1239 = vld [vmem:[%s1238] sm:$0xf]
        %v1240 = vld [vmem:[%s1238 + $0x4] sm:$0xf]
        %v1241 = vld [vmem:[%s1238 + $0x8] sm:$0x1]
        %v1244 = vunpack.c.l.b16 %v1231
        %v1245 = vunpack.c.l.b16 %v1232
        %v1246 = vpack.c.b16 %v1245, %v1244
        %v1248 = vunpack.c.l.b16 %v1233
        %v1249 = vpack.c.b16 %v1248, %v1248
        %v1251 = vshrl.u32 %v1246, 16
        %v1253 = vshll.u32 %v1246, 16
        %v1255 = vrot.slane %v1253, 1
        %v1256 = vor.u32 %v1251, %v1255
        %v1258 = vshll.u32 %v1249, 16
        %v1260 = vrot.slane %v1258, 1
        %v1261 = vsel %vm319, %v1256, %v1260
        %1262 = vrot.lane.b32.xlu0 %v1261, 64
        %v1263 = vpop.permute.xlu0 %1262
        %v1266 = vunpack.c.l.b16 %v1235
        %v1267 = vunpack.c.l.b16 %v1236
        %v1268 = vpack.c.b16 %v1267, %v1266
        %1269 = vrot.lane.b32.xlu0 %v1268, 96
        %v1270 = vpop.permute.xlu0 %1269
        %v1272 = vunpack.c.l.b16 %v1237
        %v1273 = vpack.c.b16 %v1272, %v1272
        %v1275 = vshrl.u32 %v1268, 16
        %v1277 = vshll.u32 %v1268, 16
        %v1279 = vrot.slane %v1277, 1
        %v1280 = vor.u32 %v1275, %v1279
        %v1282 = vshll.u32 %v1273, 16
        %v1284 = vrot.slane %v1282, 1
        %v1285 = vsel %vm319, %v1280, %v1284
        %1286 = vrot.lane.b32.xlu0 %v1285, 32
        %v1287 = vpop.permute.xlu0 %1286
        %v1290 = vunpack.c.l.b16 %v1239
        %v1291 = vunpack.c.l.b16 %v1240
        %v1292 = vpack.c.b16 %v1291, %v1290
        %1293 = vrot.lane.b32.xlu0 %v1292, 64
        %v1294 = vpop.permute.xlu0 %1293
        %v1296 = vunpack.c.l.b16 %v1241
        %v1297 = vpack.c.b16 %v1296, %v1296
        %v1299 = vshrl.u32 %v1292, 16
        %v1301 = vshll.u32 %v1292, 16
        %v1303 = vrot.slane %v1301, 1
        %v1304 = vor.u32 %v1299, %v1303
        %v1306 = vshll.u32 %v1297, 16
        %v1308 = vrot.slane %v1306, 1
        %v1309 = vsel %vm319, %v1304, %v1308
        %v1312 = vsel %vm382, %v1246, %v1263
        %v1314 = vsel %vm385, %v1312, %v1270
        %v1317 = vsel %vm381, %v1270, %v1287
        %v1319 = vsel %vm382, %v1317, %v1294
        %v1320 = vsel %vm385, %v1319, %v1294
        %v1322 = vunpack.c.l.bf16 %v1314
        %v1323 = vunpack.c.l.bf16 %v1320
        %v1324 = vunpack.c.l.bf16 %v1309
        %v1325 = vunpack.c.h.bf16 %v1314
        %v1326 = vunpack.c.h.bf16 %v1320
        %v1327 = vunpack.c.h.bf16 %v1309
        %1328 = vst [vmem:[#allocation5 + $0x1b0] sm:$0xff] %v1322
        %1329 = vst [vmem:[#allocation5 + $0x1b8] sm:$0xff] %v1323
        %1330 = vst.msk [vmem:[#allocation5 + $0x1c0] sm:$0xff] %vm381, %v1324
        %1331 = vst [vmem:[#allocation5 + $0x1c8] sm:$0xff] %v1325
        %1332 = vst [vmem:[#allocation5 + $0x1d0] sm:$0xff] %v1326
        %1333 = vst.msk [vmem:[#allocation5 + $0x1d8] sm:$0xff] %vm381, %v1327
        %v1334 = vld [vmem:[%s1238] sm:$0xf]
        %v1335 = vld [vmem:[%s1238 + $0x4] sm:$0xf]
        %v1336 = vld [vmem:[%s1238 + $0x8] sm:$0x1]
        %s1337 = scalar_lea.vmem %s168, 252
        %v1338 = vld [vmem:[%s1337] sm:$0xf]
        %v1339 = vld [vmem:[%s1337 + $0x4] sm:$0xf]
        %v1340 = vld [vmem:[%s1337 + $0x8] sm:$0x1]
        %s1341 = scalar_lea.vmem %s168, 264
        %v1342 = vld [vmem:[%s1341] sm:$0xf]
        %v1343 = vld [vmem:[%s1341 + $0x4] sm:$0xf]
        %v1344 = vld [vmem:[%s1341 + $0x8] sm:$0x1]
        %v1347 = vunpack.c.l.b16 %v1334
        %v1348 = vunpack.c.l.b16 %v1335
        %v1349 = vpack.c.b16 %v1348, %v1347
        %v1351 = vunpack.c.l.b16 %v1336
        %v1352 = vpack.c.b16 %v1351, %v1351
        %v1354 = vshrl.u32 %v1349, 16
        %v1356 = vshll.u32 %v1349, 16
        %v1358 = vrot.slane %v1356, 1
        %v1359 = vor.u32 %v1354, %v1358
        %v1361 = vshll.u32 %v1352, 16
        %v1363 = vrot.slane %v1361, 1
        %v1364 = vsel %vm319, %v1359, %v1363
        %1365 = vrot.lane.b32.xlu0 %v1364, 64
        %v1366 = vpop.permute.xlu0 %1365
        %v1369 = vunpack.c.l.b16 %v1338
        %v1370 = vunpack.c.l.b16 %v1339
        %v1371 = vpack.c.b16 %v1370, %v1369
        %1372 = vrot.lane.b32.xlu0 %v1371, 96
        %v1373 = vpop.permute.xlu0 %1372
        %v1375 = vunpack.c.l.b16 %v1340
        %v1376 = vpack.c.b16 %v1375, %v1375
        %v1378 = vshrl.u32 %v1371, 16
        %v1380 = vshll.u32 %v1371, 16
        %v1382 = vrot.slane %v1380, 1
        %v1383 = vor.u32 %v1378, %v1382
        %v1385 = vshll.u32 %v1376, 16
        %v1387 = vrot.slane %v1385, 1
        %v1388 = vsel %vm319, %v1383, %v1387
        %1389 = vrot.lane.b32.xlu0 %v1388, 32
        %v1390 = vpop.permute.xlu0 %1389
        %v1393 = vunpack.c.l.b16 %v1342
        %v1394 = vunpack.c.l.b16 %v1343
        %v1395 = vpack.c.b16 %v1394, %v1393
        %1396 = vrot.lane.b32.xlu0 %v1395, 64
        %v1397 = vpop.permute.xlu0 %1396
        %v1399 = vunpack.c.l.b16 %v1344
        %v1400 = vpack.c.b16 %v1399, %v1399
        %v1402 = vshrl.u32 %v1395, 16
        %v1404 = vshll.u32 %v1395, 16
        %v1406 = vrot.slane %v1404, 1
        %v1407 = vor.u32 %v1402, %v1406
        %v1409 = vshll.u32 %v1400, 16
        %v1411 = vrot.slane %v1409, 1
        %v1412 = vsel %vm319, %v1407, %v1411
        %v1415 = vsel %vm382, %v1349, %v1366
        %v1417 = vsel %vm385, %v1415, %v1373
        %v1420 = vsel %vm381, %v1373, %v1390
        %v1422 = vsel %vm382, %v1420, %v1397
        %v1423 = vsel %vm385, %v1422, %v1397
        %v1425 = vunpack.c.l.bf16 %v1417
        %v1426 = vunpack.c.l.bf16 %v1423
        %v1427 = vunpack.c.l.bf16 %v1412
        %v1428 = vunpack.c.h.bf16 %v1417
        %v1429 = vunpack.c.h.bf16 %v1423
        %v1430 = vunpack.c.h.bf16 %v1412
        %1431 = vst [vmem:[#allocation5 + $0x1e0] sm:$0xff] %v1425
        %1432 = vst [vmem:[#allocation5 + $0x1e8] sm:$0xff] %v1426
        %1433 = vst.msk [vmem:[#allocation5 + $0x1f0] sm:$0xff] %vm381, %v1427
        %1434 = vst [vmem:[#allocation5 + $0x1f8] sm:$0xff] %v1428
        %1435 = vst [vmem:[#allocation5 + $0x200] sm:$0xff] %v1429
        %1436 = vst.msk [vmem:[#allocation5 + $0x208] sm:$0xff] %vm381, %v1430
        %v1437 = vld [vmem:[%s1341] sm:$0xf]
        %v1438 = vld [vmem:[%s1341 + $0x4] sm:$0xf]
        %v1439 = vld [vmem:[%s1341 + $0x8] sm:$0x1]
        %s1440 = scalar_lea.vmem %s168, 276
        %v1441 = vld [vmem:[%s1440] sm:$0xf]
        %v1442 = vld [vmem:[%s1440 + $0x4] sm:$0xf]
        %v1443 = vld [vmem:[%s1440 + $0x8] sm:$0x1]
        %s1444 = scalar_lea.vmem %s168, 288
        %v1445 = vld [vmem:[%s1444] sm:$0xf]
        %v1446 = vld [vmem:[%s1444 + $0x4] sm:$0xf]
        %v1447 = vld [vmem:[%s1444 + $0x8] sm:$0x1]
        %v1450 = vunpack.c.l.b16 %v1437
        %v1451 = vunpack.c.l.b16 %v1438
        %v1452 = vpack.c.b16 %v1451, %v1450
        %v1454 = vunpack.c.l.b16 %v1439
        %v1455 = vpack.c.b16 %v1454, %v1454
        %v1457 = vshrl.u32 %v1452, 16
        %v1459 = vshll.u32 %v1452, 16
        %v1461 = vrot.slane %v1459, 1
        %v1462 = vor.u32 %v1457, %v1461
        %v1464 = vshll.u32 %v1455, 16
        %v1466 = vrot.slane %v1464, 1
        %v1467 = vsel %vm319, %v1462, %v1466
        %1468 = vrot.lane.b32.xlu0 %v1467, 64
        %v1469 = vpop.permute.xlu0 %1468
        %v1472 = vunpack.c.l.b16 %v1441
        %v1473 = vunpack.c.l.b16 %v1442
        %v1474 = vpack.c.b16 %v1473, %v1472
        %1475 = vrot.lane.b32.xlu0 %v1474, 96
        %v1476 = vpop.permute.xlu0 %1475
        %v1478 = vunpack.c.l.b16 %v1443
        %v1479 = vpack.c.b16 %v1478, %v1478
        %v1481 = vshrl.u32 %v1474, 16
        %v1483 = vshll.u32 %v1474, 16
        %v1485 = vrot.slane %v1483, 1
        %v1486 = vor.u32 %v1481, %v1485
        %v1488 = vshll.u32 %v1479, 16
        %v1490 = vrot.slane %v1488, 1
        %v1491 = vsel %vm319, %v1486, %v1490
        %1492 = vrot.lane.b32.xlu0 %v1491, 32
        %v1493 = vpop.permute.xlu0 %1492
        %v1496 = vunpack.c.l.b16 %v1445
        %v1497 = vunpack.c.l.b16 %v1446
        %v1498 = vpack.c.b16 %v1497, %v1496
        %1499 = vrot.lane.b32.xlu0 %v1498, 64
        %v1500 = vpop.permute.xlu0 %1499
        %v1502 = vunpack.c.l.b16 %v1447
        %v1503 = vpack.c.b16 %v1502, %v1502
        %v1505 = vshrl.u32 %v1498, 16
        %v1507 = vshll.u32 %v1498, 16
        %v1509 = vrot.slane %v1507, 1
        %v1510 = vor.u32 %v1505, %v1509
        %v1512 = vshll.u32 %v1503, 16
        %v1514 = vrot.slane %v1512, 1
        %v1515 = vsel %vm319, %v1510, %v1514
        %v1518 = vsel %vm382, %v1452, %v1469
        %v1520 = vsel %vm385, %v1518, %v1476
        %v1523 = vsel %vm381, %v1476, %v1493
        %v1525 = vsel %vm382, %v1523, %v1500
        %v1526 = vsel %vm385, %v1525, %v1500
        %v1528 = vunpack.c.l.bf16 %v1520
        %v1529 = vunpack.c.l.bf16 %v1526
        %v1530 = vunpack.c.l.bf16 %v1515
        %v1531 = vunpack.c.h.bf16 %v1520
        %v1532 = vunpack.c.h.bf16 %v1526
        %v1533 = vunpack.c.h.bf16 %v1515
        %1534 = vst [vmem:[#allocation5 + $0x210] sm:$0xff] %v1528
        %1535 = vst [vmem:[#allocation5 + $0x218] sm:$0xff] %v1529
        %1536 = vst.msk [vmem:[#allocation5 + $0x220] sm:$0xff] %vm381, %v1530
        %1537 = vst [vmem:[#allocation5 + $0x228] sm:$0xff] %v1531
        %1538 = vst [vmem:[#allocation5 + $0x230] sm:$0xff] %v1532
        %1539 = vst.msk [vmem:[#allocation5 + $0x238] sm:$0xff] %vm381, %v1533
        %v1540 = vld [vmem:[%s1444] sm:$0xf]
        %v1541 = vld [vmem:[%s1444 + $0x4] sm:$0xf]
        %v1542 = vld [vmem:[%s1444 + $0x8] sm:$0x1]
        %s1543 = scalar_lea.vmem %s168, 300
        %v1544 = vld [vmem:[%s1543] sm:$0xf]
        %v1545 = vld [vmem:[%s1543 + $0x4] sm:$0xf]
        %v1546 = vld [vmem:[%s1543 + $0x8] sm:$0x1]
        %s1547 = scalar_lea.vmem %s168, 312
        %v1548 = vld [vmem:[%s1547] sm:$0xf]
        %v1549 = vld [vmem:[%s1547 + $0x4] sm:$0xf]
        %v1550 = vld [vmem:[%s1547 + $0x8] sm:$0x1]
        %v1553 = vunpack.c.l.b16 %v1540
        %v1554 = vunpack.c.l.b16 %v1541
        %v1555 = vpack.c.b16 %v1554, %v1553
        %v1557 = vunpack.c.l.b16 %v1542
        %v1558 = vpack.c.b16 %v1557, %v1557
        %v1560 = vshrl.u32 %v1555, 16
        %v1562 = vshll.u32 %v1555, 16
        %v1564 = vrot.slane %v1562, 1
        %v1565 = vor.u32 %v1560, %v1564
        %v1567 = vshll.u32 %v1558, 16
        %v1569 = vrot.slane %v1567, 1
        %v1570 = vsel %vm319, %v1565, %v1569
        %1571 = vrot.lane.b32.xlu0 %v1570, 64
        %v1572 = vpop.permute.xlu0 %1571
        %v1575 = vunpack.c.l.b16 %v1544
        %v1576 = vunpack.c.l.b16 %v1545
        %v1577 = vpack.c.b16 %v1576, %v1575
        %1578 = vrot.lane.b32.xlu0 %v1577, 96
        %v1579 = vpop.permute.xlu0 %1578
        %v1581 = vunpack.c.l.b16 %v1546
        %v1582 = vpack.c.b16 %v1581, %v1581
        %v1584 = vshrl.u32 %v1577, 16
        %v1586 = vshll.u32 %v1577, 16
        %v1588 = vrot.slane %v1586, 1
        %v1589 = vor.u32 %v1584, %v1588
        %v1591 = vshll.u32 %v1582, 16
        %v1593 = vrot.slane %v1591, 1
        %v1594 = vsel %vm319, %v1589, %v1593
        %1595 = vrot.lane.b32.xlu0 %v1594, 32
        %v1596 = vpop.permute.xlu0 %1595
        %v1599 = vunpack.c.l.b16 %v1548
        %v1600 = vunpack.c.l.b16 %v1549
        %v1601 = vpack.c.b16 %v1600, %v1599
        %1602 = vrot.lane.b32.xlu0 %v1601, 64
        %v1603 = vpop.permute.xlu0 %1602
        %v1605 = vunpack.c.l.b16 %v1550
        %v1606 = vpack.c.b16 %v1605, %v1605
        %v1608 = vshrl.u32 %v1601, 16
        %v1610 = vshll.u32 %v1601, 16
        %v1612 = vrot.slane %v1610, 1
        %v1613 = vor.u32 %v1608, %v1612
        %v1615 = vshll.u32 %v1606, 16
        %v1617 = vrot.slane %v1615, 1
        %v1618 = vsel %vm319, %v1613, %v1617
        %v1621 = vsel %vm382, %v1555, %v1572
        %v1623 = vsel %vm385, %v1621, %v1579
        %v1626 = vsel %vm381, %v1579, %v1596
        %v1628 = vsel %vm382, %v1626, %v1603
        %v1629 = vsel %vm385, %v1628, %v1603
        %v1631 = vunpack.c.l.bf16 %v1623
        %v1632 = vunpack.c.l.bf16 %v1629
        %v1633 = vunpack.c.l.bf16 %v1618
        %v1634 = vunpack.c.h.bf16 %v1623
        %v1635 = vunpack.c.h.bf16 %v1629
        %v1636 = vunpack.c.h.bf16 %v1618
        %1637 = vst [vmem:[#allocation5 + $0x240] sm:$0xff] %v1631
        %1638 = vst [vmem:[#allocation5 + $0x248] sm:$0xff] %v1632
        %1639 = vst.msk [vmem:[#allocation5 + $0x250] sm:$0xff] %vm381, %v1633
        %1640 = vst [vmem:[#allocation5 + $0x258] sm:$0xff] %v1634
        %1641 = vst [vmem:[#allocation5 + $0x260] sm:$0xff] %v1635
        %1642 = vst.msk [vmem:[#allocation5 + $0x268] sm:$0xff] %vm381, %v1636
        %v1643 = vld [vmem:[%s1547] sm:$0xf]
        %v1644 = vld [vmem:[%s1547 + $0x4] sm:$0xf]
        %v1645 = vld [vmem:[%s1547 + $0x8] sm:$0x1]
        %s1646 = scalar_lea.vmem %s168, 324
        %v1647 = vld [vmem:[%s1646] sm:$0xf]
        %v1648 = vld [vmem:[%s1646 + $0x4] sm:$0xf]
        %v1649 = vld [vmem:[%s1646 + $0x8] sm:$0x1]
        %s1650 = scalar_lea.vmem %s168, 336
        %v1651 = vld [vmem:[%s1650] sm:$0xf]
        %v1652 = vld [vmem:[%s1650 + $0x4] sm:$0xf]
        %v1653 = vld [vmem:[%s1650 + $0x8] sm:$0x1]
        %v1656 = vunpack.c.l.b16 %v1643
        %v1657 = vunpack.c.l.b16 %v1644
        %v1658 = vpack.c.b16 %v1657, %v1656
        %v1660 = vunpack.c.l.b16 %v1645
        %v1661 = vpack.c.b16 %v1660, %v1660
        %v1663 = vshrl.u32 %v1658, 16
        %v1665 = vshll.u32 %v1658, 16
        %v1667 = vrot.slane %v1665, 1
        %v1668 = vor.u32 %v1663, %v1667
        %v1670 = vshll.u32 %v1661, 16
        %v1672 = vrot.slane %v1670, 1
        %v1673 = vsel %vm319, %v1668, %v1672
        %1674 = vrot.lane.b32.xlu0 %v1673, 64
        %v1675 = vpop.permute.xlu0 %1674
        %v1678 = vunpack.c.l.b16 %v1647
        %v1679 = vunpack.c.l.b16 %v1648
        %v1680 = vpack.c.b16 %v1679, %v1678
        %1681 = vrot.lane.b32.xlu0 %v1680, 96
        %v1682 = vpop.permute.xlu0 %1681
        %v1684 = vunpack.c.l.b16 %v1649
        %v1685 = vpack.c.b16 %v1684, %v1684
        %v1687 = vshrl.u32 %v1680, 16
        %v1689 = vshll.u32 %v1680, 16
        %v1691 = vrot.slane %v1689, 1
        %v1692 = vor.u32 %v1687, %v1691
        %v1694 = vshll.u32 %v1685, 16
        %v1696 = vrot.slane %v1694, 1
        %v1697 = vsel %vm319, %v1692, %v1696
        %1698 = vrot.lane.b32.xlu0 %v1697, 32
        %v1699 = vpop.permute.xlu0 %1698
        %v1702 = vunpack.c.l.b16 %v1651
        %v1703 = vunpack.c.l.b16 %v1652
        %v1704 = vpack.c.b16 %v1703, %v1702
        %1705 = vrot.lane.b32.xlu0 %v1704, 64
        %v1706 = vpop.permute.xlu0 %1705
        %v1708 = vunpack.c.l.b16 %v1653
        %v1709 = vpack.c.b16 %v1708, %v1708
        %v1711 = vshrl.u32 %v1704, 16
        %v1713 = vshll.u32 %v1704, 16
        %v1715 = vrot.slane %v1713, 1
        %v1716 = vor.u32 %v1711, %v1715
        %v1718 = vshll.u32 %v1709, 16
        %v1720 = vrot.slane %v1718, 1
        %v1721 = vsel %vm319, %v1716, %v1720
        %v1724 = vsel %vm382, %v1658, %v1675
        %v1726 = vsel %vm385, %v1724, %v1682
        %v1729 = vsel %vm381, %v1682, %v1699
        %v1731 = vsel %vm382, %v1729, %v1706
        %v1732 = vsel %vm385, %v1731, %v1706
        %v1734 = vunpack.c.l.bf16 %v1726
        %v1735 = vunpack.c.l.bf16 %v1732
        %v1736 = vunpack.c.l.bf16 %v1721
        %v1737 = vunpack.c.h.bf16 %v1726
        %v1738 = vunpack.c.h.bf16 %v1732
        %v1739 = vunpack.c.h.bf16 %v1721
        %1740 = vst [vmem:[#allocation5 + $0x270] sm:$0xff] %v1734
        %1741 = vst [vmem:[#allocation5 + $0x278] sm:$0xff] %v1735
        %1742 = vst.msk [vmem:[#allocation5 + $0x280] sm:$0xff] %vm381, %v1736
        %1743 = vst [vmem:[#allocation5 + $0x288] sm:$0xff] %v1737
        %1744 = vst [vmem:[#allocation5 + $0x290] sm:$0xff] %v1738
        %1745 = vst.msk [vmem:[#allocation5 + $0x298] sm:$0xff] %vm381, %v1739
        %v1746 = vld [vmem:[%s1650] sm:$0xf]
        %v1747 = vld [vmem:[%s1650 + $0x4] sm:$0xf]
        %v1748 = vld [vmem:[%s1650 + $0x8] sm:$0x1]
        %s1749 = scalar_lea.vmem %s168, 348
        %v1750 = vld [vmem:[%s1749] sm:$0xf]
        %v1751 = vld [vmem:[%s1749 + $0x4] sm:$0xf]
        %v1752 = vld [vmem:[%s1749 + $0x8] sm:$0x1]
        %s1753 = scalar_lea.vmem %s168, 360
        %v1754 = vld [vmem:[%s1753] sm:$0xf]
        %v1755 = vld [vmem:[%s1753 + $0x4] sm:$0xf]
        %v1756 = vld [vmem:[%s1753 + $0x8] sm:$0x1]
        %v1759 = vunpack.c.l.b16 %v1746
        %v1760 = vunpack.c.l.b16 %v1747
        %v1761 = vpack.c.b16 %v1760, %v1759
        %v1763 = vunpack.c.l.b16 %v1748
        %v1764 = vpack.c.b16 %v1763, %v1763
        %v1766 = vshrl.u32 %v1761, 16
        %v1768 = vshll.u32 %v1761, 16
        %v1770 = vrot.slane %v1768, 1
        %v1771 = vor.u32 %v1766, %v1770
        %v1773 = vshll.u32 %v1764, 16
        %v1775 = vrot.slane %v1773, 1
        %v1776 = vsel %vm319, %v1771, %v1775
        %1777 = vrot.lane.b32.xlu0 %v1776, 64
        %v1778 = vpop.permute.xlu0 %1777
        %v1781 = vunpack.c.l.b16 %v1750
        %v1782 = vunpack.c.l.b16 %v1751
        %v1783 = vpack.c.b16 %v1782, %v1781
        %1784 = vrot.lane.b32.xlu0 %v1783, 96
        %v1785 = vpop.permute.xlu0 %1784
        %v1787 = vunpack.c.l.b16 %v1752
        %v1788 = vpack.c.b16 %v1787, %v1787
        %v1790 = vshrl.u32 %v1783, 16
        %v1792 = vshll.u32 %v1783, 16
        %v1794 = vrot.slane %v1792, 1
        %v1795 = vor.u32 %v1790, %v1794
        %v1797 = vshll.u32 %v1788, 16
        %v1799 = vrot.slane %v1797, 1
        %v1800 = vsel %vm319, %v1795, %v1799
        %1801 = vrot.lane.b32.xlu0 %v1800, 32
        %v1802 = vpop.permute.xlu0 %1801
        %v1805 = vunpack.c.l.b16 %v1754
        %v1806 = vunpack.c.l.b16 %v1755
        %v1807 = vpack.c.b16 %v1806, %v1805
        %1808 = vrot.lane.b32.xlu0 %v1807, 64
        %v1809 = vpop.permute.xlu0 %1808
        %v1811 = vunpack.c.l.b16 %v1756
        %v1812 = vpack.c.b16 %v1811, %v1811
        %v1814 = vshrl.u32 %v1807, 16
        %v1816 = vshll.u32 %v1807, 16
        %v1818 = vrot.slane %v1816, 1
        %v1819 = vor.u32 %v1814, %v1818
        %v1821 = vshll.u32 %v1812, 16
        %v1823 = vrot.slane %v1821, 1
        %v1824 = vsel %vm319, %v1819, %v1823
        %v1827 = vsel %vm382, %v1761, %v1778
        %v1829 = vsel %vm385, %v1827, %v1785
        %v1832 = vsel %vm381, %v1785, %v1802
        %v1834 = vsel %vm382, %v1832, %v1809
        %v1835 = vsel %vm385, %v1834, %v1809
        %v1837 = vunpack.c.l.bf16 %v1829
        %v1838 = vunpack.c.l.bf16 %v1835
        %v1839 = vunpack.c.l.bf16 %v1824
        %v1840 = vunpack.c.h.bf16 %v1829
        %v1841 = vunpack.c.h.bf16 %v1835
        %v1842 = vunpack.c.h.bf16 %v1824
        %1843 = vst [vmem:[#allocation5 + $0x2a0] sm:$0xff] %v1837
        %1844 = vst [vmem:[#allocation5 + $0x2a8] sm:$0xff] %v1838
        %1845 = vst.msk [vmem:[#allocation5 + $0x2b0] sm:$0xff] %vm381, %v1839
        %1846 = vst [vmem:[#allocation5 + $0x2b8] sm:$0xff] %v1840
        %1847 = vst [vmem:[#allocation5 + $0x2c0] sm:$0xff] %v1841
        %1848 = vst.msk [vmem:[#allocation5 + $0x2c8] sm:$0xff] %vm381, %v1842
        %v1849 = vld [vmem:[%s1753] sm:$0xf]
        %v1850 = vld [vmem:[%s1753 + $0x4] sm:$0xf]
        %v1851 = vld [vmem:[%s1753 + $0x8] sm:$0x1]
        %s1852 = scalar_lea.vmem %s168, 372
        %v1853 = vld [vmem:[%s1852] sm:$0xf]
        %v1854 = vld [vmem:[%s1852 + $0x4] sm:$0xf]
        %v1855 = vld [vmem:[%s1852 + $0x8] sm:$0x1]
        %s1856 = scalar_lea.vmem %s168, 384
        %v1857 = vld [vmem:[%s1856] sm:$0xf]
        %v1858 = vld [vmem:[%s1856 + $0x4] sm:$0xf]
        %v1859 = vld [vmem:[%s1856 + $0x8] sm:$0x1]
        %v1862 = vunpack.c.l.b16 %v1849
        %v1863 = vunpack.c.l.b16 %v1850
        %v1864 = vpack.c.b16 %v1863, %v1862
        %v1866 = vunpack.c.l.b16 %v1851
        %v1867 = vpack.c.b16 %v1866, %v1866
        %v1869 = vshrl.u32 %v1864, 16
        %v1871 = vshll.u32 %v1864, 16
        %v1873 = vrot.slane %v1871, 1
        %v1874 = vor.u32 %v1869, %v1873
        %v1876 = vshll.u32 %v1867, 16
        %v1878 = vrot.slane %v1876, 1
        %v1879 = vsel %vm319, %v1874, %v1878
        %1880 = vrot.lane.b32.xlu0 %v1879, 64
        %v1881 = vpop.permute.xlu0 %1880
        %v1884 = vunpack.c.l.b16 %v1853
        %v1885 = vunpack.c.l.b16 %v1854
        %v1886 = vpack.c.b16 %v1885, %v1884
        %1887 = vrot.lane.b32.xlu0 %v1886, 96
        %v1888 = vpop.permute.xlu0 %1887
        %v1890 = vunpack.c.l.b16 %v1855
        %v1891 = vpack.c.b16 %v1890, %v1890
        %v1893 = vshrl.u32 %v1886, 16
        %v1895 = vshll.u32 %v1886, 16
        %v1897 = vrot.slane %v1895, 1
        %v1898 = vor.u32 %v1893, %v1897
        %v1900 = vshll.u32 %v1891, 16
        %v1902 = vrot.slane %v1900, 1
        %v1903 = vsel %vm319, %v1898, %v1902
        %1904 = vrot.lane.b32.xlu0 %v1903, 32
        %v1905 = vpop.permute.xlu0 %1904
        %v1908 = vunpack.c.l.b16 %v1857
        %v1909 = vunpack.c.l.b16 %v1858
        %v1910 = vpack.c.b16 %v1909, %v1908
        %1911 = vrot.lane.b32.xlu0 %v1910, 64
        %v1912 = vpop.permute.xlu0 %1911
        %v1914 = vunpack.c.l.b16 %v1859
        %v1915 = vpack.c.b16 %v1914, %v1914
        %v1917 = vshrl.u32 %v1910, 16
        %v1919 = vshll.u32 %v1910, 16
        %v1921 = vrot.slane %v1919, 1
        %v1922 = vor.u32 %v1917, %v1921
        %v1924 = vshll.u32 %v1915, 16
        %v1926 = vrot.slane %v1924, 1
        %v1927 = vsel %vm319, %v1922, %v1926
        %v1930 = vsel %vm382, %v1864, %v1881
        %v1932 = vsel %vm385, %v1930, %v1888
        %v1935 = vsel %vm381, %v1888, %v1905
        %v1937 = vsel %vm382, %v1935, %v1912
        %v1938 = vsel %vm385, %v1937, %v1912
        %v1940 = vunpack.c.l.bf16 %v1932
        %v1941 = vunpack.c.l.bf16 %v1938
        %v1942 = vunpack.c.l.bf16 %v1927
        %v1943 = vunpack.c.h.bf16 %v1932
        %v1944 = vunpack.c.h.bf16 %v1938
        %v1945 = vunpack.c.h.bf16 %v1927
        %1946 = vst [vmem:[#allocation5 + $0x2d0] sm:$0xff] %v1940
        %1947 = vst [vmem:[#allocation5 + $0x2d8] sm:$0xff] %v1941
        %1948 = vst.msk [vmem:[#allocation5 + $0x2e0] sm:$0xff] %vm381, %v1942
        %1949 = vst [vmem:[#allocation5 + $0x2e8] sm:$0xff] %v1943
        %1950 = vst [vmem:[#allocation5 + $0x2f0] sm:$0xff] %v1944
        %1951 = vst.msk [vmem:[#allocation5 + $0x2f8] sm:$0xff] %vm381, %v1945
        %v1952 = vld [vmem:[#allocation5] sm:$0xff]
        %v1953 = vld [vmem:[#allocation5 + $0x8] sm:$0xff]
        %v1954 = vld [vmem:[#allocation5 + $0x10] sm:$0xff]
        %v1955 = vld [vmem:[#allocation5 + $0x18] sm:$0xff]
        %v1956 = vld [vmem:[#allocation5 + $0x20] sm:$0xff]
        %v1957 = vld [vmem:[#allocation5 + $0x28] sm:$0xff]
        %v1958 = vld [vmem:[#allocation5 + $0x30] sm:$0xff]
        %v1959 = vld [vmem:[#allocation5 + $0x38] sm:$0xff]
        %v1960 = vld [vmem:[#allocation5 + $0x40] sm:$0xff]
        %v1961 = vld [vmem:[#allocation5 + $0x48] sm:$0xff]
        %v1962 = vld [vmem:[#allocation5 + $0x50] sm:$0xff]
        %v1963 = vld [vmem:[#allocation5 + $0x58] sm:$0xff]
        %v1964 = vld [vmem:[#allocation5 + $0x60] sm:$0xff]
        %v1965 = vld [vmem:[#allocation5 + $0x68] sm:$0xff]
        %v1966 = vld [vmem:[#allocation5 + $0x70] sm:$0xff]
        %v1967 = vld [vmem:[#allocation5 + $0x78] sm:$0xff]
        %v1968 = vld [vmem:[#allocation5 + $0x80] sm:$0xff]
        %v1969 = vld [vmem:[#allocation5 + $0x88] sm:$0xff]
        %v1970 = vld [vmem:[#allocation5 + $0x90] sm:$0xff]
        %v1971 = vld [vmem:[#allocation5 + $0x98] sm:$0xff]
        %v1972 = vld [vmem:[#allocation5 + $0xa0] sm:$0xff]
        %v1973 = vld [vmem:[#allocation5 + $0xa8] sm:$0xff]
        %v1974 = vld [vmem:[#allocation5 + $0xb0] sm:$0xff]
        %v1975 = vld [vmem:[#allocation5 + $0xb8] sm:$0xff]
        %v1976 = vld [vmem:[#allocation5 + $0xc0] sm:$0xff]
        %v1977 = vld [vmem:[#allocation5 + $0xc8] sm:$0xff]
        %v1978 = vld [vmem:[#allocation5 + $0xd0] sm:$0xff]
        %v1979 = vld [vmem:[#allocation5 + $0xd8] sm:$0xff]
        %v1980 = vld [vmem:[#allocation5 + $0xe0] sm:$0xff]
        %v1981 = vld [vmem:[#allocation5 + $0xe8] sm:$0xff]
        %v1982 = vld [vmem:[#allocation5 + $0xf0] sm:$0xff]
        %v1983 = vld [vmem:[#allocation5 + $0xf8] sm:$0xff]
        %v1984 = vld [vmem:[#allocation5 + $0x100] sm:$0xff]
        %v1985 = vld [vmem:[#allocation5 + $0x108] sm:$0xff]
        %v1986 = vld [vmem:[#allocation5 + $0x110] sm:$0xff]
        %v1987 = vld [vmem:[#allocation5 + $0x118] sm:$0xff]
        %v1988 = vld [vmem:[#allocation5 + $0x120] sm:$0xff]
        %v1989 = vld [vmem:[#allocation5 + $0x128] sm:$0xff]
        %v1990 = vld [vmem:[#allocation5 + $0x130] sm:$0xff]
        %v1991 = vld [vmem:[#allocation5 + $0x138] sm:$0xff]
        %v1992 = vld [vmem:[#allocation5 + $0x140] sm:$0xff]
        %v1993 = vld [vmem:[#allocation5 + $0x148] sm:$0xff]
        %v1994 = vld [vmem:[#allocation5 + $0x150] sm:$0xff]
        %v1995 = vld [vmem:[#allocation5 + $0x158] sm:$0xff]
        %v1996 = vld [vmem:[#allocation5 + $0x160] sm:$0xff]
        %v1997 = vld [vmem:[#allocation5 + $0x168] sm:$0xff]
        %v1998 = vld [vmem:[#allocation5 + $0x170] sm:$0xff]
        %v1999 = vld [vmem:[#allocation5 + $0x178] sm:$0xff]
        %v2000 = vld [vmem:[#allocation5 + $0x180] sm:$0xff]
        %v2001 = vld [vmem:[#allocation5 + $0x188] sm:$0xff]
        %v2002 = vld [vmem:[#allocation5 + $0x190] sm:$0xff]
        %v2003 = vld [vmem:[#allocation5 + $0x198] sm:$0xff]
        %v2004 = vld [vmem:[#allocation5 + $0x1a0] sm:$0xff]
        %v2005 = vld [vmem:[#allocation5 + $0x1a8] sm:$0xff]
        %v2006 = vld [vmem:[#allocation5 + $0x1b0] sm:$0xff]
        %v2007 = vld [vmem:[#allocation5 + $0x1b8] sm:$0xff]
        %v2008 = vld [vmem:[#allocation5 + $0x1c0] sm:$0xff]
        %v2009 = vld [vmem:[#allocation5 + $0x1c8] sm:$0xff]
        %v2010 = vld [vmem:[#allocation5 + $0x1d0] sm:$0xff]
        %v2011 = vld [vmem:[#allocation5 + $0x1d8] sm:$0xff]
        %v2012 = vld [vmem:[#allocation5 + $0x1e0] sm:$0xff]
        %v2013 = vld [vmem:[#allocation5 + $0x1e8] sm:$0xff]
        %v2014 = vld [vmem:[#allocation5 + $0x1f0] sm:$0xff]
        %v2015 = vld [vmem:[#allocation5 + $0x1f8] sm:$0xff]
        %v2016 = vld [vmem:[#allocation5 + $0x200] sm:$0xff]
        %v2017 = vld [vmem:[#allocation5 + $0x208] sm:$0xff]
        %v2018 = vld [vmem:[#allocation5 + $0x210] sm:$0xff]
        %v2019 = vld [vmem:[#allocation5 + $0x218] sm:$0xff]
        %v2020 = vld [vmem:[#allocation5 + $0x220] sm:$0xff]
        %v2021 = vld [vmem:[#allocation5 + $0x228] sm:$0xff]
        %v2022 = vld [vmem:[#allocation5 + $0x230] sm:$0xff]
        %v2023 = vld [vmem:[#allocation5 + $0x238] sm:$0xff]
        %v2024 = vld [vmem:[#allocation5 + $0x240] sm:$0xff]
        %v2025 = vld [vmem:[#allocation5 + $0x248] sm:$0xff]
        %v2026 = vld [vmem:[#allocation5 + $0x250] sm:$0xff]
        %v2027 = vld [vmem:[#allocation5 + $0x258] sm:$0xff]
        %v2028 = vld [vmem:[#allocation5 + $0x260] sm:$0xff]
        %v2029 = vld [vmem:[#allocation5 + $0x268] sm:$0xff]
        %v2030 = vld [vmem:[#allocation5 + $0x270] sm:$0xff]
        %v2031 = vld [vmem:[#allocation5 + $0x278] sm:$0xff]
        %v2032 = vld [vmem:[#allocation5 + $0x280] sm:$0xff]
        %v2033 = vld [vmem:[#allocation5 + $0x288] sm:$0xff]
        %v2034 = vld [vmem:[#allocation5 + $0x290] sm:$0xff]
        %v2035 = vld [vmem:[#allocation5 + $0x298] sm:$0xff]
        %v2036 = vld [vmem:[#allocation5 + $0x2a0] sm:$0xff]
        %v2037 = vld [vmem:[#allocation5 + $0x2a8] sm:$0xff]
        %v2038 = vld [vmem:[#allocation5 + $0x2b0] sm:$0xff]
        %v2039 = vld [vmem:[#allocation5 + $0x2b8] sm:$0xff]
        %v2040 = vld [vmem:[#allocation5 + $0x2c0] sm:$0xff]
        %v2041 = vld [vmem:[#allocation5 + $0x2c8] sm:$0xff]
        %v2042 = vld [vmem:[#allocation5 + $0x2d0] sm:$0xff]
        %v2043 = vld [vmem:[#allocation5 + $0x2d8] sm:$0xff]
        %v2044 = vld [vmem:[#allocation5 + $0x2e0] sm:$0xff]
        %v2045 = vld [vmem:[#allocation5 + $0x2e8] sm:$0xff]
        %v2046 = vld [vmem:[#allocation5 + $0x2f0] sm:$0xff]
        %v2047 = vld [vmem:[#allocation5 + $0x2f8] sm:$0xff]
        %v2048 = vpack.c.bf16 %v1955, %v1952
        %v2049 = vpack.c.bf16 %v1956, %v1953
        %v2050 = vpack.c.bf16 %v1957, %v1954
        %v2051 = vpack.c.bf16 %v1961, %v1958
        %v2052 = vpack.c.bf16 %v1962, %v1959
        %v2053 = vpack.c.bf16 %v1963, %v1960
        %v2054 = vpack.c.bf16 %v1967, %v1964
        %v2055 = vpack.c.bf16 %v1968, %v1965
        %v2056 = vpack.c.bf16 %v1969, %v1966
        %v2057 = vpack.c.bf16 %v1973, %v1970
        %v2058 = vpack.c.bf16 %v1974, %v1971
        %v2059 = vpack.c.bf16 %v1975, %v1972
        %v2060 = vpack.c.bf16 %v1979, %v1976
        %v2061 = vpack.c.bf16 %v1980, %v1977
        %v2062 = vpack.c.bf16 %v1981, %v1978
        %v2063 = vpack.c.bf16 %v1985, %v1982
        %v2064 = vpack.c.bf16 %v1986, %v1983
        %v2065 = vpack.c.bf16 %v1987, %v1984
        %v2066 = vpack.c.bf16 %v1991, %v1988
        %v2067 = vpack.c.bf16 %v1992, %v1989
        %v2068 = vpack.c.bf16 %v1993, %v1990
        %v2069 = vpack.c.bf16 %v1997, %v1994
        %v2070 = vpack.c.bf16 %v1998, %v1995
        %v2071 = vpack.c.bf16 %v1999, %v1996
        %v2072 = vpack.c.bf16 %v2003, %v2000
        %v2073 = vpack.c.bf16 %v2004, %v2001
        %v2074 = vpack.c.bf16 %v2005, %v2002
        %v2075 = vpack.c.bf16 %v2009, %v2006
        %v2076 = vpack.c.bf16 %v2010, %v2007
        %v2077 = vpack.c.bf16 %v2011, %v2008
        %v2078 = vpack.c.bf16 %v2015, %v2012
        %v2079 = vpack.c.bf16 %v2016, %v2013
        %v2080 = vpack.c.bf16 %v2017, %v2014
        %v2081 = vpack.c.bf16 %v2021, %v2018
        %v2082 = vpack.c.bf16 %v2022, %v2019
        %v2083 = vpack.c.bf16 %v2023, %v2020
        %v2084 = vpack.c.bf16 %v2027, %v2024
        %v2085 = vpack.c.bf16 %v2028, %v2025
        %v2086 = vpack.c.bf16 %v2029, %v2026
        %v2087 = vpack.c.bf16 %v2033, %v2030
        %v2088 = vpack.c.bf16 %v2034, %v2031
        %v2089 = vpack.c.bf16 %v2035, %v2032
        %v2090 = vpack.c.bf16 %v2039, %v2036
        %v2091 = vpack.c.bf16 %v2040, %v2037
        %v2092 = vpack.c.bf16 %v2041, %v2038
        %v2093 = vpack.c.bf16 %v2045, %v2042
        %v2094 = vpack.c.bf16 %v2046, %v2043
        %v2095 = vpack.c.bf16 %v2047, %v2044
        %v2096 = vld [vmem:[%s1] sm:$0xf]
        %v2097 = vld [vmem:[%s1 + $0x4] sm:$0xf]
        %v2098 = vld [vmem:[%s1 + $0x8] sm:$0xf]
        %v2099 = vld [vmem:[%s1 + $0xc] sm:$0xf]
        %v2100 = vld [vmem:[%s1 + $0x10] sm:$0xf]
        %v2101 = vld [vmem:[%s1 + $0x14] sm:$0xf]
        %v2102 = vld [vmem:[%s1 + $0x18] sm:$0xf]
        %v2103 = vld [vmem:[%s1 + $0x1c] sm:$0xf]
        %v2104 = vld [vmem:[%s1 + $0x20] sm:$0xf]
        %v2105 = vld [vmem:[%s1 + $0x24] sm:$0xf]
        %v2106 = vld [vmem:[%s1 + $0x28] sm:$0xf]
        %v2107 = vld [vmem:[%s1 + $0x2c] sm:$0xf]
        %v2108 = vld [vmem:[%s1 + $0x30] sm:$0xf]
        %v2109 = vld [vmem:[%s1 + $0x34] sm:$0xf]
        %v2110 = vld [vmem:[%s1 + $0x38] sm:$0xf]
        %v2111 = vld [vmem:[%s1 + $0x3c] sm:$0xf]
        %v2112 = vld [vmem:[%s1 + $0x40] sm:$0xf]
        %v2113 = vld [vmem:[%s1 + $0x44] sm:$0xf]
        %v2114 = vld [vmem:[%s1 + $0x48] sm:$0xf]
        %v2115 = vld [vmem:[%s1 + $0x4c] sm:$0xf]
        %v2116 = vld [vmem:[%s1 + $0x50] sm:$0xf]
        %v2117 = vld [vmem:[%s1 + $0x54] sm:$0xf]
        %v2118 = vld [vmem:[%s1 + $0x58] sm:$0xf]
        %v2119 = vld [vmem:[%s1 + $0x5c] sm:$0xf]
        %v2120 = vld [vmem:[%s1 + $0x60] sm:$0xf]
        %v2121 = vld [vmem:[%s1 + $0x64] sm:$0xf]
        %v2122 = vld [vmem:[%s1 + $0x68] sm:$0xf]
        %v2123 = vld [vmem:[%s1 + $0x6c] sm:$0xf]
        %v2124 = vld [vmem:[%s1 + $0x70] sm:$0xf]
        %v2125 = vld [vmem:[%s1 + $0x74] sm:$0xf]
        %v2126 = vld [vmem:[%s1 + $0x78] sm:$0xf]
        %v2127 = vld [vmem:[%s1 + $0x7c] sm:$0xf]
        %v2128 = vld [vmem:[%s1 + $0x80] sm:$0xf]
        %v2129 = vld [vmem:[%s1 + $0x84] sm:$0xf]
        %v2130 = vld [vmem:[%s1 + $0x88] sm:$0xf]
        %v2131 = vld [vmem:[%s1 + $0x8c] sm:$0xf]
        %v2132 = vld [vmem:[%s2] sm:$0x1]
        %v2134 = vlaneseq
        %v2135 = vshrl.u32 %v2134, 7
        %v2136 = vsub.s32 0, %v2135
        %v2137 = vrot.slane %v2132, %v2136
        %v2175 = vunpack.c.l.b16 %v2096
        %v2176 = vunpack.c.l.b16 %v2097
        %v2177 = vunpack.c.l.b16 %v2098
        %v2178 = vunpack.c.l.b16 %v2099
        %v2179 = vunpack.c.l.b16 %v2100
        %v2180 = vunpack.c.l.b16 %v2101
        %v2181 = vunpack.c.l.b16 %v2102
        %v2182 = vunpack.c.l.b16 %v2103
        %v2183 = vunpack.c.l.b16 %v2104
        %v2184 = vunpack.c.l.b16 %v2105
        %v2185 = vunpack.c.l.b16 %v2106
        %v2186 = vunpack.c.l.b16 %v2107
        %v2187 = vunpack.c.l.b16 %v2108
        %v2188 = vunpack.c.l.b16 %v2109
        %v2189 = vunpack.c.l.b16 %v2110
        %v2190 = vunpack.c.l.b16 %v2111
        %v2191 = vunpack.c.l.b16 %v2112
        %v2192 = vunpack.c.l.b16 %v2113
        %v2193 = vunpack.c.l.b16 %v2114
        %v2194 = vunpack.c.l.b16 %v2115
        %v2195 = vunpack.c.l.b16 %v2116
        %v2196 = vunpack.c.l.b16 %v2117
        %v2197 = vunpack.c.l.b16 %v2118
        %v2198 = vunpack.c.l.b16 %v2119
        %v2199 = vunpack.c.l.b16 %v2120
        %v2200 = vunpack.c.l.b16 %v2121
        %v2201 = vunpack.c.l.b16 %v2122
        %v2202 = vunpack.c.l.b16 %v2123
        %v2203 = vunpack.c.l.b16 %v2124
        %v2204 = vunpack.c.l.b16 %v2125
        %v2205 = vunpack.c.l.b16 %v2126
        %v2206 = vunpack.c.l.b16 %v2127
        %v2207 = vunpack.c.l.b16 %v2128
        %v2208 = vunpack.c.l.b16 %v2129
        %v2209 = vunpack.c.l.b16 %v2130
        %v2210 = vunpack.c.l.b16 %v2131
        %v2211 = vpack.c.b16 %v2176, %v2175
        %v2212 = vpack.c.b16 %v2178, %v2177
        %v2213 = vpack.c.b16 %v2180, %v2179
        %v2214 = vpack.c.b16 %v2182, %v2181
        %v2215 = vpack.c.b16 %v2184, %v2183
        %v2216 = vpack.c.b16 %v2186, %v2185
        %v2217 = vpack.c.b16 %v2188, %v2187
        %v2218 = vpack.c.b16 %v2190, %v2189
        %v2219 = vpack.c.b16 %v2192, %v2191
        %v2220 = vpack.c.b16 %v2194, %v2193
        %v2221 = vpack.c.b16 %v2196, %v2195
        %v2222 = vpack.c.b16 %v2198, %v2197
        %v2223 = vpack.c.b16 %v2200, %v2199
        %v2224 = vpack.c.b16 %v2202, %v2201
        %v2225 = vpack.c.b16 %v2204, %v2203
        %v2226 = vpack.c.b16 %v2206, %v2205
        %v2227 = vpack.c.b16 %v2208, %v2207
        %v2228 = vpack.c.b16 %v2210, %v2209
        %v2248 = vsel %vm381, %v2050, 0
        %v2251 = vsel %vm381, %v2053, 0
        %v2254 = vsel %vm381, %v2056, 0
        %v2257 = vsel %vm381, %v2059, 0
        %v2260 = vsel %vm381, %v2062, 0
        %v2263 = vsel %vm381, %v2065, 0
        %v2266 = vsel %vm381, %v2068, 0
        %v2269 = vsel %vm381, %v2071, 0
        %v2272 = vsel %vm381, %v2074, 0
        %v2275 = vsel %vm381, %v2077, 0
        %v2278 = vsel %vm381, %v2080, 0
        %v2281 = vsel %vm381, %v2083, 0
        %v2284 = vsel %vm381, %v2086, 0
        %v2287 = vsel %vm381, %v2089, 0
        %v2290 = vsel %vm381, %v2092, 0
        %v2293 = vsel %vm381, %v2095, 0
        %2295 = vmatprep.subr.bf16.mxu0 0
        %2296 = vmatpush1.bf16.msra.mxu0 %v2211
        %2297 = vmatprep.subr.bf16.mxu0 0
        %2298 = vmatpush1.bf16.msra.mxu0 %v2212
        %2299 = vmatprep.subr.bf16.mxu0 0
        %2300 = vmatpush1.bf16.msra.mxu0 %v2213
        %2301 = vmatprep.subr.bf16.mxu0 0
        %2302 = vmatpush1.bf16.msra.mxu0 %v2214
        %2303 = vmatprep.subr.bf16.mxu0 0
        %2304 = vmatpush1.bf16.msra.mxu0 %v2215
        %2305 = vmatprep.subr.bf16.mxu0 0
        %2306 = vmatpush1.bf16.msra.mxu0 %v2216
        %2307 = vmatprep.subr.bf16.mxu0 0
        %2308 = vmatpush1.bf16.msra.mxu0 %v2217
        %2309 = vmatprep.subr.bf16.mxu0 0
        %2310 = vmatpush1.bf16.msra.mxu0 %v2218
        %2311 = vmatprep.subr.bf16.mxu0 0
        %2312 = vmatpush1.bf16.msra.mxu0 %v2219
        %2313 = vmatprep.subr.bf16.mxu0 0
        %2314 = vmatpush1.bf16.msra.mxu0 %v2220
        %2315 = vmatprep.subr.bf16.mxu0 0
        %2316 = vmatpush1.bf16.msra.mxu0 %v2221
        %2317 = vmatprep.subr.bf16.mxu0 0
        %2318 = vmatpush1.bf16.msra.mxu0 %v2222
        %2319 = vmatprep.subr.bf16.mxu0 0
        %2320 = vmatpush1.bf16.msra.mxu0 %v2223
        %2321 = vmatprep.subr.bf16.mxu0 0
        %2322 = vmatpush1.bf16.msra.mxu0 %v2224
        %2323 = vmatprep.subr.bf16.mxu0 0
        %2324 = vmatpush1.bf16.msra.mxu0 %v2225
        %2325 = vmatprep.subr.bf16.mxu0 0
        %2326 = vmatpush1.bf16.msra.mxu0 %v2226
        %2327 = vmatprep.mubr.bf16.mxu0 %v2049
        %2328 = vmatmul.mubr.bf16.gmra.mrb[0].mxu0 %v2048
        %v2329 = vpop.f32.mrb[0].mxu0
        %v2330 = vadd.f32 %v2137, %v2329
        %v2331 = vpop.f32.mrb[0].mxu0
        %v2332 = vpop.f32.mrb[0].mxu0
        %v2333 = vadd.f32 %v2137, %v2332
        %v2334 = vpop.f32.mrb[0].mxu0
        %2335 = vmatprep.mubr.bf16.mxu0 %v2052
        %2336 = vmatmul.mubr.bf16.gmra.mrb[0].mxu0 %v2051
        %v2337 = vpop.f32.mrb[0].mxu0
        %v2338 = vadd.f32 %v2137, %v2337
        %v2339 = vpop.f32.mrb[0].mxu0
        %v2340 = vpop.f32.mrb[0].mxu0
        %v2341 = vadd.f32 %v2137, %v2340
        %v2342 = vpop.f32.mrb[0].mxu0
        %2343 = vmatprep.mubr.bf16.mxu0 %v2055
        %2344 = vmatmul.mubr.bf16.gmra.mrb[0].mxu0 %v2054
        %v2345 = vpop.f32.mrb[0].mxu0
        %v2346 = vadd.f32 %v2137, %v2345
        %v2347 = vpop.f32.mrb[0].mxu0
        %v2348 = vpop.f32.mrb[0].mxu0
        %v2349 = vadd.f32 %v2137, %v2348
        %v2350 = vpop.f32.mrb[0].mxu0
        %2351 = vmatprep.mubr.bf16.mxu0 %v2058
        %2352 = vmatmul.mubr.bf16.gmra.mrb[0].mxu0 %v2057
        %v2353 = vpop.f32.mrb[0].mxu0
        %v2354 = vadd.f32 %v2137, %v2353
        %v2355 = vpop.f32.mrb[0].mxu0
        %v2356 = vpop.f32.mrb[0].mxu0
        %v2357 = vadd.f32 %v2137, %v2356
        %v2358 = vpop.f32.mrb[0].mxu0
        %2359 = vmatprep.mubr.bf16.mxu0 %v2061
        %2360 = vmatmul.mubr.bf16.gmra.mrb[0].mxu0 %v2060
        %v2361 = vpop.f32.mrb[0].mxu0
        %v2362 = vadd.f32 %v2137, %v2361
        %v2363 = vpop.f32.mrb[0].mxu0
        %v2364 = vpop.f32.mrb[0].mxu0
        %v2365 = vadd.f32 %v2137, %v2364
        %v2366 = vpop.f32.mrb[0].mxu0
        %2367 = vmatprep.mubr.bf16.mxu0 %v2064
        %2368 = vmatmul.mubr.bf16.gmra.mrb[0].mxu0 %v2063
        %v2369 = vpop.f32.mrb[0].mxu0
        %v2370 = vadd.f32 %v2137, %v2369
        %v2371 = vpop.f32.mrb[0].mxu0
        %v2372 = vpop.f32.mrb[0].mxu0
        %v2373 = vadd.f32 %v2137, %v2372
        %v2374 = vpop.f32.mrb[0].mxu0
        %2375 = vmatprep.mubr.bf16.mxu0 %v2067
        %2376 = vmatmul.mubr.bf16.gmra.mrb[0].mxu0 %v2066
        %v2377 = vpop.f32.mrb[0].mxu0
        %v2378 = vadd.f32 %v2137, %v2377
        %v2379 = vpop.f32.mrb[0].mxu0
        %v2380 = vpop.f32.mrb[0].mxu0
        %v2381 = vadd.f32 %v2137, %v2380
        %v2382 = vpop.f32.mrb[0].mxu0
        %2383 = vmatprep.mubr.bf16.mxu0 %v2070
        %2384 = vmatmul.mubr.bf16.gmra.mrb[0].mxu0 %v2069
        %v2385 = vpop.f32.mrb[0].mxu0
        %v2386 = vadd.f32 %v2137, %v2385
        %v2387 = vpop.f32.mrb[0].mxu0
        %v2388 = vpop.f32.mrb[0].mxu0
        %v2389 = vadd.f32 %v2137, %v2388
        %v2390 = vpop.f32.mrb[0].mxu0
        %2391 = vmatprep.mubr.bf16.mxu0 %v2073
        %2392 = vmatmul.mubr.bf16.gmra.mrb[0].mxu0 %v2072
        %v2393 = vpop.f32.mrb[0].mxu0
        %v2394 = vadd.f32 %v2137, %v2393
        %v2395 = vpop.f32.mrb[0].mxu0
        %v2396 = vpop.f32.mrb[0].mxu0
        %v2397 = vadd.f32 %v2137, %v2396
        %v2398 = vpop.f32.mrb[0].mxu0
        %2399 = vmatprep.mubr.bf16.mxu0 %v2076
        %2400 = vmatmul.mubr.bf16.gmra.mrb[0].mxu0 %v2075
        %v2401 = vpop.f32.mrb[0].mxu0
        %v2402 = vadd.f32 %v2137, %v2401
        %v2403 = vpop.f32.mrb[0].mxu0
        %v2404 = vpop.f32.mrb[0].mxu0
        %v2405 = vadd.f32 %v2137, %v2404
        %v2406 = vpop.f32.mrb[0].mxu0
        %2407 = vmatprep.mubr.bf16.mxu0 %v2079
        %2408 = vmatmul.mubr.bf16.gmra.mrb[0].mxu0 %v2078
        %v2409 = vpop.f32.mrb[0].mxu0
        %v2410 = vadd.f32 %v2137, %v2409
        %v2411 = vpop.f32.mrb[0].mxu0
        %v2412 = vpop.f32.mrb[0].mxu0
        %v2413 = vadd.f32 %v2137, %v2412
        %v2414 = vpop.f32.mrb[0].mxu0
        %2415 = vmatprep.mubr.bf16.mxu0 %v2082
        %2416 = vmatmul.mubr.bf16.gmra.mrb[0].mxu0 %v2081
        %v2417 = vpop.f32.mrb[0].mxu0
        %v2418 = vadd.f32 %v2137, %v2417
        %v2419 = vpop.f32.mrb[0].mxu0
        %v2420 = vpop.f32.mrb[0].mxu0
        %v2421 = vadd.f32 %v2137, %v2420
        %v2422 = vpop.f32.mrb[0].mxu0
        %2423 = vmatprep.mubr.bf16.mxu0 %v2085
        %2424 = vmatmul.mubr.bf16.gmra.mrb[0].mxu0 %v2084
        %v2425 = vpop.f32.mrb[0].mxu0
        %v2426 = vadd.f32 %v2137, %v2425
        %v2427 = vpop.f32.mrb[0].mxu0
        %v2428 = vpop.f32.mrb[0].mxu0
        %v2429 = vadd.f32 %v2137, %v2428
        %v2430 = vpop.f32.mrb[0].mxu0
        %2431 = vmatprep.mubr.bf16.mxu0 %v2088
        %2432 = vmatmul.mubr.bf16.gmra.mrb[0].mxu0 %v2087
        %v2433 = vpop.f32.mrb[0].mxu0
        %v2434 = vadd.f32 %v2137, %v2433
        %v2435 = vpop.f32.mrb[0].mxu0
        %v2436 = vpop.f32.mrb[0].mxu0
        %v2437 = vadd.f32 %v2137, %v2436
        %v2438 = vpop.f32.mrb[0].mxu0
        %2439 = vmatprep.mubr.bf16.mxu0 %v2091
        %2440 = vmatmul.mubr.bf16.gmra.mrb[0].mxu0 %v2090
        %v2441 = vpop.f32.mrb[0].mxu0
        %v2442 = vadd.f32 %v2137, %v2441
        %v2443 = vpop.f32.mrb[0].mxu0
        %v2444 = vpop.f32.mrb[0].mxu0
        %v2445 = vadd.f32 %v2137, %v2444
        %v2446 = vpop.f32.mrb[0].mxu0
        %2447 = vmatprep.mubr.bf16.mxu0 %v2094
        %2448 = vmatmul.mubr.bf16.gmra.mrb[0].mxu0 %v2093
        %v2449 = vpop.f32.mrb[0].mxu0
        %v2450 = vadd.f32 %v2137, %v2449
        %v2451 = vpop.f32.mrb[0].mxu0
        %v2452 = vpop.f32.mrb[0].mxu0
        %v2453 = vadd.f32 %v2137, %v2452
        %v2454 = vpop.f32.mrb[0].mxu0
        %2455 = vdwg.mxu0
        %2456 = vmatprep.subr.bf16.mxu0 0
        %2457 = vmatpush1.bf16.msra.mxu0 %v2227
        %2458 = vmatprep.subr.bf16.mxu0 0
        %2459 = vmatpush1.bf16.msra.mxu0 %v2228
        %2460 = vmatprep.subr.bf16.mxu0 0
        %2461 = vmatpush1.bf16.msra.mxu0 0
        %2462 = vmatprep.subr.bf16.mxu0 0
        %2463 = vmatpush1.bf16.msra.mxu0 0
        %2464 = vmatprep.subr.bf16.mxu0 0
        %2465 = vmatpush1.bf16.msra.mxu0 0
        %2466 = vmatprep.subr.bf16.mxu0 0
        %2467 = vmatpush1.bf16.msra.mxu0 0
        %2468 = vmatprep.subr.bf16.mxu0 0
        %2469 = vmatpush1.bf16.msra.mxu0 0
        %2470 = vmatprep.subr.bf16.mxu0 0
        %2471 = vmatpush1.bf16.msra.mxu0 0
        %2472 = vmatprep.subr.bf16.mxu0 0
        %2473 = vmatpush1.bf16.msra.mxu0 0
        %2474 = vmatprep.subr.bf16.mxu0 0
        %2475 = vmatpush1.bf16.msra.mxu0 0
        %2476 = vmatprep.subr.bf16.mxu0 0
        %2477 = vmatpush1.bf16.msra.mxu0 0
        %2478 = vmatprep.subr.bf16.mxu0 0
        %2479 = vmatpush1.bf16.msra.mxu0 0
        %2480 = vmatprep.subr.bf16.mxu0 0
        %2481 = vmatpush1.bf16.msra.mxu0 0
        %2482 = vmatprep.subr.bf16.mxu0 0
        %2483 = vmatpush1.bf16.msra.mxu0 0
        %2484 = vmatprep.subr.bf16.mxu0 0
        %2485 = vmatpush1.bf16.msra.mxu0 0
        %2486 = vmatprep.subr.bf16.mxu0 0
        %2487 = vmatpush1.bf16.msra.mxu0 0
        %2488 = vmatprep.mubr.bf16.mxu0 0
        %2489 = vmatmul.mubr.bf16.gmra.mrb[0].mxu0 %v2248
        %v2490 = vpop.f32.mrb[0].mxu0
        %v2491 = vadd.f32 %v2330, %v2490
        %v2492 = vpop.f32.mrb[0].mxu0
        %v2493 = vpop.f32.mrb[0].mxu0
        %v2494 = vadd.f32 %v2333, %v2493
        %v2495 = vpop.f32.mrb[0].mxu0
        %2496 = vmatprep.mubr.bf16.mxu0 0
        %2497 = vmatmul.mubr.bf16.gmra.mrb[0].mxu0 %v2251
        %v2498 = vpop.f32.mrb[0].mxu0
        %v2499 = vadd.f32 %v2338, %v2498
        %v2500 = vpop.f32.mrb[0].mxu0
        %v2501 = vpop.f32.mrb[0].mxu0
        %v2502 = vadd.f32 %v2341, %v2501
        %v2503 = vpop.f32.mrb[0].mxu0
        %2504 = vmatprep.mubr.bf16.mxu0 0
        %2505 = vmatmul.mubr.bf16.gmra.mrb[0].mxu0 %v2254
        %v2506 = vpop.f32.mrb[0].mxu0
        %v2507 = vadd.f32 %v2346, %v2506
        %v2508 = vpop.f32.mrb[0].mxu0
        %v2509 = vpop.f32.mrb[0].mxu0
        %v2510 = vadd.f32 %v2349, %v2509
        %v2511 = vpop.f32.mrb[0].mxu0
        %2512 = vmatprep.mubr.bf16.mxu0 0
        %2513 = vmatmul.mubr.bf16.gmra.mrb[0].mxu0 %v2257
        %v2514 = vpop.f32.mrb[0].mxu0
        %v2515 = vadd.f32 %v2354, %v2514
        %v2516 = vpop.f32.mrb[0].mxu0
        %v2517 = vpop.f32.mrb[0].mxu0
        %v2518 = vadd.f32 %v2357, %v2517
        %v2519 = vpop.f32.mrb[0].mxu0
        %2520 = vmatprep.mubr.bf16.mxu0 0
        %2521 = vmatmul.mubr.bf16.gmra.mrb[0].mxu0 %v2260
        %v2522 = vpop.f32.mrb[0].mxu0
        %v2523 = vadd.f32 %v2362, %v2522
        %v2524 = vpop.f32.mrb[0].mxu0
        %v2525 = vpop.f32.mrb[0].mxu0
        %v2526 = vadd.f32 %v2365, %v2525
        %v2527 = vpop.f32.mrb[0].mxu0
        %2528 = vmatprep.mubr.bf16.mxu0 0
        %2529 = vmatmul.mubr.bf16.gmra.mrb[0].mxu0 %v2263
        %v2530 = vpop.f32.mrb[0].mxu0
        %v2531 = vadd.f32 %v2370, %v2530
        %v2532 = vpop.f32.mrb[0].mxu0
        %v2533 = vpop.f32.mrb[0].mxu0
        %v2534 = vadd.f32 %v2373, %v2533
        %v2535 = vpop.f32.mrb[0].mxu0
        %2536 = vmatprep.mubr.bf16.mxu0 0
        %2537 = vmatmul.mubr.bf16.gmra.mrb[0].mxu0 %v2266
        %v2538 = vpop.f32.mrb[0].mxu0
        %v2539 = vadd.f32 %v2378, %v2538
        %v2540 = vpop.f32.mrb[0].mxu0
        %v2541 = vpop.f32.mrb[0].mxu0
        %v2542 = vadd.f32 %v2381, %v2541
        %v2543 = vpop.f32.mrb[0].mxu0
        %2544 = vmatprep.mubr.bf16.mxu0 0
        %2545 = vmatmul.mubr.bf16.gmra.mrb[0].mxu0 %v2269
        %v2546 = vpop.f32.mrb[0].mxu0
        %v2547 = vadd.f32 %v2386, %v2546
        %v2548 = vpop.f32.mrb[0].mxu0
        %v2549 = vpop.f32.mrb[0].mxu0
        %v2550 = vadd.f32 %v2389, %v2549
        %v2551 = vpop.f32.mrb[0].mxu0
        %2552 = vmatprep.mubr.bf16.mxu0 0
        %2553 = vmatmul.mubr.bf16.gmra.mrb[0].mxu0 %v2272
        %v2554 = vpop.f32.mrb[0].mxu0
        %v2555 = vadd.f32 %v2394, %v2554
        %v2556 = vpop.f32.mrb[0].mxu0
        %v2557 = vpop.f32.mrb[0].mxu0
        %v2558 = vadd.f32 %v2397, %v2557
        %v2559 = vpop.f32.mrb[0].mxu0
        %2560 = vmatprep.mubr.bf16.mxu0 0
        %2561 = vmatmul.mubr.bf16.gmra.mrb[0].mxu0 %v2275
        %v2562 = vpop.f32.mrb[0].mxu0
        %v2563 = vadd.f32 %v2402, %v2562
        %v2564 = vpop.f32.mrb[0].mxu0
        %v2565 = vpop.f32.mrb[0].mxu0
        %v2566 = vadd.f32 %v2405, %v2565
        %v2567 = vpop.f32.mrb[0].mxu0
        %2568 = vmatprep.mubr.bf16.mxu0 0
        %2569 = vmatmul.mubr.bf16.gmra.mrb[0].mxu0 %v2278
        %v2570 = vpop.f32.mrb[0].mxu0
        %v2571 = vadd.f32 %v2410, %v2570
        %v2572 = vpop.f32.mrb[0].mxu0
        %v2573 = vpop.f32.mrb[0].mxu0
        %v2574 = vadd.f32 %v2413, %v2573
        %v2575 = vpop.f32.mrb[0].mxu0
        %2576 = vmatprep.mubr.bf16.mxu0 0
        %2577 = vmatmul.mubr.bf16.gmra.mrb[0].mxu0 %v2281
        %v2578 = vpop.f32.mrb[0].mxu0
        %v2579 = vadd.f32 %v2418, %v2578
        %v2580 = vpop.f32.mrb[0].mxu0
        %v2581 = vpop.f32.mrb[0].mxu0
        %v2582 = vadd.f32 %v2421, %v2581
        %v2583 = vpop.f32.mrb[0].mxu0
        %2584 = vmatprep.mubr.bf16.mxu0 0
        %2585 = vmatmul.mubr.bf16.gmra.mrb[0].mxu0 %v2284
        %v2586 = vpop.f32.mrb[0].mxu0
        %v2587 = vadd.f32 %v2426, %v2586
        %v2588 = vpop.f32.mrb[0].mxu0
        %v2589 = vpop.f32.mrb[0].mxu0
        %v2590 = vadd.f32 %v2429, %v2589
        %v2591 = vpop.f32.mrb[0].mxu0
        %2592 = vmatprep.mubr.bf16.mxu0 0
        %2593 = vmatmul.mubr.bf16.gmra.mrb[0].mxu0 %v2287
        %v2594 = vpop.f32.mrb[0].mxu0
        %v2595 = vadd.f32 %v2434, %v2594
        %v2596 = vpop.f32.mrb[0].mxu0
        %v2597 = vpop.f32.mrb[0].mxu0
        %v2598 = vadd.f32 %v2437, %v2597
        %v2599 = vpop.f32.mrb[0].mxu0
        %2600 = vmatprep.mubr.bf16.mxu0 0
        %2601 = vmatmul.mubr.bf16.gmra.mrb[0].mxu0 %v2290
        %v2602 = vpop.f32.mrb[0].mxu0
        %v2603 = vadd.f32 %v2442, %v2602
        %v2604 = vpop.f32.mrb[0].mxu0
        %v2605 = vpop.f32.mrb[0].mxu0
        %v2606 = vadd.f32 %v2445, %v2605
        %v2607 = vpop.f32.mrb[0].mxu0
        %2608 = vmatprep.mubr.bf16.mxu0 0
        %2609 = vmatmul.mubr.bf16.gmra.mrb[0].mxu0 %v2293
        %v2610 = vpop.f32.mrb[0].mxu0
        %v2611 = vadd.f32 %v2450, %v2610
        %v2612 = vpop.f32.mrb[0].mxu0
        %v2613 = vpop.f32.mrb[0].mxu0
        %v2614 = vadd.f32 %v2453, %v2613
        %v2615 = vpop.f32.mrb[0].mxu0
        %2616 = vdwg.mxu0
        %v2617 = vmax.f32 %v2491, 0.0
        %v2618 = vmax.f32 %v2494, 0.0
        %v2619 = vmax.f32 %v2499, 0.0
        %v2620 = vmax.f32 %v2502, 0.0
        %v2621 = vmax.f32 %v2507, 0.0
        %v2622 = vmax.f32 %v2510, 0.0
        %v2623 = vmax.f32 %v2515, 0.0
        %v2624 = vmax.f32 %v2518, 0.0
        %v2625 = vmax.f32 %v2523, 0.0
        %v2626 = vmax.f32 %v2526, 0.0
        %v2627 = vmax.f32 %v2531, 0.0
        %v2628 = vmax.f32 %v2534, 0.0
        %v2629 = vmax.f32 %v2539, 0.0
        %v2630 = vmax.f32 %v2542, 0.0
        %v2631 = vmax.f32 %v2547, 0.0
        %v2632 = vmax.f32 %v2550, 0.0
        %v2633 = vmax.f32 %v2555, 0.0
        %v2634 = vmax.f32 %v2558, 0.0
        %v2635 = vmax.f32 %v2563, 0.0
        %v2636 = vmax.f32 %v2566, 0.0
        %v2637 = vmax.f32 %v2571, 0.0
        %v2638 = vmax.f32 %v2574, 0.0
        %v2639 = vmax.f32 %v2579, 0.0
        %v2640 = vmax.f32 %v2582, 0.0
        %v2641 = vmax.f32 %v2587, 0.0
        %v2642 = vmax.f32 %v2590, 0.0
        %v2643 = vmax.f32 %v2595, 0.0
        %v2644 = vmax.f32 %v2598, 0.0
        %v2645 = vmax.f32 %v2603, 0.0
        %v2646 = vmax.f32 %v2606, 0.0
        %v2647 = vmax.f32 %v2611, 0.0
        %v2648 = vmax.f32 %v2614, 0.0
        %2649 = vst.msk [vmem:[#allocation6] sm:$0xff] %vm381, %v2617
        %2650 = vst.msk [vmem:[#allocation6 + $0x8] sm:$0xff] %vm381, %v2618
        %2651 = vst.msk [vmem:[#allocation6 + $0x10] sm:$0xff] %vm381, %v2619
        %2652 = vst.msk [vmem:[#allocation6 + $0x18] sm:$0xff] %vm381, %v2620
        %2653 = vst.msk [vmem:[#allocation6 + $0x20] sm:$0xff] %vm381, %v2621
        %2654 = vst.msk [vmem:[#allocation6 + $0x28] sm:$0xff] %vm381, %v2622
        %2655 = vst.msk [vmem:[#allocation6 + $0x30] sm:$0xff] %vm381, %v2623
        %2656 = vst.msk [vmem:[#allocation6 + $0x38] sm:$0xff] %vm381, %v2624
        %2657 = vst.msk [vmem:[#allocation6 + $0x40] sm:$0xff] %vm381, %v2625
        %2658 = vst.msk [vmem:[#allocation6 + $0x48] sm:$0xff] %vm381, %v2626
        %2659 = vst.msk [vmem:[#allocation6 + $0x50] sm:$0xff] %vm381, %v2627
        %2660 = vst.msk [vmem:[#allocation6 + $0x58] sm:$0xff] %vm381, %v2628
        %2661 = vst.msk [vmem:[#allocation6 + $0x60] sm:$0xff] %vm381, %v2629
        %2662 = vst.msk [vmem:[#allocation6 + $0x68] sm:$0xff] %vm381, %v2630
        %2663 = vst.msk [vmem:[#allocation6 + $0x70] sm:$0xff] %vm381, %v2631
        %2664 = vst.msk [vmem:[#allocation6 + $0x78] sm:$0xff] %vm381, %v2632
        %2665 = vst.msk [vmem:[#allocation6 + $0x80] sm:$0xff] %vm381, %v2633
        %2666 = vst.msk [vmem:[#allocation6 + $0x88] sm:$0xff] %vm381, %v2634
        %2667 = vst.msk [vmem:[#allocation6 + $0x90] sm:$0xff] %vm381, %v2635
        %2668 = vst.msk [vmem:[#allocation6 + $0x98] sm:$0xff] %vm381, %v2636
        %2669 = vst.msk [vmem:[#allocation6 + $0xa0] sm:$0xff] %vm381, %v2637
        %2670 = vst.msk [vmem:[#allocation6 + $0xa8] sm:$0xff] %vm381, %v2638
        %2671 = vst.msk [vmem:[#allocation6 + $0xb0] sm:$0xff] %vm381, %v2639
        %2672 = vst.msk [vmem:[#allocation6 + $0xb8] sm:$0xff] %vm381, %v2640
        %2673 = vst.msk [vmem:[#allocation6 + $0xc0] sm:$0xff] %vm381, %v2641
        %2674 = vst.msk [vmem:[#allocation6 + $0xc8] sm:$0xff] %vm381, %v2642
        %2675 = vst.msk [vmem:[#allocation6 + $0xd0] sm:$0xff] %vm381, %v2643
        %2676 = vst.msk [vmem:[#allocation6 + $0xd8] sm:$0xff] %vm381, %v2644
        %2677 = vst.msk [vmem:[#allocation6 + $0xe0] sm:$0xff] %vm381, %v2645
        %2678 = vst.msk [vmem:[#allocation6 + $0xe8] sm:$0xff] %vm381, %v2646
        %2679 = vst.msk [vmem:[#allocation6 + $0xf0] sm:$0xff] %vm381, %v2647
        %2680 = vst.msk [vmem:[#allocation6 + $0xf8] sm:$0xff] %vm381, %v2648
        %v2681 = vld [vmem:[#allocation6] ss:$2 sm:$0xff]
        %v2682 = vpack.c.bf16 %v2681, %v2681
        %s2683 = scalar_lea.vmem [#allocation6], 1
        %v2684 = vld [vmem:[%s2683] ss:$2 sm:$0xff]
        %v2685 = vpack.c.bf16 %v2684, %v2684
        %v2687 = vunpack.c.l.b16 %v2682
        %v2688 = vpack.c.b16 %v2687, %v2687
        %2689 = vrot.lane.b32.xlu0 %v2688, 32
        %v2690 = vpop.permute.xlu0 %2689
        %s2692 = scalar_lea.vmem [#allocation2], 8
        %vm2693 = vcmask 519424
        %2694 = vst.msk [vmem:[%s2692] sm:$0xf] %vm2693, %v2690
        %v2696 = vunpack.c.l.b16 %v2685
        %v2697 = vpack.c.b16 %v2696, %v2696
        %v2699 = vshrl.u32 %v2697, 16
        %v2701 = vrot.slane %v2699, 7
        %v2702 = vshll.u32 %v2697, 16
        %v2704 = vor.u32 %v2701, %v2702
        %v2705 = vrot.slane %v2701, 4
        %vm2708 = vcmask 257024
        %vm2709 = vsmask.f32 7938
        %vm2710 = vmand %vm2708, %vm2709
        %v2711 = vld [vmem:[%s2692] sm:$0xf]
        %v2712 = vsel %vm2710, %v2704, %v2711
        %2713 = vst [vmem:[%s2692] sm:$0xf] %v2712
        %vm2714 = vcmask 253952
        %vm2715 = vmand %vm2714, %vm173
        %v2716 = vld [vmem:[%s2692 + $0x4] sm:$0x1]
        %v2717 = vsel %vm2715, %v2705, %v2716
        %2718 = vst [vmem:[%s2692 + $0x4] sm:$0x1] %v2717
        %s2719 = scalar_lea.vmem [#allocation6], 16
        %v2720 = vld [vmem:[%s2719] ss:$2 sm:$0xff]
        %v2721 = vpack.c.bf16 %v2720, %v2720
        %s2722 = scalar_lea.vmem [#allocation6], 17
        %v2723 = vld [vmem:[%s2722] ss:$2 sm:$0xff]
        %v2724 = vpack.c.bf16 %v2723, %v2723
        %v2726 = vunpack.c.l.b16 %v2721
        %v2727 = vpack.c.b16 %v2726, %v2726
        %2728 = vrot.lane.b32.xlu0 %v2727, 32
        %v2729 = vpop.permute.xlu0 %2728
        %s2731 = scalar_lea.vmem [#allocation2], 16
        %2732 = vst.msk [vmem:[%s2731] sm:$0xf] %vm2693, %v2729
        %v2734 = vunpack.c.l.b16 %v2724
        %v2735 = vpack.c.b16 %v2734, %v2734
        %v2737 = vshrl.u32 %v2735, 16
        %v2739 = vrot.slane %v2737, 7
        %v2740 = vshll.u32 %v2735, 16
        %v2742 = vor.u32 %v2739, %v2740
        %v2743 = vrot.slane %v2739, 4
        %v2746 = vld [vmem:[%s2731] sm:$0xf]
        %v2747 = vsel %vm2710, %v2742, %v2746
        %2748 = vst [vmem:[%s2731] sm:$0xf] %v2747
        %v2749 = vld [vmem:[%s2731 + $0x4] sm:$0x1]
        %v2750 = vsel %vm2715, %v2743, %v2749
        %2751 = vst [vmem:[%s2731 + $0x4] sm:$0x1] %v2750
        %s2752 = scalar_lea.vmem [#allocation6], 32
        %v2753 = vld [vmem:[%s2752] ss:$2 sm:$0xff]
        %v2754 = vpack.c.bf16 %v2753, %v2753
        %s2755 = scalar_lea.vmem [#allocation6], 33
        %v2756 = vld [vmem:[%s2755] ss:$2 sm:$0xff]
        %v2757 = vpack.c.bf16 %v2756, %v2756
        %v2759 = vunpack.c.l.b16 %v2754
        %v2760 = vpack.c.b16 %v2759, %v2759
        %2761 = vrot.lane.b32.xlu0 %v2760, 32
        %v2762 = vpop.permute.xlu0 %2761
        %s2764 = scalar_lea.vmem [#allocation2], 24
        %2765 = vst.msk [vmem:[%s2764] sm:$0xf] %vm2693, %v2762
        %v2767 = vunpack.c.l.b16 %v2757
        %v2768 = vpack.c.b16 %v2767, %v2767
        %v2770 = vshrl.u32 %v2768, 16
        %v2772 = vrot.slane %v2770, 7
        %v2773 = vshll.u32 %v2768, 16
        %v2775 = vor.u32 %v2772, %v2773
        %v2776 = vrot.slane %v2772, 4
        %v2779 = vld [vmem:[%s2764] sm:$0xf]
        %v2780 = vsel %vm2710, %v2775, %v2779
        %2781 = vst [vmem:[%s2764] sm:$0xf] %v2780
        %v2782 = vld [vmem:[%s2764 + $0x4] sm:$0x1]
        %v2783 = vsel %vm2715, %v2776, %v2782
        %2784 = vst [vmem:[%s2764 + $0x4] sm:$0x1] %v2783
        %s2785 = scalar_lea.vmem [#allocation6], 48
        %v2786 = vld [vmem:[%s2785] ss:$2 sm:$0xff]
        %v2787 = vpack.c.bf16 %v2786, %v2786
        %s2788 = scalar_lea.vmem [#allocation6], 49
        %v2789 = vld [vmem:[%s2788] ss:$2 sm:$0xff]
        %v2790 = vpack.c.bf16 %v2789, %v2789
        %v2792 = vunpack.c.l.b16 %v2787
        %v2793 = vpack.c.b16 %v2792, %v2792
        %2794 = vrot.lane.b32.xlu0 %v2793, 32
        %v2795 = vpop.permute.xlu0 %2794
        %s2797 = scalar_lea.vmem [#allocation2], 32
        %2798 = vst.msk [vmem:[%s2797] sm:$0xf] %vm2693, %v2795
        %v2800 = vunpack.c.l.b16 %v2790
        %v2801 = vpack.c.b16 %v2800, %v2800
        %v2803 = vshrl.u32 %v2801, 16
        %v2805 = vrot.slane %v2803, 7
        %v2806 = vshll.u32 %v2801, 16
        %v2808 = vor.u32 %v2805, %v2806
        %v2809 = vrot.slane %v2805, 4
        %v2812 = vld [vmem:[%s2797] sm:$0xf]
        %v2813 = vsel %vm2710, %v2808, %v2812
        %2814 = vst [vmem:[%s2797] sm:$0xf] %v2813
        %v2815 = vld [vmem:[%s2797 + $0x4] sm:$0x1]
        %v2816 = vsel %vm2715, %v2809, %v2815
        %2817 = vst [vmem:[%s2797 + $0x4] sm:$0x1] %v2816
        %s2818 = scalar_lea.vmem [#allocation6], 64
        %v2819 = vld [vmem:[%s2818] ss:$2 sm:$0xff]
        %v2820 = vpack.c.bf16 %v2819, %v2819
        %s2821 = scalar_lea.vmem [#allocation6], 65
        %v2822 = vld [vmem:[%s2821] ss:$2 sm:$0xff]
        %v2823 = vpack.c.bf16 %v2822, %v2822
        %v2825 = vunpack.c.l.b16 %v2820
        %v2826 = vpack.c.b16 %v2825, %v2825
        %2827 = vrot.lane.b32.xlu0 %v2826, 32
        %v2828 = vpop.permute.xlu0 %2827
        %s2830 = scalar_lea.vmem [#allocation2], 40
        %2831 = vst.msk [vmem:[%s2830] sm:$0xf] %vm2693, %v2828
        %v2833 = vunpack.c.l.b16 %v2823
        %v2834 = vpack.c.b16 %v2833, %v2833
        %v2836 = vshrl.u32 %v2834, 16
        %v2838 = vrot.slane %v2836, 7
        %v2839 = vshll.u32 %v2834, 16
        %v2841 = vor.u32 %v2838, %v2839
        %v2842 = vrot.slane %v2838, 4
        %v2845 = vld [vmem:[%s2830] sm:$0xf]
        %v2846 = vsel %vm2710, %v2841, %v2845
        %2847 = vst [vmem:[%s2830] sm:$0xf] %v2846
        %v2848 = vld [vmem:[%s2830 + $0x4] sm:$0x1]
        %v2849 = vsel %vm2715, %v2842, %v2848
        %2850 = vst [vmem:[%s2830 + $0x4] sm:$0x1] %v2849
        %s2851 = scalar_lea.vmem [#allocation6], 80
        %v2852 = vld [vmem:[%s2851] ss:$2 sm:$0xff]
        %v2853 = vpack.c.bf16 %v2852, %v2852
        %s2854 = scalar_lea.vmem [#allocation6], 81
        %v2855 = vld [vmem:[%s2854] ss:$2 sm:$0xff]
        %v2856 = vpack.c.bf16 %v2855, %v2855
        %v2858 = vunpack.c.l.b16 %v2853
        %v2859 = vpack.c.b16 %v2858, %v2858
        %2860 = vrot.lane.b32.xlu0 %v2859, 32
        %v2861 = vpop.permute.xlu0 %2860
        %s2863 = scalar_lea.vmem [#allocation2], 48
        %2864 = vst.msk [vmem:[%s2863] sm:$0xf] %vm2693, %v2861
        %v2866 = vunpack.c.l.b16 %v2856
        %v2867 = vpack.c.b16 %v2866, %v2866
        %v2869 = vshrl.u32 %v2867, 16
        %v2871 = vrot.slane %v2869, 7
        %v2872 = vshll.u32 %v2867, 16
        %v2874 = vor.u32 %v2871, %v2872
        %v2875 = vrot.slane %v2871, 4
        %v2878 = vld [vmem:[%s2863] sm:$0xf]
        %v2879 = vsel %vm2710, %v2874, %v2878
        %2880 = vst [vmem:[%s2863] sm:$0xf] %v2879
        %v2881 = vld [vmem:[%s2863 + $0x4] sm:$0x1]
        %v2882 = vsel %vm2715, %v2875, %v2881
        %2883 = vst [vmem:[%s2863 + $0x4] sm:$0x1] %v2882
        %s2884 = scalar_lea.vmem [#allocation6], 96
        %v2885 = vld [vmem:[%s2884] ss:$2 sm:$0xff]
        %v2886 = vpack.c.bf16 %v2885, %v2885
        %s2887 = scalar_lea.vmem [#allocation6], 97
        %v2888 = vld [vmem:[%s2887] ss:$2 sm:$0xff]
        %v2889 = vpack.c.bf16 %v2888, %v2888
        %v2891 = vunpack.c.l.b16 %v2886
        %v2892 = vpack.c.b16 %v2891, %v2891
        %2893 = vrot.lane.b32.xlu0 %v2892, 32
        %v2894 = vpop.permute.xlu0 %2893
        %s2896 = scalar_lea.vmem [#allocation2], 56
        %2897 = vst.msk [vmem:[%s2896] sm:$0xf] %vm2693, %v2894
        %v2899 = vunpack.c.l.b16 %v2889
        %v2900 = vpack.c.b16 %v2899, %v2899
        %v2902 = vshrl.u32 %v2900, 16
        %v2904 = vrot.slane %v2902, 7
        %v2905 = vshll.u32 %v2900, 16
        %v2907 = vor.u32 %v2904, %v2905
        %v2908 = vrot.slane %v2904, 4
        %v2911 = vld [vmem:[%s2896] sm:$0xf]
        %v2912 = vsel %vm2710, %v2907, %v2911
        %2913 = vst [vmem:[%s2896] sm:$0xf] %v2912
        %v2914 = vld [vmem:[%s2896 + $0x4] sm:$0x1]
        %v2915 = vsel %vm2715, %v2908, %v2914
        %2916 = vst [vmem:[%s2896 + $0x4] sm:$0x1] %v2915
        %s2917 = scalar_lea.vmem [#allocation6], 112
        %v2918 = vld [vmem:[%s2917] ss:$2 sm:$0xff]
        %v2919 = vpack.c.bf16 %v2918, %v2918
        %s2920 = scalar_lea.vmem [#allocation6], 113
        %v2921 = vld [vmem:[%s2920] ss:$2 sm:$0xff]
        %v2922 = vpack.c.bf16 %v2921, %v2921
        %v2924 = vunpack.c.l.b16 %v2919
        %v2925 = vpack.c.b16 %v2924, %v2924
        %2926 = vrot.lane.b32.xlu0 %v2925, 32
        %v2927 = vpop.permute.xlu0 %2926
        %s2929 = scalar_lea.vmem [#allocation2], 64
        %2930 = vst.msk [vmem:[%s2929] sm:$0xf] %vm2693, %v2927
        %v2932 = vunpack.c.l.b16 %v2922
        %v2933 = vpack.c.b16 %v2932, %v2932
        %v2935 = vshrl.u32 %v2933, 16
        %v2937 = vrot.slane %v2935, 7
        %v2938 = vshll.u32 %v2933, 16
        %v2940 = vor.u32 %v2937, %v2938
        %v2941 = vrot.slane %v2937, 4
        %v2944 = vld [vmem:[%s2929] sm:$0xf]
        %v2945 = vsel %vm2710, %v2940, %v2944
        %2946 = vst [vmem:[%s2929] sm:$0xf] %v2945
        %v2947 = vld [vmem:[%s2929 + $0x4] sm:$0x1]
        %v2948 = vsel %vm2715, %v2941, %v2947
        %2949 = vst [vmem:[%s2929 + $0x4] sm:$0x1] %v2948
        %s2950 = scalar_lea.vmem [#allocation6], 128
        %v2951 = vld [vmem:[%s2950] ss:$2 sm:$0xff]
        %v2952 = vpack.c.bf16 %v2951, %v2951
        %s2953 = scalar_lea.vmem [#allocation6], 129
        %v2954 = vld [vmem:[%s2953] ss:$2 sm:$0xff]
        %v2955 = vpack.c.bf16 %v2954, %v2954
        %v2957 = vunpack.c.l.b16 %v2952
        %v2958 = vpack.c.b16 %v2957, %v2957
        %2959 = vrot.lane.b32.xlu0 %v2958, 32
        %v2960 = vpop.permute.xlu0 %2959
        %s2962 = scalar_lea.vmem [#allocation2], 72
        %2963 = vst.msk [vmem:[%s2962] sm:$0xf] %vm2693, %v2960
        %v2965 = vunpack.c.l.b16 %v2955
        %v2966 = vpack.c.b16 %v2965, %v2965
        %v2968 = vshrl.u32 %v2966, 16
        %v2970 = vrot.slane %v2968, 7
        %v2971 = vshll.u32 %v2966, 16
        %v2973 = vor.u32 %v2970, %v2971
        %v2974 = vrot.slane %v2970, 4
        %v2977 = vld [vmem:[%s2962] sm:$0xf]
        %v2978 = vsel %vm2710, %v2973, %v2977
        %2979 = vst [vmem:[%s2962] sm:$0xf] %v2978
        %v2980 = vld [vmem:[%s2962 + $0x4] sm:$0x1]
        %v2981 = vsel %vm2715, %v2974, %v2980
        %2982 = vst [vmem:[%s2962 + $0x4] sm:$0x1] %v2981
        %s2983 = scalar_lea.vmem [#allocation6], 144
        %v2984 = vld [vmem:[%s2983] ss:$2 sm:$0xff]
        %v2985 = vpack.c.bf16 %v2984, %v2984
        %s2986 = scalar_lea.vmem [#allocation6], 145
        %v2987 = vld [vmem:[%s2986] ss:$2 sm:$0xff]
        %v2988 = vpack.c.bf16 %v2987, %v2987
        %v2990 = vunpack.c.l.b16 %v2985
        %v2991 = vpack.c.b16 %v2990, %v2990
        %2992 = vrot.lane.b32.xlu0 %v2991, 32
        %v2993 = vpop.permute.xlu0 %2992
        %s2995 = scalar_lea.vmem [#allocation2], 80
        %2996 = vst.msk [vmem:[%s2995] sm:$0xf] %vm2693, %v2993
        %v2998 = vunpack.c.l.b16 %v2988
        %v2999 = vpack.c.b16 %v2998, %v2998
        %v3001 = vshrl.u32 %v2999, 16
        %v3003 = vrot.slane %v3001, 7
        %v3004 = vshll.u32 %v2999, 16
        %v3006 = vor.u32 %v3003, %v3004
        %v3007 = vrot.slane %v3003, 4
        %v3010 = vld [vmem:[%s2995] sm:$0xf]
        %v3011 = vsel %vm2710, %v3006, %v3010
        %3012 = vst [vmem:[%s2995] sm:$0xf] %v3011
        %v3013 = vld [vmem:[%s2995 + $0x4] sm:$0x1]
        %v3014 = vsel %vm2715, %v3007, %v3013
        %3015 = vst [vmem:[%s2995 + $0x4] sm:$0x1] %v3014
        %s3016 = scalar_lea.vmem [#allocation6], 160
        %v3017 = vld [vmem:[%s3016] ss:$2 sm:$0xff]
        %v3018 = vpack.c.bf16 %v3017, %v3017
        %s3019 = scalar_lea.vmem [#allocation6], 161
        %v3020 = vld [vmem:[%s3019] ss:$2 sm:$0xff]
        %v3021 = vpack.c.bf16 %v3020, %v3020
        %v3023 = vunpack.c.l.b16 %v3018
        %v3024 = vpack.c.b16 %v3023, %v3023
        %3025 = vrot.lane.b32.xlu0 %v3024, 32
        %v3026 = vpop.permute.xlu0 %3025
        %s3028 = scalar_lea.vmem [#allocation2], 88
        %3029 = vst.msk [vmem:[%s3028] sm:$0xf] %vm2693, %v3026
        %v3031 = vunpack.c.l.b16 %v3021
        %v3032 = vpack.c.b16 %v3031, %v3031
        %v3034 = vshrl.u32 %v3032, 16
        %v3036 = vrot.slane %v3034, 7
        %v3037 = vshll.u32 %v3032, 16
        %v3039 = vor.u32 %v3036, %v3037
        %v3040 = vrot.slane %v3036, 4
        %v3043 = vld [vmem:[%s3028] sm:$0xf]
        %v3044 = vsel %vm2710, %v3039, %v3043
        %3045 = vst [vmem:[%s3028] sm:$0xf] %v3044
        %v3046 = vld [vmem:[%s3028 + $0x4] sm:$0x1]
        %v3047 = vsel %vm2715, %v3040, %v3046
        %3048 = vst [vmem:[%s3028 + $0x4] sm:$0x1] %v3047
        %s3049 = scalar_lea.vmem [#allocation6], 176
        %v3050 = vld [vmem:[%s3049] ss:$2 sm:$0xff]
        %v3051 = vpack.c.bf16 %v3050, %v3050
        %s3052 = scalar_lea.vmem [#allocation6], 177
        %v3053 = vld [vmem:[%s3052] ss:$2 sm:$0xff]
        %v3054 = vpack.c.bf16 %v3053, %v3053
        %v3056 = vunpack.c.l.b16 %v3051
        %v3057 = vpack.c.b16 %v3056, %v3056
        %3058 = vrot.lane.b32.xlu0 %v3057, 32
        %v3059 = vpop.permute.xlu0 %3058
        %s3061 = scalar_lea.vmem [#allocation2], 96
        %3062 = vst.msk [vmem:[%s3061] sm:$0xf] %vm2693, %v3059
        %v3064 = vunpack.c.l.b16 %v3054
        %v3065 = vpack.c.b16 %v3064, %v3064
        %v3067 = vshrl.u32 %v3065, 16
        %v3069 = vrot.slane %v3067, 7
        %v3070 = vshll.u32 %v3065, 16
        %v3072 = vor.u32 %v3069, %v3070
        %v3073 = vrot.slane %v3069, 4
        %v3076 = vld [vmem:[%s3061] sm:$0xf]
        %v3077 = vsel %vm2710, %v3072, %v3076
        %3078 = vst [vmem:[%s3061] sm:$0xf] %v3077
        %v3079 = vld [vmem:[%s3061 + $0x4] sm:$0x1]
        %v3080 = vsel %vm2715, %v3073, %v3079
        %3081 = vst [vmem:[%s3061 + $0x4] sm:$0x1] %v3080
        %s3082 = scalar_lea.vmem [#allocation6], 192
        %v3083 = vld [vmem:[%s3082] ss:$2 sm:$0xff]
        %v3084 = vpack.c.bf16 %v3083, %v3083
        %s3085 = scalar_lea.vmem [#allocation6], 193
        %v3086 = vld [vmem:[%s3085] ss:$2 sm:$0xff]
        %v3087 = vpack.c.bf16 %v3086, %v3086
        %v3089 = vunpack.c.l.b16 %v3084
        %v3090 = vpack.c.b16 %v3089, %v3089
        %3091 = vrot.lane.b32.xlu0 %v3090, 32
        %v3092 = vpop.permute.xlu0 %3091
        %s3094 = scalar_lea.vmem [#allocation2], 104
        %3095 = vst.msk [vmem:[%s3094] sm:$0xf] %vm2693, %v3092
        %v3097 = vunpack.c.l.b16 %v3087
        %v3098 = vpack.c.b16 %v3097, %v3097
        %v3100 = vshrl.u32 %v3098, 16
        %v3102 = vrot.slane %v3100, 7
        %v3103 = vshll.u32 %v3098, 16
        %v3105 = vor.u32 %v3102, %v3103
        %v3106 = vrot.slane %v3102, 4
        %v3109 = vld [vmem:[%s3094] sm:$0xf]
        %v3110 = vsel %vm2710, %v3105, %v3109
        %3111 = vst [vmem:[%s3094] sm:$0xf] %v3110
        %v3112 = vld [vmem:[%s3094 + $0x4] sm:$0x1]
        %v3113 = vsel %vm2715, %v3106, %v3112
        %3114 = vst [vmem:[%s3094 + $0x4] sm:$0x1] %v3113
        %s3115 = scalar_lea.vmem [#allocation6], 208
        %v3116 = vld [vmem:[%s3115] ss:$2 sm:$0xff]
        %v3117 = vpack.c.bf16 %v3116, %v3116
        %s3118 = scalar_lea.vmem [#allocation6], 209
        %v3119 = vld [vmem:[%s3118] ss:$2 sm:$0xff]
        %v3120 = vpack.c.bf16 %v3119, %v3119
        %v3122 = vunpack.c.l.b16 %v3117
        %v3123 = vpack.c.b16 %v3122, %v3122
        %3124 = vrot.lane.b32.xlu0 %v3123, 32
        %v3125 = vpop.permute.xlu0 %3124
        %s3127 = scalar_lea.vmem [#allocation2], 112
        %3128 = vst.msk [vmem:[%s3127] sm:$0xf] %vm2693, %v3125
        %v3130 = vunpack.c.l.b16 %v3120
        %v3131 = vpack.c.b16 %v3130, %v3130
        %v3133 = vshrl.u32 %v3131, 16
        %v3135 = vrot.slane %v3133, 7
        %v3136 = vshll.u32 %v3131, 16
        %v3138 = vor.u32 %v3135, %v3136
        %v3139 = vrot.slane %v3135, 4
        %v3142 = vld [vmem:[%s3127] sm:$0xf]
        %v3143 = vsel %vm2710, %v3138, %v3142
        %3144 = vst [vmem:[%s3127] sm:$0xf] %v3143
        %v3145 = vld [vmem:[%s3127 + $0x4] sm:$0x1]
        %v3146 = vsel %vm2715, %v3139, %v3145
        %3147 = vst [vmem:[%s3127 + $0x4] sm:$0x1] %v3146
        %s3148 = scalar_lea.vmem [#allocation6], 224
        %v3149 = vld [vmem:[%s3148] ss:$2 sm:$0xff]
        %v3150 = vpack.c.bf16 %v3149, %v3149
        %s3151 = scalar_lea.vmem [#allocation6], 225
        %v3152 = vld [vmem:[%s3151] ss:$2 sm:$0xff]
        %v3153 = vpack.c.bf16 %v3152, %v3152
        %v3155 = vunpack.c.l.b16 %v3150
        %v3156 = vpack.c.b16 %v3155, %v3155
        %3157 = vrot.lane.b32.xlu0 %v3156, 32
        %v3158 = vpop.permute.xlu0 %3157
        %s3160 = scalar_lea.vmem [#allocation2], 120
        %3161 = vst.msk [vmem:[%s3160] sm:$0xf] %vm2693, %v3158
        %v3163 = vunpack.c.l.b16 %v3153
        %v3164 = vpack.c.b16 %v3163, %v3163
        %v3166 = vshrl.u32 %v3164, 16
        %v3168 = vrot.slane %v3166, 7
        %v3169 = vshll.u32 %v3164, 16
        %v3171 = vor.u32 %v3168, %v3169
        %v3172 = vrot.slane %v3168, 4
        %v3175 = vld [vmem:[%s3160] sm:$0xf]
        %v3176 = vsel %vm2710, %v3171, %v3175
        %3177 = vst [vmem:[%s3160] sm:$0xf] %v3176
        %v3178 = vld [vmem:[%s3160 + $0x4] sm:$0x1]
        %v3179 = vsel %vm2715, %v3172, %v3178
        %3180 = vst [vmem:[%s3160 + $0x4] sm:$0x1] %v3179
        %s3181 = scalar_lea.vmem [#allocation6], 240
        %v3182 = vld [vmem:[%s3181] ss:$2 sm:$0xff]
        %v3183 = vpack.c.bf16 %v3182, %v3182
        %s3184 = scalar_lea.vmem [#allocation6], 241
        %v3185 = vld [vmem:[%s3184] ss:$2 sm:$0xff]
        %v3186 = vpack.c.bf16 %v3185, %v3185
        %v3188 = vunpack.c.l.b16 %v3183
        %v3189 = vpack.c.b16 %v3188, %v3188
        %3190 = vrot.lane.b32.xlu0 %v3189, 32
        %v3191 = vpop.permute.xlu0 %3190
        %s3193 = scalar_lea.vmem [#allocation2], 128
        %3194 = vst.msk [vmem:[%s3193] sm:$0xf] %vm2693, %v3191
        %v3196 = vunpack.c.l.b16 %v3186
        %v3197 = vpack.c.b16 %v3196, %v3196
        %v3199 = vshrl.u32 %v3197, 16
        %v3201 = vrot.slane %v3199, 7
        %v3202 = vshll.u32 %v3197, 16
        %v3204 = vor.u32 %v3201, %v3202
        %v3205 = vrot.slane %v3201, 4
        %v3208 = vld [vmem:[%s3193] sm:$0xf]
        %v3209 = vsel %vm2710, %v3204, %v3208
        %3210 = vst [vmem:[%s3193] sm:$0xf] %v3209
        %v3211 = vld [vmem:[%s3193 + $0x4] sm:$0x1]
        %v3212 = vsel %vm2715, %v3205, %v3211
        %3213 = vst [vmem:[%s3193 + $0x4] sm:$0x1] %v3212
        %v3214 = vld [vmem:[#allocation2] sm:$0xf]
        %v3215 = vld [vmem:[#allocation2 + $0x4] sm:$0x1]
        %v3216 = vld [vmem:[%s2692] sm:$0xf]
        %v3217 = vld [vmem:[%s2692 + $0x4] sm:$0x1]
        %v3218 = vld [vmem:[%s2731] sm:$0xf]
        %v3219 = vld [vmem:[%s2731 + $0x4] sm:$0x1]
        %v3222 = vunpack.c.l.b16 %v3214
        %v3223 = vunpack.c.l.b16 %v3215
        %v3224 = vpack.c.b16 %v3223, %v3222
        %v3226 = vshrl.u32 %v3224, 16
        %v3228 = vshll.u32 %v3224, 16
        %v3230 = vrot.slane %v3228, 1
        %v3231 = vor.u32 %v3226, %v3230
        %3232 = vrot.lane.b32.xlu0 %v3231, 64
        %v3233 = vpop.permute.xlu0 %3232
        %v3235 = vunpack.c.l.b16 %v3216
        %v3236 = vpack.c.b16 %v3235, %v3235
        %3237 = vrot.lane.b32.xlu0 %v3236, 96
        %v3238 = vpop.permute.xlu0 %3237
        %v3240 = vunpack.c.l.b16 %v3217
        %v3241 = vpack.c.b16 %v3240, %v3235
        %v3243 = vshrl.u32 %v3241, 16
        %v3245 = vshll.u32 %v3241, 16
        %v3247 = vrot.slane %v3245, 1
        %v3248 = vor.u32 %v3243, %v3247
        %3249 = vrot.lane.b32.xlu0 %v3248, 32
        %v3250 = vpop.permute.xlu0 %3249
        %v3252 = vunpack.c.l.b16 %v3218
        %v3253 = vpack.c.b16 %v3252, %v3252
        %3254 = vrot.lane.b32.xlu0 %v3253, 64
        %v3255 = vpop.permute.xlu0 %3254
        %v3257 = vunpack.c.l.b16 %v3219
        %v3258 = vpack.c.b16 %v3257, %v3252
        %v3260 = vshrl.u32 %v3258, 16
        %v3262 = vshll.u32 %v3258, 16
        %v3264 = vrot.slane %v3262, 1
        %v3265 = vor.u32 %v3260, %v3264
        %v3269 = vsel %vm382, %v3214, %v3233
        %v3271 = vsel %vm385, %v3269, %v3238
        %v3274 = vsel %vm381, %v3238, %v3250
        %v3276 = vsel %vm382, %v3274, %v3255
        %v3277 = vsel %vm385, %v3276, %v3255
        %v3279 = vunpack.c.l.bf16 %v3271
        %v3280 = vunpack.c.l.bf16 %v3277
        %v3281 = vunpack.c.l.bf16 %v3265
        %3282 = vst [vmem:[#allocation5] sm:$0xff] %v3279
        %3283 = vst [vmem:[#allocation5 + $0x8] sm:$0xff] %v3280
        %3284 = vst.msk [vmem:[#allocation5 + $0x10] sm:$0xff] %vm381, %v3281
        %v3285 = vld [vmem:[%s2731] sm:$0xf]
        %v3286 = vld [vmem:[%s2731 + $0x4] sm:$0x1]
        %v3287 = vld [vmem:[%s2764] sm:$0xf]
        %v3288 = vld [vmem:[%s2764 + $0x4] sm:$0x1]
        %v3289 = vld [vmem:[%s2797] sm:$0xf]
        %v3290 = vld [vmem:[%s2797 + $0x4] sm:$0x1]
        %v3293 = vunpack.c.l.b16 %v3285
        %v3294 = vunpack.c.l.b16 %v3286
        %v3295 = vpack.c.b16 %v3294, %v3293
        %v3297 = vshrl.u32 %v3295, 16
        %v3299 = vshll.u32 %v3295, 16
        %v3301 = vrot.slane %v3299, 1
        %v3302 = vor.u32 %v3297, %v3301
        %3303 = vrot.lane.b32.xlu0 %v3302, 64
        %v3304 = vpop.permute.xlu0 %3303
        %v3306 = vunpack.c.l.b16 %v3287
        %v3307 = vpack.c.b16 %v3306, %v3306
        %3308 = vrot.lane.b32.xlu0 %v3307, 96
        %v3309 = vpop.permute.xlu0 %3308
        %v3311 = vunpack.c.l.b16 %v3288
        %v3312 = vpack.c.b16 %v3311, %v3306
        %v3314 = vshrl.u32 %v3312, 16
        %v3316 = vshll.u32 %v3312, 16
        %v3318 = vrot.slane %v3316, 1
        %v3319 = vor.u32 %v3314, %v3318
        %3320 = vrot.lane.b32.xlu0 %v3319, 32
        %v3321 = vpop.permute.xlu0 %3320
        %v3323 = vunpack.c.l.b16 %v3289
        %v3324 = vpack.c.b16 %v3323, %v3323
        %3325 = vrot.lane.b32.xlu0 %v3324, 64
        %v3326 = vpop.permute.xlu0 %3325
        %v3328 = vunpack.c.l.b16 %v3290
        %v3329 = vpack.c.b16 %v3328, %v3323
        %v3331 = vshrl.u32 %v3329, 16
        %v3333 = vshll.u32 %v3329, 16
        %v3335 = vrot.slane %v3333, 1
        %v3336 = vor.u32 %v3331, %v3335
        %v3340 = vsel %vm382, %v3285, %v3304
        %v3342 = vsel %vm385, %v3340, %v3309
        %v3345 = vsel %vm381, %v3309, %v3321
        %v3347 = vsel %vm382, %v3345, %v3326
        %v3348 = vsel %vm385, %v3347, %v3326
        %v3350 = vunpack.c.l.bf16 %v3342
        %v3351 = vunpack.c.l.bf16 %v3348
        %v3352 = vunpack.c.l.bf16 %v3336
        %3353 = vst [vmem:[#allocation5 + $0x18] sm:$0xff] %v3350
        %3354 = vst [vmem:[#allocation5 + $0x20] sm:$0xff] %v3351
        %3355 = vst.msk [vmem:[#allocation5 + $0x28] sm:$0xff] %vm381, %v3352
        %v3356 = vld [vmem:[%s2797] sm:$0xf]
        %v3357 = vld [vmem:[%s2797 + $0x4] sm:$0x1]
        %v3358 = vld [vmem:[%s2830] sm:$0xf]
        %v3359 = vld [vmem:[%s2830 + $0x4] sm:$0x1]
        %v3360 = vld [vmem:[%s2863] sm:$0xf]
        %v3361 = vld [vmem:[%s2863 + $0x4] sm:$0x1]
        %v3364 = vunpack.c.l.b16 %v3356
        %v3365 = vunpack.c.l.b16 %v3357
        %v3366 = vpack.c.b16 %v3365, %v3364
        %v3368 = vshrl.u32 %v3366, 16
        %v3370 = vshll.u32 %v3366, 16
        %v3372 = vrot.slane %v3370, 1
        %v3373 = vor.u32 %v3368, %v3372
        %3374 = vrot.lane.b32.xlu0 %v3373, 64
        %v3375 = vpop.permute.xlu0 %3374
        %v3377 = vunpack.c.l.b16 %v3358
        %v3378 = vpack.c.b16 %v3377, %v3377
        %3379 = vrot.lane.b32.xlu0 %v3378, 96
        %v3380 = vpop.permute.xlu0 %3379
        %v3382 = vunpack.c.l.b16 %v3359
        %v3383 = vpack.c.b16 %v3382, %v3377
        %v3385 = vshrl.u32 %v3383, 16
        %v3387 = vshll.u32 %v3383, 16
        %v3389 = vrot.slane %v3387, 1
        %v3390 = vor.u32 %v3385, %v3389
        %3391 = vrot.lane.b32.xlu0 %v3390, 32
        %v3392 = vpop.permute.xlu0 %3391
        %v3394 = vunpack.c.l.b16 %v3360
        %v3395 = vpack.c.b16 %v3394, %v3394
        %3396 = vrot.lane.b32.xlu0 %v3395, 64
        %v3397 = vpop.permute.xlu0 %3396
        %v3399 = vunpack.c.l.b16 %v3361
        %v3400 = vpack.c.b16 %v3399, %v3394
        %v3402 = vshrl.u32 %v3400, 16
        %v3404 = vshll.u32 %v3400, 16
        %v3406 = vrot.slane %v3404, 1
        %v3407 = vor.u32 %v3402, %v3406
        %v3411 = vsel %vm382, %v3356, %v3375
        %v3413 = vsel %vm385, %v3411, %v3380
        %v3416 = vsel %vm381, %v3380, %v3392
        %v3418 = vsel %vm382, %v3416, %v3397
        %v3419 = vsel %vm385, %v3418, %v3397
        %v3421 = vunpack.c.l.bf16 %v3413
        %v3422 = vunpack.c.l.bf16 %v3419
        %v3423 = vunpack.c.l.bf16 %v3407
        %3424 = vst [vmem:[#allocation5 + $0x30] sm:$0xff] %v3421
        %3425 = vst [vmem:[#allocation5 + $0x38] sm:$0xff] %v3422
        %3426 = vst.msk [vmem:[#allocation5 + $0x40] sm:$0xff] %vm381, %v3423
        %v3427 = vld [vmem:[%s2863] sm:$0xf]
        %v3428 = vld [vmem:[%s2863 + $0x4] sm:$0x1]
        %v3429 = vld [vmem:[%s2896] sm:$0xf]
        %v3430 = vld [vmem:[%s2896 + $0x4] sm:$0x1]
        %v3431 = vld [vmem:[%s2929] sm:$0xf]
        %v3432 = vld [vmem:[%s2929 + $0x4] sm:$0x1]
        %v3435 = vunpack.c.l.b16 %v3427
        %v3436 = vunpack.c.l.b16 %v3428
        %v3437 = vpack.c.b16 %v3436, %v3435
        %v3439 = vshrl.u32 %v3437, 16
        %v3441 = vshll.u32 %v3437, 16
        %v3443 = vrot.slane %v3441, 1
        %v3444 = vor.u32 %v3439, %v3443
        %3445 = vrot.lane.b32.xlu0 %v3444, 64
        %v3446 = vpop.permute.xlu0 %3445
        %v3448 = vunpack.c.l.b16 %v3429
        %v3449 = vpack.c.b16 %v3448, %v3448
        %3450 = vrot.lane.b32.xlu0 %v3449, 96
        %v3451 = vpop.permute.xlu0 %3450
        %v3453 = vunpack.c.l.b16 %v3430
        %v3454 = vpack.c.b16 %v3453, %v3448
        %v3456 = vshrl.u32 %v3454, 16
        %v3458 = vshll.u32 %v3454, 16
        %v3460 = vrot.slane %v3458, 1
        %v3461 = vor.u32 %v3456, %v3460
        %3462 = vrot.lane.b32.xlu0 %v3461, 32
        %v3463 = vpop.permute.xlu0 %3462
        %v3465 = vunpack.c.l.b16 %v3431
        %v3466 = vpack.c.b16 %v3465, %v3465
        %3467 = vrot.lane.b32.xlu0 %v3466, 64
        %v3468 = vpop.permute.xlu0 %3467
        %v3470 = vunpack.c.l.b16 %v3432
        %v3471 = vpack.c.b16 %v3470, %v3465
        %v3473 = vshrl.u32 %v3471, 16
        %v3475 = vshll.u32 %v3471, 16
        %v3477 = vrot.slane %v3475, 1
        %v3478 = vor.u32 %v3473, %v3477
        %v3482 = vsel %vm382, %v3427, %v3446
        %v3484 = vsel %vm385, %v3482, %v3451
        %v3487 = vsel %vm381, %v3451, %v3463
        %v3489 = vsel %vm382, %v3487, %v3468
        %v3490 = vsel %vm385, %v3489, %v3468
        %v3492 = vunpack.c.l.bf16 %v3484
        %v3493 = vunpack.c.l.bf16 %v3490
        %v3494 = vunpack.c.l.bf16 %v3478
        %3495 = vst [vmem:[#allocation5 + $0x48] sm:$0xff] %v3492
        %3496 = vst [vmem:[#allocation5 + $0x50] sm:$0xff] %v3493
        %3497 = vst.msk [vmem:[#allocation5 + $0x58] sm:$0xff] %vm381, %v3494
        %v3498 = vld [vmem:[%s2929] sm:$0xf]
        %v3499 = vld [vmem:[%s2929 + $0x4] sm:$0x1]
        %v3500 = vld [vmem:[%s2962] sm:$0xf]
        %v3501 = vld [vmem:[%s2962 + $0x4] sm:$0x1]
        %v3502 = vld [vmem:[%s2995] sm:$0xf]
        %v3503 = vld [vmem:[%s2995 + $0x4] sm:$0x1]
        %v3506 = vunpack.c.l.b16 %v3498
        %v3507 = vunpack.c.l.b16 %v3499
        %v3508 = vpack.c.b16 %v3507, %v3506
        %v3510 = vshrl.u32 %v3508, 16
        %v3512 = vshll.u32 %v3508, 16
        %v3514 = vrot.slane %v3512, 1
        %v3515 = vor.u32 %v3510, %v3514
        %3516 = vrot.lane.b32.xlu0 %v3515, 64
        %v3517 = vpop.permute.xlu0 %3516
        %v3519 = vunpack.c.l.b16 %v3500
        %v3520 = vpack.c.b16 %v3519, %v3519
        %3521 = vrot.lane.b32.xlu0 %v3520, 96
        %v3522 = vpop.permute.xlu0 %3521
        %v3524 = vunpack.c.l.b16 %v3501
        %v3525 = vpack.c.b16 %v3524, %v3519
        %v3527 = vshrl.u32 %v3525, 16
        %v3529 = vshll.u32 %v3525, 16
        %v3531 = vrot.slane %v3529, 1
        %v3532 = vor.u32 %v3527, %v3531
        %3533 = vrot.lane.b32.xlu0 %v3532, 32
        %v3534 = vpop.permute.xlu0 %3533
        %v3536 = vunpack.c.l.b16 %v3502
        %v3537 = vpack.c.b16 %v3536, %v3536
        %3538 = vrot.lane.b32.xlu0 %v3537, 64
        %v3539 = vpop.permute.xlu0 %3538
        %v3541 = vunpack.c.l.b16 %v3503
        %v3542 = vpack.c.b16 %v3541, %v3536
        %v3544 = vshrl.u32 %v3542, 16
        %v3546 = vshll.u32 %v3542, 16
        %v3548 = vrot.slane %v3546, 1
        %v3549 = vor.u32 %v3544, %v3548
        %v3553 = vsel %vm382, %v3498, %v3517
        %v3555 = vsel %vm385, %v3553, %v3522
        %v3558 = vsel %vm381, %v3522, %v3534
        %v3560 = vsel %vm382, %v3558, %v3539
        %v3561 = vsel %vm385, %v3560, %v3539
        %v3563 = vunpack.c.l.bf16 %v3555
        %v3564 = vunpack.c.l.bf16 %v3561
        %v3565 = vunpack.c.l.bf16 %v3549
        %3566 = vst [vmem:[#allocation5 + $0x60] sm:$0xff] %v3563
        %3567 = vst [vmem:[#allocation5 + $0x68] sm:$0xff] %v3564
        %3568 = vst.msk [vmem:[#allocation5 + $0x70] sm:$0xff] %vm381, %v3565
        %v3569 = vld [vmem:[%s2995] sm:$0xf]
        %v3570 = vld [vmem:[%s2995 + $0x4] sm:$0x1]
        %v3571 = vld [vmem:[%s3028] sm:$0xf]
        %v3572 = vld [vmem:[%s3028 + $0x4] sm:$0x1]
        %v3573 = vld [vmem:[%s3061] sm:$0xf]
        %v3574 = vld [vmem:[%s3061 + $0x4] sm:$0x1]
        %v3577 = vunpack.c.l.b16 %v3569
        %v3578 = vunpack.c.l.b16 %v3570
        %v3579 = vpack.c.b16 %v3578, %v3577
        %v3581 = vshrl.u32 %v3579, 16
        %v3583 = vshll.u32 %v3579, 16
        %v3585 = vrot.slane %v3583, 1
        %v3586 = vor.u32 %v3581, %v3585
        %3587 = vrot.lane.b32.xlu0 %v3586, 64
        %v3588 = vpop.permute.xlu0 %3587
        %v3590 = vunpack.c.l.b16 %v3571
        %v3591 = vpack.c.b16 %v3590, %v3590
        %3592 = vrot.lane.b32.xlu0 %v3591, 96
        %v3593 = vpop.permute.xlu0 %3592
        %v3595 = vunpack.c.l.b16 %v3572
        %v3596 = vpack.c.b16 %v3595, %v3590
        %v3598 = vshrl.u32 %v3596, 16
        %v3600 = vshll.u32 %v3596, 16
        %v3602 = vrot.slane %v3600, 1
        %v3603 = vor.u32 %v3598, %v3602
        %3604 = vrot.lane.b32.xlu0 %v3603, 32
        %v3605 = vpop.permute.xlu0 %3604
        %v3607 = vunpack.c.l.b16 %v3573
        %v3608 = vpack.c.b16 %v3607, %v3607
        %3609 = vrot.lane.b32.xlu0 %v3608, 64
        %v3610 = vpop.permute.xlu0 %3609
        %v3612 = vunpack.c.l.b16 %v3574
        %v3613 = vpack.c.b16 %v3612, %v3607
        %v3615 = vshrl.u32 %v3613, 16
        %v3617 = vshll.u32 %v3613, 16
        %v3619 = vrot.slane %v3617, 1
        %v3620 = vor.u32 %v3615, %v3619
        %v3624 = vsel %vm382, %v3569, %v3588
        %v3626 = vsel %vm385, %v3624, %v3593
        %v3629 = vsel %vm381, %v3593, %v3605
        %v3631 = vsel %vm382, %v3629, %v3610
        %v3632 = vsel %vm385, %v3631, %v3610
        %v3634 = vunpack.c.l.bf16 %v3626
        %v3635 = vunpack.c.l.bf16 %v3632
        %v3636 = vunpack.c.l.bf16 %v3620
        %3637 = vst [vmem:[#allocation5 + $0x78] sm:$0xff] %v3634
        %3638 = vst [vmem:[#allocation5 + $0x80] sm:$0xff] %v3635
        %3639 = vst.msk [vmem:[#allocation5 + $0x88] sm:$0xff] %vm381, %v3636
        %v3640 = vld [vmem:[%s3061] sm:$0xf]
        %v3641 = vld [vmem:[%s3061 + $0x4] sm:$0x1]
        %v3642 = vld [vmem:[%s3094] sm:$0xf]
        %v3643 = vld [vmem:[%s3094 + $0x4] sm:$0x1]
        %v3644 = vld [vmem:[%s3127] sm:$0xf]
        %v3645 = vld [vmem:[%s3127 + $0x4] sm:$0x1]
        %v3648 = vunpack.c.l.b16 %v3640
        %v3649 = vunpack.c.l.b16 %v3641
        %v3650 = vpack.c.b16 %v3649, %v3648
        %v3652 = vshrl.u32 %v3650, 16
        %v3654 = vshll.u32 %v3650, 16
        %v3656 = vrot.slane %v3654, 1
        %v3657 = vor.u32 %v3652, %v3656
        %3658 = vrot.lane.b32.xlu0 %v3657, 64
        %v3659 = vpop.permute.xlu0 %3658
        %v3661 = vunpack.c.l.b16 %v3642
        %v3662 = vpack.c.b16 %v3661, %v3661
        %3663 = vrot.lane.b32.xlu0 %v3662, 96
        %v3664 = vpop.permute.xlu0 %3663
        %v3666 = vunpack.c.l.b16 %v3643
        %v3667 = vpack.c.b16 %v3666, %v3661
        %v3669 = vshrl.u32 %v3667, 16
        %v3671 = vshll.u32 %v3667, 16
        %v3673 = vrot.slane %v3671, 1
        %v3674 = vor.u32 %v3669, %v3673
        %3675 = vrot.lane.b32.xlu0 %v3674, 32
        %v3676 = vpop.permute.xlu0 %3675
        %v3678 = vunpack.c.l.b16 %v3644
        %v3679 = vpack.c.b16 %v3678, %v3678
        %3680 = vrot.lane.b32.xlu0 %v3679, 64
        %v3681 = vpop.permute.xlu0 %3680
        %v3683 = vunpack.c.l.b16 %v3645
        %v3684 = vpack.c.b16 %v3683, %v3678
        %v3686 = vshrl.u32 %v3684, 16
        %v3688 = vshll.u32 %v3684, 16
        %v3690 = vrot.slane %v3688, 1
        %v3691 = vor.u32 %v3686, %v3690
        %v3695 = vsel %vm382, %v3640, %v3659
        %v3697 = vsel %vm385, %v3695, %v3664
        %v3700 = vsel %vm381, %v3664, %v3676
        %v3702 = vsel %vm382, %v3700, %v3681
        %v3703 = vsel %vm385, %v3702, %v3681
        %v3705 = vunpack.c.l.bf16 %v3697
        %v3706 = vunpack.c.l.bf16 %v3703
        %v3707 = vunpack.c.l.bf16 %v3691
        %3708 = vst [vmem:[#allocation5 + $0x90] sm:$0xff] %v3705
        %3709 = vst [vmem:[#allocation5 + $0x98] sm:$0xff] %v3706
        %3710 = vst.msk [vmem:[#allocation5 + $0xa0] sm:$0xff] %vm381, %v3707
        %v3711 = vld [vmem:[%s3127] sm:$0xf]
        %v3712 = vld [vmem:[%s3127 + $0x4] sm:$0x1]
        %v3713 = vld [vmem:[%s3160] sm:$0xf]
        %v3714 = vld [vmem:[%s3160 + $0x4] sm:$0x1]
        %v3715 = vld [vmem:[%s3193] sm:$0xf]
        %v3716 = vld [vmem:[%s3193 + $0x4] sm:$0x1]
        %v3719 = vunpack.c.l.b16 %v3711
        %v3720 = vunpack.c.l.b16 %v3712
        %v3721 = vpack.c.b16 %v3720, %v3719
        %v3723 = vshrl.u32 %v3721, 16
        %v3725 = vshll.u32 %v3721, 16
        %v3727 = vrot.slane %v3725, 1
        %v3728 = vor.u32 %v3723, %v3727
        %3729 = vrot.lane.b32.xlu0 %v3728, 64
        %v3730 = vpop.permute.xlu0 %3729
        %v3732 = vunpack.c.l.b16 %v3713
        %v3733 = vpack.c.b16 %v3732, %v3732
        %3734 = vrot.lane.b32.xlu0 %v3733, 96
        %v3735 = vpop.permute.xlu0 %3734
        %v3737 = vunpack.c.l.b16 %v3714
        %v3738 = vpack.c.b16 %v3737, %v3732
        %v3740 = vshrl.u32 %v3738, 16
        %v3742 = vshll.u32 %v3738, 16
        %v3744 = vrot.slane %v3742, 1
        %v3745 = vor.u32 %v3740, %v3744
        %3746 = vrot.lane.b32.xlu0 %v3745, 32
        %v3747 = vpop.permute.xlu0 %3746
        %v3749 = vunpack.c.l.b16 %v3715
        %v3750 = vpack.c.b16 %v3749, %v3749
        %3751 = vrot.lane.b32.xlu0 %v3750, 64
        %v3752 = vpop.permute.xlu0 %3751
        %v3754 = vunpack.c.l.b16 %v3716
        %v3755 = vpack.c.b16 %v3754, %v3749
        %v3757 = vshrl.u32 %v3755, 16
        %v3759 = vshll.u32 %v3755, 16
        %v3761 = vrot.slane %v3759, 1
        %v3762 = vor.u32 %v3757, %v3761
        %v3766 = vsel %vm382, %v3711, %v3730
        %v3768 = vsel %vm385, %v3766, %v3735
        %v3771 = vsel %vm381, %v3735, %v3747
        %v3773 = vsel %vm382, %v3771, %v3752
        %v3774 = vsel %vm385, %v3773, %v3752
        %v3776 = vunpack.c.l.bf16 %v3768
        %v3777 = vunpack.c.l.bf16 %v3774
        %v3778 = vunpack.c.l.bf16 %v3762
        %3779 = vst [vmem:[#allocation5 + $0xa8] sm:$0xff] %v3776
        %3780 = vst [vmem:[#allocation5 + $0xb0] sm:$0xff] %v3777
        %3781 = vst.msk [vmem:[#allocation5 + $0xb8] sm:$0xff] %vm381, %v3778
        %v3782 = vld [vmem:[#allocation5] sm:$0xff]
        %v3783 = vld [vmem:[#allocation5 + $0x8] sm:$0xff]
        %v3784 = vld [vmem:[#allocation5 + $0x10] sm:$0xff]
        %v3785 = vld [vmem:[#allocation5 + $0x18] sm:$0xff]
        %v3786 = vld [vmem:[#allocation5 + $0x20] sm:$0xff]
        %v3787 = vld [vmem:[#allocation5 + $0x28] sm:$0xff]
        %v3788 = vld [vmem:[#allocation5 + $0x30] sm:$0xff]
        %v3789 = vld [vmem:[#allocation5 + $0x38] sm:$0xff]
        %v3790 = vld [vmem:[#allocation5 + $0x40] sm:$0xff]
        %v3791 = vld [vmem:[#allocation5 + $0x48] sm:$0xff]
        %v3792 = vld [vmem:[#allocation5 + $0x50] sm:$0xff]
        %v3793 = vld [vmem:[#allocation5 + $0x58] sm:$0xff]
        %v3794 = vld [vmem:[#allocation5 + $0x60] sm:$0xff]
        %v3795 = vld [vmem:[#allocation5 + $0x68] sm:$0xff]
        %v3796 = vld [vmem:[#allocation5 + $0x70] sm:$0xff]
        %v3797 = vld [vmem:[#allocation5 + $0x78] sm:$0xff]
        %v3798 = vld [vmem:[#allocation5 + $0x80] sm:$0xff]
        %v3799 = vld [vmem:[#allocation5 + $0x88] sm:$0xff]
        %v3800 = vld [vmem:[#allocation5 + $0x90] sm:$0xff]
        %v3801 = vld [vmem:[#allocation5 + $0x98] sm:$0xff]
        %v3802 = vld [vmem:[#allocation5 + $0xa0] sm:$0xff]
        %v3803 = vld [vmem:[#allocation5 + $0xa8] sm:$0xff]
        %v3804 = vld [vmem:[#allocation5 + $0xb0] sm:$0xff]
        %v3805 = vld [vmem:[#allocation5 + $0xb8] sm:$0xff]
        %v3806 = vpack.c.bf16 %v3785, %v3782
        %v3807 = vpack.c.bf16 %v3786, %v3783
        %v3808 = vpack.c.bf16 %v3787, %v3784
        %v3809 = vpack.c.bf16 %v3791, %v3788
        %v3810 = vpack.c.bf16 %v3792, %v3789
        %v3811 = vpack.c.bf16 %v3793, %v3790
        %v3812 = vpack.c.bf16 %v3797, %v3794
        %v3813 = vpack.c.bf16 %v3798, %v3795
        %v3814 = vpack.c.bf16 %v3799, %v3796
        %v3815 = vpack.c.bf16 %v3803, %v3800
        %v3816 = vpack.c.bf16 %v3804, %v3801
        %v3817 = vpack.c.bf16 %v3805, %v3802
        %s3818 = scalar_lea.vmem %s1, 144
        %v3819 = vld [vmem:[%s3818] sm:$0xf]
        %v3820 = vld [vmem:[%s3818 + $0x4] sm:$0xf]
        %v3821 = vld [vmem:[%s3818 + $0x8] sm:$0xf]
        %v3822 = vld [vmem:[%s3818 + $0xc] sm:$0xf]
        %v3823 = vld [vmem:[%s3818 + $0x10] sm:$0xf]
        %v3824 = vld [vmem:[%s3818 + $0x14] sm:$0xf]
        %v3825 = vld [vmem:[%s3818 + $0x18] sm:$0xf]
        %v3826 = vld [vmem:[%s3818 + $0x1c] sm:$0xf]
        %v3827 = vld [vmem:[%s3818 + $0x20] sm:$0xf]
        %v3828 = vld [vmem:[%s3818 + $0x24] sm:$0xf]
        %v3829 = vld [vmem:[%s3818 + $0x28] sm:$0xf]
        %v3830 = vld [vmem:[%s3818 + $0x2c] sm:$0xf]
        %v3831 = vld [vmem:[%s3818 + $0x30] sm:$0xf]
        %v3832 = vld [vmem:[%s3818 + $0x34] sm:$0xf]
        %v3833 = vld [vmem:[%s3818 + $0x38] sm:$0xf]
        %v3834 = vld [vmem:[%s3818 + $0x3c] sm:$0xf]
        %v3835 = vld [vmem:[%s3818 + $0x40] sm:$0xf]
        %v3836 = vld [vmem:[%s3818 + $0x44] sm:$0xf]
        %v3837 = vld [vmem:[%s3818 + $0x48] sm:$0xf]
        %v3838 = vld [vmem:[%s3818 + $0x4c] sm:$0xf]
        %v3839 = vld [vmem:[%s3818 + $0x50] sm:$0xf]
        %v3840 = vld [vmem:[%s3818 + $0x54] sm:$0xf]
        %v3841 = vld [vmem:[%s3818 + $0x58] sm:$0xf]
        %v3842 = vld [vmem:[%s3818 + $0x5c] sm:$0xf]
        %v3843 = vld [vmem:[%s3818 + $0x60] sm:$0xf]
        %v3844 = vld [vmem:[%s3818 + $0x64] sm:$0xf]
        %v3845 = vld [vmem:[%s3818 + $0x68] sm:$0xf]
        %v3846 = vld [vmem:[%s3818 + $0x6c] sm:$0xf]
        %v3847 = vld [vmem:[%s3818 + $0x70] sm:$0xf]
        %v3848 = vld [vmem:[%s3818 + $0x74] sm:$0xf]
        %v3849 = vld [vmem:[%s3818 + $0x78] sm:$0xf]
        %v3850 = vld [vmem:[%s3818 + $0x7c] sm:$0xf]
        %v3851 = vld [vmem:[%s3818 + $0x80] sm:$0xf]
        %v3852 = vld [vmem:[%s3818 + $0x84] sm:$0xf]
        %v3853 = vld [vmem:[%s3818 + $0x88] sm:$0xf]
        %v3854 = vld [vmem:[%s3818 + $0x8c] sm:$0xf]
        %s3855 = scalar_lea.vmem %s2, 1
        %v3856 = vld [vmem:[%s3855] sm:$0x1]
        %v3858 = vlaneseq
        %v3859 = vshrl.u32 %v3858, 7
        %v3860 = vsub.s32 0, %v3859
        %v3861 = vrot.slane %v3856, %v3860
        %v3899 = vunpack.c.l.b16 %v3819
        %v3900 = vunpack.c.l.b16 %v3820
        %v3901 = vunpack.c.l.b16 %v3821
        %v3902 = vunpack.c.l.b16 %v3822
        %v3903 = vunpack.c.l.b16 %v3823
        %v3904 = vunpack.c.l.b16 %v3824
        %v3905 = vunpack.c.l.b16 %v3825
        %v3906 = vunpack.c.l.b16 %v3826
        %v3907 = vunpack.c.l.b16 %v3827
        %v3908 = vunpack.c.l.b16 %v3828
        %v3909 = vunpack.c.l.b16 %v3829
        %v3910 = vunpack.c.l.b16 %v3830
        %v3911 = vunpack.c.l.b16 %v3831
        %v3912 = vunpack.c.l.b16 %v3832
        %v3913 = vunpack.c.l.b16 %v3833
        %v3914 = vunpack.c.l.b16 %v3834
        %v3915 = vunpack.c.l.b16 %v3835
        %v3916 = vunpack.c.l.b16 %v3836
        %v3917 = vunpack.c.l.b16 %v3837
        %v3918 = vunpack.c.l.b16 %v3838
        %v3919 = vunpack.c.l.b16 %v3839
        %v3920 = vunpack.c.l.b16 %v3840
        %v3921 = vunpack.c.l.b16 %v3841
        %v3922 = vunpack.c.l.b16 %v3842
        %v3923 = vunpack.c.l.b16 %v3843
        %v3924 = vunpack.c.l.b16 %v3844
        %v3925 = vunpack.c.l.b16 %v3845
        %v3926 = vunpack.c.l.b16 %v3846
        %v3927 = vunpack.c.l.b16 %v3847
        %v3928 = vunpack.c.l.b16 %v3848
        %v3929 = vunpack.c.l.b16 %v3849
        %v3930 = vunpack.c.l.b16 %v3850
        %v3931 = vunpack.c.l.b16 %v3851
        %v3932 = vunpack.c.l.b16 %v3852
        %v3933 = vunpack.c.l.b16 %v3853
        %v3934 = vunpack.c.l.b16 %v3854
        %v3935 = vpack.c.b16 %v3900, %v3899
        %v3936 = vpack.c.b16 %v3902, %v3901
        %v3937 = vpack.c.b16 %v3904, %v3903
        %v3938 = vpack.c.b16 %v3906, %v3905
        %v3939 = vpack.c.b16 %v3908, %v3907
        %v3940 = vpack.c.b16 %v3910, %v3909
        %v3941 = vpack.c.b16 %v3912, %v3911
        %v3942 = vpack.c.b16 %v3914, %v3913
        %v3943 = vpack.c.b16 %v3916, %v3915
        %v3944 = vpack.c.b16 %v3918, %v3917
        %v3945 = vpack.c.b16 %v3920, %v3919
        %v3946 = vpack.c.b16 %v3922, %v3921
        %v3947 = vpack.c.b16 %v3924, %v3923
        %v3948 = vpack.c.b16 %v3926, %v3925
        %v3949 = vpack.c.b16 %v3928, %v3927
        %v3950 = vpack.c.b16 %v3930, %v3929
        %v3951 = vpack.c.b16 %v3932, %v3931
        %v3952 = vpack.c.b16 %v3934, %v3933
        %v3972 = vsel %vm381, %v3808, 0
        %v3975 = vsel %vm381, %v3811, 0
        %v3978 = vsel %vm381, %v3814, 0
        %v3981 = vsel %vm381, %v3817, 0
        %3983 = vmatprep.subr.bf16.mxu0 0
        %3984 = vmatpush1.bf16.msra.mxu0 %v3935
        %3985 = vmatprep.subr.bf16.mxu0 0
        %3986 = vmatpush1.bf16.msra.mxu0 %v3936
        %3987 = vmatprep.subr.bf16.mxu0 0
        %3988 = vmatpush1.bf16.msra.mxu0 %v3937
        %3989 = vmatprep.subr.bf16.mxu0 0
        %3990 = vmatpush1.bf16.msra.mxu0 %v3938
        %3991 = vmatprep.subr.bf16.mxu0 0
        %3992 = vmatpush1.bf16.msra.mxu0 %v3939
        %3993 = vmatprep.subr.bf16.mxu0 0
        %3994 = vmatpush1.bf16.msra.mxu0 %v3940
        %3995 = vmatprep.subr.bf16.mxu0 0
        %3996 = vmatpush1.bf16.msra.mxu0 %v3941
        %3997 = vmatprep.subr.bf16.mxu0 0
        %3998 = vmatpush1.bf16.msra.mxu0 %v3942
        %3999 = vmatprep.subr.bf16.mxu0 0
        %4000 = vmatpush1.bf16.msra.mxu0 %v3943
        %4001 = vmatprep.subr.bf16.mxu0 0
        %4002 = vmatpush1.bf16.msra.mxu0 %v3944
        %4003 = vmatprep.subr.bf16.mxu0 0
        %4004 = vmatpush1.bf16.msra.mxu0 %v3945
        %4005 = vmatprep.subr.bf16.mxu0 0
        %4006 = vmatpush1.bf16.msra.mxu0 %v3946
        %4007 = vmatprep.subr.bf16.mxu0 0
        %4008 = vmatpush1.bf16.msra.mxu0 %v3947
        %4009 = vmatprep.subr.bf16.mxu0 0
        %4010 = vmatpush1.bf16.msra.mxu0 %v3948
        %4011 = vmatprep.subr.bf16.mxu0 0
        %4012 = vmatpush1.bf16.msra.mxu0 %v3949
        %4013 = vmatprep.subr.bf16.mxu0 0
        %4014 = vmatpush1.bf16.msra.mxu0 %v3950
        %4015 = vmatprep.mubr.bf16.mxu0 %v3807
        %4016 = vmatmul.mubr.bf16.gmra.mrb[0].mxu0 %v3806
        %v4017 = vpop.f32.mrb[0].mxu0
        %v4018 = vadd.f32 %v3861, %v4017
        %v4019 = vpop.f32.mrb[0].mxu0
        %v4020 = vpop.f32.mrb[0].mxu0
        %v4021 = vadd.f32 %v3861, %v4020
        %v4022 = vpop.f32.mrb[0].mxu0
        %4023 = vmatprep.mubr.bf16.mxu0 %v3810
        %4024 = vmatmul.mubr.bf16.gmra.mrb[0].mxu0 %v3809
        %v4025 = vpop.f32.mrb[0].mxu0
        %v4026 = vadd.f32 %v3861, %v4025
        %v4027 = vpop.f32.mrb[0].mxu0
        %v4028 = vpop.f32.mrb[0].mxu0
        %v4029 = vadd.f32 %v3861, %v4028
        %v4030 = vpop.f32.mrb[0].mxu0
        %4031 = vmatprep.mubr.bf16.mxu0 %v3813
        %4032 = vmatmul.mubr.bf16.gmra.mrb[0].mxu0 %v3812
        %v4033 = vpop.f32.mrb[0].mxu0
        %v4034 = vadd.f32 %v3861, %v4033
        %v4035 = vpop.f32.mrb[0].mxu0
        %v4036 = vpop.f32.mrb[0].mxu0
        %v4037 = vadd.f32 %v3861, %v4036
        %v4038 = vpop.f32.mrb[0].mxu0
        %4039 = vmatprep.mubr.bf16.mxu0 %v3816
        %4040 = vmatmul.mubr.bf16.gmra.mrb[0].mxu0 %v3815
        %v4041 = vpop.f32.mrb[0].mxu0
        %v4042 = vadd.f32 %v3861, %v4041
        %v4043 = vpop.f32.mrb[0].mxu0
        %v4044 = vpop.f32.mrb[0].mxu0
        %v4045 = vadd.f32 %v3861, %v4044
        %v4046 = vpop.f32.mrb[0].mxu0
        %4047 = vdwg.mxu0
        %4048 = vmatprep.subr.bf16.mxu0 0
        %4049 = vmatpush1.bf16.msra.mxu0 %v3951
        %4050 = vmatprep.subr.bf16.mxu0 0
        %4051 = vmatpush1.bf16.msra.mxu0 %v3952
        %4052 = vmatprep.subr.bf16.mxu0 0
        %4053 = vmatpush1.bf16.msra.mxu0 0
        %4054 = vmatprep.subr.bf16.mxu0 0
        %4055 = vmatpush1.bf16.msra.mxu0 0
        %4056 = vmatprep.subr.bf16.mxu0 0
        %4057 = vmatpush1.bf16.msra.mxu0 0
        %4058 = vmatprep.subr.bf16.mxu0 0
        %4059 = vmatpush1.bf16.msra.mxu0 0
        %4060 = vmatprep.subr.bf16.mxu0 0
        %4061 = vmatpush1.bf16.msra.mxu0 0
        %4062 = vmatprep.subr.bf16.mxu0 0
        %4063 = vmatpush1.bf16.msra.mxu0 0
        %4064 = vmatprep.subr.bf16.mxu0 0
        %4065 = vmatpush1.bf16.msra.mxu0 0
        %4066 = vmatprep.subr.bf16.mxu0 0
        %4067 = vmatpush1.bf16.msra.mxu0 0
        %4068 = vmatprep.subr.bf16.mxu0 0
        %4069 = vmatpush1.bf16.msra.mxu0 0
        %4070 = vmatprep.subr.bf16.mxu0 0
        %4071 = vmatpush1.bf16.msra.mxu0 0
        %4072 = vmatprep.subr.bf16.mxu0 0
        %4073 = vmatpush1.bf16.msra.mxu0 0
        %4074 = vmatprep.subr.bf16.mxu0 0
        %4075 = vmatpush1.bf16.msra.mxu0 0
        %4076 = vmatprep.subr.bf16.mxu0 0
        %4077 = vmatpush1.bf16.msra.mxu0 0
        %4078 = vmatprep.subr.bf16.mxu0 0
        %4079 = vmatpush1.bf16.msra.mxu0 0
        %4080 = vmatprep.mubr.bf16.mxu0 0
        %4081 = vmatmul.mubr.bf16.gmra.mrb[0].mxu0 %v3972
        %v4082 = vpop.f32.mrb[0].mxu0
        %v4083 = vadd.f32 %v4018, %v4082
        %v4084 = vpop.f32.mrb[0].mxu0
        %v4085 = vpop.f32.mrb[0].mxu0
        %v4086 = vadd.f32 %v4021, %v4085
        %v4087 = vpop.f32.mrb[0].mxu0
        %4088 = vmatprep.mubr.bf16.mxu0 0
        %4089 = vmatmul.mubr.bf16.gmra.mrb[0].mxu0 %v3975
        %v4090 = vpop.f32.mrb[0].mxu0
        %v4091 = vadd.f32 %v4026, %v4090
        %v4092 = vpop.f32.mrb[0].mxu0
        %v4093 = vpop.f32.mrb[0].mxu0
        %v4094 = vadd.f32 %v4029, %v4093
        %v4095 = vpop.f32.mrb[0].mxu0
        %4096 = vmatprep.mubr.bf16.mxu0 0
        %4097 = vmatmul.mubr.bf16.gmra.mrb[0].mxu0 %v3978
        %v4098 = vpop.f32.mrb[0].mxu0
        %v4099 = vadd.f32 %v4034, %v4098
        %v4100 = vpop.f32.mrb[0].mxu0
        %v4101 = vpop.f32.mrb[0].mxu0
        %v4102 = vadd.f32 %v4037, %v4101
        %v4103 = vpop.f32.mrb[0].mxu0
        %4104 = vmatprep.mubr.bf16.mxu0 0
        %4105 = vmatmul.mubr.bf16.gmra.mrb[0].mxu0 %v3981
        %v4106 = vpop.f32.mrb[0].mxu0
        %v4107 = vadd.f32 %v4042, %v4106
        %v4108 = vpop.f32.mrb[0].mxu0
        %v4109 = vpop.f32.mrb[0].mxu0
        %v4110 = vadd.f32 %v4045, %v4109
        %v4111 = vpop.f32.mrb[0].mxu0
        %4112 = vdwg.mxu0
        %v4113 = vmax.f32 %v4083, 0.0
        %v4114 = vmax.f32 %v4086, 0.0
        %v4115 = vmax.f32 %v4091, 0.0
        %v4116 = vmax.f32 %v4094, 0.0
        %v4117 = vmax.f32 %v4099, 0.0
        %v4118 = vmax.f32 %v4102, 0.0
        %v4119 = vmax.f32 %v4107, 0.0
        %v4120 = vmax.f32 %v4110, 0.0
        %4121 = vst.msk [vmem:[#allocation6] sm:$0xff] %vm381, %v4113
        %4122 = vst.msk [vmem:[#allocation6 + $0x8] sm:$0xff] %vm381, %v4114
        %4123 = vst.msk [vmem:[#allocation6 + $0x10] sm:$0xff] %vm381, %v4115
        %4124 = vst.msk [vmem:[#allocation6 + $0x18] sm:$0xff] %vm381, %v4116
        %4125 = vst.msk [vmem:[#allocation6 + $0x20] sm:$0xff] %vm381, %v4117
        %4126 = vst.msk [vmem:[#allocation6 + $0x28] sm:$0xff] %vm381, %v4118
        %4127 = vst.msk [vmem:[#allocation6 + $0x30] sm:$0xff] %vm381, %v4119
        %4128 = vst.msk [vmem:[#allocation6 + $0x38] sm:$0xff] %vm381, %v4120
        %v4129 = vld [vmem:[#allocation6] ss:$2 sm:$0xf]
        %v4130 = vpack.c.bf16 %v4129, %v4129
        %v4131 = vld [vmem:[%s2683] ss:$2 sm:$0xf]
        %v4132 = vpack.c.bf16 %v4131, %v4131
        %v4134 = vunpack.c.l.b16 %v4130
        %v4135 = vpack.c.b16 %v4134, %v4134
        %4136 = vrot.lane.b32.xlu0 %v4135, 32
        %v4137 = vpop.permute.xlu0 %4136
        %s4139 = scalar_lea.vmem [#allocation3], 4
        %vm4140 = vcmask 517376
        %4141 = vst.msk [vmem:[%s4139] sm:$0x3] %vm4140, %v4137
        %v4143 = vunpack.c.l.b16 %v4132
        %v4144 = vpack.c.b16 %v4143, %v4143
        %v4146 = vshrl.u32 %v4144, 16
        %v4148 = vrot.slane %v4146, 7
        %v4149 = vshll.u32 %v4144, 16
        %v4151 = vor.u32 %v4148, %v4149
        %vm4153 = vcmask 256000
        %vm4154 = vsmask.f32 2306
        %vm4155 = vmand %vm4153, %vm4154
        %v4156 = vld [vmem:[%s4139] sm:$0x7]
        %v4157 = vsel %vm4155, %v4151, %v4156
        %4158 = vst [vmem:[%s4139] sm:$0x7] %v4157
        %s4159 = scalar_lea.vmem [#allocation6], 8
        %v4160 = vld [vmem:[%s4159] ss:$2 sm:$0xf]
        %v4161 = vpack.c.bf16 %v4160, %v4160
        %s4162 = scalar_lea.vmem [#allocation6], 9
        %v4163 = vld [vmem:[%s4162] ss:$2 sm:$0xf]
        %v4164 = vpack.c.bf16 %v4163, %v4163
        %v4166 = vunpack.c.l.b16 %v4161
        %v4167 = vpack.c.b16 %v4166, %v4166
        %4168 = vrot.lane.b32.xlu0 %v4167, 32
        %v4169 = vpop.permute.xlu0 %4168
        %s4171 = scalar_lea.vmem [#allocation3], 8
        %4172 = vst.msk [vmem:[%s4171] sm:$0x3] %vm4140, %v4169
        %v4174 = vunpack.c.l.b16 %v4164
        %v4175 = vpack.c.b16 %v4174, %v4174
        %v4177 = vshrl.u32 %v4175, 16
        %v4179 = vrot.slane %v4177, 7
        %v4180 = vshll.u32 %v4175, 16
        %v4182 = vor.u32 %v4179, %v4180
        %v4184 = vld [vmem:[%s4171] sm:$0x7]
        %v4185 = vsel %vm4155, %v4182, %v4184
        %4186 = vst [vmem:[%s4171] sm:$0x7] %v4185
        %v4187 = vld [vmem:[%s2719] ss:$2 sm:$0xf]
        %v4188 = vpack.c.bf16 %v4187, %v4187
        %v4189 = vld [vmem:[%s2722] ss:$2 sm:$0xf]
        %v4190 = vpack.c.bf16 %v4189, %v4189
        %v4192 = vunpack.c.l.b16 %v4188
        %v4193 = vpack.c.b16 %v4192, %v4192
        %4194 = vrot.lane.b32.xlu0 %v4193, 32
        %v4195 = vpop.permute.xlu0 %4194
        %s4197 = scalar_lea.vmem [#allocation3], 12
        %4198 = vst.msk [vmem:[%s4197] sm:$0x3] %vm4140, %v4195
        %v4200 = vunpack.c.l.b16 %v4190
        %v4201 = vpack.c.b16 %v4200, %v4200
        %v4203 = vshrl.u32 %v4201, 16
        %v4205 = vrot.slane %v4203, 7
        %v4206 = vshll.u32 %v4201, 16
        %v4208 = vor.u32 %v4205, %v4206
        %v4210 = vld [vmem:[%s4197] sm:$0x7]
        %v4211 = vsel %vm4155, %v4208, %v4210
        %4212 = vst [vmem:[%s4197] sm:$0x7] %v4211
        %s4213 = scalar_lea.vmem [#allocation6], 24
        %v4214 = vld [vmem:[%s4213] ss:$2 sm:$0xf]
        %v4215 = vpack.c.bf16 %v4214, %v4214
        %s4216 = scalar_lea.vmem [#allocation6], 25
        %v4217 = vld [vmem:[%s4216] ss:$2 sm:$0xf]
        %v4218 = vpack.c.bf16 %v4217, %v4217
        %v4220 = vunpack.c.l.b16 %v4215
        %v4221 = vpack.c.b16 %v4220, %v4220
        %4222 = vrot.lane.b32.xlu0 %v4221, 32
        %v4223 = vpop.permute.xlu0 %4222
        %s4225 = scalar_lea.vmem [#allocation3], 16
        %4226 = vst.msk [vmem:[%s4225] sm:$0x3] %vm4140, %v4223
        %v4228 = vunpack.c.l.b16 %v4218
        %v4229 = vpack.c.b16 %v4228, %v4228
        %v4231 = vshrl.u32 %v4229, 16
        %v4233 = vrot.slane %v4231, 7
        %v4234 = vshll.u32 %v4229, 16
        %v4236 = vor.u32 %v4233, %v4234
        %v4238 = vld [vmem:[%s4225] sm:$0x7]
        %v4239 = vsel %vm4155, %v4236, %v4238
        %4240 = vst [vmem:[%s4225] sm:$0x7] %v4239
        %v4241 = vld [vmem:[%s2752] ss:$2 sm:$0xf]
        %v4242 = vpack.c.bf16 %v4241, %v4241
        %v4243 = vld [vmem:[%s2755] ss:$2 sm:$0xf]
        %v4244 = vpack.c.bf16 %v4243, %v4243
        %v4246 = vunpack.c.l.b16 %v4242
        %v4247 = vpack.c.b16 %v4246, %v4246
        %4248 = vrot.lane.b32.xlu0 %v4247, 32
        %v4249 = vpop.permute.xlu0 %4248
        %s4251 = scalar_lea.vmem [#allocation3], 20
        %4252 = vst.msk [vmem:[%s4251] sm:$0x3] %vm4140, %v4249
        %v4254 = vunpack.c.l.b16 %v4244
        %v4255 = vpack.c.b16 %v4254, %v4254
        %v4257 = vshrl.u32 %v4255, 16
        %v4259 = vrot.slane %v4257, 7
        %v4260 = vshll.u32 %v4255, 16
        %v4262 = vor.u32 %v4259, %v4260
        %v4264 = vld [vmem:[%s4251] sm:$0x7]
        %v4265 = vsel %vm4155, %v4262, %v4264
        %4266 = vst [vmem:[%s4251] sm:$0x7] %v4265
        %s4267 = scalar_lea.vmem [#allocation6], 40
        %v4268 = vld [vmem:[%s4267] ss:$2 sm:$0xf]
        %v4269 = vpack.c.bf16 %v4268, %v4268
        %s4270 = scalar_lea.vmem [#allocation6], 41
        %v4271 = vld [vmem:[%s4270] ss:$2 sm:$0xf]
        %v4272 = vpack.c.bf16 %v4271, %v4271
        %v4274 = vunpack.c.l.b16 %v4269
        %v4275 = vpack.c.b16 %v4274, %v4274
        %4276 = vrot.lane.b32.xlu0 %v4275, 32
        %v4277 = vpop.permute.xlu0 %4276
        %s4279 = scalar_lea.vmem [#allocation3], 24
        %4280 = vst.msk [vmem:[%s4279] sm:$0x3] %vm4140, %v4277
        %v4282 = vunpack.c.l.b16 %v4272
        %v4283 = vpack.c.b16 %v4282, %v4282
        %v4285 = vshrl.u32 %v4283, 16
        %v4287 = vrot.slane %v4285, 7
        %v4288 = vshll.u32 %v4283, 16
        %v4290 = vor.u32 %v4287, %v4288
        %v4292 = vld [vmem:[%s4279] sm:$0x7]
        %v4293 = vsel %vm4155, %v4290, %v4292
        %4294 = vst [vmem:[%s4279] sm:$0x7] %v4293
        %v4295 = vld [vmem:[%s2785] ss:$2 sm:$0xf]
        %v4296 = vpack.c.bf16 %v4295, %v4295
        %v4297 = vld [vmem:[%s2788] ss:$2 sm:$0xf]
        %v4298 = vpack.c.bf16 %v4297, %v4297
        %v4300 = vunpack.c.l.b16 %v4296
        %v4301 = vpack.c.b16 %v4300, %v4300
        %4302 = vrot.lane.b32.xlu0 %v4301, 32
        %v4303 = vpop.permute.xlu0 %4302
        %s4305 = scalar_lea.vmem [#allocation3], 28
        %4306 = vst.msk [vmem:[%s4305] sm:$0x3] %vm4140, %v4303
        %v4308 = vunpack.c.l.b16 %v4298
        %v4309 = vpack.c.b16 %v4308, %v4308
        %v4311 = vshrl.u32 %v4309, 16
        %v4313 = vrot.slane %v4311, 7
        %v4314 = vshll.u32 %v4309, 16
        %v4316 = vor.u32 %v4313, %v4314
        %v4318 = vld [vmem:[%s4305] sm:$0x7]
        %v4319 = vsel %vm4155, %v4316, %v4318
        %4320 = vst [vmem:[%s4305] sm:$0x7] %v4319
        %s4321 = scalar_lea.vmem [#allocation6], 56
        %v4322 = vld [vmem:[%s4321] ss:$2 sm:$0xf]
        %v4323 = vpack.c.bf16 %v4322, %v4322
        %s4324 = scalar_lea.vmem [#allocation6], 57
        %v4325 = vld [vmem:[%s4324] ss:$2 sm:$0xf]
        %v4326 = vpack.c.bf16 %v4325, %v4325
        %v4328 = vunpack.c.l.b16 %v4323
        %v4329 = vpack.c.b16 %v4328, %v4328
        %4330 = vrot.lane.b32.xlu0 %v4329, 32
        %v4331 = vpop.permute.xlu0 %4330
        %s4333 = scalar_lea.vmem [#allocation3], 32
        %4334 = vst.msk [vmem:[%s4333] sm:$0x3] %vm4140, %v4331
        %v4336 = vunpack.c.l.b16 %v4326
        %v4337 = vpack.c.b16 %v4336, %v4336
        %v4339 = vshrl.u32 %v4337, 16
        %v4341 = vrot.slane %v4339, 7
        %v4342 = vshll.u32 %v4337, 16
        %v4344 = vor.u32 %v4341, %v4342
        %v4346 = vld [vmem:[%s4333] sm:$0x7]
        %v4347 = vsel %vm4155, %v4344, %v4346
        %4348 = vst [vmem:[%s4333] sm:$0x7] %v4347
        %v4349 = vld [vmem:[#allocation3] sm:$0x3]
        %v4350 = vld [vmem:[#allocation3] sm:$0x7]
        %v4351 = vld [vmem:[%s4139] sm:$0x3]
        %v4352 = vld [vmem:[%s4139] sm:$0x7]
        %v4353 = vld [vmem:[%s4171] sm:$0x3]
        %v4354 = vld [vmem:[%s4171] sm:$0x7]
        %v4356 = vunpack.c.l.b16 %v4350
        %v4357 = vpack.c.b16 %v4356, %v4356
        %v4359 = vshrl.u32 %v4357, 16
        %v4361 = vshll.u32 %v4357, 16
        %v4363 = vrot.slane %v4361, 1
        %v4364 = vor.u32 %v4359, %v4363
        %4365 = vrot.lane.b32.xlu0 %v4364, 64
        %v4366 = vpop.permute.xlu0 %4365
        %v4368 = vunpack.c.l.b16 %v4351
        %v4369 = vpack.c.b16 %v4368, %v4368
        %4370 = vrot.lane.b32.xlu0 %v4369, 96
        %v4371 = vpop.permute.xlu0 %4370
        %v4373 = vunpack.c.l.b16 %v4352
        %v4374 = vpack.c.b16 %v4373, %v4373
        %v4376 = vshrl.u32 %v4374, 16
        %v4378 = vshll.u32 %v4374, 16
        %v4380 = vrot.slane %v4378, 1
        %v4381 = vor.u32 %v4376, %v4380
        %4382 = vrot.lane.b32.xlu0 %v4381, 32
        %v4383 = vpop.permute.xlu0 %4382
        %v4385 = vunpack.c.l.b16 %v4353
        %v4386 = vpack.c.b16 %v4385, %v4385
        %4387 = vrot.lane.b32.xlu0 %v4386, 64
        %v4388 = vpop.permute.xlu0 %4387
        %v4390 = vunpack.c.l.b16 %v4354
        %v4391 = vpack.c.b16 %v4390, %v4390
        %v4393 = vshrl.u32 %v4391, 16
        %v4395 = vshll.u32 %v4391, 16
        %v4397 = vrot.slane %v4395, 1
        %v4398 = vor.u32 %v4393, %v4397
        %v4402 = vsel %vm382, %v4349, %v4366
        %v4404 = vsel %vm385, %v4402, %v4371
        %v4407 = vsel %vm381, %v4371, %v4383
        %v4409 = vsel %vm382, %v4407, %v4388
        %v4410 = vsel %vm385, %v4409, %v4388
        %v4412 = vunpack.c.l.bf16 %v4404
        %v4413 = vunpack.c.l.bf16 %v4410
        %v4414 = vunpack.c.l.bf16 %v4398
        %4415 = vst [vmem:[#allocation5] sm:$0xf] %v4412
        %4416 = vst [vmem:[#allocation5 + $0x8] sm:$0xf] %v4413
        %vm4417 = vcmask 257024
        %4418 = vst.msk [vmem:[#allocation5 + $0x10] sm:$0xf] %vm4417, %v4414
        %v4419 = vld [vmem:[%s4171] sm:$0x3]
        %v4420 = vld [vmem:[%s4171] sm:$0x7]
        %v4421 = vld [vmem:[%s4197] sm:$0x3]
        %v4422 = vld [vmem:[%s4197] sm:$0x7]
        %v4423 = vld [vmem:[%s4225] sm:$0x3]
        %v4424 = vld [vmem:[%s4225] sm:$0x7]
        %v4426 = vunpack.c.l.b16 %v4420
        %v4427 = vpack.c.b16 %v4426, %v4426
        %v4429 = vshrl.u32 %v4427, 16
        %v4431 = vshll.u32 %v4427, 16
        %v4433 = vrot.slane %v4431, 1
        %v4434 = vor.u32 %v4429, %v4433
        %4435 = vrot.lane.b32.xlu0 %v4434, 64
        %v4436 = vpop.permute.xlu0 %4435
        %v4438 = vunpack.c.l.b16 %v4421
        %v4439 = vpack.c.b16 %v4438, %v4438
        %4440 = vrot.lane.b32.xlu0 %v4439, 96
        %v4441 = vpop.permute.xlu0 %4440
        %v4443 = vunpack.c.l.b16 %v4422
        %v4444 = vpack.c.b16 %v4443, %v4443
        %v4446 = vshrl.u32 %v4444, 16
        %v4448 = vshll.u32 %v4444, 16
        %v4450 = vrot.slane %v4448, 1
        %v4451 = vor.u32 %v4446, %v4450
        %4452 = vrot.lane.b32.xlu0 %v4451, 32
        %v4453 = vpop.permute.xlu0 %4452
        %v4455 = vunpack.c.l.b16 %v4423
        %v4456 = vpack.c.b16 %v4455, %v4455
        %4457 = vrot.lane.b32.xlu0 %v4456, 64
        %v4458 = vpop.permute.xlu0 %4457
        %v4460 = vunpack.c.l.b16 %v4424
        %v4461 = vpack.c.b16 %v4460, %v4460
        %v4463 = vshrl.u32 %v4461, 16
        %v4465 = vshll.u32 %v4461, 16
        %v4467 = vrot.slane %v4465, 1
        %v4468 = vor.u32 %v4463, %v4467
        %v4472 = vsel %vm382, %v4419, %v4436
        %v4474 = vsel %vm385, %v4472, %v4441
        %v4477 = vsel %vm381, %v4441, %v4453
        %v4479 = vsel %vm382, %v4477, %v4458
        %v4480 = vsel %vm385, %v4479, %v4458
        %v4482 = vunpack.c.l.bf16 %v4474
        %v4483 = vunpack.c.l.bf16 %v4480
        %v4484 = vunpack.c.l.bf16 %v4468
        %v4488 = vrot.slane %v4482, 4
        %v4489 = vrot.slane %v4483, 4
        %v4490 = vrot.slane %v4484, 4
        %4494 = vst [vmem:[#allocation5] sm:$0xf0] %v4488
        %4495 = vst [vmem:[#allocation5 + $0x8] sm:$0xf0] %v4489
        %vm4496 = vcmask 261124
        %4497 = vst.msk [vmem:[#allocation5 + $0x10] sm:$0xf0] %vm4496, %v4490
        %v4498 = vld [vmem:[%s4225] sm:$0x3]
        %v4499 = vld [vmem:[%s4225] sm:$0x7]
        %v4500 = vld [vmem:[%s4251] sm:$0x3]
        %v4501 = vld [vmem:[%s4251] sm:$0x7]
        %v4502 = vld [vmem:[%s4279] sm:$0x3]
        %v4503 = vld [vmem:[%s4279] sm:$0x7]
        %v4505 = vunpack.c.l.b16 %v4499
        %v4506 = vpack.c.b16 %v4505, %v4505
        %v4508 = vshrl.u32 %v4506, 16
        %v4510 = vshll.u32 %v4506, 16
        %v4512 = vrot.slane %v4510, 1
        %v4513 = vor.u32 %v4508, %v4512
        %4514 = vrot.lane.b32.xlu0 %v4513, 64
        %v4515 = vpop.permute.xlu0 %4514
        %v4517 = vunpack.c.l.b16 %v4500
        %v4518 = vpack.c.b16 %v4517, %v4517
        %4519 = vrot.lane.b32.xlu0 %v4518, 96
        %v4520 = vpop.permute.xlu0 %4519
        %v4522 = vunpack.c.l.b16 %v4501
        %v4523 = vpack.c.b16 %v4522, %v4522
        %v4525 = vshrl.u32 %v4523, 16
        %v4527 = vshll.u32 %v4523, 16
        %v4529 = vrot.slane %v4527, 1
        %v4530 = vor.u32 %v4525, %v4529
        %4531 = vrot.lane.b32.xlu0 %v4530, 32
        %v4532 = vpop.permute.xlu0 %4531
        %v4534 = vunpack.c.l.b16 %v4502
        %v4535 = vpack.c.b16 %v4534, %v4534
        %4536 = vrot.lane.b32.xlu0 %v4535, 64
        %v4537 = vpop.permute.xlu0 %4536
        %v4539 = vunpack.c.l.b16 %v4503
        %v4540 = vpack.c.b16 %v4539, %v4539
        %v4542 = vshrl.u32 %v4540, 16
        %v4544 = vshll.u32 %v4540, 16
        %v4546 = vrot.slane %v4544, 1
        %v4547 = vor.u32 %v4542, %v4546
        %v4551 = vsel %vm382, %v4498, %v4515
        %v4553 = vsel %vm385, %v4551, %v4520
        %v4556 = vsel %vm381, %v4520, %v4532
        %v4558 = vsel %vm382, %v4556, %v4537
        %v4559 = vsel %vm385, %v4558, %v4537
        %v4561 = vunpack.c.l.bf16 %v4553
        %v4562 = vunpack.c.l.bf16 %v4559
        %v4563 = vunpack.c.l.bf16 %v4547
        %4564 = vst [vmem:[#allocation5 + $0x18] sm:$0xf] %v4561
        %4565 = vst [vmem:[#allocation5 + $0x20] sm:$0xf] %v4562
        %4566 = vst.msk [vmem:[#allocation5 + $0x28] sm:$0xf] %vm4417, %v4563
        %v4567 = vld [vmem:[%s4279] sm:$0x3]
        %v4568 = vld [vmem:[%s4279] sm:$0x7]
        %v4569 = vld [vmem:[%s4305] sm:$0x3]
        %v4570 = vld [vmem:[%s4305] sm:$0x7]
        %v4571 = vld [vmem:[%s4333] sm:$0x3]
        %v4572 = vld [vmem:[%s4333] sm:$0x7]
        %v4574 = vunpack.c.l.b16 %v4568
        %v4575 = vpack.c.b16 %v4574, %v4574
        %v4577 = vshrl.u32 %v4575, 16
        %v4579 = vshll.u32 %v4575, 16
        %v4581 = vrot.slane %v4579, 1
        %v4582 = vor.u32 %v4577, %v4581
        %4583 = vrot.lane.b32.xlu0 %v4582, 64
        %v4584 = vpop.permute.xlu0 %4583
        %v4586 = vunpack.c.l.b16 %v4569
        %v4587 = vpack.c.b16 %v4586, %v4586
        %4588 = vrot.lane.b32.xlu0 %v4587, 96
        %v4589 = vpop.permute.xlu0 %4588
        %v4591 = vunpack.c.l.b16 %v4570
        %v4592 = vpack.c.b16 %v4591, %v4591
        %v4594 = vshrl.u32 %v4592, 16
        %v4596 = vshll.u32 %v4592, 16
        %v4598 = vrot.slane %v4596, 1
        %v4599 = vor.u32 %v4594, %v4598
        %4600 = vrot.lane.b32.xlu0 %v4599, 32
        %v4601 = vpop.permute.xlu0 %4600
        %v4603 = vunpack.c.l.b16 %v4571
        %v4604 = vpack.c.b16 %v4603, %v4603
        %4605 = vrot.lane.b32.xlu0 %v4604, 64
        %v4606 = vpop.permute.xlu0 %4605
        %v4608 = vunpack.c.l.b16 %v4572
        %v4609 = vpack.c.b16 %v4608, %v4608
        %v4611 = vshrl.u32 %v4609, 16
        %v4613 = vshll.u32 %v4609, 16
        %v4615 = vrot.slane %v4613, 1
        %v4616 = vor.u32 %v4611, %v4615
        %v4620 = vsel %vm382, %v4567, %v4584
        %v4622 = vsel %vm385, %v4620, %v4589
        %v4625 = vsel %vm381, %v4589, %v4601
        %v4627 = vsel %vm382, %v4625, %v4606
        %v4628 = vsel %vm385, %v4627, %v4606
        %v4630 = vunpack.c.l.bf16 %v4622
        %v4631 = vunpack.c.l.bf16 %v4628
        %v4632 = vunpack.c.l.bf16 %v4616
        %v4636 = vrot.slane %v4630, 4
        %v4637 = vrot.slane %v4631, 4
        %v4638 = vrot.slane %v4632, 4
        %4642 = vst [vmem:[#allocation5 + $0x18] sm:$0xf0] %v4636
        %4643 = vst [vmem:[#allocation5 + $0x20] sm:$0xf0] %v4637
        %4644 = vst.msk [vmem:[#allocation5 + $0x28] sm:$0xf0] %vm4496, %v4638
        %v4645 = vld [vmem:[#allocation5] sm:$0xff]
        %v4646 = vld [vmem:[#allocation5 + $0x8] sm:$0xff]
        %v4647 = vld [vmem:[#allocation5 + $0x10] sm:$0xff]
        %v4648 = vld [vmem:[#allocation5 + $0x18] sm:$0xff]
        %v4649 = vld [vmem:[#allocation5 + $0x20] sm:$0xff]
        %v4650 = vld [vmem:[#allocation5 + $0x28] sm:$0xff]
        %v4651 = vpack.c.bf16 %v4648, %v4645
        %v4652 = vpack.c.bf16 %v4649, %v4646
        %v4653 = vpack.c.bf16 %v4650, %v4647
        %s4654 = scalar_lea.vmem %s1, 288
        %v4655 = vld [vmem:[%s4654] sm:$0xf]
        %v4656 = vld [vmem:[%s4654 + $0x4] sm:$0xf]
        %v4657 = vld [vmem:[%s4654 + $0x8] sm:$0xf]
        %v4658 = vld [vmem:[%s4654 + $0xc] sm:$0xf]
        %v4659 = vld [vmem:[%s4654 + $0x10] sm:$0xf]
        %v4660 = vld [vmem:[%s4654 + $0x14] sm:$0xf]
        %v4661 = vld [vmem:[%s4654 + $0x18] sm:$0xf]
        %v4662 = vld [vmem:[%s4654 + $0x1c] sm:$0xf]
        %v4663 = vld [vmem:[%s4654 + $0x20] sm:$0xf]
        %v4664 = vld [vmem:[%s4654 + $0x24] sm:$0xf]
        %v4665 = vld [vmem:[%s4654 + $0x28] sm:$0xf]
        %v4666 = vld [vmem:[%s4654 + $0x2c] sm:$0xf]
        %v4667 = vld [vmem:[%s4654 + $0x30] sm:$0xf]
        %v4668 = vld [vmem:[%s4654 + $0x34] sm:$0xf]
        %v4669 = vld [vmem:[%s4654 + $0x38] sm:$0xf]
        %v4670 = vld [vmem:[%s4654 + $0x3c] sm:$0xf]
        %v4671 = vld [vmem:[%s4654 + $0x40] sm:$0xf]
        %v4672 = vld [vmem:[%s4654 + $0x44] sm:$0xf]
        %v4673 = vld [vmem:[%s4654 + $0x48] sm:$0xf]
        %v4674 = vld [vmem:[%s4654 + $0x4c] sm:$0xf]
        %v4675 = vld [vmem:[%s4654 + $0x50] sm:$0xf]
        %v4676 = vld [vmem:[%s4654 + $0x54] sm:$0xf]
        %v4677 = vld [vmem:[%s4654 + $0x58] sm:$0xf]
        %v4678 = vld [vmem:[%s4654 + $0x5c] sm:$0xf]
        %v4679 = vld [vmem:[%s4654 + $0x60] sm:$0xf]
        %v4680 = vld [vmem:[%s4654 + $0x64] sm:$0xf]
        %v4681 = vld [vmem:[%s4654 + $0x68] sm:$0xf]
        %v4682 = vld [vmem:[%s4654 + $0x6c] sm:$0xf]
        %v4683 = vld [vmem:[%s4654 + $0x70] sm:$0xf]
        %v4684 = vld [vmem:[%s4654 + $0x74] sm:$0xf]
        %v4685 = vld [vmem:[%s4654 + $0x78] sm:$0xf]
        %v4686 = vld [vmem:[%s4654 + $0x7c] sm:$0xf]
        %v4687 = vld [vmem:[%s4654 + $0x80] sm:$0xf]
        %v4688 = vld [vmem:[%s4654 + $0x84] sm:$0xf]
        %v4689 = vld [vmem:[%s4654 + $0x88] sm:$0xf]
        %v4690 = vld [vmem:[%s4654 + $0x8c] sm:$0xf]
        %s4691 = scalar_lea.vmem %s2, 2
        %v4692 = vld [vmem:[%s4691] sm:$0x1]
        %v4694 = vlaneseq
        %v4695 = vshrl.u32 %v4694, 7
        %v4696 = vsub.s32 0, %v4695
        %v4697 = vrot.slane %v4692, %v4696
        %v4735 = vunpack.c.l.b16 %v4655
        %v4736 = vunpack.c.l.b16 %v4656
        %v4737 = vunpack.c.l.b16 %v4657
        %v4738 = vunpack.c.l.b16 %v4658
        %v4739 = vunpack.c.l.b16 %v4659
        %v4740 = vunpack.c.l.b16 %v4660
        %v4741 = vunpack.c.l.b16 %v4661
        %v4742 = vunpack.c.l.b16 %v4662
        %v4743 = vunpack.c.l.b16 %v4663
        %v4744 = vunpack.c.l.b16 %v4664
        %v4745 = vunpack.c.l.b16 %v4665
        %v4746 = vunpack.c.l.b16 %v4666
        %v4747 = vunpack.c.l.b16 %v4667
        %v4748 = vunpack.c.l.b16 %v4668
        %v4749 = vunpack.c.l.b16 %v4669
        %v4750 = vunpack.c.l.b16 %v4670
        %v4751 = vunpack.c.l.b16 %v4671
        %v4752 = vunpack.c.l.b16 %v4672
        %v4753 = vunpack.c.l.b16 %v4673
        %v4754 = vunpack.c.l.b16 %v4674
        %v4755 = vunpack.c.l.b16 %v4675
        %v4756 = vunpack.c.l.b16 %v4676
        %v4757 = vunpack.c.l.b16 %v4677
        %v4758 = vunpack.c.l.b16 %v4678
        %v4759 = vunpack.c.l.b16 %v4679
        %v4760 = vunpack.c.l.b16 %v4680
        %v4761 = vunpack.c.l.b16 %v4681
        %v4762 = vunpack.c.l.b16 %v4682
        %v4763 = vunpack.c.l.b16 %v4683
        %v4764 = vunpack.c.l.b16 %v4684
        %v4765 = vunpack.c.l.b16 %v4685
        %v4766 = vunpack.c.l.b16 %v4686
        %v4767 = vunpack.c.l.b16 %v4687
        %v4768 = vunpack.c.l.b16 %v4688
        %v4769 = vunpack.c.l.b16 %v4689
        %v4770 = vunpack.c.l.b16 %v4690
        %v4771 = vpack.c.b16 %v4736, %v4735
        %v4772 = vpack.c.b16 %v4738, %v4737
        %v4773 = vpack.c.b16 %v4740, %v4739
        %v4774 = vpack.c.b16 %v4742, %v4741
        %v4775 = vpack.c.b16 %v4744, %v4743
        %v4776 = vpack.c.b16 %v4746, %v4745
        %v4777 = vpack.c.b16 %v4748, %v4747
        %v4778 = vpack.c.b16 %v4750, %v4749
        %v4779 = vpack.c.b16 %v4752, %v4751
        %v4780 = vpack.c.b16 %v4754, %v4753
        %v4781 = vpack.c.b16 %v4756, %v4755
        %v4782 = vpack.c.b16 %v4758, %v4757
        %v4783 = vpack.c.b16 %v4760, %v4759
        %v4784 = vpack.c.b16 %v4762, %v4761
        %v4785 = vpack.c.b16 %v4764, %v4763
        %v4786 = vpack.c.b16 %v4766, %v4765
        %v4787 = vpack.c.b16 %v4768, %v4767
        %v4788 = vpack.c.b16 %v4770, %v4769
        %v4808 = vsel %vm381, %v4653, 0
        %4810 = vmatprep.subr.bf16.mxu0 0
        %4811 = vmatpush1.bf16.msra.mxu0 %v4771
        %4812 = vmatprep.subr.bf16.mxu0 0
        %4813 = vmatpush1.bf16.msra.mxu0 %v4772
        %4814 = vmatprep.subr.bf16.mxu0 0
        %4815 = vmatpush1.bf16.msra.mxu0 %v4773
        %4816 = vmatprep.subr.bf16.mxu0 0
        %4817 = vmatpush1.bf16.msra.mxu0 %v4774
        %4818 = vmatprep.subr.bf16.mxu0 0
        %4819 = vmatpush1.bf16.msra.mxu0 %v4775
        %4820 = vmatprep.subr.bf16.mxu0 0
        %4821 = vmatpush1.bf16.msra.mxu0 %v4776
        %4822 = vmatprep.subr.bf16.mxu0 0
        %4823 = vmatpush1.bf16.msra.mxu0 %v4777
        %4824 = vmatprep.subr.bf16.mxu0 0
        %4825 = vmatpush1.bf16.msra.mxu0 %v4778
        %4826 = vmatprep.subr.bf16.mxu0 0
        %4827 = vmatpush1.bf16.msra.mxu0 %v4779
        %4828 = vmatprep.subr.bf16.mxu0 0
        %4829 = vmatpush1.bf16.msra.mxu0 %v4780
        %4830 = vmatprep.subr.bf16.mxu0 0
        %4831 = vmatpush1.bf16.msra.mxu0 %v4781
        %4832 = vmatprep.subr.bf16.mxu0 0
        %4833 = vmatpush1.bf16.msra.mxu0 %v4782
        %4834 = vmatprep.subr.bf16.mxu0 0
        %4835 = vmatpush1.bf16.msra.mxu0 %v4783
        %4836 = vmatprep.subr.bf16.mxu0 0
        %4837 = vmatpush1.bf16.msra.mxu0 %v4784
        %4838 = vmatprep.subr.bf16.mxu0 0
        %4839 = vmatpush1.bf16.msra.mxu0 %v4785
        %4840 = vmatprep.subr.bf16.mxu0 0
        %4841 = vmatpush1.bf16.msra.mxu0 %v4786
        %4842 = vmatprep.mubr.bf16.mxu0 %v4652
        %4843 = vmatmul.mubr.bf16.gmra.mrb[0].mxu0 %v4651
        %v4844 = vpop.f32.mrb[0].mxu0
        %v4845 = vadd.f32 %v4697, %v4844
        %v4846 = vpop.f32.mrb[0].mxu0
        %v4847 = vpop.f32.mrb[0].mxu0
        %v4848 = vadd.f32 %v4697, %v4847
        %v4849 = vpop.f32.mrb[0].mxu0
        %4850 = vdwg.mxu0
        %4851 = vmatprep.subr.bf16.mxu0 0
        %4852 = vmatpush1.bf16.msra.mxu0 %v4787
        %4853 = vmatprep.subr.bf16.mxu0 0
        %4854 = vmatpush1.bf16.msra.mxu0 %v4788
        %4855 = vmatprep.subr.bf16.mxu0 0
        %4856 = vmatpush1.bf16.msra.mxu0 0
        %4857 = vmatprep.subr.bf16.mxu0 0
        %4858 = vmatpush1.bf16.msra.mxu0 0
        %4859 = vmatprep.subr.bf16.mxu0 0
        %4860 = vmatpush1.bf16.msra.mxu0 0
        %4861 = vmatprep.subr.bf16.mxu0 0
        %4862 = vmatpush1.bf16.msra.mxu0 0
        %4863 = vmatprep.subr.bf16.mxu0 0
        %4864 = vmatpush1.bf16.msra.mxu0 0
        %4865 = vmatprep.subr.bf16.mxu0 0
        %4866 = vmatpush1.bf16.msra.mxu0 0
        %4867 = vmatprep.subr.bf16.mxu0 0
        %4868 = vmatpush1.bf16.msra.mxu0 0
        %4869 = vmatprep.subr.bf16.mxu0 0
        %4870 = vmatpush1.bf16.msra.mxu0 0
        %4871 = vmatprep.subr.bf16.mxu0 0
        %4872 = vmatpush1.bf16.msra.mxu0 0
        %4873 = vmatprep.subr.bf16.mxu0 0
        %4874 = vmatpush1.bf16.msra.mxu0 0
        %4875 = vmatprep.subr.bf16.mxu0 0
        %4876 = vmatpush1.bf16.msra.mxu0 0
        %4877 = vmatprep.subr.bf16.mxu0 0
        %4878 = vmatpush1.bf16.msra.mxu0 0
        %4879 = vmatprep.subr.bf16.mxu0 0
        %4880 = vmatpush1.bf16.msra.mxu0 0
        %4881 = vmatprep.subr.bf16.mxu0 0
        %4882 = vmatpush1.bf16.msra.mxu0 0
        %4883 = vmatprep.mubr.bf16.mxu0 0
        %4884 = vmatmul.mubr.bf16.gmra.mrb[0].mxu0 %v4808
        %v4885 = vpop.f32.mrb[0].mxu0
        %v4886 = vadd.f32 %v4845, %v4885
        %v4887 = vpop.f32.mrb[0].mxu0
        %v4888 = vpop.f32.mrb[0].mxu0
        %v4889 = vadd.f32 %v4848, %v4888
        %v4890 = vpop.f32.mrb[0].mxu0
        %4891 = vdwg.mxu0
        %v4892 = vmax.f32 %v4886, 0.0
        %v4893 = vmax.f32 %v4889, 0.0
        %4894 = vst.msk [vmem:[#allocation6] sm:$0xff] %vm381, %v4892
        %4895 = vst.msk [vmem:[#allocation6 + $0x8] sm:$0xff] %vm381, %v4893
        %v4896 = vld [vmem:[#allocation6] ss:$2 sm:$0x3]
        %v4897 = vpack.c.bf16 %v4896, %v4896
        %v4898 = vld [vmem:[%s2683] ss:$2 sm:$0x3]
        %v4899 = vpack.c.bf16 %v4898, %v4898
        %v4902 = vunpack.c.l.s4 1983009808
        %v4903 = vunpack.c.0.s8 %v4902
        %v4904 = vlaneseq
        %v4905 = vshrl.u32 %v4904, 7
        %v4906 = vsub.s32 %v4903, %v4905
        %v4907 = vrot.slane %v4897, %v4906
        %4908 = vrot.lane.b32.xlu0 %v4907, 32
        %v4909 = vpop.permute.xlu0 %4908
        %s4911 = scalar_lea.vmem [#allocation4], 2
        %vm4912 = vcmask 516352
        %4913 = vst.msk [vmem:[%s4911] sm:$0x1] %vm4912, %v4909
        %v4916 = vunpack.c.l.s4 1983009808
        %v4917 = vunpack.c.0.s8 %v4916
        %v4918 = vlaneseq
        %v4919 = vshrl.u32 %v4918, 7
        %v4920 = vsub.s32 %v4917, %v4919
        %v4921 = vrot.slane %v4899, %v4920
        %v4923 = vshrl.u32 %v4921, 16
        %v4925 = vrot.slane %v4923, 7
        %v4926 = vshll.u32 %v4921, 16
        %v4928 = vor.u32 %v4925, %v4926
        %vm4930 = vcmask 254976
        %vm4931 = vsmask.f32 1282
        %vm4932 = vmand %vm4930, %vm4931
        %v4933 = vld [vmem:[%s4911] sm:$0x3]
        %v4934 = vsel %vm4932, %v4928, %v4933
        %4935 = vst [vmem:[%s4911] sm:$0x3] %v4934
        %s4936 = scalar_lea.vmem [#allocation6], 4
        %v4937 = vld [vmem:[%s4936] ss:$2 sm:$0x3]
        %v4938 = vpack.c.bf16 %v4937, %v4937
        %s4939 = scalar_lea.vmem [#allocation6], 5
        %v4940 = vld [vmem:[%s4939] ss:$2 sm:$0x3]
        %v4941 = vpack.c.bf16 %v4940, %v4940
        %v4944 = vunpack.c.l.s4 1983009808
        %v4945 = vunpack.c.0.s8 %v4944
        %v4946 = vlaneseq
        %v4947 = vshrl.u32 %v4946, 7
        %v4948 = vsub.s32 %v4945, %v4947
        %v4949 = vrot.slane %v4938, %v4948
        %4950 = vrot.lane.b32.xlu0 %v4949, 32
        %v4951 = vpop.permute.xlu0 %4950
        %s4953 = scalar_lea.vmem [#allocation4], 4
        %4954 = vst.msk [vmem:[%s4953] sm:$0x1] %vm4912, %v4951
        %v4957 = vunpack.c.l.s4 1983009808
        %v4958 = vunpack.c.0.s8 %v4957
        %v4959 = vlaneseq
        %v4960 = vshrl.u32 %v4959, 7
        %v4961 = vsub.s32 %v4958, %v4960
        %v4962 = vrot.slane %v4941, %v4961
        %v4964 = vshrl.u32 %v4962, 16
        %v4966 = vrot.slane %v4964, 7
        %v4967 = vshll.u32 %v4962, 16
        %v4969 = vor.u32 %v4966, %v4967
        %v4971 = vld [vmem:[%s4953] sm:$0x3]
        %v4972 = vsel %vm4932, %v4969, %v4971
        %4973 = vst [vmem:[%s4953] sm:$0x3] %v4972
        %v4974 = vld [vmem:[%s4159] ss:$2 sm:$0x3]
        %v4975 = vpack.c.bf16 %v4974, %v4974
        %v4976 = vld [vmem:[%s4162] ss:$2 sm:$0x3]
        %v4977 = vpack.c.bf16 %v4976, %v4976
        %v4980 = vunpack.c.l.s4 1983009808
        %v4981 = vunpack.c.0.s8 %v4980
        %v4982 = vlaneseq
        %v4983 = vshrl.u32 %v4982, 7
        %v4984 = vsub.s32 %v4981, %v4983
        %v4985 = vrot.slane %v4975, %v4984
        %4986 = vrot.lane.b32.xlu0 %v4985, 32
        %v4987 = vpop.permute.xlu0 %4986
        %s4989 = scalar_lea.vmem [#allocation4], 6
        %4990 = vst.msk [vmem:[%s4989] sm:$0x1] %vm4912, %v4987
        %v4993 = vunpack.c.l.s4 1983009808
        %v4994 = vunpack.c.0.s8 %v4993
        %v4995 = vlaneseq
        %v4996 = vshrl.u32 %v4995, 7
        %v4997 = vsub.s32 %v4994, %v4996
        %v4998 = vrot.slane %v4977, %v4997
        %v5000 = vshrl.u32 %v4998, 16
        %v5002 = vrot.slane %v5000, 7
        %v5003 = vshll.u32 %v4998, 16
        %v5005 = vor.u32 %v5002, %v5003
        %v5007 = vld [vmem:[%s4989] sm:$0x3]
        %v5008 = vsel %vm4932, %v5005, %v5007
        %5009 = vst [vmem:[%s4989] sm:$0x3] %v5008
        %s5010 = scalar_lea.vmem [#allocation6], 12
        %v5011 = vld [vmem:[%s5010] ss:$2 sm:$0x3]
        %v5012 = vpack.c.bf16 %v5011, %v5011
        %s5013 = scalar_lea.vmem [#allocation6], 13
        %v5014 = vld [vmem:[%s5013] ss:$2 sm:$0x3]
        %v5015 = vpack.c.bf16 %v5014, %v5014
        %v5018 = vunpack.c.l.s4 1983009808
        %v5019 = vunpack.c.0.s8 %v5018
        %v5020 = vlaneseq
        %v5021 = vshrl.u32 %v5020, 7
        %v5022 = vsub.s32 %v5019, %v5021
        %v5023 = vrot.slane %v5012, %v5022
        %5024 = vrot.lane.b32.xlu0 %v5023, 32
        %v5025 = vpop.permute.xlu0 %5024
        %s5027 = scalar_lea.vmem [#allocation4], 8
        %5028 = vst.msk [vmem:[%s5027] sm:$0x1] %vm4912, %v5025
        %v5031 = vunpack.c.l.s4 1983009808
        %v5032 = vunpack.c.0.s8 %v5031
        %v5033 = vlaneseq
        %v5034 = vshrl.u32 %v5033, 7
        %v5035 = vsub.s32 %v5032, %v5034
        %v5036 = vrot.slane %v5015, %v5035
        %v5038 = vshrl.u32 %v5036, 16
        %v5040 = vrot.slane %v5038, 7
        %v5041 = vshll.u32 %v5036, 16
        %v5043 = vor.u32 %v5040, %v5041
        %v5045 = vld [vmem:[%s5027] sm:$0x3]
        %v5046 = vsel %vm4932, %v5043, %v5045
        %5047 = vst [vmem:[%s5027] sm:$0x3] %v5046
        %v5048 = vld [vmem:[#allocation4] sm:$0x1]
        %v5049 = vld [vmem:[#allocation4] sm:$0x3]
        %v5050 = vld [vmem:[%s4911] sm:$0x1]
        %v5051 = vld [vmem:[%s4911] sm:$0x3]
        %v5052 = vld [vmem:[%s4953] sm:$0x1]
        %v5053 = vld [vmem:[%s4953] sm:$0x3]
        %v5056 = vunpack.c.l.s4 1983009808
        %v5057 = vunpack.c.0.s8 %v5056
        %v5058 = vlaneseq
        %v5059 = vshrl.u32 %v5058, 7
        %v5060 = vsub.s32 %v5057, %v5059
        %v5061 = vrot.slane %v5049, %v5060
        %v5063 = vshrl.u32 %v5061, 16
        %v5065 = vshll.u32 %v5061, 16
        %v5067 = vrot.slane %v5065, 1
        %v5068 = vor.u32 %v5063, %v5067
        %5069 = vrot.lane.b32.xlu0 %v5068, 64
        %v5070 = vpop.permute.xlu0 %5069
        %v5073 = vunpack.c.l.s4 1983009808
        %v5074 = vunpack.c.0.s8 %v5073
        %v5075 = vlaneseq
        %v5076 = vshrl.u32 %v5075, 7
        %v5077 = vsub.s32 %v5074, %v5076
        %v5078 = vrot.slane %v5050, %v5077
        %5079 = vrot.lane.b32.xlu0 %v5078, 96
        %v5080 = vpop.permute.xlu0 %5079
        %v5083 = vunpack.c.l.s4 1983009808
        %v5084 = vunpack.c.0.s8 %v5083
        %v5085 = vlaneseq
        %v5086 = vshrl.u32 %v5085, 7
        %v5087 = vsub.s32 %v5084, %v5086
        %v5088 = vrot.slane %v5051, %v5087
        %v5090 = vshrl.u32 %v5088, 16
        %v5092 = vshll.u32 %v5088, 16
        %v5094 = vrot.slane %v5092, 1
        %v5095 = vor.u32 %v5090, %v5094
        %5096 = vrot.lane.b32.xlu0 %v5095, 32
        %v5097 = vpop.permute.xlu0 %5096
        %v5100 = vunpack.c.l.s4 1983009808
        %v5101 = vunpack.c.0.s8 %v5100
        %v5102 = vlaneseq
        %v5103 = vshrl.u32 %v5102, 7
        %v5104 = vsub.s32 %v5101, %v5103
        %v5105 = vrot.slane %v5052, %v5104
        %5106 = vrot.lane.b32.xlu0 %v5105, 64
        %v5107 = vpop.permute.xlu0 %5106
        %v5110 = vunpack.c.l.s4 1983009808
        %v5111 = vunpack.c.0.s8 %v5110
        %v5112 = vlaneseq
        %v5113 = vshrl.u32 %v5112, 7
        %v5114 = vsub.s32 %v5111, %v5113
        %v5115 = vrot.slane %v5053, %v5114
        %v5117 = vshrl.u32 %v5115, 16
        %v5119 = vshll.u32 %v5115, 16
        %v5121 = vrot.slane %v5119, 1
        %v5122 = vor.u32 %v5117, %v5121
        %v5126 = vsel %vm382, %v5048, %v5070
        %v5128 = vsel %vm385, %v5126, %v5080
        %v5131 = vsel %vm381, %v5080, %v5097
        %v5133 = vsel %vm382, %v5131, %v5107
        %v5134 = vsel %vm385, %v5133, %v5107
        %v5136 = vunpack.c.l.bf16 %v5128
        %v5137 = vunpack.c.l.bf16 %v5134
        %v5138 = vunpack.c.l.bf16 %v5122
        %5139 = vst [vmem:[#allocation5] sm:$0x3] %v5136
        %5140 = vst [vmem:[#allocation5 + $0x8] sm:$0x3] %v5137
        %vm5141 = vcmask 254976
        %5142 = vst.msk [vmem:[#allocation5 + $0x10] sm:$0x3] %vm5141, %v5138
        %v5143 = vld [vmem:[%s4953] sm:$0x1]
        %v5144 = vld [vmem:[%s4953] sm:$0x3]
        %v5145 = vld [vmem:[%s4989] sm:$0x1]
        %v5146 = vld [vmem:[%s4989] sm:$0x3]
        %v5147 = vld [vmem:[%s5027] sm:$0x1]
        %v5148 = vld [vmem:[%s5027] sm:$0x3]
        %v5151 = vunpack.c.l.s4 1983009808
        %v5152 = vunpack.c.0.s8 %v5151
        %v5153 = vlaneseq
        %v5154 = vshrl.u32 %v5153, 7
        %v5155 = vsub.s32 %v5152, %v5154
        %v5156 = vrot.slane %v5144, %v5155
        %v5158 = vshrl.u32 %v5156, 16
        %v5160 = vshll.u32 %v5156, 16
        %v5162 = vrot.slane %v5160, 1
        %v5163 = vor.u32 %v5158, %v5162
        %5164 = vrot.lane.b32.xlu0 %v5163, 64
        %v5165 = vpop.permute.xlu0 %5164
        %v5168 = vunpack.c.l.s4 1983009808
        %v5169 = vunpack.c.0.s8 %v5168
        %v5170 = vlaneseq
        %v5171 = vshrl.u32 %v5170, 7
        %v5172 = vsub.s32 %v5169, %v5171
        %v5173 = vrot.slane %v5145, %v5172
        %5174 = vrot.lane.b32.xlu0 %v5173, 96
        %v5175 = vpop.permute.xlu0 %5174
        %v5178 = vunpack.c.l.s4 1983009808
        %v5179 = vunpack.c.0.s8 %v5178
        %v5180 = vlaneseq
        %v5181 = vshrl.u32 %v5180, 7
        %v5182 = vsub.s32 %v5179, %v5181
        %v5183 = vrot.slane %v5146, %v5182
        %v5185 = vshrl.u32 %v5183, 16
        %v5187 = vshll.u32 %v5183, 16
        %v5189 = vrot.slane %v5187, 1
        %v5190 = vor.u32 %v5185, %v5189
        %5191 = vrot.lane.b32.xlu0 %v5190, 32
        %v5192 = vpop.permute.xlu0 %5191
        %v5195 = vunpack.c.l.s4 1983009808
        %v5196 = vunpack.c.0.s8 %v5195
        %v5197 = vlaneseq
        %v5198 = vshrl.u32 %v5197, 7
        %v5199 = vsub.s32 %v5196, %v5198
        %v5200 = vrot.slane %v5147, %v5199
        %5201 = vrot.lane.b32.xlu0 %v5200, 64
        %v5202 = vpop.permute.xlu0 %5201
        %v5205 = vunpack.c.l.s4 1983009808
        %v5206 = vunpack.c.0.s8 %v5205
        %v5207 = vlaneseq
        %v5208 = vshrl.u32 %v5207, 7
        %v5209 = vsub.s32 %v5206, %v5208
        %v5210 = vrot.slane %v5148, %v5209
        %v5212 = vshrl.u32 %v5210, 16
        %v5214 = vshll.u32 %v5210, 16
        %v5216 = vrot.slane %v5214, 1
        %v5217 = vor.u32 %v5212, %v5216
        %v5221 = vsel %vm382, %v5143, %v5165
        %v5223 = vsel %vm385, %v5221, %v5175
        %v5226 = vsel %vm381, %v5175, %v5192
        %v5228 = vsel %vm382, %v5226, %v5202
        %v5229 = vsel %vm385, %v5228, %v5202
        %v5231 = vunpack.c.l.bf16 %v5223
        %v5232 = vunpack.c.l.bf16 %v5229
        %v5233 = vunpack.c.l.bf16 %v5217
        %v5237 = vrot.slane %v5231, 6
        %v5238 = vrot.slane %v5232, 6
        %v5239 = vrot.slane %v5233, 6
        %5243 = vst [vmem:[#allocation5] sm:$0xc] %v5237
        %5244 = vst [vmem:[#allocation5 + $0x8] sm:$0xc] %v5238
        %vm5245 = vcmask 257026
        %5246 = vst.msk [vmem:[#allocation5 + $0x10] sm:$0xc] %vm5245, %v5239
        %v5247 = vld [vmem:[#allocation5] sm:$0xf]
        %v5248 = vld [vmem:[#allocation5 + $0x8] sm:$0xf]
        %v5249 = vld [vmem:[#allocation5 + $0x10] sm:$0xf]
        %v5250 = vpack.c.bf16 %v5247, %v5247
        %v5251 = vpack.c.bf16 %v5248, %v5248
        %v5252 = vpack.c.bf16 %v5249, %v5249
        %s5253 = scalar_lea.vmem %s1, 432
        %v5254 = vld [vmem:[%s5253] sm:$0xf]
        %v5255 = vld [vmem:[%s5253 + $0x4] sm:$0xf]
        %v5256 = vld [vmem:[%s5253 + $0x8] sm:$0xf]
        %v5257 = vld [vmem:[%s5253 + $0xc] sm:$0xf]
        %v5258 = vld [vmem:[%s5253 + $0x10] sm:$0xf]
        %v5259 = vld [vmem:[%s5253 + $0x14] sm:$0xf]
        %v5260 = vld [vmem:[%s5253 + $0x18] sm:$0xf]
        %v5261 = vld [vmem:[%s5253 + $0x1c] sm:$0xf]
        %v5262 = vld [vmem:[%s5253 + $0x20] sm:$0xf]
        %v5263 = vld [vmem:[%s5253 + $0x24] sm:$0xf]
        %v5264 = vld [vmem:[%s5253 + $0x28] sm:$0xf]
        %v5265 = vld [vmem:[%s5253 + $0x2c] sm:$0xf]
        %v5266 = vld [vmem:[%s5253 + $0x30] sm:$0xf]
        %v5267 = vld [vmem:[%s5253 + $0x34] sm:$0xf]
        %v5268 = vld [vmem:[%s5253 + $0x38] sm:$0xf]
        %v5269 = vld [vmem:[%s5253 + $0x3c] sm:$0xf]
        %v5270 = vld [vmem:[%s5253 + $0x40] sm:$0xf]
        %v5271 = vld [vmem:[%s5253 + $0x44] sm:$0xf]
        %v5272 = vld [vmem:[%s5253 + $0x48] sm:$0xf]
        %v5273 = vld [vmem:[%s5253 + $0x4c] sm:$0xf]
        %v5274 = vld [vmem:[%s5253 + $0x50] sm:$0xf]
        %v5275 = vld [vmem:[%s5253 + $0x54] sm:$0xf]
        %v5276 = vld [vmem:[%s5253 + $0x58] sm:$0xf]
        %v5277 = vld [vmem:[%s5253 + $0x5c] sm:$0xf]
        %v5278 = vld [vmem:[%s5253 + $0x60] sm:$0xf]
        %v5279 = vld [vmem:[%s5253 + $0x64] sm:$0xf]
        %v5280 = vld [vmem:[%s5253 + $0x68] sm:$0xf]
        %v5281 = vld [vmem:[%s5253 + $0x6c] sm:$0xf]
        %v5282 = vld [vmem:[%s5253 + $0x70] sm:$0xf]
        %v5283 = vld [vmem:[%s5253 + $0x74] sm:$0xf]
        %v5284 = vld [vmem:[%s5253 + $0x78] sm:$0xf]
        %v5285 = vld [vmem:[%s5253 + $0x7c] sm:$0xf]
        %v5286 = vld [vmem:[%s5253 + $0x80] sm:$0xf]
        %v5287 = vld [vmem:[%s5253 + $0x84] sm:$0xf]
        %v5288 = vld [vmem:[%s5253 + $0x88] sm:$0xf]
        %v5289 = vld [vmem:[%s5253 + $0x8c] sm:$0xf]
        %s5290 = scalar_lea.vmem %s2, 3
        %v5291 = vld [vmem:[%s5290] sm:$0x1]
        %v5293 = vlaneseq
        %v5294 = vshrl.u32 %v5293, 7
        %v5295 = vsub.s32 0, %v5294
        %v5296 = vrot.slane %v5291, %v5295
        %v5334 = vunpack.c.l.b16 %v5254
        %v5335 = vunpack.c.l.b16 %v5255
        %v5336 = vunpack.c.l.b16 %v5256
        %v5337 = vunpack.c.l.b16 %v5257
        %v5338 = vunpack.c.l.b16 %v5258
        %v5339 = vunpack.c.l.b16 %v5259
        %v5340 = vunpack.c.l.b16 %v5260
        %v5341 = vunpack.c.l.b16 %v5261
        %v5342 = vunpack.c.l.b16 %v5262
        %v5343 = vunpack.c.l.b16 %v5263
        %v5344 = vunpack.c.l.b16 %v5264
        %v5345 = vunpack.c.l.b16 %v5265
        %v5346 = vunpack.c.l.b16 %v5266
        %v5347 = vunpack.c.l.b16 %v5267
        %v5348 = vunpack.c.l.b16 %v5268
        %v5349 = vunpack.c.l.b16 %v5269
        %v5350 = vunpack.c.l.b16 %v5270
        %v5351 = vunpack.c.l.b16 %v5271
        %v5352 = vunpack.c.l.b16 %v5272
        %v5353 = vunpack.c.l.b16 %v5273
        %v5354 = vunpack.c.l.b16 %v5274
        %v5355 = vunpack.c.l.b16 %v5275
        %v5356 = vunpack.c.l.b16 %v5276
        %v5357 = vunpack.c.l.b16 %v5277
        %v5358 = vunpack.c.l.b16 %v5278
        %v5359 = vunpack.c.l.b16 %v5279
        %v5360 = vunpack.c.l.b16 %v5280
        %v5361 = vunpack.c.l.b16 %v5281
        %v5362 = vunpack.c.l.b16 %v5282
        %v5363 = vunpack.c.l.b16 %v5283
        %v5364 = vunpack.c.l.b16 %v5284
        %v5365 = vunpack.c.l.b16 %v5285
        %v5366 = vunpack.c.l.b16 %v5286
        %v5367 = vunpack.c.l.b16 %v5287
        %v5368 = vunpack.c.l.b16 %v5288
        %v5369 = vunpack.c.l.b16 %v5289
        %v5370 = vpack.c.b16 %v5335, %v5334
        %v5371 = vpack.c.b16 %v5337, %v5336
        %v5372 = vpack.c.b16 %v5339, %v5338
        %v5373 = vpack.c.b16 %v5341, %v5340
        %v5374 = vpack.c.b16 %v5343, %v5342
        %v5375 = vpack.c.b16 %v5345, %v5344
        %v5376 = vpack.c.b16 %v5347, %v5346
        %v5377 = vpack.c.b16 %v5349, %v5348
        %v5378 = vpack.c.b16 %v5351, %v5350
        %v5379 = vpack.c.b16 %v5353, %v5352
        %v5380 = vpack.c.b16 %v5355, %v5354
        %v5381 = vpack.c.b16 %v5357, %v5356
        %v5382 = vpack.c.b16 %v5359, %v5358
        %v5383 = vpack.c.b16 %v5361, %v5360
        %v5384 = vpack.c.b16 %v5363, %v5362
        %v5385 = vpack.c.b16 %v5365, %v5364
        %v5386 = vpack.c.b16 %v5367, %v5366
        %v5387 = vpack.c.b16 %v5369, %v5368
        %v5407 = vsel %vm381, %v5252, 0
        %5409 = vmatprep.subr.bf16.mxu0 0
        %5410 = vmatpush1.bf16.msra.mxu0 %v5370
        %5411 = vmatprep.subr.bf16.mxu0 0
        %5412 = vmatpush1.bf16.msra.mxu0 %v5371
        %5413 = vmatprep.subr.bf16.mxu0 0
        %5414 = vmatpush1.bf16.msra.mxu0 %v5372
        %5415 = vmatprep.subr.bf16.mxu0 0
        %5416 = vmatpush1.bf16.msra.mxu0 %v5373
        %5417 = vmatprep.subr.bf16.mxu0 0
        %5418 = vmatpush1.bf16.msra.mxu0 %v5374
        %5419 = vmatprep.subr.bf16.mxu0 0
        %5420 = vmatpush1.bf16.msra.mxu0 %v5375
        %5421 = vmatprep.subr.bf16.mxu0 0
        %5422 = vmatpush1.bf16.msra.mxu0 %v5376
        %5423 = vmatprep.subr.bf16.mxu0 0
        %5424 = vmatpush1.bf16.msra.mxu0 %v5377
        %5425 = vmatprep.subr.bf16.mxu0 0
        %5426 = vmatpush1.bf16.msra.mxu0 %v5378
        %5427 = vmatprep.subr.bf16.mxu0 0
        %5428 = vmatpush1.bf16.msra.mxu0 %v5379
        %5429 = vmatprep.subr.bf16.mxu0 0
        %5430 = vmatpush1.bf16.msra.mxu0 %v5380
        %5431 = vmatprep.subr.bf16.mxu0 0
        %5432 = vmatpush1.bf16.msra.mxu0 %v5381
        %5433 = vmatprep.subr.bf16.mxu0 0
        %5434 = vmatpush1.bf16.msra.mxu0 %v5382
        %5435 = vmatprep.subr.bf16.mxu0 0
        %5436 = vmatpush1.bf16.msra.mxu0 %v5383
        %5437 = vmatprep.subr.bf16.mxu0 0
        %5438 = vmatpush1.bf16.msra.mxu0 %v5384
        %5439 = vmatprep.subr.bf16.mxu0 0
        %5440 = vmatpush1.bf16.msra.mxu0 %v5385
        %5441 = vmatprep.mubr.bf16.mxu0 %v5251
        %5442 = vmatmul.mubr.bf16.gmra.mrb[0].mxu0 %v5250
        %v5443 = vpop.f32.mrb[0].mxu0
        %v5444 = vadd.f32 %v5296, %v5443
        %v5445 = vpop.f32.mrb[0].mxu0
        %v5446 = vpop.f32.mrb[0].mxu0
        %v5447 = vpop.f32.mrb[0].mxu0
        %5448 = vdwg.mxu0
        %5449 = vmatprep.subr.bf16.mxu0 0
        %5450 = vmatpush1.bf16.msra.mxu0 %v5386
        %5451 = vmatprep.subr.bf16.mxu0 0
        %5452 = vmatpush1.bf16.msra.mxu0 %v5387
        %5453 = vmatprep.subr.bf16.mxu0 0
        %5454 = vmatpush1.bf16.msra.mxu0 0
        %5455 = vmatprep.subr.bf16.mxu0 0
        %5456 = vmatpush1.bf16.msra.mxu0 0
        %5457 = vmatprep.subr.bf16.mxu0 0
        %5458 = vmatpush1.bf16.msra.mxu0 0
        %5459 = vmatprep.subr.bf16.mxu0 0
        %5460 = vmatpush1.bf16.msra.mxu0 0
        %5461 = vmatprep.subr.bf16.mxu0 0
        %5462 = vmatpush1.bf16.msra.mxu0 0
        %5463 = vmatprep.subr.bf16.mxu0 0
        %5464 = vmatpush1.bf16.msra.mxu0 0
        %5465 = vmatprep.subr.bf16.mxu0 0
        %5466 = vmatpush1.bf16.msra.mxu0 0
        %5467 = vmatprep.subr.bf16.mxu0 0
        %5468 = vmatpush1.bf16.msra.mxu0 0
        %5469 = vmatprep.subr.bf16.mxu0 0
        %5470 = vmatpush1.bf16.msra.mxu0 0
        %5471 = vmatprep.subr.bf16.mxu0 0
        %5472 = vmatpush1.bf16.msra.mxu0 0
        %5473 = vmatprep.subr.bf16.mxu0 0
        %5474 = vmatpush1.bf16.msra.mxu0 0
        %5475 = vmatprep.subr.bf16.mxu0 0
        %5476 = vmatpush1.bf16.msra.mxu0 0
        %5477 = vmatprep.subr.bf16.mxu0 0
        %5478 = vmatpush1.bf16.msra.mxu0 0
        %5479 = vmatprep.subr.bf16.mxu0 0
        %5480 = vmatpush1.bf16.msra.mxu0 0
        %5481 = vmatprep.mubr.bf16.mxu0 0
        %5482 = vmatmul.mubr.bf16.gmra.mrb[0].mxu0 %v5407
        %v5483 = vpop.f32.mrb[0].mxu0
        %v5484 = vadd.f32 %v5444, %v5483
        %v5485 = vpop.f32.mrb[0].mxu0
        %v5486 = vpop.f32.mrb[0].mxu0
        %v5487 = vpop.f32.mrb[0].mxu0
        %5488 = vdwg.mxu0
        %v5489 = vmax.f32 %v5484, 0.0
        %5490 = vst.msk [vmem:[%s163] sm:$0xf] %vm4417, %v5489
        %s5491 = sand.u32 %s93, 1
        %s5492 = scalar_lea.sflag [#allocation8], %s5491
        %s5493 = sand.u32 %s93, 1
        %s5494 = smul.addr %s5493, 4
        %s5495 = scalar_lea.vmem [#allocation7], %s5494
        // Predicated region
        $region33: #{encoder_forward.1} parent=31 // pred_check
          %p5496 = pneg %p103
        $region34: #{encoder_forward.1} parent=31 // pred_check_branch
          %5498 = sbr.rel (%p5496) target = $region36
        $region35: #{encoder_forward.1} parent=31 // pred_region
          %s5500 = ssub.s32 64, 64
          %5501 = vsyncadd %s5492, %s5500
          %s5502 = smul.addr %s17, 64
          %s5503 = scalar_lea.hbm %s3, %s5502
          %s5505 = sshll.u32 %s5495, 4
          %s5506 = int_to_ptr.vmem [resolvable:$true] %s5505
          %5508 = dma.vmem_to_hbm [thread:$0]  %s5506, 64, %s5503, %s5492
        $region36: #{encoder_forward.1} parent=31 // pred_fallthru
          _
      $region32: #{encoder_forward.1} parent=5 // pred_fallthru
        _
      %p5509 = scmp.le.s32.totalorder 2, %s12
      // Predicated region
      $region37: #{encoder_forward.1} parent=5 // pred_check
        %p5510 = pneg %p5509
      $region38: #{encoder_forward.1} parent=5 // pred_check_branch
        %5512 = sbr.rel (%p5510) target = $region40
      $region39: #{encoder_forward.1} parent=5 // pred_region
        %s5513 = ssub.s32 %s12, 2
        // Predicated region
        $region41: #{encoder_forward.1} parent=39 // pred_check
          %p5514 = pneg %p109
        $region42: #{encoder_forward.1} parent=39 // pred_check_branch
          %5516 = sbr.rel (%p5514) target = $region44
        $region43: #{encoder_forward.1} parent=39 // pred_region
          %s5517 = sand.u32 %s94, 1
          %s5518 = scalar_lea.sflag [#allocation8], %s5517
          %s5519 = sand.u32 %s94, 1
          %s5520 = smul.addr %s5519, 4
          %s5521 = scalar_lea.vmem [#allocation7], %s5520
          %5522 = dma.done %s5518, 64
        $region44: #{encoder_forward.1} parent=39 // pred_fallthru
          _
      $region40: #{encoder_forward.1} parent=5 // pred_fallthru
        _
    $region6: #{encoder_forward.1} parent=1 // loop_footer
      %s16 = sadd.s32 1, %s12
    $region7: #{encoder_forward.1} parent=1 // loop_footer_branch
      %11 = sbr.rel target = $region3
    $region8: #{encoder_forward.1} parent=1 // loop_exit
      _
    %5523 = vsyncpa [#allocation8], 1
    %s5524 = scalar_lea.sflag [#allocation8], 1
    %5525 = vsyncpa %s5524, 1

</llo_original>
